<compile_context>
chip_gen: v5e
topology: v5e:2x2
jax: 0.10.0
libtpu: 0.0.40
codegen_flags: <defaults>
</compile_context>

<pallas_src>
import functools
import math

import numpy as np
import jax
import jax.numpy as jnp
from jax.experimental import pallas as pl
from jax.experimental.pallas import tpu as pltpu


# bf16 MXU operands (f32 accumulation; LN / softmax / GELU math stays f32).
MATMUL_BF16 = True
LN_EPS = 1e-5


def _default_vmem_limit():
    # Generation-aware scoped-VMEM limit: ~3/4 of physical, capped at 96 MiB
    # (=> 48 MiB on v7x's 64 MiB VMEM, 96 MiB on v5e/v6e's 128 MiB).
    try:
        cap = pltpu.get_tpu_info().vmem_capacity_bytes
        if cap:
            return int(min(cap * 3 // 4, 96 * 1024 * 1024))
    except Exception:
        pass
    return 48 * 1024 * 1024


VMEM_LIMIT_BYTES = _default_vmem_limit()
ROW_ACT_BUDGET = 6 * 1024 * 1024      # per-block activation budget (row-tiled kernels)
ATTN_ACT_BUDGET = 8 * 1024 * 1024     # per-block activation budget (attention kernel)


def _cdt():
    return jnp.bfloat16 if MATMUL_BF16 else jnp.float32


def _round_up(v, m):
    return (v + m - 1) // m * m


def _cparams(*sem):
    return pltpu.CompilerParams(dimension_semantics=sem,
                                vmem_limit_bytes=VMEM_LIMIT_BYTES)


def _pick_row_block(M, per_row_bytes, act_budget=ROW_ACT_BUDGET, max_rows=2048):
    """VMEM-aware row block; prefers >=2 grid steps for pipelining / megacore."""
    cap = act_budget // max(per_row_bytes, 1)
    cap = max(8, min(max_rows, cap // 8 * 8))
    if M <= cap:
        if M >= 16 and M % 2 == 0 and (M // 2) % 8 == 0:
            return M // 2                     # two grid steps, no padding
        return M                              # full-extent block (always legal)
    return cap


def _pick_img_block(B, nW, N, C, num_heads, act_budget=ATTN_ACT_BUDGET):
    """Images whose windows are processed per attention grid step (VMEM-aware,
    and capped at B//2 so the 'parallel' grid has >=2 steps for v7x / pipelining)."""
    per_row = 28 * C + 8 * num_heads * N      # rough live f32 bytes per token row
    rows_per_img = nW * N
    max_imgs = max(1, int(act_budget // max(per_row * rows_per_img, 1)))
    cap = min(max_imgs, max(1, B // 2))
    for d in range(min(cap, B), 0, -1):
        if B % d == 0 and (d * rows_per_img) % 8 == 0:
            return d
    return B                                  # full-extent fallback (always legal)


# ----------------------------------------------------------------------------
# In-kernel helpers
# ----------------------------------------------------------------------------
def _ln_f32(x, g, b, eps=LN_EPS):
    mu = jnp.mean(x, axis=-1, keepdims=True)
    xc = x - mu
    var = jnp.mean(xc * xc, axis=-1, keepdims=True)
    return xc * jax.lax.rsqrt(var + eps) * g + b


def _erf_approx(x):
    # Abramowitz & Stegun 7.1.26 (max abs err 1.5e-7) using only exp/mul/where.
    # TODO(synk): switch to lax.erf once Mosaic lowering is guaranteed everywhere.
    a1, a2, a3, a4, a5 = (0.254829592, -0.284496736, 1.421413741,
                          -1.453152027, 1.061405429)
    z = jnp.abs(x)
    t = 1.0 / (1.0 + 0.3275911 * z)
    poly = ((((a5 * t + a4) * t + a3) * t + a2) * t + a1) * t
    y = 1.0 - poly * jnp.exp(-z * z)
    return jnp.where(x >= 0, y, -y)


def _gelu_exact(x):
    return 0.5 * x * (1.0 + _erf_approx(x * 0.7071067811865476))


# ----------------------------------------------------------------------------
# Pallas kernels (all row-tiled, full channel extents per block)
# ----------------------------------------------------------------------------
def _layernorm_kernel(x_ref, g_ref, b_ref, o_ref):
    x = x_ref[...].astype(jnp.float32)
    o_ref[...] = _ln_f32(x, g_ref[...], b_ref[...]).astype(o_ref.dtype)


def _linear_kernel(x_ref, w_ref, b_ref, o_ref):
    o_ref[...] = (jnp.dot(x_ref[...], w_ref[...],
                          preferred_element_type=jnp.float32)
                  + b_ref[...]).astype(o_ref.dtype)


def _linear_ln_kernel(x_ref, w_ref, b_ref, g_ref, bt_ref, o_ref):
    # (x @ w + b) followed by LayerNorm over the output channels (patch embed).
    y = jnp.dot(x_ref[...], w_ref[...], preferred_element_type=jnp.float32) + b_ref[...]
    o_ref[...] = _ln_f32(y, g_ref[...], bt_ref[...]).astype(o_ref.dtype)


def _ln_linear_kernel(x_ref, g_ref, bt_ref, w_ref, b_ref, o_ref):
    # LayerNorm(x) @ w + b (patch merging reduction).
    xn = _ln_f32(x_ref[...].astype(jnp.float32), g_ref[...], bt_ref[...])
    xn = xn.astype(w_ref.dtype)
    o_ref[...] = (jnp.dot(xn, w_ref[...], preferred_element_type=jnp.float32)
                  + b_ref[...]).astype(o_ref.dtype)


def _mlp_kernel(x_ref, g_ref, bt_ref, w1_ref, b1_ref, w2_ref, b2_ref, o_ref):
    # x + fc2(GELU(fc1(LN2(x)))) -- the hidden (rows, 4C) slab never leaves VMEM.
    x = x_ref[...].astype(jnp.float32)
    xn = _ln_f32(x, g_ref[...], bt_ref[...]).astype(w1_ref.dtype)
    h = jnp.dot(xn, w1_ref[...], preferred_element_type=jnp.float32) + b1_ref[...]
    h = _gelu_exact(h).astype(w2_ref.dtype)
    y = jnp.dot(h, w2_ref[...], preferred_element_type=jnp.float32) + b2_ref[...]
    o_ref[...] = (x + y).astype(o_ref.dtype)


def _window_attn_kernel(x_ref, g1_ref, bt1_ref, qkvw_ref, qkvb_ref,
                        projw_ref, projb_ref, bias_ref, o_ref, arow_ref, *,
                        num_heads, nW, N, scale, fuse_ln, add_residual):
    rows, C = x_ref.shape
    D = C // num_heads
    W = rows // N
    img_blk = W // nW
    cdt = qkvw_ref.dtype

    x = x_ref[...]
    if fuse_ln:
        xf = x.astype(jnp.float32)
        xn = _ln_f32(xf, g1_ref[...], bt1_ref[...]).astype(cdt)
    else:
        xn = x.astype(cdt)

    # qkv: (rows, 3C), channel layout [3, nH, D] (matches torch's qkv reshape).
    qkv = jnp.dot(xn, qkvw_ref[...], preferred_element_type=jnp.float32) + qkvb_ref[...]
    bias = bias_ref[...].astype(jnp.float32)          # (nW_b, nH, N, N)
    nW_b = bias.shape[0]

    # TODO(synk): per-head lane slices start at D-aligned (not 128-aligned)
    # offsets; a head-batched dot_general would avoid the per-head relayout for
    # larger head counts.
    o_heads = []
    arow = jnp.zeros((W, N), jnp.float32)
    for h in range(num_heads):
        q = qkv[:, h * D:(h + 1) * D].reshape(W, N, D) * scale
        k = qkv[:, C + h * D:C + (h + 1) * D].reshape(W, N, D)
        v = qkv[:, 2 * C + h * D:2 * C + (h + 1) * D].reshape(W, N, D)

        s = jnp.einsum('wnd,wmd->wnm', q, k, preferred_element_type=jnp.float32)
        bh = bias[:, h]                               # (nW_b, N, N)
        if nW_b == 1:
            s = s + bh                                # broadcast over all windows
        else:
            s = (s.reshape(img_blk, nW, N, N) + bh[None]).reshape(W, N, N)

        s = s - jnp.max(s, axis=-1, keepdims=True)
        p = jnp.exp(s)
        # approx reciprocal on the EUP (~2^-12 rel err, below bf16 matmul noise).
        p = p * pl.reciprocal(jnp.sum(p, axis=-1, keepdims=True), approx=True)

        arow = arow + p[:, 0, :]
        o_h = jnp.einsum('wnm,wmd->wnd', p, v, preferred_element_type=jnp.float32)
        o_heads.append(o_h.reshape(rows, D))

    # Single full-K (rows, C) @ (C, C) projection (no per-head K=D matmuls).
    attn_out = o_heads[0] if num_heads == 1 else jnp.concatenate(o_heads, axis=-1)
    out = jnp.dot(attn_out.astype(cdt), projw_ref[...],
                  preferred_element_type=jnp.float32) + projb_ref[...]
    if add_residual:
        out = out + x.astype(jnp.float32)
    o_ref[...] = out.astype(o_ref.dtype)

    # Head-averaged attention row 0 (torch: attn.mean(1)[:, 0, :]), lane-dense.
    arow = arow * (1.0 / num_heads)
    Npad = arow_ref.shape[-1]
    if Npad != N:
        arow = jnp.concatenate([arow, jnp.zeros((W, Npad - N), jnp.float32)], axis=-1)
    arow_ref[...] = arow.reshape(W, 1, Npad).astype(arow_ref.dtype)


# ----------------------------------------------------------------------------
# Kernel wrappers
# ----------------------------------------------------------------------------
def layernorm(x, g, b):
    shape = x.shape
    C = shape[-1]
    x2 = x.reshape(-1, C)
    M = x2.shape[0]
    tr = _pick_row_block(M, 8 * C)
    Mp = _round_up(M, tr)
    xp = x2 if Mp == M else jnp.pad(x2, ((0, Mp - M), (0, 0)))
    out = pl.pallas_call(
        _layernorm_kernel,
        grid=(Mp // tr,),
        in_specs=[pl.BlockSpec((tr, C), lambda i: (i, 0)),
                  pl.BlockSpec((1, C), lambda i: (0, 0)),
                  pl.BlockSpec((1, C), lambda i: (0, 0))],
        out_specs=pl.BlockSpec((tr, C), lambda i: (i, 0)),
        out_shape=jax.ShapeDtypeStruct((Mp, C), jnp.float32),
        compiler_params=_cparams("parallel"),
    )(xp, g, b)
    if Mp != M:
        out = out[:M]
    return out.reshape(shape)


def linear(x, w, b):
    """x: (M, K) already in the weight's compute dtype, w: (K, N), b: (1, N)."""
    M, K = x.shape
    N = w.shape[1]
    tr = _pick_row_block(M, 4 * K + 6 * N)
    Mp = _round_up(M, tr)
    xp = x if Mp == M else jnp.pad(x, ((0, Mp - M), (0, 0)))
    out = pl.pallas_call(
        _linear_kernel,
        grid=(Mp // tr,),
        in_specs=[pl.BlockSpec((tr, K), lambda i: (i, 0)),
                  pl.BlockSpec((K, N), lambda i: (0, 0)),
                  pl.BlockSpec((1, N), lambda i: (0, 0))],
        out_specs=pl.BlockSpec((tr, N), lambda i: (i, 0)),
        out_shape=jax.ShapeDtypeStruct((Mp, N), jnp.float32),
        compiler_params=_cparams("parallel"),
    )(xp, w, b)
    return out[:M] if Mp != M else out


def linear_ln(x, w, b, g, bt):
    """(x @ w + b) then LayerNorm (patch embed).  x pre-cast to the MXU dtype."""
    M, K = x.shape
    N = w.shape[1]
    tr = _pick_row_block(M, 4 * K + 8 * N)
    Mp = _round_up(M, tr)
    xp = x if Mp == M else jnp.pad(x, ((0, Mp - M), (0, 0)))
    out = pl.pallas_call(
        _linear_ln_kernel,
        grid=(Mp // tr,),
        in_specs=[pl.BlockSpec((tr, K), lambda i: (i, 0)),
                  pl.BlockSpec((K, N), lambda i: (0, 0)),
                  pl.BlockSpec((1, N), lambda i: (0, 0)),
                  pl.BlockSpec((1, N), lambda i: (0, 0)),
                  pl.BlockSpec((1, N), lambda i: (0, 0))],
        out_specs=pl.BlockSpec((tr, N), lambda i: (i, 0)),
        out_shape=jax.ShapeDtypeStruct((Mp, N), jnp.float32),
        compiler_params=_cparams("parallel"),
    )(xp, w, b, g, bt)
    return out[:M] if Mp != M else out


def ln_linear(x, g, bt, w, b):
    """LayerNorm(x) @ w + b (patch merging).  x stays f32, cast post-LN in-kernel."""
    M, K = x.shape
    N = w.shape[1]
    tr = _pick_row_block(M, 10 * K + 4 * N)
    Mp = _round_up(M, tr)
    xp = x if Mp == M else jnp.pad(x, ((0, Mp - M), (0, 0)))
    out = pl.pallas_call(
        _ln_linear_kernel,
        grid=(Mp // tr,),
        in_specs=[pl.BlockSpec((tr, K), lambda i: (i, 0)),
                  pl.BlockSpec((1, K), lambda i: (0, 0)),
                  pl.BlockSpec((1, K), lambda i: (0, 0)),
                  pl.BlockSpec((K, N), lambda i: (0, 0)),
                  pl.BlockSpec((1, N), lambda i: (0, 0))],
        out_specs=pl.BlockSpec((tr, N), lambda i: (i, 0)),
        out_shape=jax.ShapeDtypeStruct((Mp, N), jnp.float32),
        compiler_params=_cparams("parallel"),
    )(xp, g, bt, w, b)
    return out[:M] if Mp != M else out


def mlp_residual(x2, p):
    """x + fc2(GELU(fc1(LN2(x)))) fused in one kernel.  x2: (M, C) f32."""
    M, C = x2.shape
    Hd = p['fc1_w'].shape[1]
    # TODO(synk): very large C would need a grid-K tiled fallback (fc weights > VMEM).
    tr = _pick_row_block(M, 12 * C + 6 * Hd)
    Mp = _round_up(M, tr)
    xp = x2 if Mp == M else jnp.pad(x2, ((0, Mp - M), (0, 0)))
    out = pl.pallas_call(
        _mlp_kernel,
        grid=(Mp // tr,),
        in_specs=[pl.BlockSpec((tr, C), lambda i: (i, 0)),
                  pl.BlockSpec((1, C), lambda i: (0, 0)),
                  pl.BlockSpec((1, C), lambda i: (0, 0)),
                  pl.BlockSpec((C, Hd), lambda i: (0, 0)),
                  pl.BlockSpec((1, Hd), lambda i: (0, 0)),
                  pl.BlockSpec((Hd, C), lambda i: (0, 0)),
                  pl.BlockSpec((1, C), lambda i: (0, 0))],
        out_specs=pl.BlockSpec((tr, C), lambda i: (i, 0)),
        out_shape=jax.ShapeDtypeStruct((Mp, C), jnp.float32),
        compiler_params=_cparams("parallel"),
    )(xp, p['norm2_g'], p['norm2_b'], p['fc1_w'], p['fc1_b'],
      p['fc2_w'], p['fc2_b'])
    return out[:M] if Mp != M else out


def window_attention(xw, p, num_heads, bias, nW, *, fuse_ln, add_residual):
    """xw: (B_, N, C), bias: (nW_b, nH, N, N) -> ((B_, N, C) f32, (B_, N) f32)."""
    B_, N, C = xw.shape
    B = B_ // nW
    img_blk = _pick_img_block(B, nW, N, C, num_heads)
    rows_blk = img_blk * nW * N
    w_blk = img_blk * nW
    Npad = _round_up(N, 128)
    x2 = xw.reshape(B_ * N, C)
    scale = (C // num_heads) ** (-0.5)
    nW_b = bias.shape[0]

    kernel = functools.partial(_window_attn_kernel, num_heads=num_heads, nW=nW,
                               N=N, scale=scale, fuse_ln=fuse_ln,
                               add_residual=add_residual)
    out, arow = pl.pallas_call(
        kernel,
        grid=(B // img_blk,),
        in_specs=[
            pl.BlockSpec((rows_blk, C), lambda i: (i, 0)),
            pl.BlockSpec((1, C), lambda i: (0, 0)),              # norm1 gamma
            pl.BlockSpec((1, C), lambda i: (0, 0)),              # norm1 beta
            pl.BlockSpec((C, 3 * C), lambda i: (0, 0)),          # qkv weight (bf16)
            pl.BlockSpec((1, 3 * C), lambda i: (0, 0)),          # qkv bias
            pl.BlockSpec((C, C), lambda i: (0, 0)),              # proj weight (bf16)
            pl.BlockSpec((1, C), lambda i: (0, 0)),              # proj bias
            pl.BlockSpec((nW_b, num_heads, N, N), lambda i: (0, 0, 0, 0)),
        ],
        out_specs=[
            pl.BlockSpec((rows_blk, C), lambda i: (i, 0)),
            pl.BlockSpec((w_blk, 1, Npad), lambda i: (i, 0, 0)),  # lane-dense
        ],
        out_shape=[jax.ShapeDtypeStruct((B_ * N, C), jnp.float32),
                   jax.ShapeDtypeStruct((B_, 1, Npad), jnp.float32)],
        compiler_params=_cparams("parallel"),
    )(x2, p['norm1_g'], p['norm1_b'], p['qkv_w'], p['qkv_b'],
      p['proj_w'], p['proj_b'], bias)
    return out.reshape(B_, N, C), arow.reshape(B_, Npad)[:, :N]


# ----------------------------------------------------------------------------
# Plain-JAX / numpy glue (matches the PyTorch reference exactly)
# ----------------------------------------------------------------------------
def window_partition(x, ws):
    B, H, W, C = x.shape
    x = x.reshape(B, H // ws, ws, W // ws, ws, C)
    x = jnp.transpose(x, (0, 1, 3, 2, 4, 5))
    return x.reshape(-1, ws, ws, C)


def window_reverse(windows, ws, H, W):
    B = windows.shape[0] // ((H // ws) * (W // ws))
    x = windows.reshape(B, H // ws, W // ws, ws, ws, -1)
    x = jnp.transpose(x, (0, 1, 3, 2, 4, 5))
    return x.reshape(B, H, W, -1)


def create_mask(H, W, ws, shift):
    Hp = int(math.ceil(H / ws)) * ws
    Wp = int(math.ceil(W / ws)) * ws
    img_mask = np.zeros((1, Hp, Wp, 1), np.float32)
    slices = (slice(0, -ws), slice(-ws, -shift), slice(-shift, None))
    cnt = 0
    for h in slices:
        for w in slices:
            img_mask[:, h, w, :] = cnt
            cnt += 1
    mw = img_mask.reshape(1, Hp // ws, ws, Wp // ws, ws, 1)
    mw = mw.transpose(0, 1, 3, 2, 4, 5).reshape(-1, ws * ws)
    attn_mask = mw[:, None, :] - mw[:, :, None]
    attn_mask = np.where(attn_mask != 0, -100.0, 0.0).astype(np.float32)
    return attn_mask                                # (nW, N, N)


@functools.lru_cache(maxsize=None)
def _relative_position_index(ws):
    coords = np.stack(np.meshgrid(np.arange(ws), np.arange(ws), indexing='ij'))
    coords_flatten = coords.reshape(2, -1)
    rel = coords_flatten[:, :, None] - coords_flatten[:, None, :]
    rel = rel.transpose(1, 2, 0).astype(np.int64)
    rel[:, :, 0] += ws - 1
    rel[:, :, 1] += ws - 1
    rel[:, :, 0] *= 2 * ws - 1
    return rel.sum(-1).astype(np.int32)             # (N, N)


# ----------------------------------------------------------------------------
# Model pieces
# ----------------------------------------------------------------------------
def swin_block(x, p, H, W, ws, shift_size, attn_mask, num_heads):
    B, L, C = x.shape
    pad_r = (ws - W % ws) % ws
    pad_b = (ws - H % ws) % ws
    fuse = (pad_r == 0 and pad_b == 0)
    if fuse:
        xs = x.reshape(B, H, W, C)
    else:
        # Reference pads AFTER norm1 (padded tokens stay exactly zero), so LN /
        # residual cannot be fused into the attention kernel on this path.
        xs = layernorm(x, p['norm1_g'], p['norm1_b']).reshape(B, H, W, C)
        xs = jnp.pad(xs, ((0, 0), (0, pad_b), (0, pad_r), (0, 0)))
    Hp, Wp = xs.shape[1], xs.shape[2]
    if shift_size > 0:
        xs = jnp.roll(xs, shift=(-shift_size, -shift_size), axis=(1, 2))
    N = ws * ws
    x_windows = window_partition(xs, ws).reshape(-1, N, C)
    nW = (Hp // ws) * (Wp // ws)

    if shift_size > 0:
        bias = jnp.transpose(p['rel_bias'][:, None] + attn_mask[None], (1, 0, 2, 3))
    else:
        bias = p['rel_bias'][None]                  # (1, nH, N, N) -> in-kernel broadcast
    if not fuse:
        x_windows = x_windows.astype(p['qkv_w'].dtype)   # bf16 at source (no in-kernel LN)

    attn_windows, attention = window_attention(
        x_windows, p, num_heads, bias, nW, fuse_ln=fuse, add_residual=fuse)

    attn_windows = attn_windows.reshape(-1, ws, ws, C)
    xr = window_reverse(attn_windows, ws, Hp, Wp)
    if shift_size > 0:
        xr = jnp.roll(xr, shift=(shift_size, shift_size), axis=(1, 2))
    if fuse:
        x = xr.reshape(B, H * W, C)                 # shortcut added inside the kernel
    else:
        xr = xr[:, :H, :W, :]
        x = x + xr.reshape(B, H * W, C)             # drop_path = identity (eval)

    x = mlp_residual(x.reshape(B * H * W, C), p).reshape(B, H * W, C)
    return x, attention


def patch_merging(x, p, H, W):
    # TODO(synk): strided-slice/concat left as XLA glue; LN + reduction matmul
    # run fused in one Pallas kernel.
    B, L, C = x.shape
    x = x.reshape(B, H, W, C)
    if H % 2 == 1 or W % 2 == 1:
        x = jnp.pad(x, ((0, 0), (0, H % 2), (0, W % 2), (0, 0)))
    x0 = x[:, 0::2, 0::2, :]
    x1 = x[:, 1::2, 0::2, :]
    x2 = x[:, 0::2, 1::2, :]
    x3 = x[:, 1::2, 1::2, :]
    xc = jnp.concatenate([x0, x1, x2, x3], axis=-1)
    Ho, Wo = xc.shape[1], xc.shape[2]
    xc = xc.reshape(B * Ho * Wo, 4 * C)
    out = ln_linear(xc, p['norm_g'], p['norm_b'], p['red_w'], p['red_b'])
    return out.reshape(B, Ho * Wo, 2 * C)


def swin_forward(params, x, cfg):
    # x: (B, Cin, H, W)  (NCHW, like torch)
    ps = cfg['patch_size']
    B, Cin, H, W = x.shape
    pad_h = (ps - H % ps) % ps
    pad_w = (ps - W % ps) % ps
    if pad_h or pad_w:
        x = jnp.pad(x, ((0, 0), (0, 0), (0, pad_h), (0, pad_w)))
    B, Cin, H, W = x.shape
    Hp, Wp = H // ps, W // ps
    # Patch-embed conv (kernel == stride) as patch-extract + fused matmul+LN.
    patches = x.reshape(B, Cin, Hp, ps, Wp, ps)
    patches = jnp.transpose(patches, (0, 2, 4, 1, 3, 5)).reshape(B * Hp * Wp, Cin * ps * ps)
    pe = params['patch_embed']
    xt = linear_ln(patches.astype(pe['w'].dtype), pe['w'], pe['b'], pe['ng'], pe['nb'])
    E = cfg['embed_dim']
    xt = xt.reshape(B, Hp * Wp, E)
    H, W = Hp, Wp

    attentions = []
    ws = cfg['window_size']
    shift = ws // 2
    for li, layer_p in enumerate(params['layers']):
        attn_mask = jnp.asarray(create_mask(H, W, ws, shift))
        attention = None
        for bi, blk in enumerate(layer_p['blocks']):
            shift_size = 0 if bi % 2 == 0 else shift
            xt, attention = swin_block(xt, blk, H, W, ws, shift_size, attn_mask,
                                       cfg['num_heads'][li])
        if layer_p['downsample'] is not None:
            xt = patch_merging(xt, layer_p['downsample'], H, W)
            H, W = (H + 1) // 2, (W + 1) // 2
        attentions.append(attention)

    fn = params['final_norm']
    xt = layernorm(xt, fn['g'], fn['b'])
    xt = jnp.mean(xt, axis=1)                       # AdaptiveAvgPool1d(1) + flatten
    head = params['head']
    logits = linear(xt.astype(head['w'].dtype), head['w'], head['b'])
    return logits, attentions


# ----------------------------------------------------------------------------
# Deterministic synthetic parameters (shapes per module __init__)
# ----------------------------------------------------------------------------
def init_params(key, cfg):
    ps, cin, E = cfg['patch_size'], cfg['in_chans'], cfg['embed_dim']
    ws = cfg['window_size']
    keys = iter(jax.random.split(key, 512))

    def tn(shape, std=0.02):
        return jax.random.normal(next(keys), shape, jnp.float32) * std

    params = {}
    params['patch_embed'] = dict(
        w=tn((cin * ps * ps, E)), b=jnp.zeros((E,), jnp.float32),
        ng=jnp.ones((E,), jnp.float32), nb=jnp.zeros((E,), jnp.float32))

    layers = []
    nl = len(cfg['depths'])
    for i in range(nl):
        dim = E * (2 ** i)
        nH = cfg['num_heads'][i]
        hidden = int(dim * cfg['mlp_ratio'])
        blocks = []
        for _ in range(cfg['depths'][i]):
            blocks.append(dict(
                norm1_g=jnp.ones((dim,), jnp.float32), norm1_b=jnp.zeros((dim,), jnp.float32),
                qkv_w=tn((dim, 3 * dim)), qkv_b=jnp.zeros((3 * dim,), jnp.float32),
                rel_table=tn(((2 * ws - 1) ** 2, nH)),
                proj_w=tn((dim, dim)), proj_b=jnp.zeros((dim,), jnp.float32),
                norm2_g=jnp.ones((dim,), jnp.float32), norm2_b=jnp.zeros((dim,), jnp.float32),
                fc1_w=tn((dim, hidden)), fc1_b=jnp.zeros((hidden,), jnp.float32),
                fc2_w=tn((hidden, dim)), fc2_b=jnp.zeros((dim,), jnp.float32)))
        layer = dict(blocks=blocks)
        if i < nl - 1:
            layer['downsample'] = dict(
                norm_g=jnp.ones((4 * dim,), jnp.float32),
                norm_b=jnp.zeros((4 * dim,), jnp.float32),
                red_w=tn((4 * dim, 2 * dim)))
        else:
            layer['downsample'] = None
        layers.append(layer)
    params['layers'] = layers

    nf = E * (2 ** (nl - 1))
    params['final_norm'] = dict(g=jnp.ones((nf,), jnp.float32), b=jnp.zeros((nf,), jnp.float32))
    params['head'] = dict(w=tn((nf, cfg['num_classes'])),
                          b=jnp.zeros((cfg['num_classes'],), jnp.float32))
    return params


def prepare_params(raw, cfg):
    """One-time (outside jit) prep: cast matmul weights to the MXU dtype, reshape
    LN params / biases to (1, N) rows, pre-gather the relative-position bias."""
    cdt = _cdt()
    ws = cfg['window_size']
    N = ws * ws
    rel_idx = jnp.asarray(_relative_position_index(ws).reshape(-1))

    def row(v):
        return jnp.asarray(v, jnp.float32).reshape(1, -1)

    pe = raw['patch_embed']
    out = {'patch_embed': dict(w=pe['w'].astype(cdt), b=row(pe['b']),
                               ng=row(pe['ng']), nb=row(pe['nb']))}
    layers = []
    for li, layer in enumerate(raw['layers']):
        nH = cfg['num_heads'][li]
        blocks = []
        for b in layer['blocks']:
            rel = jnp.take(b['rel_table'], rel_idx, axis=0).reshape(N, N, nH)
            rel = jnp.transpose(rel, (2, 0, 1))          # (nH, N, N)
            blocks.append(dict(
                norm1_g=row(b['norm1_g']), norm1_b=row(b['norm1_b']),
                qkv_w=b['qkv_w'].astype(cdt), qkv_b=row(b['qkv_b']),
                proj_w=b['proj_w'].astype(cdt), proj_b=row(b['proj_b']),
                rel_bias=rel,
                norm2_g=row(b['norm2_g']), norm2_b=row(b['norm2_b']),
                fc1_w=b['fc1_w'].astype(cdt), fc1_b=row(b['fc1_b']),
                fc2_w=b['fc2_w'].astype(cdt), fc2_b=row(b['fc2_b'])))
        newl = dict(blocks=blocks)
        ds = layer['downsample']
        if ds is not None:
            dim2 = ds['red_w'].shape[1]
            newl['downsample'] = dict(
                norm_g=row(ds['norm_g']), norm_b=row(ds['norm_b']),
                red_w=ds['red_w'].astype(cdt),
                red_b=jnp.zeros((1, dim2), jnp.float32))
        else:
            newl['downsample'] = None
        layers.append(newl)
    out['layers'] = layers
    fn = raw['final_norm']
    out['final_norm'] = dict(g=row(fn['g']), b=row(fn['b']))
    hd = raw['head']
    out['head'] = dict(w=hd['w'].astype(cdt), b=row(hd['b']))
    return out


# ----------------------------------------------------------------------------
if __name__ == "__main__":
    cfg = dict(patch_size=4, in_chans=3, num_classes=10, embed_dim=16,
               depths=(2, 2), num_heads=(2, 4), window_size=4, mlp_ratio=4.0)
    key = jax.random.PRNGKey(0)
    pkey, xkey = jax.random.split(key)
    params = prepare_params(init_params(pkey, cfg), cfg)   # weight prep hoisted out of jit
    x = jax.random.normal(xkey, (2, 3, 32, 32), jnp.float32)

    fwd = jax.jit(functools.partial(swin_forward, cfg=cfg))
    logits, attentions = fwd(params, x)
    logits = jax.block_until_ready(logits)
    for a in attentions:
        jax.block_until_ready(a)
    assert logits.shape == (2, cfg['num_classes'])
    assert bool(jnp.all(jnp.isfinite(logits)))
    print("KERNEL_OK")
</pallas_src>

<mosaic_0001>
module attributes {stable_mosaic.version = 11 : i64} {
  func.func @_linear_ln_kernel(%arg0: i32, %arg1: memref<64x48xbf16, #tpu.memory_space<vmem>>, %arg2: memref<48x16xbf16, #tpu.memory_space<vmem>>, %arg3: memref<1x16xf32, #tpu.memory_space<vmem>>, %arg4: memref<1x16xf32, #tpu.memory_space<vmem>>, %arg5: memref<1x16xf32, #tpu.memory_space<vmem>>, %arg6: memref<64x16xf32, #tpu.memory_space<vmem>>) attributes {dimension_semantics = [#tpu.dimension_semantics<parallel>], iteration_bounds = array<i64: 2>, scalar_prefetch = 0 : i64, scratch_operands = 0 : i64, tpu.core_type = #tpu.core_type<tc>, window_params = [{transform_indices = @transform_0, window_bounds = array<i64: 64, 48>}, {pipeline_mode = #tpu.pipeline_mode<synchronous>, transform_indices = @transform_1, window_bounds = array<i64: 48, 16>}, {pipeline_mode = #tpu.pipeline_mode<synchronous>, transform_indices = @transform_2, window_bounds = array<i64: 1, 16>}, {pipeline_mode = #tpu.pipeline_mode<synchronous>, transform_indices = @transform_3, window_bounds = array<i64: 1, 16>}, {pipeline_mode = #tpu.pipeline_mode<synchronous>, transform_indices = @transform_4, window_bounds = array<i64: 1, 16>}, {transform_indices = @transform_5, window_bounds = array<i64: 64, 16>}]} {
    %c0 = arith.constant 0 : index
    %c0_0 = arith.constant 0 : index
    %0 = vector.load %arg1[%c0, %c0_0] : memref<64x48xbf16, #tpu.memory_space<vmem>>, vector<64x48xbf16>
    %c0_1 = arith.constant 0 : index
    %c0_2 = arith.constant 0 : index
    %1 = vector.load %arg2[%c0_1, %c0_2] : memref<48x16xbf16, #tpu.memory_space<vmem>>, vector<48x16xbf16>
    %cst = arith.constant dense<0.000000e+00> : vector<64x16xf32>
    %2 = tpu.matmul %0, %1, %cst {dimension_numbers = #tpu.dot_dimension_numbers<[1], [0], [0], [1], [0, 0, 1, 1], [], []>} : vector<64x48xbf16>, vector<48x16xbf16>, vector<64x16xf32> -> vector<64x16xf32>
    %c0_3 = arith.constant 0 : index
    %c0_4 = arith.constant 0 : index
    %3 = vector.load %arg3[%c0_3, %c0_4] : memref<1x16xf32, #tpu.memory_space<vmem>>, vector<1x16xf32>
    %4 = vector.broadcast %3 : vector<1x16xf32> to vector<64x16xf32>
    %5 = arith.addf %2, %4 : vector<64x16xf32>
    %c0_5 = arith.constant 0 : index
    %c0_6 = arith.constant 0 : index
    %6 = vector.load %arg4[%c0_5, %c0_6] : memref<1x16xf32, #tpu.memory_space<vmem>>, vector<1x16xf32>
    %c0_7 = arith.constant 0 : index
    %c0_8 = arith.constant 0 : index
    %7 = vector.load %arg5[%c0_7, %c0_8] : memref<1x16xf32, #tpu.memory_space<vmem>>, vector<1x16xf32>
    %cst_9 = arith.constant dense<0.000000e+00> : vector<64xf32>
    %8 = vector.multi_reduction <add>, %5, %cst_9 [1] : vector<64x16xf32> to vector<64xf32>
    %9 = vector.shape_cast %8 : vector<64xf32> to vector<64x1xf32>
    %cst_10 = arith.constant 1.600000e+01 : f32
    %10 = vector.broadcast %cst_10 : f32 to vector<64x1xf32>
    %11 = arith.divf %9, %10 : vector<64x1xf32>
    %12 = vector.broadcast %11 : vector<64x1xf32> to vector<64x16xf32>
    %13 = arith.subf %5, %12 : vector<64x16xf32>
    %14 = arith.mulf %13, %13 : vector<64x16xf32>
    %cst_11 = arith.constant dense<0.000000e+00> : vector<64xf32>
    %15 = vector.multi_reduction <add>, %14, %cst_11 [1] : vector<64x16xf32> to vector<64xf32>
    %16 = vector.shape_cast %15 : vector<64xf32> to vector<64x1xf32>
    %cst_12 = arith.constant 1.600000e+01 : f32
    %17 = vector.broadcast %cst_12 : f32 to vector<64x1xf32>
    %18 = arith.divf %16, %17 : vector<64x1xf32>
    %cst_13 = arith.constant 9.99999974E-6 : f32
    %19 = vector.broadcast %cst_13 : f32 to vector<64x1xf32>
    %20 = arith.addf %18, %19 : vector<64x1xf32>
    %21 = math.rsqrt %20 : vector<64x1xf32>
    %22 = vector.broadcast %21 : vector<64x1xf32> to vector<64x16xf32>
    %23 = arith.mulf %13, %22 : vector<64x16xf32>
    %24 = vector.broadcast %6 : vector<1x16xf32> to vector<64x16xf32>
    %25 = arith.mulf %23, %24 : vector<64x16xf32>
    %26 = vector.broadcast %7 : vector<1x16xf32> to vector<64x16xf32>
    %27 = arith.addf %25, %26 : vector<64x16xf32>
    %c0_14 = arith.constant 0 : index
    %c0_15 = arith.constant 0 : index
    %28 = vector.load %arg6[%c0_14, %c0_15] : memref<64x16xf32, #tpu.memory_space<vmem>>, vector<64x16xf32>
    tpu.vector_store %arg6[%c0_14, %c0_15], %27 {strides = array<i32>} : memref<64x16xf32, #tpu.memory_space<vmem>>, vector<64x16xf32>,
    return
  }
  func.func @transform_0(%arg0: i32) -> (i32, i32) {
    %c0_i32 = arith.constant 0 : i32
    %c0_i32_0 = arith.constant 0 : i32
    return %arg0, %c0_i32 : i32, i32
  }
  func.func @transform_1(%arg0: i32) -> (i32, i32) {
    %c0_i32 = arith.constant 0 : i32
    %c0_i32_0 = arith.constant 0 : i32
    %c0_i32_1 = arith.constant 0 : i32
    return %c0_i32, %c0_i32_0 : i32, i32
  }
  func.func @transform_2(%arg0: i32) -> (i32, i32) {
    %c0_i32 = arith.constant 0 : i32
    %c0_i32_0 = arith.constant 0 : i32
    %c0_i32_1 = arith.constant 0 : i32
    return %c0_i32, %c0_i32_0 : i32, i32
  }
  func.func @transform_3(%arg0: i32) -> (i32, i32) {
    %c0_i32 = arith.constant 0 : i32
    %c0_i32_0 = arith.constant 0 : i32
    %c0_i32_1 = arith.constant 0 : i32
    return %c0_i32, %c0_i32_0 : i32, i32
  }
  func.func @transform_4(%arg0: i32) -> (i32, i32) {
    %c0_i32 = arith.constant 0 : i32
    %c0_i32_0 = arith.constant 0 : i32
    %c0_i32_1 = arith.constant 0 : i32
    return %c0_i32, %c0_i32_0 : i32, i32
  }
  func.func @transform_5(%arg0: i32) -> (i32, i32) {
    %c0_i32 = arith.constant 0 : i32
    %c0_i32_0 = arith.constant 0 : i32
    return %arg0, %c0_i32 : i32, i32
  }
}

module attributes {stable_mosaic.version = 11 : i64} {
  func.func @_window_attn_kernel(%arg0: i32, %arg1: memref<64x16xf32, #tpu.memory_space<vmem>>, %arg2: memref<1x16xf32, #tpu.memory_space<vmem>>, %arg3: memref<1x16xf32, #tpu.memory_space<vmem>>, %arg4: memref<16x48xbf16, #tpu.memory_space<vmem>>, %arg5: memref<1x48xf32, #tpu.memory_space<vmem>>, %arg6: memref<16x16xbf16, #tpu.memory_space<vmem>>, %arg7: memref<1x16xf32, #tpu.memory_space<vmem>>, %arg8: memref<1x2x16x16xf32, #tpu.memory_space<vmem>>, %arg9: memref<64x16xf32, #tpu.memory_space<vmem>>, %arg10: memref<4x1x128xf32, #tpu.memory_space<vmem>>) attributes {dimension_semantics = [#tpu.dimension_semantics<parallel>], iteration_bounds = array<i64: 2>, scalar_prefetch = 0 : i64, scratch_operands = 0 : i64, tpu.core_type = #tpu.core_type<tc>, window_params = [{transform_indices = @transform_0, window_bounds = array<i64: 64, 16>}, {pipeline_mode = #tpu.pipeline_mode<synchronous>, transform_indices = @transform_1, window_bounds = array<i64: 1, 16>}, {pipeline_mode = #tpu.pipeline_mode<synchronous>, transform_indices = @transform_2, window_bounds = array<i64: 1, 16>}, {pipeline_mode = #tpu.pipeline_mode<synchronous>, transform_indices = @transform_3, window_bounds = array<i64: 16, 48>}, {pipeline_mode = #tpu.pipeline_mode<synchronous>, transform_indices = @transform_4, window_bounds = array<i64: 1, 48>}, {pipeline_mode = #tpu.pipeline_mode<synchronous>, transform_indices = @transform_5, window_bounds = array<i64: 16, 16>}, {pipeline_mode = #tpu.pipeline_mode<synchronous>, transform_indices = @transform_6, window_bounds = array<i64: 1, 16>}, {pipeline_mode = #tpu.pipeline_mode<synchronous>, transform_indices = @transform_7, window_bounds = array<i64: 1, 2, 16, 16>}, {transform_indices = @transform_8, window_bounds = array<i64: 64, 16>}, {transform_indices = @transform_9, window_bounds = array<i64: 4, 1, 128>}]} {
    %c0 = arith.constant 0 : index
    %c0_0 = arith.constant 0 : index
    %0 = vector.load %arg1[%c0, %c0_0] : memref<64x16xf32, #tpu.memory_space<vmem>>, vector<64x16xf32>
    %c0_1 = arith.constant 0 : index
    %c0_2 = arith.constant 0 : index
    %1 = vector.load %arg2[%c0_1, %c0_2] : memref<1x16xf32, #tpu.memory_space<vmem>>, vector<1x16xf32>
    %c0_3 = arith.constant 0 : index
    %c0_4 = arith.constant 0 : index
    %2 = vector.load %arg3[%c0_3, %c0_4] : memref<1x16xf32, #tpu.memory_space<vmem>>, vector<1x16xf32>
    %cst = arith.constant dense<0.000000e+00> : vector<64xf32>
    %3 = vector.multi_reduction <add>, %0, %cst [1] : vector<64x16xf32> to vector<64xf32>
    %4 = vector.shape_cast %3 : vector<64xf32> to vector<64x1xf32>
    %cst_5 = arith.constant 1.600000e+01 : f32
    %5 = vector.broadcast %cst_5 : f32 to vector<64x1xf32>
    %6 = arith.divf %4, %5 : vector<64x1xf32>
    %7 = vector.broadcast %6 : vector<64x1xf32> to vector<64x16xf32>
    %8 = arith.subf %0, %7 : vector<64x16xf32>
    %9 = arith.mulf %8, %8 : vector<64x16xf32>
    %cst_6 = arith.constant dense<0.000000e+00> : vector<64xf32>
    %10 = vector.multi_reduction <add>, %9, %cst_6 [1] : vector<64x16xf32> to vector<64xf32>
    %11 = vector.shape_cast %10 : vector<64xf32> to vector<64x1xf32>
    %cst_7 = arith.constant 1.600000e+01 : f32
    %12 = vector.broadcast %cst_7 : f32 to vector<64x1xf32>
    %13 = arith.divf %11, %12 : vector<64x1xf32>
    %cst_8 = arith.constant 9.99999974E-6 : f32
    %14 = vector.broadcast %cst_8 : f32 to vector<64x1xf32>
    %15 = arith.addf %13, %14 : vector<64x1xf32>
    %16 = math.rsqrt %15 : vector<64x1xf32>
    %17 = vector.broadcast %16 : vector<64x1xf32> to vector<64x16xf32>
    %18 = arith.mulf %8, %17 : vector<64x16xf32>
    %19 = vector.broadcast %1 : vector<1x16xf32> to vector<64x16xf32>
    %20 = arith.mulf %18, %19 : vector<64x16xf32>
    %21 = vector.broadcast %2 : vector<1x16xf32> to vector<64x16xf32>
    %22 = arith.addf %20, %21 : vector<64x16xf32>
    %23 = arith.truncf %22 : vector<64x16xf32> to vector<64x16xbf16>
    %c0_9 = arith.constant 0 : index
    %c0_10 = arith.constant 0 : index
    %24 = vector.load %arg4[%c0_9, %c0_10] : memref<16x48xbf16, #tpu.memory_space<vmem>>, vector<16x48xbf16>
    %cst_11 = arith.constant dense<0.000000e+00> : vector<64x48xf32>
    %25 = tpu.matmul %23, %24, %cst_11 {dimension_numbers = #tpu.dot_dimension_numbers<[1], [0], [0], [1], [0, 0, 1, 1], [], []>} : vector<64x16xbf16>, vector<16x48xbf16>, vector<64x48xf32> -> vector<64x48xf32>
    %c0_12 = arith.constant 0 : index
    %c0_13 = arith.constant 0 : index
    %26 = vector.load %arg5[%c0_12, %c0_13] : memref<1x48xf32, #tpu.memory_space<vmem>>, vector<1x48xf32>
    %27 = vector.broadcast %26 : vector<1x48xf32> to vector<64x48xf32>
    %28 = arith.addf %25, %27 : vector<64x48xf32>
    %c0_14 = arith.constant 0 : index
    %c0_15 = arith.constant 0 : index
    %c0_16 = arith.constant 0 : index
    %c0_17 = arith.constant 0 : index
    %29 = vector.load %arg8[%c0_14, %c0_15, %c0_16, %c0_17] : memref<1x2x16x16xf32, #tpu.memory_space<vmem>>, vector<1x2x16x16xf32>
    %cst_18 = arith.constant 0.000000e+00 : f32
    %30 = vector.broadcast %cst_18 : f32 to vector<4x16xf32>
    %31 = vector.extract_strided_slice %28 {offsets = [0, 0], sizes = [64, 8], strides = [1, 1]} : vector<64x48xf32> to vector<64x8xf32>
    %32 = vector.shape_cast %31 : vector<64x8xf32> to vector<4x16x8xf32>
    %cst_19 = arith.constant 0.353553385 : f32
    %33 = vector.broadcast %cst_19 : f32 to vector<4x16x8xf32>
    %34 = arith.mulf %32, %33 : vector<4x16x8xf32>
    %35 = vector.extract_strided_slice %28 {offsets = [0, 16], sizes = [64, 8], strides = [1, 1]} : vector<64x48xf32> to vector<64x8xf32>
    %36 = vector.shape_cast %35 : vector<64x8xf32> to vector<4x16x8xf32>
    %37 = vector.extract_strided_slice %28 {offsets = [0, 32], sizes = [64, 8], strides = [1, 1]} : vector<64x48xf32> to vector<64x8xf32>
    %38 = vector.shape_cast %37 : vector<64x8xf32> to vector<4x16x8xf32>
    "tpu.trace_start"() <{level = 10 : i32, message = "wnd,wmd->wnm"}> : () -> ()
    %cst_20 = arith.constant dense<0.000000e+00> : vector<4x16x16xf32>
    %39 = tpu.matmul %34, %36, %cst_20 {dimension_numbers = #tpu.dot_dimension_numbers<[2], [2], [1], [1], [0, 0, 0, 1, 1, 1], [0], [0]>} : vector<4x16x8xf32>, vector<4x16x8xf32>, vector<4x16x16xf32> -> vector<4x16x16xf32>
    "tpu.trace_stop"() : () -> ()
    %40 = vector.extract_strided_slice %29 {offsets = [0, 0, 0, 0], sizes = [1, 1, 16, 16], strides = [1, 1, 1, 1]} : vector<1x2x16x16xf32> to vector<1x1x16x16xf32>
    %41 = vector.shape_cast %40 : vector<1x1x16x16xf32> to vector<1x16x16xf32>
    %42 = vector.broadcast %41 : vector<1x16x16xf32> to vector<4x16x16xf32>
    %43 = arith.addf %39, %42 : vector<4x16x16xf32>
    %cst_21 = arith.constant dense<0xFF800000> : vector<4x16xf32>
    %44 = vector.multi_reduction <maximumf>, %43, %cst_21 [2] : vector<4x16x16xf32> to vector<4x16xf32>
    %45 = vector.shape_cast %44 : vector<4x16xf32> to vector<4x16x1xf32>
    %46 = vector.broadcast %45 : vector<4x16x1xf32> to vector<4x16x16xf32>
    %47 = arith.subf %43, %46 : vector<4x16x16xf32>
    %48 = math.exp %47 : vector<4x16x16xf32>
    %cst_22 = arith.constant dense<0.000000e+00> : vector<4x16xf32>
    %49 = vector.multi_reduction <add>, %48, %cst_22 [2] : vector<4x16x16xf32> to vector<4x16xf32>
    %50 = vector.shape_cast %49 : vector<4x16xf32> to vector<4x16x1xf32>
    %51 = tpu.reciprocal %50 {approx = true} : vector<4x16x1xf32> -> vector<4x16x1xf32>
    %52 = vector.broadcast %51 : vector<4x16x1xf32> to vector<4x16x16xf32>
    %53 = arith.mulf %48, %52 : vector<4x16x16xf32>
    %54 = vector.extract_strided_slice %53 {offsets = [0, 0, 0], sizes = [4, 1, 16], strides = [1, 1, 1]} : vector<4x16x16xf32> to vector<4x1x16xf32>
    %55 = vector.shape_cast %54 : vector<4x1x16xf32> to vector<4x16xf32>
    %56 = arith.addf %30, %55 : vector<4x16xf32>
    "tpu.trace_start"() <{level = 10 : i32, message = "wnm,wmd->wnd"}> : () -> ()
    %cst_23 = arith.constant dense<0.000000e+00> : vector<4x16x8xf32>
    %57 = tpu.matmul %53, %38, %cst_23 {dimension_numbers = #tpu.dot_dimension_numbers<[2], [1], [1], [2], [0, 0, 0, 1, 1, 2], [0], [0]>} : vector<4x16x16xf32>, vector<4x16x8xf32>, vector<4x16x8xf32> -> vector<4x16x8xf32>
    "tpu.trace_stop"() : () -> ()
    %58 = vector.shape_cast %57 : vector<4x16x8xf32> to vector<64x8xf32>
    %59 = vector.extract_strided_slice %28 {offsets = [0, 8], sizes = [64, 8], strides = [1, 1]} : vector<64x48xf32> to vector<64x8xf32>
    %60 = vector.shape_cast %59 : vector<64x8xf32> to vector<4x16x8xf32>
    %cst_24 = arith.constant 0.353553385 : f32
    %61 = vector.broadcast %cst_24 : f32 to vector<4x16x8xf32>
    %62 = arith.mulf %60, %61 : vector<4x16x8xf32>
    %63 = vector.extract_strided_slice %28 {offsets = [0, 24], sizes = [64, 8], strides = [1, 1]} : vector<64x48xf32> to vector<64x8xf32>
    %64 = vector.shape_cast %63 : vector<64x8xf32> to vector<4x16x8xf32>
    %65 = vector.extract_strided_slice %28 {offsets = [0, 40], sizes = [64, 8], strides = [1, 1]} : vector<64x48xf32> to vector<64x8xf32>
    %66 = vector.shape_cast %65 : vector<64x8xf32> to vector<4x16x8xf32>
    "tpu.trace_start"() <{level = 10 : i32, message = "wnd,wmd->wnm"}> : () -> ()
    %cst_25 = arith.constant dense<0.000000e+00> : vector<4x16x16xf32>
    %67 = tpu.matmul %62, %64, %cst_25 {dimension_numbers = #tpu.dot_dimension_numbers<[2], [2], [1], [1], [0, 0, 0, 1, 1, 1], [0], [0]>} : vector<4x16x8xf32>, vector<4x16x8xf32>, vector<4x16x16xf32> -> vector<4x16x16xf32>
    "tpu.trace_stop"() : () -> ()
    %68 = vector.extract_strided_slice %29 {offsets = [0, 1, 0, 0], sizes = [1, 1, 16, 16], strides = [1, 1, 1, 1]} : vector<1x2x16x16xf32> to vector<1x1x16x16xf32>
    %69 = vector.shape_cast %68 : vector<1x1x16x16xf32> to vector<1x16x16xf32>
    %70 = vector.broadcast %69 : vector<1x16x16xf32> to vector<4x16x16xf32>
    %71 = arith.addf %67, %70 : vector<4x16x16xf32>
    %cst_26 = arith.constant dense<0xFF800000> : vector<4x16xf32>
    %72 = vector.multi_reduction <maximumf>, %71, %cst_26 [2] : vector<4x16x16xf32> to vector<4x16xf32>
    %73 = vector.shape_cast %72 : vector<4x16xf32> to vector<4x16x1xf32>
    %74 = vector.broadcast %73 : vector<4x16x1xf32> to vector<4x16x16xf32>
    %75 = arith.subf %71, %74 : vector<4x16x16xf32>
    %76 = math.exp %75 : vector<4x16x16xf32>
    %cst_27 = arith.constant dense<0.000000e+00> : vector<4x16xf32>
    %77 = vector.multi_reduction <add>, %76, %cst_27 [2] : vector<4x16x16xf32> to vector<4x16xf32>
    %78 = vector.shape_cast %77 : vector<4x16xf32> to vector<4x16x1xf32>
    %79 = tpu.reciprocal %78 {approx = true} : vector<4x16x1xf32> -> vector<4x16x1xf32>
    %80 = vector.broadcast %79 : vector<4x16x1xf32> to vector<4x16x16xf32>
    %81 = arith.mulf %76, %80 : vector<4x16x16xf32>
    %82 = vector.extract_strided_slice %81 {offsets = [0, 0, 0], sizes = [4, 1, 16], strides = [1, 1, 1]} : vector<4x16x16xf32> to vector<4x1x16xf32>
    %83 = vector.shape_cast %82 : vector<4x1x16xf32> to vector<4x16xf32>
    %84 = arith.addf %56, %83 : vector<4x16xf32>
    "tpu.trace_start"() <{level = 10 : i32, message = "wnm,wmd->wnd"}> : () -> ()
    %cst_28 = arith.constant dense<0.000000e+00> : vector<4x16x8xf32>
    %85 = tpu.matmul %81, %66, %cst_28 {dimension_numbers = #tpu.dot_dimension_numbers<[2], [1], [1], [2], [0, 0, 0, 1, 1, 2], [0], [0]>} : vector<4x16x16xf32>, vector<4x16x8xf32>, vector<4x16x8xf32> -> vector<4x16x8xf32>
    "tpu.trace_stop"() : () -> ()
    %86 = vector.shape_cast %85 : vector<4x16x8xf32> to vector<64x8xf32>
    %87 = tpu.concatenate %58, %86 in 1 : vector<64x8xf32>, vector<64x8xf32> -> vector<64x16xf32>
    %88 = arith.truncf %87 : vector<64x16xf32> to vector<64x16xbf16>
    %c0_29 = arith.constant 0 : index
    %c0_30 = arith.constant 0 : index
    %89 = vector.load %arg6[%c0_29, %c0_30] : memref<16x16xbf16, #tpu.memory_space<vmem>>, vector<16x16xbf16>
    %cst_31 = arith.constant dense<0.000000e+00> : vector<64x16xf32>
    %90 = tpu.matmul %88, %89, %cst_31 {dimension_numbers = #tpu.dot_dimension_numbers<[1], [0], [0], [1], [0, 0, 1, 1], [], []>} : vector<64x16xbf16>, vector<16x16xbf16>, vector<64x16xf32> -> vector<64x16xf32>
    %c0_32 = arith.constant 0 : index
    %c0_33 = arith.constant 0 : index
    %91 = vector.load %arg7[%c0_32, %c0_33] : memref<1x16xf32, #tpu.memory_space<vmem>>, vector<1x16xf32>
    %92 = vector.broadcast %91 : vector<1x16xf32> to vector<64x16xf32>
    %93 = arith.addf %90, %92 : vector<64x16xf32>
    %94 = arith.addf %93, %0 : vector<64x16xf32>
    %c0_34 = arith.constant 0 : index
    %c0_35 = arith.constant 0 : index
    %95 = vector.load %arg9[%c0_34, %c0_35] : memref<64x16xf32, #tpu.memory_space<vmem>>, vector<64x16xf32>
    tpu.vector_store %arg9[%c0_34, %c0_35], %94 {strides = array<i32>} : memref<64x16xf32, #tpu.memory_space<vmem>>, vector<64x16xf32>,
    %cst_36 = arith.constant 5.000000e-01 : f32
    %96 = vector.broadcast %cst_36 : f32 to vector<4x16xf32>
    %97 = arith.mulf %84, %96 : vector<4x16xf32>
    %cst_37 = arith.constant 0.000000e+00 : f32
    %98 = vector.broadcast %cst_37 : f32 to vector<4x112xf32>
    %99 = tpu.concatenate %97, %98 in 1 : vector<4x16xf32>, vector<4x112xf32> -> vector<4x128xf32>
    %100 = vector.shape_cast %99 : vector<4x128xf32> to vector<4x1x128xf32>
    %c0_38 = arith.constant 0 : index
    %c0_39 = arith.constant 0 : index
    %c0_40 = arith.constant 0 : index
    %101 = vector.load %arg10[%c0_38, %c0_39, %c0_40] : memref<4x1x128xf32, #tpu.memory_space<vmem>>, vector<4x1x128xf32>
    tpu.vector_store %arg10[%c0_38, %c0_39, %c0_40], %100 {strides = array<i32>} : memref<4x1x128xf32, #tpu.memory_space<vmem>>, vector<4x1x128xf32>,
    return
  }
  func.func @transform_0(%arg0: i32) -> (i32, i32) {
    %c0_i32 = arith.constant 0 : i32
    %c0_i32_0 = arith.constant 0 : i32
    return %arg0, %c0_i32 : i32, i32
  }
  func.func @transform_1(%arg0: i32) -> (i32, i32) {
    %c0_i32 = arith.constant 0 : i32
    %c0_i32_0 = arith.constant 0 : i32
    %c0_i32_1 = arith.constant 0 : i32
    return %c0_i32, %c0_i32_0 : i32, i32
  }
  func.func @transform_2(%arg0: i32) -> (i32, i32) {
    %c0_i32 = arith.constant 0 : i32
    %c0_i32_0 = arith.constant 0 : i32
    %c0_i32_1 = arith.constant 0 : i32
    return %c0_i32, %c0_i32_0 : i32, i32
  }
  func.func @transform_3(%arg0: i32) -> (i32, i32) {
    %c0_i32 = arith.constant 0 : i32
    %c0_i32_0 = arith.constant 0 : i32
    %c0_i32_1 = arith.constant 0 : i32
    return %c0_i32, %c0_i32_0 : i32, i32
  }
  func.func @transform_4(%arg0: i32) -> (i32, i32) {
    %c0_i32 = arith.constant 0 : i32
    %c0_i32_0 = arith.constant 0 : i32
    %c0_i32_1 = arith.constant 0 : i32
    return %c0_i32, %c0_i32_0 : i32, i32
  }
  func.func @transform_5(%arg0: i32) -> (i32, i32) {
    %c0_i32 = arith.constant 0 : i32
    %c0_i32_0 = arith.constant 0 : i32
    %c0_i32_1 = arith.constant 0 : i32
    return %c0_i32, %c0_i32_0 : i32, i32
  }
  func.func @transform_6(%arg0: i32) -> (i32, i32) {
    %c0_i32 = arith.constant 0 : i32
    %c0_i32_0 = arith.constant 0 : i32
    %c0_i32_1 = arith.constant 0 : i32
    return %c0_i32, %c0_i32_0 : i32, i32
  }
  func.func @transform_7(%arg0: i32) -> (i32, i32, i32, i32) {
    %c0_i32 = arith.constant 0 : i32
    %c0_i32_0 = arith.constant 0 : i32
    %c0_i32_1 = arith.constant 0 : i32
    %c0_i32_2 = arith.constant 0 : i32
    %c0_i32_3 = arith.constant 0 : i32
    return %c0_i32, %c0_i32_0, %c0_i32_1, %c0_i32_2 : i32, i32, i32, i32
  }
  func.func @transform_8(%arg0: i32) -> (i32, i32) {
    %c0_i32 = arith.constant 0 : i32
    %c0_i32_0 = arith.constant 0 : i32
    return %arg0, %c0_i32 : i32, i32
  }
  func.func @transform_9(%arg0: i32) -> (i32, i32, i32) {
    %c0_i32 = arith.constant 0 : i32
    %c0_i32_0 = arith.constant 0 : i32
    %c0_i32_1 = arith.constant 0 : i32
    return %arg0, %c0_i32, %c0_i32_0 : i32, i32, i32
  }
}

module attributes {stable_mosaic.version = 11 : i64} {
  func.func @_mlp_kernel(%arg0: i32, %arg1: memref<64x16xf32, #tpu.memory_space<vmem>>, %arg2: memref<1x16xf32, #tpu.memory_space<vmem>>, %arg3: memref<1x16xf32, #tpu.memory_space<vmem>>, %arg4: memref<16x64xbf16, #tpu.memory_space<vmem>>, %arg5: memref<1x64xf32, #tpu.memory_space<vmem>>, %arg6: memref<64x16xbf16, #tpu.memory_space<vmem>>, %arg7: memref<1x16xf32, #tpu.memory_space<vmem>>, %arg8: memref<64x16xf32, #tpu.memory_space<vmem>>) attributes {dimension_semantics = [#tpu.dimension_semantics<parallel>], iteration_bounds = array<i64: 2>, scalar_prefetch = 0 : i64, scratch_operands = 0 : i64, tpu.core_type = #tpu.core_type<tc>, window_params = [{transform_indices = @transform_0, window_bounds = array<i64: 64, 16>}, {pipeline_mode = #tpu.pipeline_mode<synchronous>, transform_indices = @transform_1, window_bounds = array<i64: 1, 16>}, {pipeline_mode = #tpu.pipeline_mode<synchronous>, transform_indices = @transform_2, window_bounds = array<i64: 1, 16>}, {pipeline_mode = #tpu.pipeline_mode<synchronous>, transform_indices = @transform_3, window_bounds = array<i64: 16, 64>}, {pipeline_mode = #tpu.pipeline_mode<synchronous>, transform_indices = @transform_4, window_bounds = array<i64: 1, 64>}, {pipeline_mode = #tpu.pipeline_mode<synchronous>, transform_indices = @transform_5, window_bounds = array<i64: 64, 16>}, {pipeline_mode = #tpu.pipeline_mode<synchronous>, transform_indices = @transform_6, window_bounds = array<i64: 1, 16>}, {transform_indices = @transform_7, window_bounds = array<i64: 64, 16>}]} {
    %c0 = arith.constant 0 : index
    %c0_0 = arith.constant 0 : index
    %0 = vector.load %arg1[%c0, %c0_0] : memref<64x16xf32, #tpu.memory_space<vmem>>, vector<64x16xf32>
    %c0_1 = arith.constant 0 : index
    %c0_2 = arith.constant 0 : index
    %1 = vector.load %arg2[%c0_1, %c0_2] : memref<1x16xf32, #tpu.memory_space<vmem>>, vector<1x16xf32>
    %c0_3 = arith.constant 0 : index
    %c0_4 = arith.constant 0 : index
    %2 = vector.load %arg3[%c0_3, %c0_4] : memref<1x16xf32, #tpu.memory_space<vmem>>, vector<1x16xf32>
    %cst = arith.constant dense<0.000000e+00> : vector<64xf32>
    %3 = vector.multi_reduction <add>, %0, %cst [1] : vector<64x16xf32> to vector<64xf32>
    %4 = vector.shape_cast %3 : vector<64xf32> to vector<64x1xf32>
    %cst_5 = arith.constant 1.600000e+01 : f32
    %5 = vector.broadcast %cst_5 : f32 to vector<64x1xf32>
    %6 = arith.divf %4, %5 : vector<64x1xf32>
    %7 = vector.broadcast %6 : vector<64x1xf32> to vector<64x16xf32>
    %8 = arith.subf %0, %7 : vector<64x16xf32>
    %9 = arith.mulf %8, %8 : vector<64x16xf32>
    %cst_6 = arith.constant dense<0.000000e+00> : vector<64xf32>
    %10 = vector.multi_reduction <add>, %9, %cst_6 [1] : vector<64x16xf32> to vector<64xf32>
    %11 = vector.shape_cast %10 : vector<64xf32> to vector<64x1xf32>
    %cst_7 = arith.constant 1.600000e+01 : f32
    %12 = vector.broadcast %cst_7 : f32 to vector<64x1xf32>
    %13 = arith.divf %11, %12 : vector<64x1xf32>
    %cst_8 = arith.constant 9.99999974E-6 : f32
    %14 = vector.broadcast %cst_8 : f32 to vector<64x1xf32>
    %15 = arith.addf %13, %14 : vector<64x1xf32>
    %16 = math.rsqrt %15 : vector<64x1xf32>
    %17 = vector.broadcast %16 : vector<64x1xf32> to vector<64x16xf32>
    %18 = arith.mulf %8, %17 : vector<64x16xf32>
    %19 = vector.broadcast %1 : vector<1x16xf32> to vector<64x16xf32>
    %20 = arith.mulf %18, %19 : vector<64x16xf32>
    %21 = vector.broadcast %2 : vector<1x16xf32> to vector<64x16xf32>
    %22 = arith.addf %20, %21 : vector<64x16xf32>
    %23 = arith.truncf %22 : vector<64x16xf32> to vector<64x16xbf16>
    %c0_9 = arith.constant 0 : index
    %c0_10 = arith.constant 0 : index
    %24 = vector.load %arg4[%c0_9, %c0_10] : memref<16x64xbf16, #tpu.memory_space<vmem>>, vector<16x64xbf16>
    %cst_11 = arith.constant dense<0.000000e+00> : vector<64x64xf32>
    %25 = tpu.matmul %23, %24, %cst_11 {dimension_numbers = #tpu.dot_dimension_numbers<[1], [0], [0], [1], [0, 0, 1, 1], [], []>} : vector<64x16xbf16>, vector<16x64xbf16>, vector<64x64xf32> -> vector<64x64xf32>
    %c0_12 = arith.constant 0 : index
    %c0_13 = arith.constant 0 : index
    %26 = vector.load %arg5[%c0_12, %c0_13] : memref<1x64xf32, #tpu.memory_space<vmem>>, vector<1x64xf32>
    %27 = vector.broadcast %26 : vector<1x64xf32> to vector<64x64xf32>
    %28 = arith.addf %25, %27 : vector<64x64xf32>
    %cst_14 = arith.constant 5.000000e-01 : f32
    %29 = vector.broadcast %cst_14 : f32 to vector<64x64xf32>
    %30 = arith.mulf %29, %28 : vector<64x64xf32>
    %cst_15 = arith.constant 0.707106769 : f32
    %31 = vector.broadcast %cst_15 : f32 to vector<64x64xf32>
    %32 = arith.mulf %28, %31 : vector<64x64xf32>
    %33 = math.absf %32 : vector<64x64xf32>
    %cst_16 = arith.constant 0.327591091 : f32
    %34 = vector.broadcast %cst_16 : f32 to vector<64x64xf32>
    %35 = arith.mulf %34, %33 : vector<64x64xf32>
    %cst_17 = arith.constant 1.000000e+00 : f32
    %36 = vector.broadcast %cst_17 : f32 to vector<64x64xf32>
    %37 = arith.addf %36, %35 : vector<64x64xf32>
    %cst_18 = arith.constant 1.000000e+00 : f32
    %38 = vector.broadcast %cst_18 : f32 to vector<64x64xf32>
    %39 = arith.divf %38, %37 : vector<64x64xf32>
    %cst_19 = arith.constant 1.06140542 : f32
    %40 = vector.broadcast %cst_19 : f32 to vector<64x64xf32>
    %41 = arith.mulf %40, %39 : vector<64x64xf32>
    %cst_20 = arith.constant -1.45315206 : f32
    %42 = vector.broadcast %cst_20 : f32 to vector<64x64xf32>
    %43 = arith.addf %41, %42 : vector<64x64xf32>
    %44 = arith.mulf %43, %39 : vector<64x64xf32>
    %cst_21 = arith.constant 1.42141378 : f32
    %45 = vector.broadcast %cst_21 : f32 to vector<64x64xf32>
    %46 = arith.addf %44, %45 : vector<64x64xf32>
    %47 = arith.mulf %46, %39 : vector<64x64xf32>
    %cst_22 = arith.constant -0.284496725 : f32
    %48 = vector.broadcast %cst_22 : f32 to vector<64x64xf32>
    %49 = arith.addf %47, %48 : vector<64x64xf32>
    %50 = arith.mulf %49, %39 : vector<64x64xf32>
    %cst_23 = arith.constant 0.254829586 : f32
    %51 = vector.broadcast %cst_23 : f32 to vector<64x64xf32>
    %52 = arith.addf %50, %51 : vector<64x64xf32>
    %53 = arith.mulf %52, %39 : vector<64x64xf32>
    %cst_24 = arith.constant 0.000000e+00 : f32
    %54 = vector.broadcast %cst_24 : f32 to vector<64x64xf32>
    %55 = arith.subf %54, %33 : vector<64x64xf32>
    %56 = arith.mulf %55, %33 : vector<64x64xf32>
    %57 = math.exp %56 : vector<64x64xf32>
    %58 = arith.mulf %53, %57 : vector<64x64xf32>
    %cst_25 = arith.constant 1.000000e+00 : f32
    %59 = vector.broadcast %cst_25 : f32 to vector<64x64xf32>
    %60 = arith.subf %59, %58 : vector<64x64xf32>
    %cst_26 = arith.constant 0.000000e+00 : f32
    %61 = vector.broadcast %cst_26 : f32 to vector<64x64xf32>
    %62 = arith.cmpf oge, %32, %61 : vector<64x64xf32>
    %cst_27 = arith.constant 0.000000e+00 : f32
    %63 = vector.broadcast %cst_27 : f32 to vector<64x64xf32>
    %64 = arith.subf %63, %60 : vector<64x64xf32>
    %65 = arith.select %62, %60, %64 : vector<64x64xi1>, vector<64x64xf32>
    %cst_28 = arith.constant 1.000000e+00 : f32
    %66 = vector.broadcast %cst_28 : f32 to vector<64x64xf32>
    %67 = arith.addf %66, %65 : vector<64x64xf32>
    %68 = arith.mulf %30, %67 : vector<64x64xf32>
    %69 = arith.truncf %68 : vector<64x64xf32> to vector<64x64xbf16>
    %c0_29 = arith.constant 0 : index
    %c0_30 = arith.constant 0 : index
    %70 = vector.load %arg6[%c0_29, %c0_30] : memref<64x16xbf16, #tpu.memory_space<vmem>>, vector<64x16xbf16>
    %cst_31 = arith.constant dense<0.000000e+00> : vector<64x16xf32>
    %71 = tpu.matmul %69, %70, %cst_31 {dimension_numbers = #tpu.dot_dimension_numbers<[1], [0], [0], [1], [0, 0, 1, 1], [], []>} : vector<64x64xbf16>, vector<64x16xbf16>, vector<64x16xf32> -> vector<64x16xf32>
    %c0_32 = arith.constant 0 : index
    %c0_33 = arith.constant 0 : index
    %72 = vector.load %arg7[%c0_32, %c0_33] : memref<1x16xf32, #tpu.memory_space<vmem>>, vector<1x16xf32>
    %73 = vector.broadcast %72 : vector<1x16xf32> to vector<64x16xf32>
    %74 = arith.addf %71, %73 : vector<64x16xf32>
    %75 = arith.addf %0, %74 : vector<64x16xf32>
    %c0_34 = arith.constant 0 : index
    %c0_35 = arith.constant 0 : index
    %76 = vector.load %arg8[%c0_34, %c0_35] : memref<64x16xf32, #tpu.memory_space<vmem>>, vector<64x16xf32>
    tpu.vector_store %arg8[%c0_34, %c0_35], %75 {strides = array<i32>} : memref<64x16xf32, #tpu.memory_space<vmem>>, vector<64x16xf32>,
    return
  }
  func.func @transform_0(%arg0: i32) -> (i32, i32) {
    %c0_i32 = arith.constant 0 : i32
    %c0_i32_0 = arith.constant 0 : i32
    return %arg0, %c0_i32 : i32, i32
  }
  func.func @transform_1(%arg0: i32) -> (i32, i32) {
    %c0_i32 = arith.constant 0 : i32
    %c0_i32_0 = arith.constant 0 : i32
    %c0_i32_1 = arith.constant 0 : i32
    return %c0_i32, %c0_i32_0 : i32, i32
  }
  func.func @transform_2(%arg0: i32) -> (i32, i32) {
    %c0_i32 = arith.constant 0 : i32
    %c0_i32_0 = arith.constant 0 : i32
    %c0_i32_1 = arith.constant 0 : i32
    return %c0_i32, %c0_i32_0 : i32, i32
  }
  func.func @transform_3(%arg0: i32) -> (i32, i32) {
    %c0_i32 = arith.constant 0 : i32
    %c0_i32_0 = arith.constant 0 : i32
    %c0_i32_1 = arith.constant 0 : i32
    return %c0_i32, %c0_i32_0 : i32, i32
  }
  func.func @transform_4(%arg0: i32) -> (i32, i32) {
    %c0_i32 = arith.constant 0 : i32
    %c0_i32_0 = arith.constant 0 : i32
    %c0_i32_1 = arith.constant 0 : i32
    return %c0_i32, %c0_i32_0 : i32, i32
  }
  func.func @transform_5(%arg0: i32) -> (i32, i32) {
    %c0_i32 = arith.constant 0 : i32
    %c0_i32_0 = arith.constant 0 : i32
    %c0_i32_1 = arith.constant 0 : i32
    return %c0_i32, %c0_i32_0 : i32, i32
  }
  func.func @transform_6(%arg0: i32) -> (i32, i32) {
    %c0_i32 = arith.constant 0 : i32
    %c0_i32_0 = arith.constant 0 : i32
    %c0_i32_1 = arith.constant 0 : i32
    return %c0_i32, %c0_i32_0 : i32, i32
  }
  func.func @transform_7(%arg0: i32) -> (i32, i32) {
    %c0_i32 = arith.constant 0 : i32
    %c0_i32_0 = arith.constant 0 : i32
    return %arg0, %c0_i32 : i32, i32
  }
}

module attributes {stable_mosaic.version = 11 : i64} {
  func.func @_window_attn_kernel(%arg0: i32, %arg1: memref<64x16xf32, #tpu.memory_space<vmem>>, %arg2: memref<1x16xf32, #tpu.memory_space<vmem>>, %arg3: memref<1x16xf32, #tpu.memory_space<vmem>>, %arg4: memref<16x48xbf16, #tpu.memory_space<vmem>>, %arg5: memref<1x48xf32, #tpu.memory_space<vmem>>, %arg6: memref<16x16xbf16, #tpu.memory_space<vmem>>, %arg7: memref<1x16xf32, #tpu.memory_space<vmem>>, %arg8: memref<4x2x16x16xf32, #tpu.memory_space<vmem>>, %arg9: memref<64x16xf32, #tpu.memory_space<vmem>>, %arg10: memref<4x1x128xf32, #tpu.memory_space<vmem>>) attributes {dimension_semantics = [#tpu.dimension_semantics<parallel>], iteration_bounds = array<i64: 2>, scalar_prefetch = 0 : i64, scratch_operands = 0 : i64, tpu.core_type = #tpu.core_type<tc>, window_params = [{transform_indices = @transform_0, window_bounds = array<i64: 64, 16>}, {pipeline_mode = #tpu.pipeline_mode<synchronous>, transform_indices = @transform_1, window_bounds = array<i64: 1, 16>}, {pipeline_mode = #tpu.pipeline_mode<synchronous>, transform_indices = @transform_2, window_bounds = array<i64: 1, 16>}, {pipeline_mode = #tpu.pipeline_mode<synchronous>, transform_indices = @transform_3, window_bounds = array<i64: 16, 48>}, {pipeline_mode = #tpu.pipeline_mode<synchronous>, transform_indices = @transform_4, window_bounds = array<i64: 1, 48>}, {pipeline_mode = #tpu.pipeline_mode<synchronous>, transform_indices = @transform_5, window_bounds = array<i64: 16, 16>}, {pipeline_mode = #tpu.pipeline_mode<synchronous>, transform_indices = @transform_6, window_bounds = array<i64: 1, 16>}, {pipeline_mode = #tpu.pipeline_mode<synchronous>, transform_indices = @transform_7, window_bounds = array<i64: 4, 2, 16, 16>}, {transform_indices = @transform_8, window_bounds = array<i64: 64, 16>}, {transform_indices = @transform_9, window_bounds = array<i64: 4, 1, 128>}]} {
    %c0 = arith.constant 0 : index
    %c0_0 = arith.constant 0 : index
    %0 = vector.load %arg1[%c0, %c0_0] : memref<64x16xf32, #tpu.memory_space<vmem>>, vector<64x16xf32>
    %c0_1 = arith.constant 0 : index
    %c0_2 = arith.constant 0 : index
    %1 = vector.load %arg2[%c0_1, %c0_2] : memref<1x16xf32, #tpu.memory_space<vmem>>, vector<1x16xf32>
    %c0_3 = arith.constant 0 : index
    %c0_4 = arith.constant 0 : index
    %2 = vector.load %arg3[%c0_3, %c0_4] : memref<1x16xf32, #tpu.memory_space<vmem>>, vector<1x16xf32>
    %cst = arith.constant dense<0.000000e+00> : vector<64xf32>
    %3 = vector.multi_reduction <add>, %0, %cst [1] : vector<64x16xf32> to vector<64xf32>
    %4 = vector.shape_cast %3 : vector<64xf32> to vector<64x1xf32>
    %cst_5 = arith.constant 1.600000e+01 : f32
    %5 = vector.broadcast %cst_5 : f32 to vector<64x1xf32>
    %6 = arith.divf %4, %5 : vector<64x1xf32>
    %7 = vector.broadcast %6 : vector<64x1xf32> to vector<64x16xf32>
    %8 = arith.subf %0, %7 : vector<64x16xf32>
    %9 = arith.mulf %8, %8 : vector<64x16xf32>
    %cst_6 = arith.constant dense<0.000000e+00> : vector<64xf32>
    %10 = vector.multi_reduction <add>, %9, %cst_6 [1] : vector<64x16xf32> to vector<64xf32>
    %11 = vector.shape_cast %10 : vector<64xf32> to vector<64x1xf32>
    %cst_7 = arith.constant 1.600000e+01 : f32
    %12 = vector.broadcast %cst_7 : f32 to vector<64x1xf32>
    %13 = arith.divf %11, %12 : vector<64x1xf32>
    %cst_8 = arith.constant 9.99999974E-6 : f32
    %14 = vector.broadcast %cst_8 : f32 to vector<64x1xf32>
    %15 = arith.addf %13, %14 : vector<64x1xf32>
    %16 = math.rsqrt %15 : vector<64x1xf32>
    %17 = vector.broadcast %16 : vector<64x1xf32> to vector<64x16xf32>
    %18 = arith.mulf %8, %17 : vector<64x16xf32>
    %19 = vector.broadcast %1 : vector<1x16xf32> to vector<64x16xf32>
    %20 = arith.mulf %18, %19 : vector<64x16xf32>
    %21 = vector.broadcast %2 : vector<1x16xf32> to vector<64x16xf32>
    %22 = arith.addf %20, %21 : vector<64x16xf32>
    %23 = arith.truncf %22 : vector<64x16xf32> to vector<64x16xbf16>
    %c0_9 = arith.constant 0 : index
    %c0_10 = arith.constant 0 : index
    %24 = vector.load %arg4[%c0_9, %c0_10] : memref<16x48xbf16, #tpu.memory_space<vmem>>, vector<16x48xbf16>
    %cst_11 = arith.constant dense<0.000000e+00> : vector<64x48xf32>
    %25 = tpu.matmul %23, %24, %cst_11 {dimension_numbers = #tpu.dot_dimension_numbers<[1], [0], [0], [1], [0, 0, 1, 1], [], []>} : vector<64x16xbf16>, vector<16x48xbf16>, vector<64x48xf32> -> vector<64x48xf32>
    %c0_12 = arith.constant 0 : index
    %c0_13 = arith.constant 0 : index
    %26 = vector.load %arg5[%c0_12, %c0_13] : memref<1x48xf32, #tpu.memory_space<vmem>>, vector<1x48xf32>
    %27 = vector.broadcast %26 : vector<1x48xf32> to vector<64x48xf32>
    %28 = arith.addf %25, %27 : vector<64x48xf32>
    %c0_14 = arith.constant 0 : index
    %c0_15 = arith.constant 0 : index
    %c0_16 = arith.constant 0 : index
    %c0_17 = arith.constant 0 : index
    %29 = vector.load %arg8[%c0_14, %c0_15, %c0_16, %c0_17] : memref<4x2x16x16xf32, #tpu.memory_space<vmem>>, vector<4x2x16x16xf32>
    %cst_18 = arith.constant 0.000000e+00 : f32
    %30 = vector.broadcast %cst_18 : f32 to vector<4x16xf32>
    %31 = vector.extract_strided_slice %28 {offsets = [0, 0], sizes = [64, 8], strides = [1, 1]} : vector<64x48xf32> to vector<64x8xf32>
    %32 = vector.shape_cast %31 : vector<64x8xf32> to vector<4x16x8xf32>
    %cst_19 = arith.constant 0.353553385 : f32
    %33 = vector.broadcast %cst_19 : f32 to vector<4x16x8xf32>
    %34 = arith.mulf %32, %33 : vector<4x16x8xf32>
    %35 = vector.extract_strided_slice %28 {offsets = [0, 16], sizes = [64, 8], strides = [1, 1]} : vector<64x48xf32> to vector<64x8xf32>
    %36 = vector.shape_cast %35 : vector<64x8xf32> to vector<4x16x8xf32>
    %37 = vector.extract_strided_slice %28 {offsets = [0, 32], sizes = [64, 8], strides = [1, 1]} : vector<64x48xf32> to vector<64x8xf32>
    %38 = vector.shape_cast %37 : vector<64x8xf32> to vector<4x16x8xf32>
    "tpu.trace_start"() <{level = 10 : i32, message = "wnd,wmd->wnm"}> : () -> ()
    %cst_20 = arith.constant dense<0.000000e+00> : vector<4x16x16xf32>
    %39 = tpu.matmul %34, %36, %cst_20 {dimension_numbers = #tpu.dot_dimension_numbers<[2], [2], [1], [1], [0, 0, 0, 1, 1, 1], [0], [0]>} : vector<4x16x8xf32>, vector<4x16x8xf32>, vector<4x16x16xf32> -> vector<4x16x16xf32>
    "tpu.trace_stop"() : () -> ()
    %40 = vector.extract_strided_slice %29 {offsets = [0, 0, 0, 0], sizes = [4, 1, 16, 16], strides = [1, 1, 1, 1]} : vector<4x2x16x16xf32> to vector<4x1x16x16xf32>
    %41 = vector.shape_cast %40 : vector<4x1x16x16xf32> to vector<4x16x16xf32>
    %42 = vector.shape_cast %39 : vector<4x16x16xf32> to vector<1x4x16x16xf32>
    %43 = vector.shape_cast %41 : vector<4x16x16xf32> to vector<1x4x16x16xf32>
    %44 = arith.addf %42, %43 : vector<1x4x16x16xf32>
    %45 = vector.shape_cast %44 : vector<1x4x16x16xf32> to vector<4x16x16xf32>
    %cst_21 = arith.constant dense<0xFF800000> : vector<4x16xf32>
    %46 = vector.multi_reduction <maximumf>, %45, %cst_21 [2] : vector<4x16x16xf32> to vector<4x16xf32>
    %47 = vector.shape_cast %46 : vector<4x16xf32> to vector<4x16x1xf32>
    %48 = vector.broadcast %47 : vector<4x16x1xf32> to vector<4x16x16xf32>
    %49 = arith.subf %45, %48 : vector<4x16x16xf32>
    %50 = math.exp %49 : vector<4x16x16xf32>
    %cst_22 = arith.constant dense<0.000000e+00> : vector<4x16xf32>
    %51 = vector.multi_reduction <add>, %50, %cst_22 [2] : vector<4x16x16xf32> to vector<4x16xf32>
    %52 = vector.shape_cast %51 : vector<4x16xf32> to vector<4x16x1xf32>
    %53 = tpu.reciprocal %52 {approx = true} : vector<4x16x1xf32> -> vector<4x16x1xf32>
    %54 = vector.broadcast %53 : vector<4x16x1xf32> to vector<4x16x16xf32>
    %55 = arith.mulf %50, %54 : vector<4x16x16xf32>
    %56 = vector.extract_strided_slice %55 {offsets = [0, 0, 0], sizes = [4, 1, 16], strides = [1, 1, 1]} : vector<4x16x16xf32> to vector<4x1x16xf32>
    %57 = vector.shape_cast %56 : vector<4x1x16xf32> to vector<4x16xf32>
    %58 = arith.addf %30, %57 : vector<4x16xf32>
    "tpu.trace_start"() <{level = 10 : i32, message = "wnm,wmd->wnd"}> : () -> ()
    %cst_23 = arith.constant dense<0.000000e+00> : vector<4x16x8xf32>
    %59 = tpu.matmul %55, %38, %cst_23 {dimension_numbers = #tpu.dot_dimension_numbers<[2], [1], [1], [2], [0, 0, 0, 1, 1, 2], [0], [0]>} : vector<4x16x16xf32>, vector<4x16x8xf32>, vector<4x16x8xf32> -> vector<4x16x8xf32>
    "tpu.trace_stop"() : () -> ()
    %60 = vector.shape_cast %59 : vector<4x16x8xf32> to vector<64x8xf32>
    %61 = vector.extract_strided_slice %28 {offsets = [0, 8], sizes = [64, 8], strides = [1, 1]} : vector<64x48xf32> to vector<64x8xf32>
    %62 = vector.shape_cast %61 : vector<64x8xf32> to vector<4x16x8xf32>
    %cst_24 = arith.constant 0.353553385 : f32
    %63 = vector.broadcast %cst_24 : f32 to vector<4x16x8xf32>
    %64 = arith.mulf %62, %63 : vector<4x16x8xf32>
    %65 = vector.extract_strided_slice %28 {offsets = [0, 24], sizes = [64, 8], strides = [1, 1]} : vector<64x48xf32> to vector<64x8xf32>
    %66 = vector.shape_cast %65 : vector<64x8xf32> to vector<4x16x8xf32>
    %67 = vector.extract_strided_slice %28 {offsets = [0, 40], sizes = [64, 8], strides = [1, 1]} : vector<64x48xf32> to vector<64x8xf32>
    %68 = vector.shape_cast %67 : vector<64x8xf32> to vector<4x16x8xf32>
    "tpu.trace_start"() <{level = 10 : i32, message = "wnd,wmd->wnm"}> : () -> ()
    %cst_25 = arith.constant dense<0.000000e+00> : vector<4x16x16xf32>
    %69 = tpu.matmul %64, %66, %cst_25 {dimension_numbers = #tpu.dot_dimension_numbers<[2], [2], [1], [1], [0, 0, 0, 1, 1, 1], [0], [0]>} : vector<4x16x8xf32>, vector<4x16x8xf32>, vector<4x16x16xf32> -> vector<4x16x16xf32>
    "tpu.trace_stop"() : () -> ()
    %70 = vector.extract_strided_slice %29 {offsets = [0, 1, 0, 0], sizes = [4, 1, 16, 16], strides = [1, 1, 1, 1]} : vector<4x2x16x16xf32> to vector<4x1x16x16xf32>
    %71 = vector.shape_cast %70 : vector<4x1x16x16xf32> to vector<4x16x16xf32>
    %72 = vector.shape_cast %69 : vector<4x16x16xf32> to vector<1x4x16x16xf32>
    %73 = vector.shape_cast %71 : vector<4x16x16xf32> to vector<1x4x16x16xf32>
    %74 = arith.addf %72, %73 : vector<1x4x16x16xf32>
    %75 = vector.shape_cast %74 : vector<1x4x16x16xf32> to vector<4x16x16xf32>
    %cst_26 = arith.constant dense<0xFF800000> : vector<4x16xf32>
    %76 = vector.multi_reduction <maximumf>, %75, %cst_26 [2] : vector<4x16x16xf32> to vector<4x16xf32>
    %77 = vector.shape_cast %76 : vector<4x16xf32> to vector<4x16x1xf32>
    %78 = vector.broadcast %77 : vector<4x16x1xf32> to vector<4x16x16xf32>
    %79 = arith.subf %75, %78 : vector<4x16x16xf32>
    %80 = math.exp %79 : vector<4x16x16xf32>
    %cst_27 = arith.constant dense<0.000000e+00> : vector<4x16xf32>
    %81 = vector.multi_reduction <add>, %80, %cst_27 [2] : vector<4x16x16xf32> to vector<4x16xf32>
    %82 = vector.shape_cast %81 : vector<4x16xf32> to vector<4x16x1xf32>
    %83 = tpu.reciprocal %82 {approx = true} : vector<4x16x1xf32> -> vector<4x16x1xf32>
    %84 = vector.broadcast %83 : vector<4x16x1xf32> to vector<4x16x16xf32>
    %85 = arith.mulf %80, %84 : vector<4x16x16xf32>
    %86 = vector.extract_strided_slice %85 {offsets = [0, 0, 0], sizes = [4, 1, 16], strides = [1, 1, 1]} : vector<4x16x16xf32> to vector<4x1x16xf32>
    %87 = vector.shape_cast %86 : vector<4x1x16xf32> to vector<4x16xf32>
    %88 = arith.addf %58, %87 : vector<4x16xf32>
    "tpu.trace_start"() <{level = 10 : i32, message = "wnm,wmd->wnd"}> : () -> ()
    %cst_28 = arith.constant dense<0.000000e+00> : vector<4x16x8xf32>
    %89 = tpu.matmul %85, %68, %cst_28 {dimension_numbers = #tpu.dot_dimension_numbers<[2], [1], [1], [2], [0, 0, 0, 1, 1, 2], [0], [0]>} : vector<4x16x16xf32>, vector<4x16x8xf32>, vector<4x16x8xf32> -> vector<4x16x8xf32>
    "tpu.trace_stop"() : () -> ()
    %90 = vector.shape_cast %89 : vector<4x16x8xf32> to vector<64x8xf32>
    %91 = tpu.concatenate %60, %90 in 1 : vector<64x8xf32>, vector<64x8xf32> -> vector<64x16xf32>
    %92 = arith.truncf %91 : vector<64x16xf32> to vector<64x16xbf16>
    %c0_29 = arith.constant 0 : index
    %c0_30 = arith.constant 0 : index
    %93 = vector.load %arg6[%c0_29, %c0_30] : memref<16x16xbf16, #tpu.memory_space<vmem>>, vector<16x16xbf16>
    %cst_31 = arith.constant dense<0.000000e+00> : vector<64x16xf32>
    %94 = tpu.matmul %92, %93, %cst_31 {dimension_numbers = #tpu.dot_dimension_numbers<[1], [0], [0], [1], [0, 0, 1, 1], [], []>} : vector<64x16xbf16>, vector<16x16xbf16>, vector<64x16xf32> -> vector<64x16xf32>
    %c0_32 = arith.constant 0 : index
    %c0_33 = arith.constant 0 : index
    %95 = vector.load %arg7[%c0_32, %c0_33] : memref<1x16xf32, #tpu.memory_space<vmem>>, vector<1x16xf32>
    %96 = vector.broadcast %95 : vector<1x16xf32> to vector<64x16xf32>
    %97 = arith.addf %94, %96 : vector<64x16xf32>
    %98 = arith.addf %97, %0 : vector<64x16xf32>
    %c0_34 = arith.constant 0 : index
    %c0_35 = arith.constant 0 : index
    %99 = vector.load %arg9[%c0_34, %c0_35] : memref<64x16xf32, #tpu.memory_space<vmem>>, vector<64x16xf32>
    tpu.vector_store %arg9[%c0_34, %c0_35], %98 {strides = array<i32>} : memref<64x16xf32, #tpu.memory_space<vmem>>, vector<64x16xf32>,
    %cst_36 = arith.constant 5.000000e-01 : f32
    %100 = vector.broadcast %cst_36 : f32 to vector<4x16xf32>
    %101 = arith.mulf %88, %100 : vector<4x16xf32>
    %cst_37 = arith.constant 0.000000e+00 : f32
    %102 = vector.broadcast %cst_37 : f32 to vector<4x112xf32>
    %103 = tpu.concatenate %101, %102 in 1 : vector<4x16xf32>, vector<4x112xf32> -> vector<4x128xf32>
    %104 = vector.shape_cast %103 : vector<4x128xf32> to vector<4x1x128xf32>
    %c0_38 = arith.constant 0 : index
    %c0_39 = arith.constant 0 : index
    %c0_40 = arith.constant 0 : index
    %105 = vector.load %arg10[%c0_38, %c0_39, %c0_40] : memref<4x1x128xf32, #tpu.memory_space<vmem>>, vector<4x1x128xf32>
    tpu.vector_store %arg10[%c0_38, %c0_39, %c0_40], %104 {strides = array<i32>} : memref<4x1x128xf32, #tpu.memory_space<vmem>>, vector<4x1x128xf32>,
    return
  }
  func.func @transform_0(%arg0: i32) -> (i32, i32) {
    %c0_i32 = arith.constant 0 : i32
    %c0_i32_0 = arith.constant 0 : i32
    return %arg0, %c0_i32 : i32, i32
  }
  func.func @transform_1(%arg0: i32) -> (i32, i32) {
    %c0_i32 = arith.constant 0 : i32
    %c0_i32_0 = arith.constant 0 : i32
    %c0_i32_1 = arith.constant 0 : i32
    return %c0_i32, %c0_i32_0 : i32, i32
  }
  func.func @transform_2(%arg0: i32) -> (i32, i32) {
    %c0_i32 = arith.constant 0 : i32
    %c0_i32_0 = arith.constant 0 : i32
    %c0_i32_1 = arith.constant 0 : i32
    return %c0_i32, %c0_i32_0 : i32, i32
  }
  func.func @transform_3(%arg0: i32) -> (i32, i32) {
    %c0_i32 = arith.constant 0 : i32
    %c0_i32_0 = arith.constant 0 : i32
    %c0_i32_1 = arith.constant 0 : i32
    return %c0_i32, %c0_i32_0 : i32, i32
  }
  func.func @transform_4(%arg0: i32) -> (i32, i32) {
    %c0_i32 = arith.constant 0 : i32
    %c0_i32_0 = arith.constant 0 : i32
    %c0_i32_1 = arith.constant 0 : i32
    return %c0_i32, %c0_i32_0 : i32, i32
  }
  func.func @transform_5(%arg0: i32) -> (i32, i32) {
    %c0_i32 = arith.constant 0 : i32
    %c0_i32_0 = arith.constant 0 : i32
    %c0_i32_1 = arith.constant 0 : i32
    return %c0_i32, %c0_i32_0 : i32, i32
  }
  func.func @transform_6(%arg0: i32) -> (i32, i32) {
    %c0_i32 = arith.constant 0 : i32
    %c0_i32_0 = arith.constant 0 : i32
    %c0_i32_1 = arith.constant 0 : i32
    return %c0_i32, %c0_i32_0 : i32, i32
  }
  func.func @transform_7(%arg0: i32) -> (i32, i32, i32, i32) {
    %c0_i32 = arith.constant 0 : i32
    %c0_i32_0 = arith.constant 0 : i32
    %c0_i32_1 = arith.constant 0 : i32
    %c0_i32_2 = arith.constant 0 : i32
    %c0_i32_3 = arith.constant 0 : i32
    return %c0_i32, %c0_i32_0, %c0_i32_1, %c0_i32_2 : i32, i32, i32, i32
  }
  func.func @transform_8(%arg0: i32) -> (i32, i32) {
    %c0_i32 = arith.constant 0 : i32
    %c0_i32_0 = arith.constant 0 : i32
    return %arg0, %c0_i32 : i32, i32
  }
  func.func @transform_9(%arg0: i32) -> (i32, i32, i32) {
    %c0_i32 = arith.constant 0 : i32
    %c0_i32_0 = arith.constant 0 : i32
    %c0_i32_1 = arith.constant 0 : i32
    return %arg0, %c0_i32, %c0_i32_0 : i32, i32, i32
  }
}

module attributes {stable_mosaic.version = 11 : i64} {
  func.func @_ln_linear_kernel(%arg0: i32, %arg1: memref<16x64xf32, #tpu.memory_space<vmem>>, %arg2: memref<1x64xf32, #tpu.memory_space<vmem>>, %arg3: memref<1x64xf32, #tpu.memory_space<vmem>>, %arg4: memref<64x32xbf16, #tpu.memory_space<vmem>>, %arg5: memref<1x32xf32, #tpu.memory_space<vmem>>, %arg6: memref<16x32xf32, #tpu.memory_space<vmem>>) attributes {dimension_semantics = [#tpu.dimension_semantics<parallel>], iteration_bounds = array<i64: 2>, scalar_prefetch = 0 : i64, scratch_operands = 0 : i64, tpu.core_type = #tpu.core_type<tc>, window_params = [{transform_indices = @transform_0, window_bounds = array<i64: 16, 64>}, {pipeline_mode = #tpu.pipeline_mode<synchronous>, transform_indices = @transform_1, window_bounds = array<i64: 1, 64>}, {pipeline_mode = #tpu.pipeline_mode<synchronous>, transform_indices = @transform_2, window_bounds = array<i64: 1, 64>}, {pipeline_mode = #tpu.pipeline_mode<synchronous>, transform_indices = @transform_3, window_bounds = array<i64: 64, 32>}, {pipeline_mode = #tpu.pipeline_mode<synchronous>, transform_indices = @transform_4, window_bounds = array<i64: 1, 32>}, {transform_indices = @transform_5, window_bounds = array<i64: 16, 32>}]} {
    %c0 = arith.constant 0 : index
    %c0_0 = arith.constant 0 : index
    %0 = vector.load %arg1[%c0, %c0_0] : memref<16x64xf32, #tpu.memory_space<vmem>>, vector<16x64xf32>
    %c0_1 = arith.constant 0 : index
    %c0_2 = arith.constant 0 : index
    %1 = vector.load %arg2[%c0_1, %c0_2] : memref<1x64xf32, #tpu.memory_space<vmem>>, vector<1x64xf32>
    %c0_3 = arith.constant 0 : index
    %c0_4 = arith.constant 0 : index
    %2 = vector.load %arg3[%c0_3, %c0_4] : memref<1x64xf32, #tpu.memory_space<vmem>>, vector<1x64xf32>
    %cst = arith.constant dense<0.000000e+00> : vector<16xf32>
    %3 = vector.multi_reduction <add>, %0, %cst [1] : vector<16x64xf32> to vector<16xf32>
    %4 = vector.shape_cast %3 : vector<16xf32> to vector<16x1xf32>
    %cst_5 = arith.constant 6.400000e+01 : f32
    %5 = vector.broadcast %cst_5 : f32 to vector<16x1xf32>
    %6 = arith.divf %4, %5 : vector<16x1xf32>
    %7 = vector.broadcast %6 : vector<16x1xf32> to vector<16x64xf32>
    %8 = arith.subf %0, %7 : vector<16x64xf32>
    %9 = arith.mulf %8, %8 : vector<16x64xf32>
    %cst_6 = arith.constant dense<0.000000e+00> : vector<16xf32>
    %10 = vector.multi_reduction <add>, %9, %cst_6 [1] : vector<16x64xf32> to vector<16xf32>
    %11 = vector.shape_cast %10 : vector<16xf32> to vector<16x1xf32>
    %cst_7 = arith.constant 6.400000e+01 : f32
    %12 = vector.broadcast %cst_7 : f32 to vector<16x1xf32>
    %13 = arith.divf %11, %12 : vector<16x1xf32>
    %cst_8 = arith.constant 9.99999974E-6 : f32
    %14 = vector.broadcast %cst_8 : f32 to vector<16x1xf32>
    %15 = arith.addf %13, %14 : vector<16x1xf32>
    %16 = math.rsqrt %15 : vector<16x1xf32>
    %17 = vector.broadcast %16 : vector<16x1xf32> to vector<16x64xf32>
    %18 = arith.mulf %8, %17 : vector<16x64xf32>
    %19 = vector.broadcast %1 : vector<1x64xf32> to vector<16x64xf32>
    %20 = arith.mulf %18, %19 : vector<16x64xf32>
    %21 = vector.broadcast %2 : vector<1x64xf32> to vector<16x64xf32>
    %22 = arith.addf %20, %21 : vector<16x64xf32>
    %23 = arith.truncf %22 : vector<16x64xf32> to vector<16x64xbf16>
    %c0_9 = arith.constant 0 : index
    %c0_10 = arith.constant 0 : index
    %24 = vector.load %arg4[%c0_9, %c0_10] : memref<64x32xbf16, #tpu.memory_space<vmem>>, vector<64x32xbf16>
    %cst_11 = arith.constant dense<0.000000e+00> : vector<16x32xf32>
    %25 = tpu.matmul %23, %24, %cst_11 {dimension_numbers = #tpu.dot_dimension_numbers<[1], [0], [0], [1], [0, 0, 1, 1], [], []>} : vector<16x64xbf16>, vector<64x32xbf16>, vector<16x32xf32> -> vector<16x32xf32>
    %c0_12 = arith.constant 0 : index
    %c0_13 = arith.constant 0 : index
    %26 = vector.load %arg5[%c0_12, %c0_13] : memref<1x32xf32, #tpu.memory_space<vmem>>, vector<1x32xf32>
    %27 = vector.broadcast %26 : vector<1x32xf32> to vector<16x32xf32>
    %28 = arith.addf %25, %27 : vector<16x32xf32>
    %c0_14 = arith.constant 0 : index
    %c0_15 = arith.constant 0 : index
    %29 = vector.load %arg6[%c0_14, %c0_15] : memref<16x32xf32, #tpu.memory_space<vmem>>, vector<16x32xf32>
    tpu.vector_store %arg6[%c0_14, %c0_15], %28 {strides = array<i32>} : memref<16x32xf32, #tpu.memory_space<vmem>>, vector<16x32xf32>,
    return
  }
  func.func @transform_0(%arg0: i32) -> (i32, i32) {
    %c0_i32 = arith.constant 0 : i32
    %c0_i32_0 = arith.constant 0 : i32
    return %arg0, %c0_i32 : i32, i32
  }
  func.func @transform_1(%arg0: i32) -> (i32, i32) {
    %c0_i32 = arith.constant 0 : i32
    %c0_i32_0 = arith.constant 0 : i32
    %c0_i32_1 = arith.constant 0 : i32
    return %c0_i32, %c0_i32_0 : i32, i32
  }
  func.func @transform_2(%arg0: i32) -> (i32, i32) {
    %c0_i32 = arith.constant 0 : i32
    %c0_i32_0 = arith.constant 0 : i32
    %c0_i32_1 = arith.constant 0 : i32
    return %c0_i32, %c0_i32_0 : i32, i32
  }
  func.func @transform_3(%arg0: i32) -> (i32, i32) {
    %c0_i32 = arith.constant 0 : i32
    %c0_i32_0 = arith.constant 0 : i32
    %c0_i32_1 = arith.constant 0 : i32
    return %c0_i32, %c0_i32_0 : i32, i32
  }
  func.func @transform_4(%arg0: i32) -> (i32, i32) {
    %c0_i32 = arith.constant 0 : i32
    %c0_i32_0 = arith.constant 0 : i32
    %c0_i32_1 = arith.constant 0 : i32
    return %c0_i32, %c0_i32_0 : i32, i32
  }
  func.func @transform_5(%arg0: i32) -> (i32, i32) {
    %c0_i32 = arith.constant 0 : i32
    %c0_i32_0 = arith.constant 0 : i32
    return %arg0, %c0_i32 : i32, i32
  }
}

module attributes {stable_mosaic.version = 11 : i64} {
  func.func @_mlp_kernel(%arg0: i32, %arg1: memref<16x32xf32, #tpu.memory_space<vmem>>, %arg2: memref<1x32xf32, #tpu.memory_space<vmem>>, %arg3: memref<1x32xf32, #tpu.memory_space<vmem>>, %arg4: memref<32x128xbf16, #tpu.memory_space<vmem>>, %arg5: memref<1x128xf32, #tpu.memory_space<vmem>>, %arg6: memref<128x32xbf16, #tpu.memory_space<vmem>>, %arg7: memref<1x32xf32, #tpu.memory_space<vmem>>, %arg8: memref<16x32xf32, #tpu.memory_space<vmem>>) attributes {dimension_semantics = [#tpu.dimension_semantics<parallel>], iteration_bounds = array<i64: 2>, scalar_prefetch = 0 : i64, scratch_operands = 0 : i64, tpu.core_type = #tpu.core_type<tc>, window_params = [{transform_indices = @transform_0, window_bounds = array<i64: 16, 32>}, {pipeline_mode = #tpu.pipeline_mode<synchronous>, transform_indices = @transform_1, window_bounds = array<i64: 1, 32>}, {pipeline_mode = #tpu.pipeline_mode<synchronous>, transform_indices = @transform_2, window_bounds = array<i64: 1, 32>}, {pipeline_mode = #tpu.pipeline_mode<synchronous>, transform_indices = @transform_3, window_bounds = array<i64: 32, 128>}, {pipeline_mode = #tpu.pipeline_mode<synchronous>, transform_indices = @transform_4, window_bounds = array<i64: 1, 128>}, {pipeline_mode = #tpu.pipeline_mode<synchronous>, transform_indices = @transform_5, window_bounds = array<i64: 128, 32>}, {pipeline_mode = #tpu.pipeline_mode<synchronous>, transform_indices = @transform_6, window_bounds = array<i64: 1, 32>}, {transform_indices = @transform_7, window_bounds = array<i64: 16, 32>}]} {
    %c0 = arith.constant 0 : index
    %c0_0 = arith.constant 0 : index
    %0 = vector.load %arg1[%c0, %c0_0] : memref<16x32xf32, #tpu.memory_space<vmem>>, vector<16x32xf32>
    %c0_1 = arith.constant 0 : index
    %c0_2 = arith.constant 0 : index
    %1 = vector.load %arg2[%c0_1, %c0_2] : memref<1x32xf32, #tpu.memory_space<vmem>>, vector<1x32xf32>
    %c0_3 = arith.constant 0 : index
    %c0_4 = arith.constant 0 : index
    %2 = vector.load %arg3[%c0_3, %c0_4] : memref<1x32xf32, #tpu.memory_space<vmem>>, vector<1x32xf32>
    %cst = arith.constant dense<0.000000e+00> : vector<16xf32>
    %3 = vector.multi_reduction <add>, %0, %cst [1] : vector<16x32xf32> to vector<16xf32>
    %4 = vector.shape_cast %3 : vector<16xf32> to vector<16x1xf32>
    %cst_5 = arith.constant 3.200000e+01 : f32
    %5 = vector.broadcast %cst_5 : f32 to vector<16x1xf32>
    %6 = arith.divf %4, %5 : vector<16x1xf32>
    %7 = vector.broadcast %6 : vector<16x1xf32> to vector<16x32xf32>
    %8 = arith.subf %0, %7 : vector<16x32xf32>
    %9 = arith.mulf %8, %8 : vector<16x32xf32>
    %cst_6 = arith.constant dense<0.000000e+00> : vector<16xf32>
    %10 = vector.multi_reduction <add>, %9, %cst_6 [1] : vector<16x32xf32> to vector<16xf32>
    %11 = vector.shape_cast %10 : vector<16xf32> to vector<16x1xf32>
    %cst_7 = arith.constant 3.200000e+01 : f32
    %12 = vector.broadcast %cst_7 : f32 to vector<16x1xf32>
    %13 = arith.divf %11, %12 : vector<16x1xf32>
    %cst_8 = arith.constant 9.99999974E-6 : f32
    %14 = vector.broadcast %cst_8 : f32 to vector<16x1xf32>
    %15 = arith.addf %13, %14 : vector<16x1xf32>
    %16 = math.rsqrt %15 : vector<16x1xf32>
    %17 = vector.broadcast %16 : vector<16x1xf32> to vector<16x32xf32>
    %18 = arith.mulf %8, %17 : vector<16x32xf32>
    %19 = vector.broadcast %1 : vector<1x32xf32> to vector<16x32xf32>
    %20 = arith.mulf %18, %19 : vector<16x32xf32>
    %21 = vector.broadcast %2 : vector<1x32xf32> to vector<16x32xf32>
    %22 = arith.addf %20, %21 : vector<16x32xf32>
    %23 = arith.truncf %22 : vector<16x32xf32> to vector<16x32xbf16>
    %c0_9 = arith.constant 0 : index
    %c0_10 = arith.constant 0 : index
    %24 = vector.load %arg4[%c0_9, %c0_10] : memref<32x128xbf16, #tpu.memory_space<vmem>>, vector<32x128xbf16>
    %cst_11 = arith.constant dense<0.000000e+00> : vector<16x128xf32>
    %25 = tpu.matmul %23, %24, %cst_11 {dimension_numbers = #tpu.dot_dimension_numbers<[1], [0], [0], [1], [0, 0, 1, 1], [], []>} : vector<16x32xbf16>, vector<32x128xbf16>, vector<16x128xf32> -> vector<16x128xf32>
    %c0_12 = arith.constant 0 : index
    %c0_13 = arith.constant 0 : index
    %26 = vector.load %arg5[%c0_12, %c0_13] : memref<1x128xf32, #tpu.memory_space<vmem>>, vector<1x128xf32>
    %27 = vector.broadcast %26 : vector<1x128xf32> to vector<16x128xf32>
    %28 = arith.addf %25, %27 : vector<16x128xf32>
    %cst_14 = arith.constant 5.000000e-01 : f32
    %29 = vector.broadcast %cst_14 : f32 to vector<16x128xf32>
    %30 = arith.mulf %29, %28 : vector<16x128xf32>
    %cst_15 = arith.constant 0.707106769 : f32
    %31 = vector.broadcast %cst_15 : f32 to vector<16x128xf32>
    %32 = arith.mulf %28, %31 : vector<16x128xf32>
    %33 = math.absf %32 : vector<16x128xf32>
    %cst_16 = arith.constant 0.327591091 : f32
    %34 = vector.broadcast %cst_16 : f32 to vector<16x128xf32>
    %35 = arith.mulf %34, %33 : vector<16x128xf32>
    %cst_17 = arith.constant 1.000000e+00 : f32
    %36 = vector.broadcast %cst_17 : f32 to vector<16x128xf32>
    %37 = arith.addf %36, %35 : vector<16x128xf32>
    %cst_18 = arith.constant 1.000000e+00 : f32
    %38 = vector.broadcast %cst_18 : f32 to vector<16x128xf32>
    %39 = arith.divf %38, %37 : vector<16x128xf32>
    %cst_19 = arith.constant 1.06140542 : f32
    %40 = vector.broadcast %cst_19 : f32 to vector<16x128xf32>
    %41 = arith.mulf %40, %39 : vector<16x128xf32>
    %cst_20 = arith.constant -1.45315206 : f32
    %42 = vector.broadcast %cst_20 : f32 to vector<16x128xf32>
    %43 = arith.addf %41, %42 : vector<16x128xf32>
    %44 = arith.mulf %43, %39 : vector<16x128xf32>
    %cst_21 = arith.constant 1.42141378 : f32
    %45 = vector.broadcast %cst_21 : f32 to vector<16x128xf32>
    %46 = arith.addf %44, %45 : vector<16x128xf32>
    %47 = arith.mulf %46, %39 : vector<16x128xf32>
    %cst_22 = arith.constant -0.284496725 : f32
    %48 = vector.broadcast %cst_22 : f32 to vector<16x128xf32>
    %49 = arith.addf %47, %48 : vector<16x128xf32>
    %50 = arith.mulf %49, %39 : vector<16x128xf32>
    %cst_23 = arith.constant 0.254829586 : f32
    %51 = vector.broadcast %cst_23 : f32 to vector<16x128xf32>
    %52 = arith.addf %50, %51 : vector<16x128xf32>
    %53 = arith.mulf %52, %39 : vector<16x128xf32>
    %cst_24 = arith.constant 0.000000e+00 : f32
    %54 = vector.broadcast %cst_24 : f32 to vector<16x128xf32>
    %55 = arith.subf %54, %33 : vector<16x128xf32>
    %56 = arith.mulf %55, %33 : vector<16x128xf32>
    %57 = math.exp %56 : vector<16x128xf32>
    %58 = arith.mulf %53, %57 : vector<16x128xf32>
    %cst_25 = arith.constant 1.000000e+00 : f32
    %59 = vector.broadcast %cst_25 : f32 to vector<16x128xf32>
    %60 = arith.subf %59, %58 : vector<16x128xf32>
    %cst_26 = arith.constant 0.000000e+00 : f32
    %61 = vector.broadcast %cst_26 : f32 to vector<16x128xf32>
    %62 = arith.cmpf oge, %32, %61 : vector<16x128xf32>
    %cst_27 = arith.constant 0.000000e+00 : f32
    %63 = vector.broadcast %cst_27 : f32 to vector<16x128xf32>
    %64 = arith.subf %63, %60 : vector<16x128xf32>
    %65 = arith.select %62, %60, %64 : vector<16x128xi1>, vector<16x128xf32>
    %cst_28 = arith.constant 1.000000e+00 : f32
    %66 = vector.broadcast %cst_28 : f32 to vector<16x128xf32>
    %67 = arith.addf %66, %65 : vector<16x128xf32>
    %68 = arith.mulf %30, %67 : vector<16x128xf32>
    %69 = arith.truncf %68 : vector<16x128xf32> to vector<16x128xbf16>
    %c0_29 = arith.constant 0 : index
    %c0_30 = arith.constant 0 : index
    %70 = vector.load %arg6[%c0_29, %c0_30] : memref<128x32xbf16, #tpu.memory_space<vmem>>, vector<128x32xbf16>
    %cst_31 = arith.constant dense<0.000000e+00> : vector<16x32xf32>
    %71 = tpu.matmul %69, %70, %cst_31 {dimension_numbers = #tpu.dot_dimension_numbers<[1], [0], [0], [1], [0, 0, 1, 1], [], []>} : vector<16x128xbf16>, vector<128x32xbf16>, vector<16x32xf32> -> vector<16x32xf32>
    %c0_32 = arith.constant 0 : index
    %c0_33 = arith.constant 0 : index
    %72 = vector.load %arg7[%c0_32, %c0_33] : memref<1x32xf32, #tpu.memory_space<vmem>>, vector<1x32xf32>
    %73 = vector.broadcast %72 : vector<1x32xf32> to vector<16x32xf32>
    %74 = arith.addf %71, %73 : vector<16x32xf32>
    %75 = arith.addf %0, %74 : vector<16x32xf32>
    %c0_34 = arith.constant 0 : index
    %c0_35 = arith.constant 0 : index
    %76 = vector.load %arg8[%c0_34, %c0_35] : memref<16x32xf32, #tpu.memory_space<vmem>>, vector<16x32xf32>
    tpu.vector_store %arg8[%c0_34, %c0_35], %75 {strides = array<i32>} : memref<16x32xf32, #tpu.memory_space<vmem>>, vector<16x32xf32>,
    return
  }
  func.func @transform_0(%arg0: i32) -> (i32, i32) {
    %c0_i32 = arith.constant 0 : i32
    %c0_i32_0 = arith.constant 0 : i32
    return %arg0, %c0_i32 : i32, i32
  }
  func.func @transform_1(%arg0: i32) -> (i32, i32) {
    %c0_i32 = arith.constant 0 : i32
    %c0_i32_0 = arith.constant 0 : i32
    %c0_i32_1 = arith.constant 0 : i32
    return %c0_i32, %c0_i32_0 : i32, i32
  }
  func.func @transform_2(%arg0: i32) -> (i32, i32) {
    %c0_i32 = arith.constant 0 : i32
    %c0_i32_0 = arith.constant 0 : i32
    %c0_i32_1 = arith.constant 0 : i32
    return %c0_i32, %c0_i32_0 : i32, i32
  }
  func.func @transform_3(%arg0: i32) -> (i32, i32) {
    %c0_i32 = arith.constant 0 : i32
    %c0_i32_0 = arith.constant 0 : i32
    %c0_i32_1 = arith.constant 0 : i32
    return %c0_i32, %c0_i32_0 : i32, i32
  }
  func.func @transform_4(%arg0: i32) -> (i32, i32) {
    %c0_i32 = arith.constant 0 : i32
    %c0_i32_0 = arith.constant 0 : i32
    %c0_i32_1 = arith.constant 0 : i32
    return %c0_i32, %c0_i32_0 : i32, i32
  }
  func.func @transform_5(%arg0: i32) -> (i32, i32) {
    %c0_i32 = arith.constant 0 : i32
    %c0_i32_0 = arith.constant 0 : i32
    %c0_i32_1 = arith.constant 0 : i32
    return %c0_i32, %c0_i32_0 : i32, i32
  }
  func.func @transform_6(%arg0: i32) -> (i32, i32) {
    %c0_i32 = arith.constant 0 : i32
    %c0_i32_0 = arith.constant 0 : i32
    %c0_i32_1 = arith.constant 0 : i32
    return %c0_i32, %c0_i32_0 : i32, i32
  }
  func.func @transform_7(%arg0: i32) -> (i32, i32) {
    %c0_i32 = arith.constant 0 : i32
    %c0_i32_0 = arith.constant 0 : i32
    return %arg0, %c0_i32 : i32, i32
  }
}

module attributes {stable_mosaic.version = 11 : i64} {
  func.func @_window_attn_kernel(%arg0: i32, %arg1: memref<16x32xf32, #tpu.memory_space<vmem>>, %arg2: memref<1x32xf32, #tpu.memory_space<vmem>>, %arg3: memref<1x32xf32, #tpu.memory_space<vmem>>, %arg4: memref<32x96xbf16, #tpu.memory_space<vmem>>, %arg5: memref<1x96xf32, #tpu.memory_space<vmem>>, %arg6: memref<32x32xbf16, #tpu.memory_space<vmem>>, %arg7: memref<1x32xf32, #tpu.memory_space<vmem>>, %arg8: memref<1x4x16x16xf32, #tpu.memory_space<vmem>>, %arg9: memref<16x32xf32, #tpu.memory_space<vmem>>, %arg10: memref<1x1x128xf32, #tpu.memory_space<vmem>>) attributes {dimension_semantics = [#tpu.dimension_semantics<parallel>], iteration_bounds = array<i64: 2>, scalar_prefetch = 0 : i64, scratch_operands = 0 : i64, tpu.core_type = #tpu.core_type<tc>, window_params = [{transform_indices = @transform_0, window_bounds = array<i64: 16, 32>}, {pipeline_mode = #tpu.pipeline_mode<synchronous>, transform_indices = @transform_1, window_bounds = array<i64: 1, 32>}, {pipeline_mode = #tpu.pipeline_mode<synchronous>, transform_indices = @transform_2, window_bounds = array<i64: 1, 32>}, {pipeline_mode = #tpu.pipeline_mode<synchronous>, transform_indices = @transform_3, window_bounds = array<i64: 32, 96>}, {pipeline_mode = #tpu.pipeline_mode<synchronous>, transform_indices = @transform_4, window_bounds = array<i64: 1, 96>}, {pipeline_mode = #tpu.pipeline_mode<synchronous>, transform_indices = @transform_5, window_bounds = array<i64: 32, 32>}, {pipeline_mode = #tpu.pipeline_mode<synchronous>, transform_indices = @transform_6, window_bounds = array<i64: 1, 32>}, {pipeline_mode = #tpu.pipeline_mode<synchronous>, transform_indices = @transform_7, window_bounds = array<i64: 1, 4, 16, 16>}, {transform_indices = @transform_8, window_bounds = array<i64: 16, 32>}, {transform_indices = @transform_9, window_bounds = array<i64: 1, 1, 128>}]} {
    %c0 = arith.constant 0 : index
    %c0_0 = arith.constant 0 : index
    %0 = vector.load %arg1[%c0, %c0_0] : memref<16x32xf32, #tpu.memory_space<vmem>>, vector<16x32xf32>
    %c0_1 = arith.constant 0 : index
    %c0_2 = arith.constant 0 : index
    %1 = vector.load %arg2[%c0_1, %c0_2] : memref<1x32xf32, #tpu.memory_space<vmem>>, vector<1x32xf32>
    %c0_3 = arith.constant 0 : index
    %c0_4 = arith.constant 0 : index
    %2 = vector.load %arg3[%c0_3, %c0_4] : memref<1x32xf32, #tpu.memory_space<vmem>>, vector<1x32xf32>
    %cst = arith.constant dense<0.000000e+00> : vector<16xf32>
    %3 = vector.multi_reduction <add>, %0, %cst [1] : vector<16x32xf32> to vector<16xf32>
    %4 = vector.shape_cast %3 : vector<16xf32> to vector<16x1xf32>
    %cst_5 = arith.constant 3.200000e+01 : f32
    %5 = vector.broadcast %cst_5 : f32 to vector<16x1xf32>
    %6 = arith.divf %4, %5 : vector<16x1xf32>
    %7 = vector.broadcast %6 : vector<16x1xf32> to vector<16x32xf32>
    %8 = arith.subf %0, %7 : vector<16x32xf32>
    %9 = arith.mulf %8, %8 : vector<16x32xf32>
    %cst_6 = arith.constant dense<0.000000e+00> : vector<16xf32>
    %10 = vector.multi_reduction <add>, %9, %cst_6 [1] : vector<16x32xf32> to vector<16xf32>
    %11 = vector.shape_cast %10 : vector<16xf32> to vector<16x1xf32>
    %cst_7 = arith.constant 3.200000e+01 : f32
    %12 = vector.broadcast %cst_7 : f32 to vector<16x1xf32>
    %13 = arith.divf %11, %12 : vector<16x1xf32>
    %cst_8 = arith.constant 9.99999974E-6 : f32
    %14 = vector.broadcast %cst_8 : f32 to vector<16x1xf32>
    %15 = arith.addf %13, %14 : vector<16x1xf32>
    %16 = math.rsqrt %15 : vector<16x1xf32>
    %17 = vector.broadcast %16 : vector<16x1xf32> to vector<16x32xf32>
    %18 = arith.mulf %8, %17 : vector<16x32xf32>
    %19 = vector.broadcast %1 : vector<1x32xf32> to vector<16x32xf32>
    %20 = arith.mulf %18, %19 : vector<16x32xf32>
    %21 = vector.broadcast %2 : vector<1x32xf32> to vector<16x32xf32>
    %22 = arith.addf %20, %21 : vector<16x32xf32>
    %23 = arith.truncf %22 : vector<16x32xf32> to vector<16x32xbf16>
    %c0_9 = arith.constant 0 : index
    %c0_10 = arith.constant 0 : index
    %24 = vector.load %arg4[%c0_9, %c0_10] : memref<32x96xbf16, #tpu.memory_space<vmem>>, vector<32x96xbf16>
    %cst_11 = arith.constant dense<0.000000e+00> : vector<16x96xf32>
    %25 = tpu.matmul %23, %24, %cst_11 {dimension_numbers = #tpu.dot_dimension_numbers<[1], [0], [0], [1], [0, 0, 1, 1], [], []>} : vector<16x32xbf16>, vector<32x96xbf16>, vector<16x96xf32> -> vector<16x96xf32>
    %c0_12 = arith.constant 0 : index
    %c0_13 = arith.constant 0 : index
    %26 = vector.load %arg5[%c0_12, %c0_13] : memref<1x96xf32, #tpu.memory_space<vmem>>, vector<1x96xf32>
    %27 = vector.broadcast %26 : vector<1x96xf32> to vector<16x96xf32>
    %28 = arith.addf %25, %27 : vector<16x96xf32>
    %c0_14 = arith.constant 0 : index
    %c0_15 = arith.constant 0 : index
    %c0_16 = arith.constant 0 : index
    %c0_17 = arith.constant 0 : index
    %29 = vector.load %arg8[%c0_14, %c0_15, %c0_16, %c0_17] : memref<1x4x16x16xf32, #tpu.memory_space<vmem>>, vector<1x4x16x16xf32>
    %cst_18 = arith.constant 0.000000e+00 : f32
    %30 = vector.broadcast %cst_18 : f32 to vector<1x16xf32>
    %31 = vector.extract_strided_slice %28 {offsets = [0, 0], sizes = [16, 8], strides = [1, 1]} : vector<16x96xf32> to vector<16x8xf32>
    %32 = vector.shape_cast %31 : vector<16x8xf32> to vector<1x16x8xf32>
    %cst_19 = arith.constant 0.353553385 : f32
    %33 = vector.broadcast %cst_19 : f32 to vector<1x16x8xf32>
    %34 = arith.mulf %32, %33 : vector<1x16x8xf32>
    %35 = vector.extract_strided_slice %28 {offsets = [0, 32], sizes = [16, 8], strides = [1, 1]} : vector<16x96xf32> to vector<16x8xf32>
    %36 = vector.shape_cast %35 : vector<16x8xf32> to vector<1x16x8xf32>
    %37 = vector.extract_strided_slice %28 {offsets = [0, 64], sizes = [16, 8], strides = [1, 1]} : vector<16x96xf32> to vector<16x8xf32>
    %38 = vector.shape_cast %37 : vector<16x8xf32> to vector<1x16x8xf32>
    "tpu.trace_start"() <{level = 10 : i32, message = "wnd,wmd->wnm"}> : () -> ()
    %cst_20 = arith.constant dense<0.000000e+00> : vector<1x16x16xf32>
    %39 = tpu.matmul %34, %36, %cst_20 {dimension_numbers = #tpu.dot_dimension_numbers<[2], [2], [1], [1], [0, 0, 0, 1, 1, 1], [0], [0]>} : vector<1x16x8xf32>, vector<1x16x8xf32>, vector<1x16x16xf32> -> vector<1x16x16xf32>
    "tpu.trace_stop"() : () -> ()
    %40 = vector.extract_strided_slice %29 {offsets = [0, 0, 0, 0], sizes = [1, 1, 16, 16], strides = [1, 1, 1, 1]} : vector<1x4x16x16xf32> to vector<1x1x16x16xf32>
    %41 = vector.shape_cast %40 : vector<1x1x16x16xf32> to vector<1x16x16xf32>
    %42 = arith.addf %39, %41 : vector<1x16x16xf32>
    %cst_21 = arith.constant dense<0xFF800000> : vector<1x16xf32>
    %43 = vector.multi_reduction <maximumf>, %42, %cst_21 [2] : vector<1x16x16xf32> to vector<1x16xf32>
    %44 = vector.shape_cast %43 : vector<1x16xf32> to vector<1x16x1xf32>
    %45 = vector.broadcast %44 : vector<1x16x1xf32> to vector<1x16x16xf32>
    %46 = arith.subf %42, %45 : vector<1x16x16xf32>
    %47 = math.exp %46 : vector<1x16x16xf32>
    %cst_22 = arith.constant dense<0.000000e+00> : vector<1x16xf32>
    %48 = vector.multi_reduction <add>, %47, %cst_22 [2] : vector<1x16x16xf32> to vector<1x16xf32>
    %49 = vector.shape_cast %48 : vector<1x16xf32> to vector<1x16x1xf32>
    %50 = tpu.reciprocal %49 {approx = true} : vector<1x16x1xf32> -> vector<1x16x1xf32>
    %51 = vector.broadcast %50 : vector<1x16x1xf32> to vector<1x16x16xf32>
    %52 = arith.mulf %47, %51 : vector<1x16x16xf32>
    %53 = vector.extract_strided_slice %52 {offsets = [0, 0, 0], sizes = [1, 1, 16], strides = [1, 1, 1]} : vector<1x16x16xf32> to vector<1x1x16xf32>
    %54 = vector.shape_cast %53 : vector<1x1x16xf32> to vector<1x16xf32>
    %55 = arith.addf %30, %54 : vector<1x16xf32>
    "tpu.trace_start"() <{level = 10 : i32, message = "wnm,wmd->wnd"}> : () -> ()
    %cst_23 = arith.constant dense<0.000000e+00> : vector<1x16x8xf32>
    %56 = tpu.matmul %52, %38, %cst_23 {dimension_numbers = #tpu.dot_dimension_numbers<[2], [1], [1], [2], [0, 0, 0, 1, 1, 2], [0], [0]>} : vector<1x16x16xf32>, vector<1x16x8xf32>, vector<1x16x8xf32> -> vector<1x16x8xf32>
    "tpu.trace_stop"() : () -> ()
    %57 = vector.shape_cast %56 : vector<1x16x8xf32> to vector<16x8xf32>
    %58 = vector.extract_strided_slice %28 {offsets = [0, 8], sizes = [16, 8], strides = [1, 1]} : vector<16x96xf32> to vector<16x8xf32>
    %59 = vector.shape_cast %58 : vector<16x8xf32> to vector<1x16x8xf32>
    %cst_24 = arith.constant 0.353553385 : f32
    %60 = vector.broadcast %cst_24 : f32 to vector<1x16x8xf32>
    %61 = arith.mulf %59, %60 : vector<1x16x8xf32>
    %62 = vector.extract_strided_slice %28 {offsets = [0, 40], sizes = [16, 8], strides = [1, 1]} : vector<16x96xf32> to vector<16x8xf32>
    %63 = vector.shape_cast %62 : vector<16x8xf32> to vector<1x16x8xf32>
    %64 = vector.extract_strided_slice %28 {offsets = [0, 72], sizes = [16, 8], strides = [1, 1]} : vector<16x96xf32> to vector<16x8xf32>
    %65 = vector.shape_cast %64 : vector<16x8xf32> to vector<1x16x8xf32>
    "tpu.trace_start"() <{level = 10 : i32, message = "wnd,wmd->wnm"}> : () -> ()
    %cst_25 = arith.constant dense<0.000000e+00> : vector<1x16x16xf32>
    %66 = tpu.matmul %61, %63, %cst_25 {dimension_numbers = #tpu.dot_dimension_numbers<[2], [2], [1], [1], [0, 0, 0, 1, 1, 1], [0], [0]>} : vector<1x16x8xf32>, vector<1x16x8xf32>, vector<1x16x16xf32> -> vector<1x16x16xf32>
    "tpu.trace_stop"() : () -> ()
    %67 = vector.extract_strided_slice %29 {offsets = [0, 1, 0, 0], sizes = [1, 1, 16, 16], strides = [1, 1, 1, 1]} : vector<1x4x16x16xf32> to vector<1x1x16x16xf32>
    %68 = vector.shape_cast %67 : vector<1x1x16x16xf32> to vector<1x16x16xf32>
    %69 = arith.addf %66, %68 : vector<1x16x16xf32>
    %cst_26 = arith.constant dense<0xFF800000> : vector<1x16xf32>
    %70 = vector.multi_reduction <maximumf>, %69, %cst_26 [2] : vector<1x16x16xf32> to vector<1x16xf32>
    %71 = vector.shape_cast %70 : vector<1x16xf32> to vector<1x16x1xf32>
    %72 = vector.broadcast %71 : vector<1x16x1xf32> to vector<1x16x16xf32>
    %73 = arith.subf %69, %72 : vector<1x16x16xf32>
    %74 = math.exp %73 : vector<1x16x16xf32>
    %cst_27 = arith.constant dense<0.000000e+00> : vector<1x16xf32>
    %75 = vector.multi_reduction <add>, %74, %cst_27 [2] : vector<1x16x16xf32> to vector<1x16xf32>
    %76 = vector.shape_cast %75 : vector<1x16xf32> to vector<1x16x1xf32>
    %77 = tpu.reciprocal %76 {approx = true} : vector<1x16x1xf32> -> vector<1x16x1xf32>
    %78 = vector.broadcast %77 : vector<1x16x1xf32> to vector<1x16x16xf32>
    %79 = arith.mulf %74, %78 : vector<1x16x16xf32>
    %80 = vector.extract_strided_slice %79 {offsets = [0, 0, 0], sizes = [1, 1, 16], strides = [1, 1, 1]} : vector<1x16x16xf32> to vector<1x1x16xf32>
    %81 = vector.shape_cast %80 : vector<1x1x16xf32> to vector<1x16xf32>
    %82 = arith.addf %55, %81 : vector<1x16xf32>
    "tpu.trace_start"() <{level = 10 : i32, message = "wnm,wmd->wnd"}> : () -> ()
    %cst_28 = arith.constant dense<0.000000e+00> : vector<1x16x8xf32>
    %83 = tpu.matmul %79, %65, %cst_28 {dimension_numbers = #tpu.dot_dimension_numbers<[2], [1], [1], [2], [0, 0, 0, 1, 1, 2], [0], [0]>} : vector<1x16x16xf32>, vector<1x16x8xf32>, vector<1x16x8xf32> -> vector<1x16x8xf32>
    "tpu.trace_stop"() : () -> ()
    %84 = vector.shape_cast %83 : vector<1x16x8xf32> to vector<16x8xf32>
    %85 = vector.extract_strided_slice %28 {offsets = [0, 16], sizes = [16, 8], strides = [1, 1]} : vector<16x96xf32> to vector<16x8xf32>
    %86 = vector.shape_cast %85 : vector<16x8xf32> to vector<1x16x8xf32>
    %cst_29 = arith.constant 0.353553385 : f32
    %87 = vector.broadcast %cst_29 : f32 to vector<1x16x8xf32>
    %88 = arith.mulf %86, %87 : vector<1x16x8xf32>
    %89 = vector.extract_strided_slice %28 {offsets = [0, 48], sizes = [16, 8], strides = [1, 1]} : vector<16x96xf32> to vector<16x8xf32>
    %90 = vector.shape_cast %89 : vector<16x8xf32> to vector<1x16x8xf32>
    %91 = vector.extract_strided_slice %28 {offsets = [0, 80], sizes = [16, 8], strides = [1, 1]} : vector<16x96xf32> to vector<16x8xf32>
    %92 = vector.shape_cast %91 : vector<16x8xf32> to vector<1x16x8xf32>
    "tpu.trace_start"() <{level = 10 : i32, message = "wnd,wmd->wnm"}> : () -> ()
    %cst_30 = arith.constant dense<0.000000e+00> : vector<1x16x16xf32>
    %93 = tpu.matmul %88, %90, %cst_30 {dimension_numbers = #tpu.dot_dimension_numbers<[2], [2], [1], [1], [0, 0, 0, 1, 1, 1], [0], [0]>} : vector<1x16x8xf32>, vector<1x16x8xf32>, vector<1x16x16xf32> -> vector<1x16x16xf32>
    "tpu.trace_stop"() : () -> ()
    %94 = vector.extract_strided_slice %29 {offsets = [0, 2, 0, 0], sizes = [1, 1, 16, 16], strides = [1, 1, 1, 1]} : vector<1x4x16x16xf32> to vector<1x1x16x16xf32>
    %95 = vector.shape_cast %94 : vector<1x1x16x16xf32> to vector<1x16x16xf32>
    %96 = arith.addf %93, %95 : vector<1x16x16xf32>
    %cst_31 = arith.constant dense<0xFF800000> : vector<1x16xf32>
    %97 = vector.multi_reduction <maximumf>, %96, %cst_31 [2] : vector<1x16x16xf32> to vector<1x16xf32>
    %98 = vector.shape_cast %97 : vector<1x16xf32> to vector<1x16x1xf32>
    %99 = vector.broadcast %98 : vector<1x16x1xf32> to vector<1x16x16xf32>
    %100 = arith.subf %96, %99 : vector<1x16x16xf32>
    %101 = math.exp %100 : vector<1x16x16xf32>
    %cst_32 = arith.constant dense<0.000000e+00> : vector<1x16xf32>
    %102 = vector.multi_reduction <add>, %101, %cst_32 [2] : vector<1x16x16xf32> to vector<1x16xf32>
    %103 = vector.shape_cast %102 : vector<1x16xf32> to vector<1x16x1xf32>
    %104 = tpu.reciprocal %103 {approx = true} : vector<1x16x1xf32> -> vector<1x16x1xf32>
    %105 = vector.broadcast %104 : vector<1x16x1xf32> to vector<1x16x16xf32>
    %106 = arith.mulf %101, %105 : vector<1x16x16xf32>
    %107 = vector.extract_strided_slice %106 {offsets = [0, 0, 0], sizes = [1, 1, 16], strides = [1, 1, 1]} : vector<1x16x16xf32> to vector<1x1x16xf32>
    %108 = vector.shape_cast %107 : vector<1x1x16xf32> to vector<1x16xf32>
    %109 = arith.addf %82, %108 : vector<1x16xf32>
    "tpu.trace_start"() <{level = 10 : i32, message = "wnm,wmd->wnd"}> : () -> ()
    %cst_33 = arith.constant dense<0.000000e+00> : vector<1x16x8xf32>
    %110 = tpu.matmul %106, %92, %cst_33 {dimension_numbers = #tpu.dot_dimension_numbers<[2], [1], [1], [2], [0, 0, 0, 1, 1, 2], [0], [0]>} : vector<1x16x16xf32>, vector<1x16x8xf32>, vector<1x16x8xf32> -> vector<1x16x8xf32>
    "tpu.trace_stop"() : () -> ()
    %111 = vector.shape_cast %110 : vector<1x16x8xf32> to vector<16x8xf32>
    %112 = vector.extract_strided_slice %28 {offsets = [0, 24], sizes = [16, 8], strides = [1, 1]} : vector<16x96xf32> to vector<16x8xf32>
    %113 = vector.shape_cast %112 : vector<16x8xf32> to vector<1x16x8xf32>
    %cst_34 = arith.constant 0.353553385 : f32
    %114 = vector.broadcast %cst_34 : f32 to vector<1x16x8xf32>
    %115 = arith.mulf %113, %114 : vector<1x16x8xf32>
    %116 = vector.extract_strided_slice %28 {offsets = [0, 56], sizes = [16, 8], strides = [1, 1]} : vector<16x96xf32> to vector<16x8xf32>
    %117 = vector.shape_cast %116 : vector<16x8xf32> to vector<1x16x8xf32>
    %118 = vector.extract_strided_slice %28 {offsets = [0, 88], sizes = [16, 8], strides = [1, 1]} : vector<16x96xf32> to vector<16x8xf32>
    %119 = vector.shape_cast %118 : vector<16x8xf32> to vector<1x16x8xf32>
    "tpu.trace_start"() <{level = 10 : i32, message = "wnd,wmd->wnm"}> : () -> ()
    %cst_35 = arith.constant dense<0.000000e+00> : vector<1x16x16xf32>
    %120 = tpu.matmul %115, %117, %cst_35 {dimension_numbers = #tpu.dot_dimension_numbers<[2], [2], [1], [1], [0, 0, 0, 1, 1, 1], [0], [0]>} : vector<1x16x8xf32>, vector<1x16x8xf32>, vector<1x16x16xf32> -> vector<1x16x16xf32>
    "tpu.trace_stop"() : () -> ()
    %121 = vector.extract_strided_slice %29 {offsets = [0, 3, 0, 0], sizes = [1, 1, 16, 16], strides = [1, 1, 1, 1]} : vector<1x4x16x16xf32> to vector<1x1x16x16xf32>
    %122 = vector.shape_cast %121 : vector<1x1x16x16xf32> to vector<1x16x16xf32>
    %123 = arith.addf %120, %122 : vector<1x16x16xf32>
    %cst_36 = arith.constant dense<0xFF800000> : vector<1x16xf32>
    %124 = vector.multi_reduction <maximumf>, %123, %cst_36 [2] : vector<1x16x16xf32> to vector<1x16xf32>
    %125 = vector.shape_cast %124 : vector<1x16xf32> to vector<1x16x1xf32>
    %126 = vector.broadcast %125 : vector<1x16x1xf32> to vector<1x16x16xf32>
    %127 = arith.subf %123, %126 : vector<1x16x16xf32>
    %128 = math.exp %127 : vector<1x16x16xf32>
    %cst_37 = arith.constant dense<0.000000e+00> : vector<1x16xf32>
    %129 = vector.multi_reduction <add>, %128, %cst_37 [2] : vector<1x16x16xf32> to vector<1x16xf32>
    %130 = vector.shape_cast %129 : vector<1x16xf32> to vector<1x16x1xf32>
    %131 = tpu.reciprocal %130 {approx = true} : vector<1x16x1xf32> -> vector<1x16x1xf32>
    %132 = vector.broadcast %131 : vector<1x16x1xf32> to vector<1x16x16xf32>
    %133 = arith.mulf %128, %132 : vector<1x16x16xf32>
    %134 = vector.extract_strided_slice %133 {offsets = [0, 0, 0], sizes = [1, 1, 16], strides = [1, 1, 1]} : vector<1x16x16xf32> to vector<1x1x16xf32>
    %135 = vector.shape_cast %134 : vector<1x1x16xf32> to vector<1x16xf32>
    %136 = arith.addf %109, %135 : vector<1x16xf32>
    "tpu.trace_start"() <{level = 10 : i32, message = "wnm,wmd->wnd"}> : () -> ()
    %cst_38 = arith.constant dense<0.000000e+00> : vector<1x16x8xf32>
    %137 = tpu.matmul %133, %119, %cst_38 {dimension_numbers = #tpu.dot_dimension_numbers<[2], [1], [1], [2], [0, 0, 0, 1, 1, 2], [0], [0]>} : vector<1x16x16xf32>, vector<1x16x8xf32>, vector<1x16x8xf32> -> vector<1x16x8xf32>
    "tpu.trace_stop"() : () -> ()
    %138 = vector.shape_cast %137 : vector<1x16x8xf32> to vector<16x8xf32>
    %139 = tpu.concatenate %57, %84, %111, %138 in 1 : vector<16x8xf32>, vector<16x8xf32>, vector<16x8xf32>, vector<16x8xf32> -> vector<16x32xf32>
    %140 = arith.truncf %139 : vector<16x32xf32> to vector<16x32xbf16>
    %c0_39 = arith.constant 0 : index
    %c0_40 = arith.constant 0 : index
    %141 = vector.load %arg6[%c0_39, %c0_40] : memref<32x32xbf16, #tpu.memory_space<vmem>>, vector<32x32xbf16>
    %cst_41 = arith.constant dense<0.000000e+00> : vector<16x32xf32>
    %142 = tpu.matmul %140, %141, %cst_41 {dimension_numbers = #tpu.dot_dimension_numbers<[1], [0], [0], [1], [0, 0, 1, 1], [], []>} : vector<16x32xbf16>, vector<32x32xbf16>, vector<16x32xf32> -> vector<16x32xf32>
    %c0_42 = arith.constant 0 : index
    %c0_43 = arith.constant 0 : index
    %143 = vector.load %arg7[%c0_42, %c0_43] : memref<1x32xf32, #tpu.memory_space<vmem>>, vector<1x32xf32>
    %144 = vector.broadcast %143 : vector<1x32xf32> to vector<16x32xf32>
    %145 = arith.addf %142, %144 : vector<16x32xf32>
    %146 = arith.addf %145, %0 : vector<16x32xf32>
    %c0_44 = arith.constant 0 : index
    %c0_45 = arith.constant 0 : index
    %147 = vector.load %arg9[%c0_44, %c0_45] : memref<16x32xf32, #tpu.memory_space<vmem>>, vector<16x32xf32>
    tpu.vector_store %arg9[%c0_44, %c0_45], %146 {strides = array<i32>} : memref<16x32xf32, #tpu.memory_space<vmem>>, vector<16x32xf32>,
    %cst_46 = arith.constant 2.500000e-01 : f32
    %148 = vector.broadcast %cst_46 : f32 to vector<1x16xf32>
    %149 = arith.mulf %136, %148 : vector<1x16xf32>
    %cst_47 = arith.constant 0.000000e+00 : f32
    %150 = vector.broadcast %cst_47 : f32 to vector<1x112xf32>
    %151 = tpu.concatenate %149, %150 in 1 : vector<1x16xf32>, vector<1x112xf32> -> vector<1x128xf32>
    %152 = vector.shape_cast %151 : vector<1x128xf32> to vector<1x1x128xf32>
    %c0_48 = arith.constant 0 : index
    %c0_49 = arith.constant 0 : index
    %c0_50 = arith.constant 0 : index
    %153 = vector.load %arg10[%c0_48, %c0_49, %c0_50] : memref<1x1x128xf32, #tpu.memory_space<vmem>>, vector<1x1x128xf32>
    tpu.vector_store %arg10[%c0_48, %c0_49, %c0_50], %152 {strides = array<i32>} : memref<1x1x128xf32, #tpu.memory_space<vmem>>, vector<1x1x128xf32>,
    return
  }
  func.func @transform_0(%arg0: i32) -> (i32, i32) {
    %c0_i32 = arith.constant 0 : i32
    %c0_i32_0 = arith.constant 0 : i32
    return %arg0, %c0_i32 : i32, i32
  }
  func.func @transform_1(%arg0: i32) -> (i32, i32) {
    %c0_i32 = arith.constant 0 : i32
    %c0_i32_0 = arith.constant 0 : i32
    %c0_i32_1 = arith.constant 0 : i32
    return %c0_i32, %c0_i32_0 : i32, i32
  }
  func.func @transform_2(%arg0: i32) -> (i32, i32) {
    %c0_i32 = arith.constant 0 : i32
    %c0_i32_0 = arith.constant 0 : i32
    %c0_i32_1 = arith.constant 0 : i32
    return %c0_i32, %c0_i32_0 : i32, i32
  }
  func.func @transform_3(%arg0: i32) -> (i32, i32) {
    %c0_i32 = arith.constant 0 : i32
    %c0_i32_0 = arith.constant 0 : i32
    %c0_i32_1 = arith.constant 0 : i32
    return %c0_i32, %c0_i32_0 : i32, i32
  }
  func.func @transform_4(%arg0: i32) -> (i32, i32) {
    %c0_i32 = arith.constant 0 : i32
    %c0_i32_0 = arith.constant 0 : i32
    %c0_i32_1 = arith.constant 0 : i32
    return %c0_i32, %c0_i32_0 : i32, i32
  }
  func.func @transform_5(%arg0: i32) -> (i32, i32) {
    %c0_i32 = arith.constant 0 : i32
    %c0_i32_0 = arith.constant 0 : i32
    %c0_i32_1 = arith.constant 0 : i32
    return %c0_i32, %c0_i32_0 : i32, i32
  }
  func.func @transform_6(%arg0: i32) -> (i32, i32) {
    %c0_i32 = arith.constant 0 : i32
    %c0_i32_0 = arith.constant 0 : i32
    %c0_i32_1 = arith.constant 0 : i32
    return %c0_i32, %c0_i32_0 : i32, i32
  }
  func.func @transform_7(%arg0: i32) -> (i32, i32, i32, i32) {
    %c0_i32 = arith.constant 0 : i32
    %c0_i32_0 = arith.constant 0 : i32
    %c0_i32_1 = arith.constant 0 : i32
    %c0_i32_2 = arith.constant 0 : i32
    %c0_i32_3 = arith.constant 0 : i32
    return %c0_i32, %c0_i32_0, %c0_i32_1, %c0_i32_2 : i32, i32, i32, i32
  }
  func.func @transform_8(%arg0: i32) -> (i32, i32) {
    %c0_i32 = arith.constant 0 : i32
    %c0_i32_0 = arith.constant 0 : i32
    return %arg0, %c0_i32 : i32, i32
  }
  func.func @transform_9(%arg0: i32) -> (i32, i32, i32) {
    %c0_i32 = arith.constant 0 : i32
    %c0_i32_0 = arith.constant 0 : i32
    %c0_i32_1 = arith.constant 0 : i32
    return %arg0, %c0_i32, %c0_i32_0 : i32, i32, i32
  }
}

module attributes {stable_mosaic.version = 11 : i64} {
  func.func @_layernorm_kernel(%arg0: i32, %arg1: memref<16x32xf32, #tpu.memory_space<vmem>>, %arg2: memref<1x32xf32, #tpu.memory_space<vmem>>, %arg3: memref<1x32xf32, #tpu.memory_space<vmem>>, %arg4: memref<16x32xf32, #tpu.memory_space<vmem>>) attributes {dimension_semantics = [#tpu.dimension_semantics<parallel>], iteration_bounds = array<i64: 2>, scalar_prefetch = 0 : i64, scratch_operands = 0 : i64, tpu.core_type = #tpu.core_type<tc>, window_params = [{transform_indices = @transform_0, window_bounds = array<i64: 16, 32>}, {pipeline_mode = #tpu.pipeline_mode<synchronous>, transform_indices = @transform_1, window_bounds = array<i64: 1, 32>}, {pipeline_mode = #tpu.pipeline_mode<synchronous>, transform_indices = @transform_2, window_bounds = array<i64: 1, 32>}, {transform_indices = @transform_3, window_bounds = array<i64: 16, 32>}]} {
    %c0 = arith.constant 0 : index
    %c0_0 = arith.constant 0 : index
    %0 = vector.load %arg1[%c0, %c0_0] : memref<16x32xf32, #tpu.memory_space<vmem>>, vector<16x32xf32>
    %c0_1 = arith.constant 0 : index
    %c0_2 = arith.constant 0 : index
    %1 = vector.load %arg2[%c0_1, %c0_2] : memref<1x32xf32, #tpu.memory_space<vmem>>, vector<1x32xf32>
    %c0_3 = arith.constant 0 : index
    %c0_4 = arith.constant 0 : index
    %2 = vector.load %arg3[%c0_3, %c0_4] : memref<1x32xf32, #tpu.memory_space<vmem>>, vector<1x32xf32>
    %cst = arith.constant dense<0.000000e+00> : vector<16xf32>
    %3 = vector.multi_reduction <add>, %0, %cst [1] : vector<16x32xf32> to vector<16xf32>
    %4 = vector.shape_cast %3 : vector<16xf32> to vector<16x1xf32>
    %cst_5 = arith.constant 3.200000e+01 : f32
    %5 = vector.broadcast %cst_5 : f32 to vector<16x1xf32>
    %6 = arith.divf %4, %5 : vector<16x1xf32>
    %7 = vector.broadcast %6 : vector<16x1xf32> to vector<16x32xf32>
    %8 = arith.subf %0, %7 : vector<16x32xf32>
    %9 = arith.mulf %8, %8 : vector<16x32xf32>
    %cst_6 = arith.constant dense<0.000000e+00> : vector<16xf32>
    %10 = vector.multi_reduction <add>, %9, %cst_6 [1] : vector<16x32xf32> to vector<16xf32>
    %11 = vector.shape_cast %10 : vector<16xf32> to vector<16x1xf32>
    %cst_7 = arith.constant 3.200000e+01 : f32
    %12 = vector.broadcast %cst_7 : f32 to vector<16x1xf32>
    %13 = arith.divf %11, %12 : vector<16x1xf32>
    %cst_8 = arith.constant 9.99999974E-6 : f32
    %14 = vector.broadcast %cst_8 : f32 to vector<16x1xf32>
    %15 = arith.addf %13, %14 : vector<16x1xf32>
    %16 = math.rsqrt %15 : vector<16x1xf32>
    %17 = vector.broadcast %16 : vector<16x1xf32> to vector<16x32xf32>
    %18 = arith.mulf %8, %17 : vector<16x32xf32>
    %19 = vector.broadcast %1 : vector<1x32xf32> to vector<16x32xf32>
    %20 = arith.mulf %18, %19 : vector<16x32xf32>
    %21 = vector.broadcast %2 : vector<1x32xf32> to vector<16x32xf32>
    %22 = arith.addf %20, %21 : vector<16x32xf32>
    %c0_9 = arith.constant 0 : index
    %c0_10 = arith.constant 0 : index
    %23 = vector.load %arg4[%c0_9, %c0_10] : memref<16x32xf32, #tpu.memory_space<vmem>>, vector<16x32xf32>
    tpu.vector_store %arg4[%c0_9, %c0_10], %22 {strides = array<i32>} : memref<16x32xf32, #tpu.memory_space<vmem>>, vector<16x32xf32>,
    return
  }
  func.func @transform_0(%arg0: i32) -> (i32, i32) {
    %c0_i32 = arith.constant 0 : i32
    %c0_i32_0 = arith.constant 0 : i32
    return %arg0, %c0_i32 : i32, i32
  }
  func.func @transform_1(%arg0: i32) -> (i32, i32) {
    %c0_i32 = arith.constant 0 : i32
    %c0_i32_0 = arith.constant 0 : i32
    %c0_i32_1 = arith.constant 0 : i32
    return %c0_i32, %c0_i32_0 : i32, i32
  }
  func.func @transform_2(%arg0: i32) -> (i32, i32) {
    %c0_i32 = arith.constant 0 : i32
    %c0_i32_0 = arith.constant 0 : i32
    %c0_i32_1 = arith.constant 0 : i32
    return %c0_i32, %c0_i32_0 : i32, i32
  }
  func.func @transform_3(%arg0: i32) -> (i32, i32) {
    %c0_i32 = arith.constant 0 : i32
    %c0_i32_0 = arith.constant 0 : i32
    return %arg0, %c0_i32 : i32, i32
  }
}

module attributes {stable_mosaic.version = 11 : i64} {
  func.func @_linear_kernel(%arg0: i32, %arg1: memref<2x32xbf16, #tpu.memory_space<vmem>>, %arg2: memref<32x10xbf16, #tpu.memory_space<vmem>>, %arg3: memref<1x10xf32, #tpu.memory_space<vmem>>, %arg4: memref<2x10xf32, #tpu.memory_space<vmem>>) attributes {dimension_semantics = [#tpu.dimension_semantics<parallel>], iteration_bounds = array<i64: 1>, scalar_prefetch = 0 : i64, scratch_operands = 0 : i64, tpu.core_type = #tpu.core_type<tc>, window_params = [{transform_indices = @transform_0, window_bounds = array<i64: 2, 32>}, {pipeline_mode = #tpu.pipeline_mode<synchronous>, transform_indices = @transform_1, window_bounds = array<i64: 32, 10>}, {pipeline_mode = #tpu.pipeline_mode<synchronous>, transform_indices = @transform_2, window_bounds = array<i64: 1, 10>}, {transform_indices = @transform_3, window_bounds = array<i64: 2, 10>}]} {
    %c0 = arith.constant 0 : index
    %c0_0 = arith.constant 0 : index
    %0 = vector.load %arg1[%c0, %c0_0] : memref<2x32xbf16, #tpu.memory_space<vmem>>, vector<2x32xbf16>
    %c0_1 = arith.constant 0 : index
    %c0_2 = arith.constant 0 : index
    %1 = vector.load %arg2[%c0_1, %c0_2] : memref<32x10xbf16, #tpu.memory_space<vmem>>, vector<32x10xbf16>
    %cst = arith.constant dense<0.000000e+00> : vector<2x10xf32>
    %2 = tpu.matmul %0, %1, %cst {dimension_numbers = #tpu.dot_dimension_numbers<[1], [0], [0], [1], [0, 0, 1, 1], [], []>} : vector<2x32xbf16>, vector<32x10xbf16>, vector<2x10xf32> -> vector<2x10xf32>
    %c0_3 = arith.constant 0 : index
    %c0_4 = arith.constant 0 : index
    %3 = vector.load %arg3[%c0_3, %c0_4] : memref<1x10xf32, #tpu.memory_space<vmem>>, vector<1x10xf32>
    %4 = vector.broadcast %3 : vector<1x10xf32> to vector<2x10xf32>
    %5 = arith.addf %2, %4 : vector<2x10xf32>
    %c0_5 = arith.constant 0 : index
    %c0_6 = arith.constant 0 : index
    %6 = vector.load %arg4[%c0_5, %c0_6] : memref<2x10xf32, #tpu.memory_space<vmem>>, vector<2x10xf32>
    tpu.vector_store %arg4[%c0_5, %c0_6], %5 {strides = array<i32>} : memref<2x10xf32, #tpu.memory_space<vmem>>, vector<2x10xf32>,
    return
  }
  func.func @transform_0(%arg0: i32) -> (i32, i32) {
    %c0_i32 = arith.constant 0 : i32
    %c0_i32_0 = arith.constant 0 : i32
    return %arg0, %c0_i32 : i32, i32
  }
  func.func @transform_1(%arg0: i32) -> (i32, i32) {
    %c0_i32 = arith.constant 0 : i32
    %c0_i32_0 = arith.constant 0 : i32
    %c0_i32_1 = arith.constant 0 : i32
    return %c0_i32, %c0_i32_0 : i32, i32
  }
  func.func @transform_2(%arg0: i32) -> (i32, i32) {
    %c0_i32 = arith.constant 0 : i32
    %c0_i32_0 = arith.constant 0 : i32
    %c0_i32_1 = arith.constant 0 : i32
    return %c0_i32, %c0_i32_0 : i32, i32
  }
  func.func @transform_3(%arg0: i32) -> (i32, i32) {
    %c0_i32 = arith.constant 0 : i32
    %c0_i32_0 = arith.constant 0 : i32
    return %arg0, %c0_i32 : i32, i32
  }
}

</mosaic_0001>

<llo_original>
// kernel: swin_forward.12
$region0: #{swin_forward.12}
  #allocation0 [shape = 'u32[]', space=smem, size = 0x4, offset = 0x4, fixed_abs, tag = 'smem constant byte address 0x4 - core index']
  #allocation1 [shape = 'u32[72,128]{1,0:T(1,128)}', space=vmem, size = 0x9000, scoped, tag = 'internal scratch']
  %s0 = inlined_call_operand.vmem [shape: bf16[128,48], index: 0, kind: input, shape index: {}]
  %s1 = inlined_call_operand.vmem [shape: bf16[48,16], index: 1, kind: input, shape index: {}]
  %s2 = inlined_call_operand.vmem [shape: f32[1,16], index: 2, kind: input, shape index: {}]
  %s3 = inlined_call_operand.vmem [shape: f32[1,16], index: 3, kind: input, shape index: {}]
  %s4 = inlined_call_operand.vmem [shape: f32[1,16], index: 4, kind: input, shape index: {}]
  %s5 = inlined_call_operand.vmem [shape: f32[128,16], index: 5, kind: output, shape index: {}]
  %s6 = sld [smem:[#allocation0]]
  $region53: #{swin_forward.12} parent=0
    _
  %s8 = ssub.s32 1, %s6
  %s9 = scalar_select 0, %s8, %s6
  loop: start=0, step=1, limit=4
  $region2: #{swin_forward.12} parent=0 // loop_pre_header
    _
  $region3: #{swin_forward.12} parent=0 // loop_header
    %s11 = sphi 0, %s15
    %p12 = scmp.ge.s32.totalorder %s11, 4
    %s21 = sphi 0, %s23
    %s24 = sphi 0, %s21
    %s25 = sphi 0, %s24
    %s41 = sphi 0, %s25
    %s45 = sphi 0, %s45
    %s47 = sphi 0, %s45
    %s48 = sphi 0, %s47
    %s62 = sphi 0, %s48
    %s66 = sphi 0, %s66
    %s68 = sphi 0, %s66
    %s69 = sphi 0, %s68
    %s83 = sphi 0, %s69
    %s87 = sphi 0, %s87
    %s89 = sphi 0, %s87
    %s90 = sphi 0, %s89
    %s104 = sphi 0, %s90
    %s108 = sphi 0, %s108
    %s110 = sphi 0, %s108
    %s111 = sphi 0, %s110
    %s125 = sphi 0, %s111
    %s131 = sphi 0, %s133
    %s134 = sphi 0, %s131
    %s135 = sphi 0, %s134
    %s151 = sphi 0, %s135
  $region4: #{swin_forward.12} parent=0 // loop_header_branch
    %14 = sbr.rel (%p12) target = $region8
  $region5: #{swin_forward.12} parent=0 // loop_body
    %s16 = ssub.s32 %s11, 1
    %s17 = ssub.s32 %s11, 2
    %s18 = sadd.s32 %s11, 1
    %s19 = ssub.s32 %s11, %s18
    %p20 = scmp.eq.s32.totalorder %s19, 0
    %s22 = sadd.s32 %s21, 1
    %s23 = scalar_select %p20, %s21, %s22
    %p26 = pneg %p20
    %p27 = scmp.eq.s32.totalorder %s11, 1
    %p28 = por %p26, %p27
    %p29 = scmp.ne.s32.totalorder %s21, %s24
    %p30 = scmp.eq.s32.totalorder %s11, 0
    %p31 = por %p29, %p30
    %p32 = scmp.ne.s32.totalorder %s21, %s24
    %p33 = scmp.eq.s32.totalorder %s16, 1
    %p34 = por %p32, %p33
    %p35 = scmp.ne.s32.totalorder %s24, %s25
    %p36 = scmp.eq.s32.totalorder %s16, 0
    %p37 = por %p35, %p36
    %p38 = scmp.ne.s32.totalorder %s24, %s25
    %p39 = scmp.eq.s32.totalorder %s17, 1
    %p40 = por %p38, %p39
    %p42 = scmp.ne.s32.totalorder %s25, %s41
    %p43 = scmp.eq.s32.totalorder %s17, 0
    %p44 = por %p42, %p43
    %s46 = sadd.s32 %s45, 1
    %p49 = scmp.eq.s32.totalorder %s11, 1
    %p50 = scmp.ne.s32.totalorder %s45, %s47
    %p51 = scmp.eq.s32.totalorder %s11, 0
    %p52 = por %p50, %p51
    %p53 = scmp.ne.s32.totalorder %s45, %s47
    %p54 = scmp.eq.s32.totalorder %s16, 1
    %p55 = por %p53, %p54
    %p56 = scmp.ne.s32.totalorder %s47, %s48
    %p57 = scmp.eq.s32.totalorder %s16, 0
    %p58 = por %p56, %p57
    %p59 = scmp.ne.s32.totalorder %s47, %s48
    %p60 = scmp.eq.s32.totalorder %s17, 1
    %p61 = por %p59, %p60
    %p63 = scmp.ne.s32.totalorder %s48, %s62
    %p64 = scmp.eq.s32.totalorder %s17, 0
    %p65 = por %p63, %p64
    %s67 = sadd.s32 %s66, 1
    %p70 = scmp.eq.s32.totalorder %s11, 1
    %p71 = scmp.ne.s32.totalorder %s66, %s68
    %p72 = scmp.eq.s32.totalorder %s11, 0
    %p73 = por %p71, %p72
    %p74 = scmp.ne.s32.totalorder %s66, %s68
    %p75 = scmp.eq.s32.totalorder %s16, 1
    %p76 = por %p74, %p75
    %p77 = scmp.ne.s32.totalorder %s68, %s69
    %p78 = scmp.eq.s32.totalorder %s16, 0
    %p79 = por %p77, %p78
    %p80 = scmp.ne.s32.totalorder %s68, %s69
    %p81 = scmp.eq.s32.totalorder %s17, 1
    %p82 = por %p80, %p81
    %p84 = scmp.ne.s32.totalorder %s69, %s83
    %p85 = scmp.eq.s32.totalorder %s17, 0
    %p86 = por %p84, %p85
    %s88 = sadd.s32 %s87, 1
    %p91 = scmp.eq.s32.totalorder %s11, 1
    %p92 = scmp.ne.s32.totalorder %s87, %s89
    %p93 = scmp.eq.s32.totalorder %s11, 0
    %p94 = por %p92, %p93
    %p95 = scmp.ne.s32.totalorder %s87, %s89
    %p96 = scmp.eq.s32.totalorder %s16, 1
    %p97 = por %p95, %p96
    %p98 = scmp.ne.s32.totalorder %s89, %s90
    %p99 = scmp.eq.s32.totalorder %s16, 0
    %p100 = por %p98, %p99
    %p101 = scmp.ne.s32.totalorder %s89, %s90
    %p102 = scmp.eq.s32.totalorder %s17, 1
    %p103 = por %p101, %p102
    %p105 = scmp.ne.s32.totalorder %s90, %s104
    %p106 = scmp.eq.s32.totalorder %s17, 0
    %p107 = por %p105, %p106
    %s109 = sadd.s32 %s108, 1
    %p112 = scmp.eq.s32.totalorder %s11, 1
    %p113 = scmp.ne.s32.totalorder %s108, %s110
    %p114 = scmp.eq.s32.totalorder %s11, 0
    %p115 = por %p113, %p114
    %p116 = scmp.ne.s32.totalorder %s108, %s110
    %p117 = scmp.eq.s32.totalorder %s16, 1
    %p118 = por %p116, %p117
    %p119 = scmp.ne.s32.totalorder %s110, %s111
    %p120 = scmp.eq.s32.totalorder %s16, 0
    %p121 = por %p119, %p120
    %p122 = scmp.ne.s32.totalorder %s110, %s111
    %p123 = scmp.eq.s32.totalorder %s17, 1
    %p124 = por %p122, %p123
    %p126 = scmp.ne.s32.totalorder %s111, %s125
    %p127 = scmp.eq.s32.totalorder %s17, 0
    %p128 = por %p126, %p127
    %s129 = ssub.s32 %s11, %s18
    %p130 = scmp.eq.s32.totalorder %s129, 0
    %s132 = sadd.s32 %s131, 1
    %s133 = scalar_select %p130, %s131, %s132
    %p136 = pneg %p130
    %p137 = scmp.eq.s32.totalorder %s11, 1
    %p138 = por %p136, %p137
    %p139 = scmp.ne.s32.totalorder %s131, %s134
    %p140 = scmp.eq.s32.totalorder %s11, 0
    %p141 = por %p139, %p140
    %p142 = scmp.ne.s32.totalorder %s131, %s134
    %p143 = scmp.eq.s32.totalorder %s16, 1
    %p144 = por %p142, %p143
    %p145 = scmp.ne.s32.totalorder %s134, %s135
    %p146 = scmp.eq.s32.totalorder %s16, 0
    %p147 = por %p145, %p146
    %p148 = scmp.ne.s32.totalorder %s134, %s135
    %p149 = scmp.eq.s32.totalorder %s17, 1
    %p150 = por %p148, %p149
    %p152 = scmp.ne.s32.totalorder %s135, %s151
    %p153 = scmp.eq.s32.totalorder %s17, 0
    %p154 = por %p152, %p153
    %p155 = scmp.le.s32.totalorder 1, %s11
    %p156 = scmp.lt.s32.totalorder %s11, 3
    %p157 = pnand %p155, %p156
    %p158 = pneg %p157
    // Predicated region
    $region9: #{swin_forward.12} parent=5 // pred_check
      _
    $region10: #{swin_forward.12} parent=5 // pred_check_branch
      %160 = sbr.rel (%p157) target = $region12
    $region11: #{swin_forward.12} parent=5 // pred_region
      %s161 = ssub.s32 %s11, 1
      // Predicated region
      $region13: #{swin_forward.12} parent=11 // pred_check
        %p162 = pneg %p58
      $region14: #{swin_forward.12} parent=11 // pred_check_branch
        %164 = sbr.rel (%p162) target = $region16
      $region15: #{swin_forward.12} parent=11 // pred_region
        _
      $region16: #{swin_forward.12} parent=11 // pred_fallthru
        _
      // Predicated region
      $region17: #{swin_forward.12} parent=11 // pred_check
        %p165 = pneg %p79
      $region18: #{swin_forward.12} parent=11 // pred_check_branch
        %167 = sbr.rel (%p165) target = $region20
      $region19: #{swin_forward.12} parent=11 // pred_region
        _
      $region20: #{swin_forward.12} parent=11 // pred_fallthru
        _
      // Predicated region
      $region21: #{swin_forward.12} parent=11 // pred_check
        %p168 = pneg %p100
      $region22: #{swin_forward.12} parent=11 // pred_check_branch
        %170 = sbr.rel (%p168) target = $region24
      $region23: #{swin_forward.12} parent=11 // pred_region
        _
      $region24: #{swin_forward.12} parent=11 // pred_fallthru
        _
      // Predicated region
      $region25: #{swin_forward.12} parent=11 // pred_check
        %p171 = pneg %p121
      $region26: #{swin_forward.12} parent=11 // pred_check_branch
        %173 = sbr.rel (%p171) target = $region28
      $region27: #{swin_forward.12} parent=11 // pred_region
        _
      $region28: #{swin_forward.12} parent=11 // pred_fallthru
        _
    $region12: #{swin_forward.12} parent=5 // pred_fallthru
      _
    %p174 = scmp.lt.s32.totalorder %s11, 2
    // Predicated region
    $region29: #{swin_forward.12} parent=5 // pred_check
      %p175 = pneg %p174
    $region30: #{swin_forward.12} parent=5 // pred_check_branch
      %177 = sbr.rel (%p175) target = $region32
    $region31: #{swin_forward.12} parent=5 // pred_region
      // Predicated region
      $region33: #{swin_forward.12} parent=31 // pred_check
        %p178 = pneg %p31
      $region34: #{swin_forward.12} parent=31 // pred_check_branch
        %180 = sbr.rel (%p178) target = $region36
      $region35: #{swin_forward.12} parent=31 // pred_region
        %s181 = smul.u32 8, %s11
        %p182 = scmp.lt.s32.totalorder %s181, 15
        %s183 = scalar_select %p182, %s181, 15
        %s184 = smul.addr %s183, 4
        %s185 = scalar_lea.vmem %s0, %s184
        %s186 = smul.u32 8, %s11
      $region36: #{swin_forward.12} parent=31 // pred_fallthru
        _
    $region32: #{swin_forward.12} parent=5 // pred_fallthru
      _
    %p187 = scmp.le.s32.totalorder 1, %s11
    %p188 = scmp.lt.s32.totalorder %s11, 3
    %p189 = pnand %p187, %p188
    %p190 = pneg %p189
    // Predicated region
    $region37: #{swin_forward.12} parent=5 // pred_check
      _
    $region38: #{swin_forward.12} parent=5 // pred_check_branch
      %192 = sbr.rel (%p189) target = $region40
    $region39: #{swin_forward.12} parent=5 // pred_region
      %s193 = ssub.s32 %s11, 1
      %s194 = smul.u32 8, %s16
      %p195 = scmp.lt.s32.totalorder %s194, 15
      %s196 = scalar_select %p195, %s194, 15
      %s197 = smul.addr %s196, 4
      %s198 = scalar_lea.vmem %s0, %s197
      %p199 = pneg %p37
      %p200 = pneg %p34
      %p201 = pneg %p58
      %p202 = pneg %p55
      %p203 = pneg %p79
      %p204 = pneg %p76
      %p205 = pneg %p100
      %p206 = pneg %p97
      %p207 = pneg %p121
      %p208 = pneg %p118
      %p209 = pneg %p147
      %p210 = pneg %p144
      %s211 = smul.u32 8, %s16
      %p212 = scmp.lt.s32.totalorder %s211, 15
      %s213 = scalar_select %p212, %s211, 15
      %s214 = smul.addr %s213, 8
      %s215 = scalar_lea.vmem %s5, %s214
      %s216 = smul.u32 8, %s16
      %p217 = scmp.lt.s32.totalorder %s216, 15
      %s218 = scalar_select %p217, %s216, 15
      %s219 = smul.addr %s218, 4
      %s220 = scalar_lea.vmem %s0, %s219
      %s221 = smul.u32 8, %s16
      %s222 = smul.u32 8, %s16
      %p223 = scmp.lt.s32.totalorder %s222, 15
      %s224 = scalar_select %p223, %s222, 15
      %s225 = smul.addr %s224, 8
      %s226 = scalar_lea.vmem %s5, %s225
      %s227 = smul.u32 8, %s16
      %v229 = vld [vmem:[%s220] sm:$0xf]
      %v230 = vld [vmem:[%s220 + $0x4] sm:$0xf]
      %v231 = vld [vmem:[%s220 + $0x8] sm:$0xf]
      %v232 = vld [vmem:[%s220 + $0xc] sm:$0xf]
      %v233 = vld [vmem:[%s220 + $0x10] sm:$0xf]
      %v234 = vld [vmem:[%s220 + $0x14] sm:$0xf]
      %v235 = vld [vmem:[%s220 + $0x18] sm:$0xf]
      %v236 = vld [vmem:[%s220 + $0x1c] sm:$0xf]
      %v237 = vld [vmem:[%s1] sm:$0xf]
      %v238 = vld [vmem:[%s1 + $0x4] sm:$0xf]
      %v239 = vld [vmem:[%s1 + $0x8] sm:$0xf]
      %v240 = vld [vmem:[%s1 + $0xc] sm:$0xf]
      %v241 = vld [vmem:[%s1 + $0x10] sm:$0xf]
      %v242 = vld [vmem:[%s1 + $0x14] sm:$0xf]
      %v243 = vld [vmem:[%s2] sm:$0x1]
      %v245 = vperm.slane %v243, 0
      %v255 = vunpack.c.l.b16 %v229
      %v256 = vunpack.c.l.b16 %v230
      %v257 = vunpack.c.l.b16 %v231
      %v258 = vunpack.c.l.b16 %v232
      %v259 = vunpack.c.l.b16 %v233
      %v260 = vunpack.c.l.b16 %v234
      %v261 = vunpack.c.l.b16 %v235
      %v262 = vunpack.c.l.b16 %v236
      %v263 = vpack.c.b16 %v256, %v255
      %v264 = vpack.c.b16 %v258, %v257
      %v265 = vpack.c.b16 %v260, %v259
      %v266 = vpack.c.b16 %v262, %v261
      %v273 = vunpack.c.l.b16 %v237
      %v274 = vunpack.c.l.b16 %v238
      %v275 = vunpack.c.l.b16 %v239
      %v276 = vunpack.c.l.b16 %v240
      %v277 = vunpack.c.l.b16 %v241
      %v278 = vunpack.c.l.b16 %v242
      %v279 = vpack.c.b16 %v274, %v273
      %v280 = vpack.c.b16 %v276, %v275
      %v281 = vpack.c.b16 %v278, %v277
      %vm285 = vcmask 392192
      %v287 = vsel %vm285, %v263, 0
      %v290 = vsel %vm285, %v264, 0
      %v293 = vsel %vm285, %v265, 0
      %v296 = vsel %vm285, %v266, 0
      %298 = vmatpush.bf16.msra.mxu0 0
      %299 = vmatpush.bf16.msra.mxu0 0
      %300 = vmatpush.bf16.msra.mxu0 0
      %301 = vmatpush.bf16.msra.mxu0 0
      %302 = vmatpush.bf16.msra.mxu0 0
      %303 = vmatpush.bf16.msra.mxu0 %v281
      %304 = vmatpush.bf16.msra.mxu0 %v280
      %305 = vmatpush.bf16.msra.mxu0 %v279
      %306 = vmatmul.bf16.gmra.mxu0 %v287
      %v307 = vpop.f32.mrf.mxu0
      %v308 = vadd.f32 %v245, %v307
      %v309 = vpop.f32.mrf.mxu0
      %v310 = vadd.f32 %v245, %v309
      %311 = vmatmul.bf16.gmra.mxu0 %v290
      %v312 = vpop.f32.mrf.mxu0
      %v313 = vadd.f32 %v245, %v312
      %v314 = vpop.f32.mrf.mxu0
      %v315 = vadd.f32 %v245, %v314
      %316 = vmatmul.bf16.gmra.mxu0 %v293
      %v317 = vpop.f32.mrf.mxu0
      %v318 = vadd.f32 %v245, %v317
      %v319 = vpop.f32.mrf.mxu0
      %v320 = vadd.f32 %v245, %v319
      %321 = vmatmul.bf16.gmra.mxu0 %v296
      %v322 = vpop.f32.mrf.mxu0
      %v323 = vadd.f32 %v245, %v322
      %v324 = vpop.f32.mrf.mxu0
      %v325 = vadd.f32 %v245, %v324
      %326 = vdwg.mxu0
      %v327 = vld [vmem:[%s3] sm:$0x1]
      %v328 = vld [vmem:[%s4] sm:$0x1]
      %vm329 = vcmask 130048
      %v330 = vsel %vm329, %v308, 0.0
      %331 = vadd.xlane.f32.xlu0 %v330
      %v332 = vpop.xlane.xlu0 %331
      %v333 = vsel %vm329, %v310, 0.0
      %334 = vadd.xlane.f32.xlu0 %v333
      %v335 = vpop.xlane.xlu0 %334
      %v336 = vsel %vm329, %v313, 0.0
      %337 = vadd.xlane.f32.xlu0 %v336
      %v338 = vpop.xlane.xlu0 %337
      %v339 = vsel %vm329, %v315, 0.0
      %340 = vadd.xlane.f32.xlu0 %v339
      %v341 = vpop.xlane.xlu0 %340
      %v342 = vsel %vm329, %v318, 0.0
      %343 = vadd.xlane.f32.xlu0 %v342
      %v344 = vpop.xlane.xlu0 %343
      %v345 = vsel %vm329, %v320, 0.0
      %346 = vadd.xlane.f32.xlu0 %v345
      %v347 = vpop.xlane.xlu0 %346
      %v348 = vsel %vm329, %v323, 0.0
      %349 = vadd.xlane.f32.xlu0 %v348
      %v350 = vpop.xlane.xlu0 %349
      %v351 = vsel %vm329, %v325, 0.0
      %352 = vadd.xlane.f32.xlu0 %v351
      %v353 = vpop.xlane.xlu0 %352
      %v354 = vrcp.pop 16.0
      %v355 = vmul.f32 16.0, %v354
      %v356 = vsub.f32 1.0, %v355
      %v357 = vmul.f32 %v354, %v356
      %v358 = vadd.f32 %v354, %v357
      %vm359 = vweird.f32 %v354
      %v360 = vsel %vm359, %v354, %v358
      %v361 = vmul.f32 %v332, %v360
      %v362 = vmul.f32 %v335, %v360
      %v363 = vmul.f32 %v338, %v360
      %v364 = vmul.f32 %v341, %v360
      %v365 = vmul.f32 %v344, %v360
      %v366 = vmul.f32 %v347, %v360
      %v367 = vmul.f32 %v350, %v360
      %v368 = vmul.f32 %v353, %v360
      %v369 = vsub.f32 %v308, %v361
      %v370 = vsub.f32 %v310, %v362
      %v371 = vsub.f32 %v313, %v363
      %v372 = vsub.f32 %v315, %v364
      %v373 = vsub.f32 %v318, %v365
      %v374 = vsub.f32 %v320, %v366
      %v375 = vsub.f32 %v323, %v367
      %v376 = vsub.f32 %v325, %v368
      %v377 = vmul.f32 %v369, %v369
      %v378 = vmul.f32 %v370, %v370
      %v379 = vmul.f32 %v371, %v371
      %v380 = vmul.f32 %v372, %v372
      %v381 = vmul.f32 %v373, %v373
      %v382 = vmul.f32 %v374, %v374
      %v383 = vmul.f32 %v375, %v375
      %v384 = vmul.f32 %v376, %v376
      %v385 = vsel %vm329, %v377, 0.0
      %386 = vadd.xlane.f32.xlu0 %v385
      %v387 = vpop.xlane.xlu0 %386
      %v388 = vsel %vm329, %v378, 0.0
      %389 = vadd.xlane.f32.xlu0 %v388
      %v390 = vpop.xlane.xlu0 %389
      %v391 = vsel %vm329, %v379, 0.0
      %392 = vadd.xlane.f32.xlu0 %v391
      %v393 = vpop.xlane.xlu0 %392
      %v394 = vsel %vm329, %v380, 0.0
      %395 = vadd.xlane.f32.xlu0 %v394
      %v396 = vpop.xlane.xlu0 %395
      %v397 = vsel %vm329, %v381, 0.0
      %398 = vadd.xlane.f32.xlu0 %v397
      %v399 = vpop.xlane.xlu0 %398
      %v400 = vsel %vm329, %v382, 0.0
      %401 = vadd.xlane.f32.xlu0 %v400
      %v402 = vpop.xlane.xlu0 %401
      %v403 = vsel %vm329, %v383, 0.0
      %404 = vadd.xlane.f32.xlu0 %v403
      %v405 = vpop.xlane.xlu0 %404
      %v406 = vsel %vm329, %v384, 0.0
      %407 = vadd.xlane.f32.xlu0 %v406
      %v408 = vpop.xlane.xlu0 %407
      %v409 = vmul.f32 %v387, %v360
      %v410 = vmul.f32 %v390, %v360
      %v411 = vmul.f32 %v393, %v360
      %v412 = vmul.f32 %v396, %v360
      %v413 = vmul.f32 %v399, %v360
      %v414 = vmul.f32 %v402, %v360
      %v415 = vmul.f32 %v405, %v360
      %v416 = vmul.f32 %v408, %v360
      %v417 = vadd.f32 %v409, 1e-05
      %v418 = vadd.f32 %v410, 1e-05
      %v419 = vadd.f32 %v411, 1e-05
      %v420 = vadd.f32 %v412, 1e-05
      %v421 = vadd.f32 %v413, 1e-05
      %v422 = vadd.f32 %v414, 1e-05
      %v423 = vadd.f32 %v415, 1e-05
      %v424 = vadd.f32 %v416, 1e-05
      %v425 = vrsqrt.pop %v417
      %v426 = vmul.f32 %v425, %v417
      %v427 = vmul.f32 %v426, %v425
      %v428 = vmul.f32 0.5, %v427
      %v429 = vsub.f32 1.5, %v428
      %v430 = vmul.f32 %v425, %v429
      %vm431 = vweird.f32 %v417
      %vm432 = vweird.f32 %v425
      %vm433 = vmor %vm431, %vm432
      %v434 = vsel %vm433, %v425, %v430
      %v435 = vrsqrt.pop %v418
      %v436 = vmul.f32 %v435, %v418
      %v437 = vmul.f32 %v436, %v435
      %v438 = vmul.f32 0.5, %v437
      %v439 = vsub.f32 1.5, %v438
      %v440 = vmul.f32 %v435, %v439
      %vm441 = vweird.f32 %v418
      %vm442 = vweird.f32 %v435
      %vm443 = vmor %vm441, %vm442
      %v444 = vsel %vm443, %v435, %v440
      %v445 = vrsqrt.pop %v419
      %v446 = vmul.f32 %v445, %v419
      %v447 = vmul.f32 %v446, %v445
      %v448 = vmul.f32 0.5, %v447
      %v449 = vsub.f32 1.5, %v448
      %v450 = vmul.f32 %v445, %v449
      %vm451 = vweird.f32 %v419
      %vm452 = vweird.f32 %v445
      %vm453 = vmor %vm451, %vm452
      %v454 = vsel %vm453, %v445, %v450
      %v455 = vrsqrt.pop %v420
      %v456 = vmul.f32 %v455, %v420
      %v457 = vmul.f32 %v456, %v455
      %v458 = vmul.f32 0.5, %v457
      %v459 = vsub.f32 1.5, %v458
      %v460 = vmul.f32 %v455, %v459
      %vm461 = vweird.f32 %v420
      %vm462 = vweird.f32 %v455
      %vm463 = vmor %vm461, %vm462
      %v464 = vsel %vm463, %v455, %v460
      %v465 = vrsqrt.pop %v421
      %v466 = vmul.f32 %v465, %v421
      %v467 = vmul.f32 %v466, %v465
      %v468 = vmul.f32 0.5, %v467
      %v469 = vsub.f32 1.5, %v468
      %v470 = vmul.f32 %v465, %v469
      %vm471 = vweird.f32 %v421
      %vm472 = vweird.f32 %v465
      %vm473 = vmor %vm471, %vm472
      %v474 = vsel %vm473, %v465, %v470
      %v475 = vrsqrt.pop %v422
      %v476 = vmul.f32 %v475, %v422
      %v477 = vmul.f32 %v476, %v475
      %v478 = vmul.f32 0.5, %v477
      %v479 = vsub.f32 1.5, %v478
      %v480 = vmul.f32 %v475, %v479
      %vm481 = vweird.f32 %v422
      %vm482 = vweird.f32 %v475
      %vm483 = vmor %vm481, %vm482
      %v484 = vsel %vm483, %v475, %v480
      %v485 = vrsqrt.pop %v423
      %v486 = vmul.f32 %v485, %v423
      %v487 = vmul.f32 %v486, %v485
      %v488 = vmul.f32 0.5, %v487
      %v489 = vsub.f32 1.5, %v488
      %v490 = vmul.f32 %v485, %v489
      %vm491 = vweird.f32 %v423
      %vm492 = vweird.f32 %v485
      %vm493 = vmor %vm491, %vm492
      %v494 = vsel %vm493, %v485, %v490
      %v495 = vrsqrt.pop %v424
      %v496 = vmul.f32 %v495, %v424
      %v497 = vmul.f32 %v496, %v495
      %v498 = vmul.f32 0.5, %v497
      %v499 = vsub.f32 1.5, %v498
      %v500 = vmul.f32 %v495, %v499
      %vm501 = vweird.f32 %v424
      %vm502 = vweird.f32 %v495
      %vm503 = vmor %vm501, %vm502
      %v504 = vsel %vm503, %v495, %v500
      %v505 = vmul.f32 %v369, %v434
      %v506 = vmul.f32 %v370, %v444
      %v507 = vmul.f32 %v371, %v454
      %v508 = vmul.f32 %v372, %v464
      %v509 = vmul.f32 %v373, %v474
      %v510 = vmul.f32 %v374, %v484
      %v511 = vmul.f32 %v375, %v494
      %v512 = vmul.f32 %v376, %v504
      %v514 = vperm.slane %v327, 0
      %v516 = vmul.f32 %v505, %v514
      %v517 = vmul.f32 %v506, %v514
      %v518 = vmul.f32 %v507, %v514
      %v519 = vmul.f32 %v508, %v514
      %v520 = vmul.f32 %v509, %v514
      %v521 = vmul.f32 %v510, %v514
      %v522 = vmul.f32 %v511, %v514
      %v523 = vmul.f32 %v512, %v514
      %v525 = vperm.slane %v328, 0
      %v527 = vadd.f32 %v516, %v525
      %v528 = vadd.f32 %v517, %v525
      %v529 = vadd.f32 %v518, %v525
      %v530 = vadd.f32 %v519, %v525
      %v531 = vadd.f32 %v520, %v525
      %v532 = vadd.f32 %v521, %v525
      %v533 = vadd.f32 %v522, %v525
      %v534 = vadd.f32 %v523, %v525
      %535 = vst.msk [vmem:[%s226] sm:$0xff] %vm329, %v527
      %536 = vst.msk [vmem:[%s226 + $0x8] sm:$0xff] %vm329, %v528
      %537 = vst.msk [vmem:[%s226 + $0x10] sm:$0xff] %vm329, %v529
      %538 = vst.msk [vmem:[%s226 + $0x18] sm:$0xff] %vm329, %v530
      %539 = vst.msk [vmem:[%s226 + $0x20] sm:$0xff] %vm329, %v531
      %540 = vst.msk [vmem:[%s226 + $0x28] sm:$0xff] %vm329, %v532
      %541 = vst.msk [vmem:[%s226 + $0x30] sm:$0xff] %vm329, %v533
      %542 = vst.msk [vmem:[%s226 + $0x38] sm:$0xff] %vm329, %v534
      %s543 = smul.u32 8, %s16
      %p544 = scmp.lt.s32.totalorder %s543, 15
      %s545 = scalar_select %p544, %s543, 15
      %s546 = smul.addr %s545, 8
      %s547 = scalar_lea.vmem %s5, %s546
      // Predicated region
      $region41: #{swin_forward.12} parent=39 // pred_check
        %p548 = pneg %p144
      $region42: #{swin_forward.12} parent=39 // pred_check_branch
        %550 = sbr.rel (%p548) target = $region44
      $region43: #{swin_forward.12} parent=39 // pred_region
        %s551 = smul.u32 8, %s16
      $region44: #{swin_forward.12} parent=39 // pred_fallthru
        _
    $region40: #{swin_forward.12} parent=5 // pred_fallthru
      _
    %p552 = scmp.le.s32.totalorder 2, %s11
    // Predicated region
    $region45: #{swin_forward.12} parent=5 // pred_check
      %p553 = pneg %p552
    $region46: #{swin_forward.12} parent=5 // pred_check_branch
      %555 = sbr.rel (%p553) target = $region48
    $region47: #{swin_forward.12} parent=5 // pred_region
      %s556 = ssub.s32 %s11, 2
      // Predicated region
      $region49: #{swin_forward.12} parent=47 // pred_check
        %p557 = pneg %p150
      $region50: #{swin_forward.12} parent=47 // pred_check_branch
        %559 = sbr.rel (%p557) target = $region52
      $region51: #{swin_forward.12} parent=47 // pred_region
        %s560 = smul.u32 8, %s17
        %p561 = scmp.lt.s32.totalorder %s560, 15
        %s562 = scalar_select %p561, %s560, 15
        %s563 = smul.addr %s562, 8
        %s564 = scalar_lea.vmem %s5, %s563
      $region52: #{swin_forward.12} parent=47 // pred_fallthru
        _
    $region48: #{swin_forward.12} parent=5 // pred_fallthru
      _
  $region6: #{swin_forward.12} parent=0 // loop_footer
    %s15 = sadd.s32 1, %s11
  $region7: #{swin_forward.12} parent=0 // loop_footer_branch
    %10 = sbr.rel target = $region3
  $region8: #{swin_forward.12} parent=0 // loop_exit
    _

// kernel: swin_forward.13
$region0: #{swin_forward.13}
  #allocation0 [shape = 'u32[]', space=smem, size = 0x4, offset = 0x4, fixed_abs, tag = 'smem constant byte address 0x4 - core index']
  #allocation1 [shape = 'u32[72,128]{1,0:T(1,128)}', space=vmem, size = 0x9000, scoped, tag = 'internal scratch']
  %s0 = inlined_call_operand.vmem [shape: f32[128,16], index: 0, kind: input, shape index: {}]
  %s1 = inlined_call_operand.vmem [shape: f32[1,16], index: 1, kind: input, shape index: {}]
  %s2 = inlined_call_operand.vmem [shape: f32[1,16], index: 2, kind: input, shape index: {}]
  %s3 = inlined_call_operand.vmem [shape: bf16[16,48], index: 3, kind: input, shape index: {}]
  %s4 = inlined_call_operand.vmem [shape: f32[1,48], index: 4, kind: input, shape index: {}]
  %s5 = inlined_call_operand.vmem [shape: bf16[16,16], index: 5, kind: input, shape index: {}]
  %s6 = inlined_call_operand.vmem [shape: f32[1,16], index: 6, kind: input, shape index: {}]
  %s7 = inlined_call_operand.vmem [shape: f32[1,2,16,16], index: 7, kind: input, shape index: {}]
  %s8 = inlined_call_operand.vmem [shape: f32[128,16], index: 8, kind: output, shape index: {0}]
  %s9 = inlined_call_operand.hbm [shape: f32[8,1,128], index: 9, kind: output, shape index: {1}]
  %10 = xla_tuple %s8, %s9
  %s11 = sld [smem:[#allocation0]]
  $region73: #{swin_forward.13} parent=0
    _
  %s13 = ssub.s32 1, %s11
  %s14 = scalar_select 0, %s13, %s11
  $region1: #{swin_forward.13} parent=0
    #allocation2 [shape = 'u8[4096]{0}', space=vmem, size = 0x1000, scoped, tag = 'output window, operand 1']
    #allocation3 [shape = 's32[2]{0}', space=sflag, size = 0x8, scoped, tag = 'scoped memory for swin_forward.13']
    %15 = vsyncpa [#allocation3], 0
    %s16 = scalar_lea.sflag [#allocation3], 1
    %17 = vsyncpa %s16, 0
    loop: start=0, step=1, limit=4
    $region2: #{swin_forward.13} parent=1 // loop_pre_header
      _
    $region3: #{swin_forward.13} parent=1 // loop_header
      %s19 = sphi 0, %s23
      %p20 = scmp.ge.s32.totalorder %s19, 4
      %s29 = sphi 0, %s31
      %s32 = sphi 0, %s29
      %s33 = sphi 0, %s32
      %s49 = sphi 0, %s33
      %s53 = sphi 0, %s53
      %s55 = sphi 0, %s53
      %s56 = sphi 0, %s55
      %s70 = sphi 0, %s56
      %s74 = sphi 0, %s74
      %s76 = sphi 0, %s74
      %s77 = sphi 0, %s76
      %s91 = sphi 0, %s77
      %s95 = sphi 0, %s95
      %s97 = sphi 0, %s95
      %s98 = sphi 0, %s97
      %s112 = sphi 0, %s98
      %s116 = sphi 0, %s116
      %s118 = sphi 0, %s116
      %s119 = sphi 0, %s118
      %s133 = sphi 0, %s119
      %s137 = sphi 0, %s137
      %s139 = sphi 0, %s137
      %s140 = sphi 0, %s139
      %s154 = sphi 0, %s140
      %s158 = sphi 0, %s158
      %s160 = sphi 0, %s158
      %s161 = sphi 0, %s160
      %s175 = sphi 0, %s161
      %s179 = sphi 0, %s179
      %s181 = sphi 0, %s179
      %s182 = sphi 0, %s181
      %s196 = sphi 0, %s182
      %s202 = sphi 0, %s204
      %s205 = sphi 0, %s202
      %s206 = sphi 0, %s205
      %s222 = sphi 0, %s206
      %s228 = sphi 0, %s230
      %s231 = sphi 0, %s228
      %s232 = sphi 0, %s231
      %s248 = sphi 0, %s232
    $region4: #{swin_forward.13} parent=1 // loop_header_branch
      %22 = sbr.rel (%p20) target = $region8
    $region5: #{swin_forward.13} parent=1 // loop_body
      %s24 = ssub.s32 %s19, 1
      %s25 = ssub.s32 %s19, 2
      %s26 = sadd.s32 %s19, 1
      %s27 = ssub.s32 %s19, %s26
      %p28 = scmp.eq.s32.totalorder %s27, 0
      %s30 = sadd.s32 %s29, 1
      %s31 = scalar_select %p28, %s29, %s30
      %p34 = pneg %p28
      %p35 = scmp.eq.s32.totalorder %s19, 1
      %p36 = por %p34, %p35
      %p37 = scmp.ne.s32.totalorder %s29, %s32
      %p38 = scmp.eq.s32.totalorder %s19, 0
      %p39 = por %p37, %p38
      %p40 = scmp.ne.s32.totalorder %s29, %s32
      %p41 = scmp.eq.s32.totalorder %s24, 1
      %p42 = por %p40, %p41
      %p43 = scmp.ne.s32.totalorder %s32, %s33
      %p44 = scmp.eq.s32.totalorder %s24, 0
      %p45 = por %p43, %p44
      %p46 = scmp.ne.s32.totalorder %s32, %s33
      %p47 = scmp.eq.s32.totalorder %s25, 1
      %p48 = por %p46, %p47
      %p50 = scmp.ne.s32.totalorder %s33, %s49
      %p51 = scmp.eq.s32.totalorder %s25, 0
      %p52 = por %p50, %p51
      %s54 = sadd.s32 %s53, 1
      %p57 = scmp.eq.s32.totalorder %s19, 1
      %p58 = scmp.ne.s32.totalorder %s53, %s55
      %p59 = scmp.eq.s32.totalorder %s19, 0
      %p60 = por %p58, %p59
      %p61 = scmp.ne.s32.totalorder %s53, %s55
      %p62 = scmp.eq.s32.totalorder %s24, 1
      %p63 = por %p61, %p62
      %p64 = scmp.ne.s32.totalorder %s55, %s56
      %p65 = scmp.eq.s32.totalorder %s24, 0
      %p66 = por %p64, %p65
      %p67 = scmp.ne.s32.totalorder %s55, %s56
      %p68 = scmp.eq.s32.totalorder %s25, 1
      %p69 = por %p67, %p68
      %p71 = scmp.ne.s32.totalorder %s56, %s70
      %p72 = scmp.eq.s32.totalorder %s25, 0
      %p73 = por %p71, %p72
      %s75 = sadd.s32 %s74, 1
      %p78 = scmp.eq.s32.totalorder %s19, 1
      %p79 = scmp.ne.s32.totalorder %s74, %s76
      %p80 = scmp.eq.s32.totalorder %s19, 0
      %p81 = por %p79, %p80
      %p82 = scmp.ne.s32.totalorder %s74, %s76
      %p83 = scmp.eq.s32.totalorder %s24, 1
      %p84 = por %p82, %p83
      %p85 = scmp.ne.s32.totalorder %s76, %s77
      %p86 = scmp.eq.s32.totalorder %s24, 0
      %p87 = por %p85, %p86
      %p88 = scmp.ne.s32.totalorder %s76, %s77
      %p89 = scmp.eq.s32.totalorder %s25, 1
      %p90 = por %p88, %p89
      %p92 = scmp.ne.s32.totalorder %s77, %s91
      %p93 = scmp.eq.s32.totalorder %s25, 0
      %p94 = por %p92, %p93
      %s96 = sadd.s32 %s95, 1
      %p99 = scmp.eq.s32.totalorder %s19, 1
      %p100 = scmp.ne.s32.totalorder %s95, %s97
      %p101 = scmp.eq.s32.totalorder %s19, 0
      %p102 = por %p100, %p101
      %p103 = scmp.ne.s32.totalorder %s95, %s97
      %p104 = scmp.eq.s32.totalorder %s24, 1
      %p105 = por %p103, %p104
      %p106 = scmp.ne.s32.totalorder %s97, %s98
      %p107 = scmp.eq.s32.totalorder %s24, 0
      %p108 = por %p106, %p107
      %p109 = scmp.ne.s32.totalorder %s97, %s98
      %p110 = scmp.eq.s32.totalorder %s25, 1
      %p111 = por %p109, %p110
      %p113 = scmp.ne.s32.totalorder %s98, %s112
      %p114 = scmp.eq.s32.totalorder %s25, 0
      %p115 = por %p113, %p114
      %s117 = sadd.s32 %s116, 1
      %p120 = scmp.eq.s32.totalorder %s19, 1
      %p121 = scmp.ne.s32.totalorder %s116, %s118
      %p122 = scmp.eq.s32.totalorder %s19, 0
      %p123 = por %p121, %p122
      %p124 = scmp.ne.s32.totalorder %s116, %s118
      %p125 = scmp.eq.s32.totalorder %s24, 1
      %p126 = por %p124, %p125
      %p127 = scmp.ne.s32.totalorder %s118, %s119
      %p128 = scmp.eq.s32.totalorder %s24, 0
      %p129 = por %p127, %p128
      %p130 = scmp.ne.s32.totalorder %s118, %s119
      %p131 = scmp.eq.s32.totalorder %s25, 1
      %p132 = por %p130, %p131
      %p134 = scmp.ne.s32.totalorder %s119, %s133
      %p135 = scmp.eq.s32.totalorder %s25, 0
      %p136 = por %p134, %p135
      %s138 = sadd.s32 %s137, 1
      %p141 = scmp.eq.s32.totalorder %s19, 1
      %p142 = scmp.ne.s32.totalorder %s137, %s139
      %p143 = scmp.eq.s32.totalorder %s19, 0
      %p144 = por %p142, %p143
      %p145 = scmp.ne.s32.totalorder %s137, %s139
      %p146 = scmp.eq.s32.totalorder %s24, 1
      %p147 = por %p145, %p146
      %p148 = scmp.ne.s32.totalorder %s139, %s140
      %p149 = scmp.eq.s32.totalorder %s24, 0
      %p150 = por %p148, %p149
      %p151 = scmp.ne.s32.totalorder %s139, %s140
      %p152 = scmp.eq.s32.totalorder %s25, 1
      %p153 = por %p151, %p152
      %p155 = scmp.ne.s32.totalorder %s140, %s154
      %p156 = scmp.eq.s32.totalorder %s25, 0
      %p157 = por %p155, %p156
      %s159 = sadd.s32 %s158, 1
      %p162 = scmp.eq.s32.totalorder %s19, 1
      %p163 = scmp.ne.s32.totalorder %s158, %s160
      %p164 = scmp.eq.s32.totalorder %s19, 0
      %p165 = por %p163, %p164
      %p166 = scmp.ne.s32.totalorder %s158, %s160
      %p167 = scmp.eq.s32.totalorder %s24, 1
      %p168 = por %p166, %p167
      %p169 = scmp.ne.s32.totalorder %s160, %s161
      %p170 = scmp.eq.s32.totalorder %s24, 0
      %p171 = por %p169, %p170
      %p172 = scmp.ne.s32.totalorder %s160, %s161
      %p173 = scmp.eq.s32.totalorder %s25, 1
      %p174 = por %p172, %p173
      %p176 = scmp.ne.s32.totalorder %s161, %s175
      %p177 = scmp.eq.s32.totalorder %s25, 0
      %p178 = por %p176, %p177
      %s180 = sadd.s32 %s179, 1
      %p183 = scmp.eq.s32.totalorder %s19, 1
      %p184 = scmp.ne.s32.totalorder %s179, %s181
      %p185 = scmp.eq.s32.totalorder %s19, 0
      %p186 = por %p184, %p185
      %p187 = scmp.ne.s32.totalorder %s179, %s181
      %p188 = scmp.eq.s32.totalorder %s24, 1
      %p189 = por %p187, %p188
      %p190 = scmp.ne.s32.totalorder %s181, %s182
      %p191 = scmp.eq.s32.totalorder %s24, 0
      %p192 = por %p190, %p191
      %p193 = scmp.ne.s32.totalorder %s181, %s182
      %p194 = scmp.eq.s32.totalorder %s25, 1
      %p195 = por %p193, %p194
      %p197 = scmp.ne.s32.totalorder %s182, %s196
      %p198 = scmp.eq.s32.totalorder %s25, 0
      %p199 = por %p197, %p198
      %s200 = ssub.s32 %s19, %s26
      %p201 = scmp.eq.s32.totalorder %s200, 0
      %s203 = sadd.s32 %s202, 1
      %s204 = scalar_select %p201, %s202, %s203
      %p207 = pneg %p201
      %p208 = scmp.eq.s32.totalorder %s19, 1
      %p209 = por %p207, %p208
      %p210 = scmp.ne.s32.totalorder %s202, %s205
      %p211 = scmp.eq.s32.totalorder %s19, 0
      %p212 = por %p210, %p211
      %p213 = scmp.ne.s32.totalorder %s202, %s205
      %p214 = scmp.eq.s32.totalorder %s24, 1
      %p215 = por %p213, %p214
      %p216 = scmp.ne.s32.totalorder %s205, %s206
      %p217 = scmp.eq.s32.totalorder %s24, 0
      %p218 = por %p216, %p217
      %p219 = scmp.ne.s32.totalorder %s205, %s206
      %p220 = scmp.eq.s32.totalorder %s25, 1
      %p221 = por %p219, %p220
      %p223 = scmp.ne.s32.totalorder %s206, %s222
      %p224 = scmp.eq.s32.totalorder %s25, 0
      %p225 = por %p223, %p224
      %s226 = ssub.s32 %s19, %s26
      %p227 = scmp.eq.s32.totalorder %s226, 0
      %s229 = sadd.s32 %s228, 1
      %s230 = scalar_select %p227, %s228, %s229
      %p233 = pneg %p227
      %p234 = scmp.eq.s32.totalorder %s19, 1
      %p235 = por %p233, %p234
      %p236 = scmp.ne.s32.totalorder %s228, %s231
      %p237 = scmp.eq.s32.totalorder %s19, 0
      %p238 = por %p236, %p237
      %p239 = scmp.ne.s32.totalorder %s228, %s231
      %p240 = scmp.eq.s32.totalorder %s24, 1
      %p241 = por %p239, %p240
      %p242 = scmp.ne.s32.totalorder %s231, %s232
      %p243 = scmp.eq.s32.totalorder %s24, 0
      %p244 = por %p242, %p243
      %p245 = scmp.ne.s32.totalorder %s231, %s232
      %p246 = scmp.eq.s32.totalorder %s25, 1
      %p247 = por %p245, %p246
      %p249 = scmp.ne.s32.totalorder %s232, %s248
      %p250 = scmp.eq.s32.totalorder %s25, 0
      %p251 = por %p249, %p250
      %p252 = scmp.le.s32.totalorder 1, %s19
      %p253 = scmp.lt.s32.totalorder %s19, 3
      %p254 = pnand %p252, %p253
      %p255 = pneg %p254
      // Predicated region
      $region9: #{swin_forward.13} parent=5 // pred_check
        _
      $region10: #{swin_forward.13} parent=5 // pred_check_branch
        %257 = sbr.rel (%p254) target = $region12
      $region11: #{swin_forward.13} parent=5 // pred_region
        %s258 = ssub.s32 %s19, 1
        // Predicated region
        $region13: #{swin_forward.13} parent=11 // pred_check
          %p259 = pneg %p66
        $region14: #{swin_forward.13} parent=11 // pred_check_branch
          %261 = sbr.rel (%p259) target = $region16
        $region15: #{swin_forward.13} parent=11 // pred_region
          _
        $region16: #{swin_forward.13} parent=11 // pred_fallthru
          _
        // Predicated region
        $region17: #{swin_forward.13} parent=11 // pred_check
          %p262 = pneg %p87
        $region18: #{swin_forward.13} parent=11 // pred_check_branch
          %264 = sbr.rel (%p262) target = $region20
        $region19: #{swin_forward.13} parent=11 // pred_region
          _
        $region20: #{swin_forward.13} parent=11 // pred_fallthru
          _
        // Predicated region
        $region21: #{swin_forward.13} parent=11 // pred_check
          %p265 = pneg %p108
        $region22: #{swin_forward.13} parent=11 // pred_check_branch
          %267 = sbr.rel (%p265) target = $region24
        $region23: #{swin_forward.13} parent=11 // pred_region
          _
        $region24: #{swin_forward.13} parent=11 // pred_fallthru
          _
        // Predicated region
        $region25: #{swin_forward.13} parent=11 // pred_check
          %p268 = pneg %p129
        $region26: #{swin_forward.13} parent=11 // pred_check_branch
          %270 = sbr.rel (%p268) target = $region28
        $region27: #{swin_forward.13} parent=11 // pred_region
          _
        $region28: #{swin_forward.13} parent=11 // pred_fallthru
          _
        // Predicated region
        $region29: #{swin_forward.13} parent=11 // pred_check
          %p271 = pneg %p150
        $region30: #{swin_forward.13} parent=11 // pred_check_branch
          %273 = sbr.rel (%p271) target = $region32
        $region31: #{swin_forward.13} parent=11 // pred_region
          _
        $region32: #{swin_forward.13} parent=11 // pred_fallthru
          _
        // Predicated region
        $region33: #{swin_forward.13} parent=11 // pred_check
          %p274 = pneg %p171
        $region34: #{swin_forward.13} parent=11 // pred_check_branch
          %276 = sbr.rel (%p274) target = $region36
        $region35: #{swin_forward.13} parent=11 // pred_region
          _
        $region36: #{swin_forward.13} parent=11 // pred_fallthru
          _
        // Predicated region
        $region37: #{swin_forward.13} parent=11 // pred_check
          %p277 = pneg %p192
        $region38: #{swin_forward.13} parent=11 // pred_check_branch
          %279 = sbr.rel (%p277) target = $region40
        $region39: #{swin_forward.13} parent=11 // pred_region
          _
        $region40: #{swin_forward.13} parent=11 // pred_fallthru
          _
      $region12: #{swin_forward.13} parent=5 // pred_fallthru
        _
      %p280 = scmp.lt.s32.totalorder %s19, 2
      // Predicated region
      $region41: #{swin_forward.13} parent=5 // pred_check
        %p281 = pneg %p280
      $region42: #{swin_forward.13} parent=5 // pred_check_branch
        %283 = sbr.rel (%p281) target = $region44
      $region43: #{swin_forward.13} parent=5 // pred_region
        // Predicated region
        $region45: #{swin_forward.13} parent=43 // pred_check
          %p284 = pneg %p39
        $region46: #{swin_forward.13} parent=43 // pred_check_branch
          %286 = sbr.rel (%p284) target = $region48
        $region47: #{swin_forward.13} parent=43 // pred_region
          %s287 = smul.u32 8, %s19
          %p288 = scmp.lt.s32.totalorder %s287, 15
          %s289 = scalar_select %p288, %s287, 15
          %s290 = smul.addr %s289, 8
          %s291 = scalar_lea.vmem %s0, %s290
          %s292 = smul.u32 8, %s19
        $region48: #{swin_forward.13} parent=43 // pred_fallthru
          _
      $region44: #{swin_forward.13} parent=5 // pred_fallthru
        _
      %p293 = scmp.le.s32.totalorder 1, %s19
      %p294 = scmp.lt.s32.totalorder %s19, 3
      %p295 = pnand %p293, %p294
      %p296 = pneg %p295
      // Predicated region
      $region49: #{swin_forward.13} parent=5 // pred_check
        _
      $region50: #{swin_forward.13} parent=5 // pred_check_branch
        %298 = sbr.rel (%p295) target = $region52
      $region51: #{swin_forward.13} parent=5 // pred_region
        %s299 = ssub.s32 %s19, 1
        %s300 = smul.u32 8, %s24
        %p301 = scmp.lt.s32.totalorder %s300, 15
        %s302 = scalar_select %p301, %s300, 15
        %s303 = smul.addr %s302, 8
        %s304 = scalar_lea.vmem %s0, %s303
        %p305 = pneg %p45
        %p306 = pneg %p42
        %p307 = pneg %p66
        %p308 = pneg %p63
        %p309 = pneg %p87
        %p310 = pneg %p84
        %p311 = pneg %p108
        %p312 = pneg %p105
        %p313 = pneg %p129
        %p314 = pneg %p126
        %p315 = pneg %p150
        %p316 = pneg %p147
        %p317 = pneg %p171
        %p318 = pneg %p168
        %p319 = pneg %p192
        %p320 = pneg %p189
        %p321 = pneg %p218
        %p322 = pneg %p215
        %s323 = smul.u32 8, %s24
        %p324 = scmp.lt.s32.totalorder %s323, 15
        %s325 = scalar_select %p324, %s323, 15
        %s326 = smul.addr %s325, 8
        %s327 = scalar_lea.vmem %s8, %s326
        %p328 = pneg %p244
        %p329 = pneg %p241
        %s330 = sand.u32 %s231, 1
        %s331 = scalar_lea.sflag [#allocation3], %s330
        %s332 = sand.u32 %s231, 1
        %s333 = smul.addr %s332, 4
        %s334 = scalar_lea.vmem [#allocation2], %s333
        %s335 = smul.u32 8, %s24
        %p336 = scmp.lt.s32.totalorder %s335, 15
        %s337 = scalar_select %p336, %s335, 15
        %s338 = smul.addr %s337, 8
        %s339 = scalar_lea.vmem %s0, %s338
        %s340 = smul.u32 8, %s24
        %s341 = smul.u32 8, %s24
        %p342 = scmp.lt.s32.totalorder %s341, 15
        %s343 = scalar_select %p342, %s341, 15
        %s344 = smul.addr %s343, 8
        %s345 = scalar_lea.vmem %s8, %s344
        %s346 = smul.u32 8, %s24
        %s347 = smul.u32 4, %s24
        %v349 = vld [vmem:[%s339] sm:$0xff]
        %v350 = vld [vmem:[%s339 + $0x8] sm:$0xff]
        %v351 = vld [vmem:[%s339 + $0x10] sm:$0xff]
        %v352 = vld [vmem:[%s339 + $0x18] sm:$0xff]
        %v353 = vld [vmem:[%s339 + $0x20] sm:$0xff]
        %v354 = vld [vmem:[%s339 + $0x28] sm:$0xff]
        %v355 = vld [vmem:[%s339 + $0x30] sm:$0xff]
        %v356 = vld [vmem:[%s339 + $0x38] sm:$0xff]
        %v357 = vld [vmem:[%s1] sm:$0x1]
        %v358 = vld [vmem:[%s2] sm:$0x1]
        %vm359 = vcmask 130048
        %v360 = vsel %vm359, %v349, 0.0
        %361 = vadd.xlane.f32.xlu0 %v360
        %v362 = vpop.xlane.xlu0 %361
        %v363 = vsel %vm359, %v350, 0.0
        %364 = vadd.xlane.f32.xlu0 %v363
        %v365 = vpop.xlane.xlu0 %364
        %v366 = vsel %vm359, %v351, 0.0
        %367 = vadd.xlane.f32.xlu0 %v366
        %v368 = vpop.xlane.xlu0 %367
        %v369 = vsel %vm359, %v352, 0.0
        %370 = vadd.xlane.f32.xlu0 %v369
        %v371 = vpop.xlane.xlu0 %370
        %v372 = vsel %vm359, %v353, 0.0
        %373 = vadd.xlane.f32.xlu0 %v372
        %v374 = vpop.xlane.xlu0 %373
        %v375 = vsel %vm359, %v354, 0.0
        %376 = vadd.xlane.f32.xlu0 %v375
        %v377 = vpop.xlane.xlu0 %376
        %v378 = vsel %vm359, %v355, 0.0
        %379 = vadd.xlane.f32.xlu0 %v378
        %v380 = vpop.xlane.xlu0 %379
        %v381 = vsel %vm359, %v356, 0.0
        %382 = vadd.xlane.f32.xlu0 %v381
        %v383 = vpop.xlane.xlu0 %382
        %v384 = vrcp.pop 16.0
        %v385 = vmul.f32 16.0, %v384
        %v386 = vsub.f32 1.0, %v385
        %v387 = vmul.f32 %v384, %v386
        %v388 = vadd.f32 %v384, %v387
        %vm389 = vweird.f32 %v384
        %v390 = vsel %vm389, %v384, %v388
        %v391 = vmul.f32 %v362, %v390
        %v392 = vmul.f32 %v365, %v390
        %v393 = vmul.f32 %v368, %v390
        %v394 = vmul.f32 %v371, %v390
        %v395 = vmul.f32 %v374, %v390
        %v396 = vmul.f32 %v377, %v390
        %v397 = vmul.f32 %v380, %v390
        %v398 = vmul.f32 %v383, %v390
        %v399 = vsub.f32 %v349, %v391
        %v400 = vsub.f32 %v350, %v392
        %v401 = vsub.f32 %v351, %v393
        %v402 = vsub.f32 %v352, %v394
        %v403 = vsub.f32 %v353, %v395
        %v404 = vsub.f32 %v354, %v396
        %v405 = vsub.f32 %v355, %v397
        %v406 = vsub.f32 %v356, %v398
        %v407 = vmul.f32 %v399, %v399
        %v408 = vmul.f32 %v400, %v400
        %v409 = vmul.f32 %v401, %v401
        %v410 = vmul.f32 %v402, %v402
        %v411 = vmul.f32 %v403, %v403
        %v412 = vmul.f32 %v404, %v404
        %v413 = vmul.f32 %v405, %v405
        %v414 = vmul.f32 %v406, %v406
        %v415 = vsel %vm359, %v407, 0.0
        %416 = vadd.xlane.f32.xlu0 %v415
        %v417 = vpop.xlane.xlu0 %416
        %v418 = vsel %vm359, %v408, 0.0
        %419 = vadd.xlane.f32.xlu0 %v418
        %v420 = vpop.xlane.xlu0 %419
        %v421 = vsel %vm359, %v409, 0.0
        %422 = vadd.xlane.f32.xlu0 %v421
        %v423 = vpop.xlane.xlu0 %422
        %v424 = vsel %vm359, %v410, 0.0
        %425 = vadd.xlane.f32.xlu0 %v424
        %v426 = vpop.xlane.xlu0 %425
        %v427 = vsel %vm359, %v411, 0.0
        %428 = vadd.xlane.f32.xlu0 %v427
        %v429 = vpop.xlane.xlu0 %428
        %v430 = vsel %vm359, %v412, 0.0
        %431 = vadd.xlane.f32.xlu0 %v430
        %v432 = vpop.xlane.xlu0 %431
        %v433 = vsel %vm359, %v413, 0.0
        %434 = vadd.xlane.f32.xlu0 %v433
        %v435 = vpop.xlane.xlu0 %434
        %v436 = vsel %vm359, %v414, 0.0
        %437 = vadd.xlane.f32.xlu0 %v436
        %v438 = vpop.xlane.xlu0 %437
        %v439 = vmul.f32 %v417, %v390
        %v440 = vmul.f32 %v420, %v390
        %v441 = vmul.f32 %v423, %v390
        %v442 = vmul.f32 %v426, %v390
        %v443 = vmul.f32 %v429, %v390
        %v444 = vmul.f32 %v432, %v390
        %v445 = vmul.f32 %v435, %v390
        %v446 = vmul.f32 %v438, %v390
        %v447 = vadd.f32 %v439, 1e-05
        %v448 = vadd.f32 %v440, 1e-05
        %v449 = vadd.f32 %v441, 1e-05
        %v450 = vadd.f32 %v442, 1e-05
        %v451 = vadd.f32 %v443, 1e-05
        %v452 = vadd.f32 %v444, 1e-05
        %v453 = vadd.f32 %v445, 1e-05
        %v454 = vadd.f32 %v446, 1e-05
        %v455 = vrsqrt.pop %v447
        %v456 = vmul.f32 %v455, %v447
        %v457 = vmul.f32 %v456, %v455
        %v458 = vmul.f32 0.5, %v457
        %v459 = vsub.f32 1.5, %v458
        %v460 = vmul.f32 %v455, %v459
        %vm461 = vweird.f32 %v447
        %vm462 = vweird.f32 %v455
        %vm463 = vmor %vm461, %vm462
        %v464 = vsel %vm463, %v455, %v460
        %v465 = vrsqrt.pop %v448
        %v466 = vmul.f32 %v465, %v448
        %v467 = vmul.f32 %v466, %v465
        %v468 = vmul.f32 0.5, %v467
        %v469 = vsub.f32 1.5, %v468
        %v470 = vmul.f32 %v465, %v469
        %vm471 = vweird.f32 %v448
        %vm472 = vweird.f32 %v465
        %vm473 = vmor %vm471, %vm472
        %v474 = vsel %vm473, %v465, %v470
        %v475 = vrsqrt.pop %v449
        %v476 = vmul.f32 %v475, %v449
        %v477 = vmul.f32 %v476, %v475
        %v478 = vmul.f32 0.5, %v477
        %v479 = vsub.f32 1.5, %v478
        %v480 = vmul.f32 %v475, %v479
        %vm481 = vweird.f32 %v449
        %vm482 = vweird.f32 %v475
        %vm483 = vmor %vm481, %vm482
        %v484 = vsel %vm483, %v475, %v480
        %v485 = vrsqrt.pop %v450
        %v486 = vmul.f32 %v485, %v450
        %v487 = vmul.f32 %v486, %v485
        %v488 = vmul.f32 0.5, %v487
        %v489 = vsub.f32 1.5, %v488
        %v490 = vmul.f32 %v485, %v489
        %vm491 = vweird.f32 %v450
        %vm492 = vweird.f32 %v485
        %vm493 = vmor %vm491, %vm492
        %v494 = vsel %vm493, %v485, %v490
        %v495 = vrsqrt.pop %v451
        %v496 = vmul.f32 %v495, %v451
        %v497 = vmul.f32 %v496, %v495
        %v498 = vmul.f32 0.5, %v497
        %v499 = vsub.f32 1.5, %v498
        %v500 = vmul.f32 %v495, %v499
        %vm501 = vweird.f32 %v451
        %vm502 = vweird.f32 %v495
        %vm503 = vmor %vm501, %vm502
        %v504 = vsel %vm503, %v495, %v500
        %v505 = vrsqrt.pop %v452
        %v506 = vmul.f32 %v505, %v452
        %v507 = vmul.f32 %v506, %v505
        %v508 = vmul.f32 0.5, %v507
        %v509 = vsub.f32 1.5, %v508
        %v510 = vmul.f32 %v505, %v509
        %vm511 = vweird.f32 %v452
        %vm512 = vweird.f32 %v505
        %vm513 = vmor %vm511, %vm512
        %v514 = vsel %vm513, %v505, %v510
        %v515 = vrsqrt.pop %v453
        %v516 = vmul.f32 %v515, %v453
        %v517 = vmul.f32 %v516, %v515
        %v518 = vmul.f32 0.5, %v517
        %v519 = vsub.f32 1.5, %v518
        %v520 = vmul.f32 %v515, %v519
        %vm521 = vweird.f32 %v453
        %vm522 = vweird.f32 %v515
        %vm523 = vmor %vm521, %vm522
        %v524 = vsel %vm523, %v515, %v520
        %v525 = vrsqrt.pop %v454
        %v526 = vmul.f32 %v525, %v454
        %v527 = vmul.f32 %v526, %v525
        %v528 = vmul.f32 0.5, %v527
        %v529 = vsub.f32 1.5, %v528
        %v530 = vmul.f32 %v525, %v529
        %vm531 = vweird.f32 %v454
        %vm532 = vweird.f32 %v525
        %vm533 = vmor %vm531, %vm532
        %v534 = vsel %vm533, %v525, %v530
        %v535 = vmul.f32 %v399, %v464
        %v536 = vmul.f32 %v400, %v474
        %v537 = vmul.f32 %v401, %v484
        %v538 = vmul.f32 %v402, %v494
        %v539 = vmul.f32 %v403, %v504
        %v540 = vmul.f32 %v404, %v514
        %v541 = vmul.f32 %v405, %v524
        %v542 = vmul.f32 %v406, %v534
        %v544 = vperm.slane %v357, 0
        %v546 = vmul.f32 %v535, %v544
        %v547 = vmul.f32 %v536, %v544
        %v548 = vmul.f32 %v537, %v544
        %v549 = vmul.f32 %v538, %v544
        %v550 = vmul.f32 %v539, %v544
        %v551 = vmul.f32 %v540, %v544
        %v552 = vmul.f32 %v541, %v544
        %v553 = vmul.f32 %v542, %v544
        %v555 = vperm.slane %v358, 0
        %v557 = vadd.f32 %v546, %v555
        %v558 = vadd.f32 %v547, %v555
        %v559 = vadd.f32 %v548, %v555
        %v560 = vadd.f32 %v549, %v555
        %v561 = vadd.f32 %v550, %v555
        %v562 = vadd.f32 %v551, %v555
        %v563 = vadd.f32 %v552, %v555
        %v564 = vadd.f32 %v553, %v555
        %v565 = vpack.c.bf16 %v558, %v557
        %v566 = vpack.c.bf16 %v560, %v559
        %v567 = vpack.c.bf16 %v562, %v561
        %v568 = vpack.c.bf16 %v564, %v563
        %v569 = vld [vmem:[%s3] sm:$0xf]
        %v570 = vld [vmem:[%s3 + $0x4] sm:$0xf]
        %v571 = vld [vmem:[%s4] sm:$0x1]
        %v573 = vperm.slane %v571, 0
        %v577 = vunpack.c.l.b16 %v569
        %v578 = vunpack.c.l.b16 %v570
        %v579 = vpack.c.b16 %v578, %v577
        %v582 = vsel %vm359, %v565, 0
        %v585 = vsel %vm359, %v566, 0
        %v588 = vsel %vm359, %v567, 0
        %v591 = vsel %vm359, %v568, 0
        %593 = vmatpush.bf16.msra.mxu0 0
        %594 = vmatpush.bf16.msra.mxu0 0
        %595 = vmatpush.bf16.msra.mxu0 0
        %596 = vmatpush.bf16.msra.mxu0 0
        %597 = vmatpush.bf16.msra.mxu0 0
        %598 = vmatpush.bf16.msra.mxu0 0
        %599 = vmatpush.bf16.msra.mxu0 0
        %600 = vmatpush.bf16.msra.mxu0 %v579
        %601 = vmatmul.bf16.gmra.mxu0 %v582
        %v602 = vpop.f32.mrf.mxu0
        %v603 = vadd.f32 %v573, %v602
        %v604 = vpop.f32.mrf.mxu0
        %v605 = vadd.f32 %v573, %v604
        %606 = vmatmul.bf16.gmra.mxu0 %v585
        %v607 = vpop.f32.mrf.mxu0
        %v608 = vadd.f32 %v573, %v607
        %v609 = vpop.f32.mrf.mxu0
        %v610 = vadd.f32 %v573, %v609
        %611 = vmatmul.bf16.gmra.mxu0 %v588
        %v612 = vpop.f32.mrf.mxu0
        %v613 = vadd.f32 %v573, %v612
        %v614 = vpop.f32.mrf.mxu0
        %v615 = vadd.f32 %v573, %v614
        %616 = vmatmul.bf16.gmra.mxu0 %v591
        %v617 = vpop.f32.mrf.mxu0
        %v618 = vadd.f32 %v573, %v617
        %v619 = vpop.f32.mrf.mxu0
        %v620 = vadd.f32 %v573, %v619
        %621 = vdwg.mxu0
        %v622 = vld [vmem:[%s7] sm:$0xff]
        %v623 = vld [vmem:[%s7 + $0x8] sm:$0xff]
        %v624 = vld [vmem:[%s7 + $0x10] sm:$0xff]
        %v625 = vld [vmem:[%s7 + $0x18] sm:$0xff]
        %v626 = vmul.f32 %v603, 0.35355338
        %v627 = vmul.f32 %v605, 0.35355338
        %v628 = vmul.f32 %v608, 0.35355338
        %v629 = vmul.f32 %v610, 0.35355338
        %v630 = vmul.f32 %v613, 0.35355338
        %v631 = vmul.f32 %v615, 0.35355338
        %v632 = vmul.f32 %v618, 0.35355338
        %v633 = vmul.f32 %v620, 0.35355338
        %636 = vrot.lane.b32.xlu0 %v603, 112
        %v637 = vpop.permute.xlu0 %636
        %638 = vrot.lane.b32.xlu0 %v605, 112
        %v639 = vpop.permute.xlu0 %638
        %vm640 = vcmask 64512
        %v642 = vsel %vm640, %v626, 0
        %v645 = vsel %vm640, %v627, 0
        %v647 = vsel %vm640, %v637, 0
        %v649 = vsel %vm640, %v639, 0
        %651 = vmatpush.xpose.msra.mxu0 0.0
        %652 = vmatpush.xpose.msra.mxu0 0.0
        %653 = vmatpush.xpose.msra.mxu0 0.0
        %654 = vmatpush.xpose.msra.mxu0 0.0
        %655 = vmatpush.xpose.msra.mxu0 0.0
        %656 = vmatpush.xpose.msra.mxu0 0.0
        %657 = vmatpush.xpose.msra.mxu0 0.0
        %658 = vmatpush.xpose.msra.mxu0 0.0
        %659 = vmatpush.xpose.msra.mxu0 0.0
        %660 = vmatpush.xpose.msra.mxu0 0.0
        %661 = vmatpush.xpose.msra.mxu0 0.0
        %662 = vmatpush.xpose.msra.mxu0 0.0
        %663 = vmatpush.xpose.msra.mxu0 0.0
        %664 = vmatpush.xpose.msra.mxu0 0.0
        %665 = vmatpush.xpose.msra.mxu0 %v649
        %666 = vmatpush.xpose.msra.mxu0 %v647
        %667 = vmatmul.f32.gmra.mxu0 %v642
        %v668 = vpop.f32.mrf.mxu0
        %v669 = vadd.f32 %v622, %v668
        %670 = vmatmul.f32.gmra.mxu0 %v645
        %v671 = vpop.f32.mrf.mxu0
        %v672 = vadd.f32 %v623, %v671
        %673 = vdwg.mxu0
        %676 = vrot.lane.b32.xlu0 %v608, 112
        %v677 = vpop.permute.xlu0 %676
        %678 = vrot.lane.b32.xlu0 %v610, 112
        %v679 = vpop.permute.xlu0 %678
        %v681 = vsel %vm640, %v628, 0
        %v684 = vsel %vm640, %v629, 0
        %v686 = vsel %vm640, %v677, 0
        %v688 = vsel %vm640, %v679, 0
        %690 = vmatpush.xpose.msra.mxu0 0.0
        %691 = vmatpush.xpose.msra.mxu0 0.0
        %692 = vmatpush.xpose.msra.mxu0 0.0
        %693 = vmatpush.xpose.msra.mxu0 0.0
        %694 = vmatpush.xpose.msra.mxu0 0.0
        %695 = vmatpush.xpose.msra.mxu0 0.0
        %696 = vmatpush.xpose.msra.mxu0 0.0
        %697 = vmatpush.xpose.msra.mxu0 0.0
        %698 = vmatpush.xpose.msra.mxu0 0.0
        %699 = vmatpush.xpose.msra.mxu0 0.0
        %700 = vmatpush.xpose.msra.mxu0 0.0
        %701 = vmatpush.xpose.msra.mxu0 0.0
        %702 = vmatpush.xpose.msra.mxu0 0.0
        %703 = vmatpush.xpose.msra.mxu0 0.0
        %704 = vmatpush.xpose.msra.mxu0 %v688
        %705 = vmatpush.xpose.msra.mxu0 %v686
        %706 = vmatmul.f32.gmra.mxu0 %v681
        %v707 = vpop.f32.mrf.mxu0
        %v708 = vadd.f32 %v622, %v707
        %709 = vmatmul.f32.gmra.mxu0 %v684
        %v710 = vpop.f32.mrf.mxu0
        %v711 = vadd.f32 %v623, %v710
        %712 = vdwg.mxu0
        %715 = vrot.lane.b32.xlu0 %v613, 112
        %v716 = vpop.permute.xlu0 %715
        %717 = vrot.lane.b32.xlu0 %v615, 112
        %v718 = vpop.permute.xlu0 %717
        %v720 = vsel %vm640, %v630, 0
        %v723 = vsel %vm640, %v631, 0
        %v725 = vsel %vm640, %v716, 0
        %v727 = vsel %vm640, %v718, 0
        %729 = vmatpush.xpose.msra.mxu0 0.0
        %730 = vmatpush.xpose.msra.mxu0 0.0
        %731 = vmatpush.xpose.msra.mxu0 0.0
        %732 = vmatpush.xpose.msra.mxu0 0.0
        %733 = vmatpush.xpose.msra.mxu0 0.0
        %734 = vmatpush.xpose.msra.mxu0 0.0
        %735 = vmatpush.xpose.msra.mxu0 0.0
        %736 = vmatpush.xpose.msra.mxu0 0.0
        %737 = vmatpush.xpose.msra.mxu0 0.0
        %738 = vmatpush.xpose.msra.mxu0 0.0
        %739 = vmatpush.xpose.msra.mxu0 0.0
        %740 = vmatpush.xpose.msra.mxu0 0.0
        %741 = vmatpush.xpose.msra.mxu0 0.0
        %742 = vmatpush.xpose.msra.mxu0 0.0
        %743 = vmatpush.xpose.msra.mxu0 %v727
        %744 = vmatpush.xpose.msra.mxu0 %v725
        %745 = vmatmul.f32.gmra.mxu0 %v720
        %v746 = vpop.f32.mrf.mxu0
        %v747 = vadd.f32 %v622, %v746
        %748 = vmatmul.f32.gmra.mxu0 %v723
        %v749 = vpop.f32.mrf.mxu0
        %v750 = vadd.f32 %v623, %v749
        %751 = vdwg.mxu0
        %754 = vrot.lane.b32.xlu0 %v618, 112
        %v755 = vpop.permute.xlu0 %754
        %756 = vrot.lane.b32.xlu0 %v620, 112
        %v757 = vpop.permute.xlu0 %756
        %v759 = vsel %vm640, %v632, 0
        %v762 = vsel %vm640, %v633, 0
        %v764 = vsel %vm640, %v755, 0
        %v766 = vsel %vm640, %v757, 0
        %768 = vmatpush.xpose.msra.mxu0 0.0
        %769 = vmatpush.xpose.msra.mxu0 0.0
        %770 = vmatpush.xpose.msra.mxu0 0.0
        %771 = vmatpush.xpose.msra.mxu0 0.0
        %772 = vmatpush.xpose.msra.mxu0 0.0
        %773 = vmatpush.xpose.msra.mxu0 0.0
        %774 = vmatpush.xpose.msra.mxu0 0.0
        %775 = vmatpush.xpose.msra.mxu0 0.0
        %776 = vmatpush.xpose.msra.mxu0 0.0
        %777 = vmatpush.xpose.msra.mxu0 0.0
        %778 = vmatpush.xpose.msra.mxu0 0.0
        %779 = vmatpush.xpose.msra.mxu0 0.0
        %780 = vmatpush.xpose.msra.mxu0 0.0
        %781 = vmatpush.xpose.msra.mxu0 0.0
        %782 = vmatpush.xpose.msra.mxu0 %v766
        %783 = vmatpush.xpose.msra.mxu0 %v764
        %784 = vmatmul.f32.gmra.mxu0 %v759
        %v785 = vpop.f32.mrf.mxu0
        %v786 = vadd.f32 %v622, %v785
        %787 = vmatmul.f32.gmra.mxu0 %v762
        %v788 = vpop.f32.mrf.mxu0
        %v789 = vadd.f32 %v623, %v788
        %790 = vdwg.mxu0
        %v791 = vsel %vm359, %v669, -inf
        %792 = vmax.xlane.f32.xlu0 %v791
        %v793 = vpop.xlane.xlu0 %792
        %v794 = vsel %vm359, %v672, -inf
        %795 = vmax.xlane.f32.xlu0 %v794
        %v796 = vpop.xlane.xlu0 %795
        %v797 = vsel %vm359, %v708, -inf
        %798 = vmax.xlane.f32.xlu0 %v797
        %v799 = vpop.xlane.xlu0 %798
        %v800 = vsel %vm359, %v711, -inf
        %801 = vmax.xlane.f32.xlu0 %v800
        %v802 = vpop.xlane.xlu0 %801
        %v803 = vsel %vm359, %v747, -inf
        %804 = vmax.xlane.f32.xlu0 %v803
        %v805 = vpop.xlane.xlu0 %804
        %v806 = vsel %vm359, %v750, -inf
        %807 = vmax.xlane.f32.xlu0 %v806
        %v808 = vpop.xlane.xlu0 %807
        %v809 = vsel %vm359, %v786, -inf
        %810 = vmax.xlane.f32.xlu0 %v809
        %v811 = vpop.xlane.xlu0 %810
        %v812 = vsel %vm359, %v789, -inf
        %813 = vmax.xlane.f32.xlu0 %v812
        %v814 = vpop.xlane.xlu0 %813
        %v815 = vsub.f32 %v669, %v793
        %v816 = vsub.f32 %v672, %v796
        %v817 = vsub.f32 %v708, %v799
        %v818 = vsub.f32 %v711, %v802
        %v819 = vsub.f32 %v747, %v805
        %v820 = vsub.f32 %v750, %v808
        %v821 = vsub.f32 %v786, %v811
        %v822 = vsub.f32 %v789, %v814
        %v823 = vmul.f32 %v815, 1.442695
        %v824 = vpow.pop %v823
        %v825 = vmul.f32 %v816, 1.442695
        %v826 = vpow.pop %v825
        %v827 = vmul.f32 %v817, 1.442695
        %v828 = vpow.pop %v827
        %v829 = vmul.f32 %v818, 1.442695
        %v830 = vpow.pop %v829
        %v831 = vmul.f32 %v819, 1.442695
        %v832 = vpow.pop %v831
        %v833 = vmul.f32 %v820, 1.442695
        %v834 = vpow.pop %v833
        %v835 = vmul.f32 %v821, 1.442695
        %v836 = vpow.pop %v835
        %v837 = vmul.f32 %v822, 1.442695
        %v838 = vpow.pop %v837
        %v839 = vsel %vm359, %v824, 0.0
        %840 = vadd.xlane.f32.xlu0 %v839
        %v841 = vpop.xlane.xlu0 %840
        %v842 = vsel %vm359, %v826, 0.0
        %843 = vadd.xlane.f32.xlu0 %v842
        %v844 = vpop.xlane.xlu0 %843
        %v845 = vsel %vm359, %v828, 0.0
        %846 = vadd.xlane.f32.xlu0 %v845
        %v847 = vpop.xlane.xlu0 %846
        %v848 = vsel %vm359, %v830, 0.0
        %849 = vadd.xlane.f32.xlu0 %v848
        %v850 = vpop.xlane.xlu0 %849
        %v851 = vsel %vm359, %v832, 0.0
        %852 = vadd.xlane.f32.xlu0 %v851
        %v853 = vpop.xlane.xlu0 %852
        %v854 = vsel %vm359, %v834, 0.0
        %855 = vadd.xlane.f32.xlu0 %v854
        %v856 = vpop.xlane.xlu0 %855
        %v857 = vsel %vm359, %v836, 0.0
        %858 = vadd.xlane.f32.xlu0 %v857
        %v859 = vpop.xlane.xlu0 %858
        %v860 = vsel %vm359, %v838, 0.0
        %861 = vadd.xlane.f32.xlu0 %v860
        %v862 = vpop.xlane.xlu0 %861
        %v863 = vrcp.pop %v841
        %v864 = vrcp.pop %v844
        %v865 = vrcp.pop %v847
        %v866 = vrcp.pop %v850
        %v867 = vrcp.pop %v853
        %v868 = vrcp.pop %v856
        %v869 = vrcp.pop %v859
        %v870 = vrcp.pop %v862
        %v871 = vmul.f32 %v824, %v863
        %v872 = vmul.f32 %v826, %v864
        %v873 = vmul.f32 %v828, %v865
        %v874 = vmul.f32 %v830, %v866
        %v875 = vmul.f32 %v832, %v867
        %v876 = vmul.f32 %v834, %v868
        %v877 = vmul.f32 %v836, %v869
        %v878 = vmul.f32 %v838, %v870
        %v879 = vadd.f32 %v871, 0.0
        %v880 = vadd.f32 %v873, 0.0
        %v881 = vadd.f32 %v875, 0.0
        %v882 = vadd.f32 %v877, 0.0
        %883 = vrot.lane.b32.xlu0 %v603, 96
        %v884 = vpop.permute.xlu0 %883
        %885 = vrot.lane.b32.xlu0 %v605, 96
        %v886 = vpop.permute.xlu0 %885
        %v890 = vsel %vm359, %v871, 0
        %v893 = vsel %vm359, %v872, 0
        %895 = vmatpush.msra.mxu0 0.0
        %896 = vmatpush.msra.mxu0 0.0
        %897 = vmatpush.msra.mxu0 0.0
        %898 = vmatpush.msra.mxu0 0.0
        %899 = vmatpush.msra.mxu0 0.0
        %900 = vmatpush.msra.mxu0 0.0
        %901 = vmatpush.msra.mxu0 0.0
        %902 = vmatpush.msra.mxu0 0.0
        %903 = vmatpush.msra.mxu0 0.0
        %904 = vmatpush.msra.mxu0 0.0
        %905 = vmatpush.msra.mxu0 0.0
        %906 = vmatpush.msra.mxu0 0.0
        %907 = vmatpush.msra.mxu0 0.0
        %908 = vmatpush.msra.mxu0 0.0
        %909 = vmatpush.msra.mxu0 %v886
        %910 = vmatpush.msra.mxu0 %v884
        %911 = vmatmul.f32.gmra.mxu0 %v890
        %v912 = vpop.f32.mrf.mxu0
        %v913 = vadd.f32 0.0, %v912
        %914 = vmatmul.f32.gmra.mxu0 %v893
        %v915 = vpop.f32.mrf.mxu0
        %v916 = vadd.f32 0.0, %v915
        %917 = vdwg.mxu0
        %918 = vrot.lane.b32.xlu0 %v608, 96
        %v919 = vpop.permute.xlu0 %918
        %920 = vrot.lane.b32.xlu0 %v610, 96
        %v921 = vpop.permute.xlu0 %920
        %v925 = vsel %vm359, %v873, 0
        %v928 = vsel %vm359, %v874, 0
        %930 = vmatpush.msra.mxu0 0.0
        %931 = vmatpush.msra.mxu0 0.0
        %932 = vmatpush.msra.mxu0 0.0
        %933 = vmatpush.msra.mxu0 0.0
        %934 = vmatpush.msra.mxu0 0.0
        %935 = vmatpush.msra.mxu0 0.0
        %936 = vmatpush.msra.mxu0 0.0
        %937 = vmatpush.msra.mxu0 0.0
        %938 = vmatpush.msra.mxu0 0.0
        %939 = vmatpush.msra.mxu0 0.0
        %940 = vmatpush.msra.mxu0 0.0
        %941 = vmatpush.msra.mxu0 0.0
        %942 = vmatpush.msra.mxu0 0.0
        %943 = vmatpush.msra.mxu0 0.0
        %944 = vmatpush.msra.mxu0 %v921
        %945 = vmatpush.msra.mxu0 %v919
        %946 = vmatmul.f32.gmra.mxu0 %v925
        %v947 = vpop.f32.mrf.mxu0
        %v948 = vadd.f32 0.0, %v947
        %949 = vmatmul.f32.gmra.mxu0 %v928
        %v950 = vpop.f32.mrf.mxu0
        %v951 = vadd.f32 0.0, %v950
        %952 = vdwg.mxu0
        %953 = vrot.lane.b32.xlu0 %v613, 96
        %v954 = vpop.permute.xlu0 %953
        %955 = vrot.lane.b32.xlu0 %v615, 96
        %v956 = vpop.permute.xlu0 %955
        %v960 = vsel %vm359, %v875, 0
        %v963 = vsel %vm359, %v876, 0
        %965 = vmatpush.msra.mxu0 0.0
        %966 = vmatpush.msra.mxu0 0.0
        %967 = vmatpush.msra.mxu0 0.0
        %968 = vmatpush.msra.mxu0 0.0
        %969 = vmatpush.msra.mxu0 0.0
        %970 = vmatpush.msra.mxu0 0.0
        %971 = vmatpush.msra.mxu0 0.0
        %972 = vmatpush.msra.mxu0 0.0
        %973 = vmatpush.msra.mxu0 0.0
        %974 = vmatpush.msra.mxu0 0.0
        %975 = vmatpush.msra.mxu0 0.0
        %976 = vmatpush.msra.mxu0 0.0
        %977 = vmatpush.msra.mxu0 0.0
        %978 = vmatpush.msra.mxu0 0.0
        %979 = vmatpush.msra.mxu0 %v956
        %980 = vmatpush.msra.mxu0 %v954
        %981 = vmatmul.f32.gmra.mxu0 %v960
        %v982 = vpop.f32.mrf.mxu0
        %v983 = vadd.f32 0.0, %v982
        %984 = vmatmul.f32.gmra.mxu0 %v963
        %v985 = vpop.f32.mrf.mxu0
        %v986 = vadd.f32 0.0, %v985
        %987 = vdwg.mxu0
        %988 = vrot.lane.b32.xlu0 %v618, 96
        %v989 = vpop.permute.xlu0 %988
        %990 = vrot.lane.b32.xlu0 %v620, 96
        %v991 = vpop.permute.xlu0 %990
        %v995 = vsel %vm359, %v877, 0
        %v998 = vsel %vm359, %v878, 0
        %1000 = vmatpush.msra.mxu0 0.0
        %1001 = vmatpush.msra.mxu0 0.0
        %1002 = vmatpush.msra.mxu0 0.0
        %1003 = vmatpush.msra.mxu0 0.0
        %1004 = vmatpush.msra.mxu0 0.0
        %1005 = vmatpush.msra.mxu0 0.0
        %1006 = vmatpush.msra.mxu0 0.0
        %1007 = vmatpush.msra.mxu0 0.0
        %1008 = vmatpush.msra.mxu0 0.0
        %1009 = vmatpush.msra.mxu0 0.0
        %1010 = vmatpush.msra.mxu0 0.0
        %1011 = vmatpush.msra.mxu0 0.0
        %1012 = vmatpush.msra.mxu0 0.0
        %1013 = vmatpush.msra.mxu0 0.0
        %1014 = vmatpush.msra.mxu0 %v991
        %1015 = vmatpush.msra.mxu0 %v989
        %1016 = vmatmul.f32.gmra.mxu0 %v995
        %v1017 = vpop.f32.mrf.mxu0
        %v1018 = vadd.f32 0.0, %v1017
        %1019 = vmatmul.f32.gmra.mxu0 %v998
        %v1020 = vpop.f32.mrf.mxu0
        %v1021 = vadd.f32 0.0, %v1020
        %1022 = vdwg.mxu0
        %1023 = vrot.lane.b32.xlu0 %v626, 120
        %v1024 = vpop.permute.xlu0 %1023
        %1025 = vrot.lane.b32.xlu0 %v627, 120
        %v1026 = vpop.permute.xlu0 %1025
        %1027 = vrot.lane.b32.xlu0 %v603, 104
        %v1028 = vpop.permute.xlu0 %1027
        %1029 = vrot.lane.b32.xlu0 %v605, 104
        %v1030 = vpop.permute.xlu0 %1029
        %v1031 = vsel %vm640, %v1024, 0
        %v1033 = vsel %vm640, %v1026, 0
        %v1035 = vsel %vm640, %v1028, 0
        %v1037 = vsel %vm640, %v1030, 0
        %1039 = vmatpush.xpose.msra.mxu0 0.0
        %1040 = vmatpush.xpose.msra.mxu0 0.0
        %1041 = vmatpush.xpose.msra.mxu0 0.0
        %1042 = vmatpush.xpose.msra.mxu0 0.0
        %1043 = vmatpush.xpose.msra.mxu0 0.0
        %1044 = vmatpush.xpose.msra.mxu0 0.0
        %1045 = vmatpush.xpose.msra.mxu0 0.0
        %1046 = vmatpush.xpose.msra.mxu0 0.0
        %1047 = vmatpush.xpose.msra.mxu0 0.0
        %1048 = vmatpush.xpose.msra.mxu0 0.0
        %1049 = vmatpush.xpose.msra.mxu0 0.0
        %1050 = vmatpush.xpose.msra.mxu0 0.0
        %1051 = vmatpush.xpose.msra.mxu0 0.0
        %1052 = vmatpush.xpose.msra.mxu0 0.0
        %1053 = vmatpush.xpose.msra.mxu0 %v1037
        %1054 = vmatpush.xpose.msra.mxu0 %v1035
        %1055 = vmatmul.f32.gmra.mxu0 %v1031
        %v1056 = vpop.f32.mrf.mxu0
        %v1057 = vadd.f32 %v624, %v1056
        %1058 = vmatmul.f32.gmra.mxu0 %v1033
        %v1059 = vpop.f32.mrf.mxu0
        %v1060 = vadd.f32 %v625, %v1059
        %1061 = vdwg.mxu0
        %1062 = vrot.lane.b32.xlu0 %v628, 120
        %v1063 = vpop.permute.xlu0 %1062
        %1064 = vrot.lane.b32.xlu0 %v629, 120
        %v1065 = vpop.permute.xlu0 %1064
        %1066 = vrot.lane.b32.xlu0 %v608, 104
        %v1067 = vpop.permute.xlu0 %1066
        %1068 = vrot.lane.b32.xlu0 %v610, 104
        %v1069 = vpop.permute.xlu0 %1068
        %v1070 = vsel %vm640, %v1063, 0
        %v1072 = vsel %vm640, %v1065, 0
        %v1074 = vsel %vm640, %v1067, 0
        %v1076 = vsel %vm640, %v1069, 0
        %1078 = vmatpush.xpose.msra.mxu0 0.0
        %1079 = vmatpush.xpose.msra.mxu0 0.0
        %1080 = vmatpush.xpose.msra.mxu0 0.0
        %1081 = vmatpush.xpose.msra.mxu0 0.0
        %1082 = vmatpush.xpose.msra.mxu0 0.0
        %1083 = vmatpush.xpose.msra.mxu0 0.0
        %1084 = vmatpush.xpose.msra.mxu0 0.0
        %1085 = vmatpush.xpose.msra.mxu0 0.0
        %1086 = vmatpush.xpose.msra.mxu0 0.0
        %1087 = vmatpush.xpose.msra.mxu0 0.0
        %1088 = vmatpush.xpose.msra.mxu0 0.0
        %1089 = vmatpush.xpose.msra.mxu0 0.0
        %1090 = vmatpush.xpose.msra.mxu0 0.0
        %1091 = vmatpush.xpose.msra.mxu0 0.0
        %1092 = vmatpush.xpose.msra.mxu0 %v1076
        %1093 = vmatpush.xpose.msra.mxu0 %v1074
        %1094 = vmatmul.f32.gmra.mxu0 %v1070
        %v1095 = vpop.f32.mrf.mxu0
        %v1096 = vadd.f32 %v624, %v1095
        %1097 = vmatmul.f32.gmra.mxu0 %v1072
        %v1098 = vpop.f32.mrf.mxu0
        %v1099 = vadd.f32 %v625, %v1098
        %1100 = vdwg.mxu0
        %1101 = vrot.lane.b32.xlu0 %v630, 120
        %v1102 = vpop.permute.xlu0 %1101
        %1103 = vrot.lane.b32.xlu0 %v631, 120
        %v1104 = vpop.permute.xlu0 %1103
        %1105 = vrot.lane.b32.xlu0 %v613, 104
        %v1106 = vpop.permute.xlu0 %1105
        %1107 = vrot.lane.b32.xlu0 %v615, 104
        %v1108 = vpop.permute.xlu0 %1107
        %v1109 = vsel %vm640, %v1102, 0
        %v1111 = vsel %vm640, %v1104, 0
        %v1113 = vsel %vm640, %v1106, 0
        %v1115 = vsel %vm640, %v1108, 0
        %1117 = vmatpush.xpose.msra.mxu0 0.0
        %1118 = vmatpush.xpose.msra.mxu0 0.0
        %1119 = vmatpush.xpose.msra.mxu0 0.0
        %1120 = vmatpush.xpose.msra.mxu0 0.0
        %1121 = vmatpush.xpose.msra.mxu0 0.0
        %1122 = vmatpush.xpose.msra.mxu0 0.0
        %1123 = vmatpush.xpose.msra.mxu0 0.0
        %1124 = vmatpush.xpose.msra.mxu0 0.0
        %1125 = vmatpush.xpose.msra.mxu0 0.0
        %1126 = vmatpush.xpose.msra.mxu0 0.0
        %1127 = vmatpush.xpose.msra.mxu0 0.0
        %1128 = vmatpush.xpose.msra.mxu0 0.0
        %1129 = vmatpush.xpose.msra.mxu0 0.0
        %1130 = vmatpush.xpose.msra.mxu0 0.0
        %1131 = vmatpush.xpose.msra.mxu0 %v1115
        %1132 = vmatpush.xpose.msra.mxu0 %v1113
        %1133 = vmatmul.f32.gmra.mxu0 %v1109
        %v1134 = vpop.f32.mrf.mxu0
        %v1135 = vadd.f32 %v624, %v1134
        %1136 = vmatmul.f32.gmra.mxu0 %v1111
        %v1137 = vpop.f32.mrf.mxu0
        %v1138 = vadd.f32 %v625, %v1137
        %1139 = vdwg.mxu0
        %1140 = vrot.lane.b32.xlu0 %v632, 120
        %v1141 = vpop.permute.xlu0 %1140
        %1142 = vrot.lane.b32.xlu0 %v633, 120
        %v1143 = vpop.permute.xlu0 %1142
        %1144 = vrot.lane.b32.xlu0 %v618, 104
        %v1145 = vpop.permute.xlu0 %1144
        %1146 = vrot.lane.b32.xlu0 %v620, 104
        %v1147 = vpop.permute.xlu0 %1146
        %v1148 = vsel %vm640, %v1141, 0
        %v1150 = vsel %vm640, %v1143, 0
        %v1152 = vsel %vm640, %v1145, 0
        %v1154 = vsel %vm640, %v1147, 0
        %1156 = vmatpush.xpose.msra.mxu0 0.0
        %1157 = vmatpush.xpose.msra.mxu0 0.0
        %1158 = vmatpush.xpose.msra.mxu0 0.0
        %1159 = vmatpush.xpose.msra.mxu0 0.0
        %1160 = vmatpush.xpose.msra.mxu0 0.0
        %1161 = vmatpush.xpose.msra.mxu0 0.0
        %1162 = vmatpush.xpose.msra.mxu0 0.0
        %1163 = vmatpush.xpose.msra.mxu0 0.0
        %1164 = vmatpush.xpose.msra.mxu0 0.0
        %1165 = vmatpush.xpose.msra.mxu0 0.0
        %1166 = vmatpush.xpose.msra.mxu0 0.0
        %1167 = vmatpush.xpose.msra.mxu0 0.0
        %1168 = vmatpush.xpose.msra.mxu0 0.0
        %1169 = vmatpush.xpose.msra.mxu0 0.0
        %1170 = vmatpush.xpose.msra.mxu0 %v1154
        %1171 = vmatpush.xpose.msra.mxu0 %v1152
        %1172 = vmatmul.f32.gmra.mxu0 %v1148
        %v1173 = vpop.f32.mrf.mxu0
        %v1174 = vadd.f32 %v624, %v1173
        %1175 = vmatmul.f32.gmra.mxu0 %v1150
        %v1176 = vpop.f32.mrf.mxu0
        %v1177 = vadd.f32 %v625, %v1176
        %1178 = vdwg.mxu0
        %v1179 = vsel %vm359, %v1057, -inf
        %1180 = vmax.xlane.f32.xlu0 %v1179
        %v1181 = vpop.xlane.xlu0 %1180
        %v1182 = vsel %vm359, %v1060, -inf
        %1183 = vmax.xlane.f32.xlu0 %v1182
        %v1184 = vpop.xlane.xlu0 %1183
        %v1185 = vsel %vm359, %v1096, -inf
        %1186 = vmax.xlane.f32.xlu0 %v1185
        %v1187 = vpop.xlane.xlu0 %1186
        %v1188 = vsel %vm359, %v1099, -inf
        %1189 = vmax.xlane.f32.xlu0 %v1188
        %v1190 = vpop.xlane.xlu0 %1189
        %v1191 = vsel %vm359, %v1135, -inf
        %1192 = vmax.xlane.f32.xlu0 %v1191
        %v1193 = vpop.xlane.xlu0 %1192
        %v1194 = vsel %vm359, %v1138, -inf
        %1195 = vmax.xlane.f32.xlu0 %v1194
        %v1196 = vpop.xlane.xlu0 %1195
        %v1197 = vsel %vm359, %v1174, -inf
        %1198 = vmax.xlane.f32.xlu0 %v1197
        %v1199 = vpop.xlane.xlu0 %1198
        %v1200 = vsel %vm359, %v1177, -inf
        %1201 = vmax.xlane.f32.xlu0 %v1200
        %v1202 = vpop.xlane.xlu0 %1201
        %v1203 = vsub.f32 %v1057, %v1181
        %v1204 = vsub.f32 %v1060, %v1184
        %v1205 = vsub.f32 %v1096, %v1187
        %v1206 = vsub.f32 %v1099, %v1190
        %v1207 = vsub.f32 %v1135, %v1193
        %v1208 = vsub.f32 %v1138, %v1196
        %v1209 = vsub.f32 %v1174, %v1199
        %v1210 = vsub.f32 %v1177, %v1202
        %v1211 = vmul.f32 %v1203, 1.442695
        %v1212 = vpow.pop %v1211
        %v1213 = vmul.f32 %v1204, 1.442695
        %v1214 = vpow.pop %v1213
        %v1215 = vmul.f32 %v1205, 1.442695
        %v1216 = vpow.pop %v1215
        %v1217 = vmul.f32 %v1206, 1.442695
        %v1218 = vpow.pop %v1217
        %v1219 = vmul.f32 %v1207, 1.442695
        %v1220 = vpow.pop %v1219
        %v1221 = vmul.f32 %v1208, 1.442695
        %v1222 = vpow.pop %v1221
        %v1223 = vmul.f32 %v1209, 1.442695
        %v1224 = vpow.pop %v1223
        %v1225 = vmul.f32 %v1210, 1.442695
        %v1226 = vpow.pop %v1225
        %v1227 = vsel %vm359, %v1212, 0.0
        %1228 = vadd.xlane.f32.xlu0 %v1227
        %v1229 = vpop.xlane.xlu0 %1228
        %v1230 = vsel %vm359, %v1214, 0.0
        %1231 = vadd.xlane.f32.xlu0 %v1230
        %v1232 = vpop.xlane.xlu0 %1231
        %v1233 = vsel %vm359, %v1216, 0.0
        %1234 = vadd.xlane.f32.xlu0 %v1233
        %v1235 = vpop.xlane.xlu0 %1234
        %v1236 = vsel %vm359, %v1218, 0.0
        %1237 = vadd.xlane.f32.xlu0 %v1236
        %v1238 = vpop.xlane.xlu0 %1237
        %v1239 = vsel %vm359, %v1220, 0.0
        %1240 = vadd.xlane.f32.xlu0 %v1239
        %v1241 = vpop.xlane.xlu0 %1240
        %v1242 = vsel %vm359, %v1222, 0.0
        %1243 = vadd.xlane.f32.xlu0 %v1242
        %v1244 = vpop.xlane.xlu0 %1243
        %v1245 = vsel %vm359, %v1224, 0.0
        %1246 = vadd.xlane.f32.xlu0 %v1245
        %v1247 = vpop.xlane.xlu0 %1246
        %v1248 = vsel %vm359, %v1226, 0.0
        %1249 = vadd.xlane.f32.xlu0 %v1248
        %v1250 = vpop.xlane.xlu0 %1249
        %v1251 = vrcp.pop %v1229
        %v1252 = vrcp.pop %v1232
        %v1253 = vrcp.pop %v1235
        %v1254 = vrcp.pop %v1238
        %v1255 = vrcp.pop %v1241
        %v1256 = vrcp.pop %v1244
        %v1257 = vrcp.pop %v1247
        %v1258 = vrcp.pop %v1250
        %v1259 = vmul.f32 %v1212, %v1251
        %v1260 = vmul.f32 %v1214, %v1252
        %v1261 = vmul.f32 %v1216, %v1253
        %v1262 = vmul.f32 %v1218, %v1254
        %v1263 = vmul.f32 %v1220, %v1255
        %v1264 = vmul.f32 %v1222, %v1256
        %v1265 = vmul.f32 %v1224, %v1257
        %v1266 = vmul.f32 %v1226, %v1258
        %v1267 = vadd.f32 %v879, %v1259
        %v1268 = vadd.f32 %v880, %v1261
        %v1269 = vadd.f32 %v881, %v1263
        %v1270 = vadd.f32 %v882, %v1265
        %1271 = vrot.lane.b32.xlu0 %v603, 88
        %v1272 = vpop.permute.xlu0 %1271
        %1273 = vrot.lane.b32.xlu0 %v605, 88
        %v1274 = vpop.permute.xlu0 %1273
        %v1278 = vsel %vm359, %v1259, 0
        %v1281 = vsel %vm359, %v1260, 0
        %1283 = vmatpush.msra.mxu0 0.0
        %1284 = vmatpush.msra.mxu0 0.0
        %1285 = vmatpush.msra.mxu0 0.0
        %1286 = vmatpush.msra.mxu0 0.0
        %1287 = vmatpush.msra.mxu0 0.0
        %1288 = vmatpush.msra.mxu0 0.0
        %1289 = vmatpush.msra.mxu0 0.0
        %1290 = vmatpush.msra.mxu0 0.0
        %1291 = vmatpush.msra.mxu0 0.0
        %1292 = vmatpush.msra.mxu0 0.0
        %1293 = vmatpush.msra.mxu0 0.0
        %1294 = vmatpush.msra.mxu0 0.0
        %1295 = vmatpush.msra.mxu0 0.0
        %1296 = vmatpush.msra.mxu0 0.0
        %1297 = vmatpush.msra.mxu0 %v1274
        %1298 = vmatpush.msra.mxu0 %v1272
        %1299 = vmatmul.f32.gmra.mxu0 %v1278
        %v1300 = vpop.f32.mrf.mxu0
        %v1301 = vadd.f32 0.0, %v1300
        %1302 = vmatmul.f32.gmra.mxu0 %v1281
        %v1303 = vpop.f32.mrf.mxu0
        %v1304 = vadd.f32 0.0, %v1303
        %1305 = vdwg.mxu0
        %1306 = vrot.lane.b32.xlu0 %v608, 88
        %v1307 = vpop.permute.xlu0 %1306
        %1308 = vrot.lane.b32.xlu0 %v610, 88
        %v1309 = vpop.permute.xlu0 %1308
        %v1313 = vsel %vm359, %v1261, 0
        %v1316 = vsel %vm359, %v1262, 0
        %1318 = vmatpush.msra.mxu0 0.0
        %1319 = vmatpush.msra.mxu0 0.0
        %1320 = vmatpush.msra.mxu0 0.0
        %1321 = vmatpush.msra.mxu0 0.0
        %1322 = vmatpush.msra.mxu0 0.0
        %1323 = vmatpush.msra.mxu0 0.0
        %1324 = vmatpush.msra.mxu0 0.0
        %1325 = vmatpush.msra.mxu0 0.0
        %1326 = vmatpush.msra.mxu0 0.0
        %1327 = vmatpush.msra.mxu0 0.0
        %1328 = vmatpush.msra.mxu0 0.0
        %1329 = vmatpush.msra.mxu0 0.0
        %1330 = vmatpush.msra.mxu0 0.0
        %1331 = vmatpush.msra.mxu0 0.0
        %1332 = vmatpush.msra.mxu0 %v1309
        %1333 = vmatpush.msra.mxu0 %v1307
        %1334 = vmatmul.f32.gmra.mxu0 %v1313
        %v1335 = vpop.f32.mrf.mxu0
        %v1336 = vadd.f32 0.0, %v1335
        %1337 = vmatmul.f32.gmra.mxu0 %v1316
        %v1338 = vpop.f32.mrf.mxu0
        %v1339 = vadd.f32 0.0, %v1338
        %1340 = vdwg.mxu0
        %1341 = vrot.lane.b32.xlu0 %v613, 88
        %v1342 = vpop.permute.xlu0 %1341
        %1343 = vrot.lane.b32.xlu0 %v615, 88
        %v1344 = vpop.permute.xlu0 %1343
        %v1348 = vsel %vm359, %v1263, 0
        %v1351 = vsel %vm359, %v1264, 0
        %1353 = vmatpush.msra.mxu0 0.0
        %1354 = vmatpush.msra.mxu0 0.0
        %1355 = vmatpush.msra.mxu0 0.0
        %1356 = vmatpush.msra.mxu0 0.0
        %1357 = vmatpush.msra.mxu0 0.0
        %1358 = vmatpush.msra.mxu0 0.0
        %1359 = vmatpush.msra.mxu0 0.0
        %1360 = vmatpush.msra.mxu0 0.0
        %1361 = vmatpush.msra.mxu0 0.0
        %1362 = vmatpush.msra.mxu0 0.0
        %1363 = vmatpush.msra.mxu0 0.0
        %1364 = vmatpush.msra.mxu0 0.0
        %1365 = vmatpush.msra.mxu0 0.0
        %1366 = vmatpush.msra.mxu0 0.0
        %1367 = vmatpush.msra.mxu0 %v1344
        %1368 = vmatpush.msra.mxu0 %v1342
        %1369 = vmatmul.f32.gmra.mxu0 %v1348
        %v1370 = vpop.f32.mrf.mxu0
        %v1371 = vadd.f32 0.0, %v1370
        %1372 = vmatmul.f32.gmra.mxu0 %v1351
        %v1373 = vpop.f32.mrf.mxu0
        %v1374 = vadd.f32 0.0, %v1373
        %1375 = vdwg.mxu0
        %1376 = vrot.lane.b32.xlu0 %v618, 88
        %v1377 = vpop.permute.xlu0 %1376
        %1378 = vrot.lane.b32.xlu0 %v620, 88
        %v1379 = vpop.permute.xlu0 %1378
        %v1383 = vsel %vm359, %v1265, 0
        %v1386 = vsel %vm359, %v1266, 0
        %1388 = vmatpush.msra.mxu0 0.0
        %1389 = vmatpush.msra.mxu0 0.0
        %1390 = vmatpush.msra.mxu0 0.0
        %1391 = vmatpush.msra.mxu0 0.0
        %1392 = vmatpush.msra.mxu0 0.0
        %1393 = vmatpush.msra.mxu0 0.0
        %1394 = vmatpush.msra.mxu0 0.0
        %1395 = vmatpush.msra.mxu0 0.0
        %1396 = vmatpush.msra.mxu0 0.0
        %1397 = vmatpush.msra.mxu0 0.0
        %1398 = vmatpush.msra.mxu0 0.0
        %1399 = vmatpush.msra.mxu0 0.0
        %1400 = vmatpush.msra.mxu0 0.0
        %1401 = vmatpush.msra.mxu0 0.0
        %1402 = vmatpush.msra.mxu0 %v1379
        %1403 = vmatpush.msra.mxu0 %v1377
        %1404 = vmatmul.f32.gmra.mxu0 %v1383
        %v1405 = vpop.f32.mrf.mxu0
        %v1406 = vadd.f32 0.0, %v1405
        %1407 = vmatmul.f32.gmra.mxu0 %v1386
        %v1408 = vpop.f32.mrf.mxu0
        %v1409 = vadd.f32 0.0, %v1408
        %1410 = vdwg.mxu0
        %1419 = vrot.lane.b32.xlu0 %v1301, 8
        %v1420 = vpop.permute.xlu0 %1419
        %1421 = vrot.lane.b32.xlu0 %v1304, 8
        %v1422 = vpop.permute.xlu0 %1421
        %1423 = vrot.lane.b32.xlu0 %v1336, 8
        %v1424 = vpop.permute.xlu0 %1423
        %1425 = vrot.lane.b32.xlu0 %v1339, 8
        %v1426 = vpop.permute.xlu0 %1425
        %1427 = vrot.lane.b32.xlu0 %v1371, 8
        %v1428 = vpop.permute.xlu0 %1427
        %1429 = vrot.lane.b32.xlu0 %v1374, 8
        %v1430 = vpop.permute.xlu0 %1429
        %1431 = vrot.lane.b32.xlu0 %v1406, 8
        %v1432 = vpop.permute.xlu0 %1431
        %1433 = vrot.lane.b32.xlu0 %v1409, 8
        %v1434 = vpop.permute.xlu0 %1433
        %v1443 = vsel %vm640, %v913, %v1420
        %v1444 = vsel %vm640, %v916, %v1422
        %v1445 = vsel %vm640, %v948, %v1424
        %v1446 = vsel %vm640, %v951, %v1426
        %v1447 = vsel %vm640, %v983, %v1428
        %v1448 = vsel %vm640, %v986, %v1430
        %v1449 = vsel %vm640, %v1018, %v1432
        %v1450 = vsel %vm640, %v1021, %v1434
        %v1451 = vpack.c.bf16 %v1444, %v1443
        %v1452 = vpack.c.bf16 %v1446, %v1445
        %v1453 = vpack.c.bf16 %v1448, %v1447
        %v1454 = vpack.c.bf16 %v1450, %v1449
        %v1455 = vld [vmem:[%s5] sm:$0xf]
        %v1456 = vld [vmem:[%s5 + $0x4] sm:$0xf]
        %v1457 = vld [vmem:[%s6] sm:$0x1]
        %v1459 = vperm.slane %v1457, 0
        %v1463 = vunpack.c.l.b16 %v1455
        %v1464 = vunpack.c.l.b16 %v1456
        %v1465 = vpack.c.b16 %v1464, %v1463
        %v1468 = vsel %vm359, %v1451, 0
        %v1471 = vsel %vm359, %v1452, 0
        %v1474 = vsel %vm359, %v1453, 0
        %v1477 = vsel %vm359, %v1454, 0
        %1479 = vmatpush.bf16.msra.mxu0 0
        %1480 = vmatpush.bf16.msra.mxu0 0
        %1481 = vmatpush.bf16.msra.mxu0 0
        %1482 = vmatpush.bf16.msra.mxu0 0
        %1483 = vmatpush.bf16.msra.mxu0 0
        %1484 = vmatpush.bf16.msra.mxu0 0
        %1485 = vmatpush.bf16.msra.mxu0 0
        %1486 = vmatpush.bf16.msra.mxu0 %v1465
        %1487 = vmatmul.bf16.gmra.mxu0 %v1468
        %v1488 = vpop.f32.mrf.mxu0
        %v1489 = vadd.f32 %v1459, %v1488
        %v1490 = vpop.f32.mrf.mxu0
        %v1491 = vadd.f32 %v1459, %v1490
        %1492 = vmatmul.bf16.gmra.mxu0 %v1471
        %v1493 = vpop.f32.mrf.mxu0
        %v1494 = vadd.f32 %v1459, %v1493
        %v1495 = vpop.f32.mrf.mxu0
        %v1496 = vadd.f32 %v1459, %v1495
        %1497 = vmatmul.bf16.gmra.mxu0 %v1474
        %v1498 = vpop.f32.mrf.mxu0
        %v1499 = vadd.f32 %v1459, %v1498
        %v1500 = vpop.f32.mrf.mxu0
        %v1501 = vadd.f32 %v1459, %v1500
        %1502 = vmatmul.bf16.gmra.mxu0 %v1477
        %v1503 = vpop.f32.mrf.mxu0
        %v1504 = vadd.f32 %v1459, %v1503
        %v1505 = vpop.f32.mrf.mxu0
        %v1506 = vadd.f32 %v1459, %v1505
        %1507 = vdwg.mxu0
        %v1508 = vadd.f32 %v1489, %v349
        %v1509 = vadd.f32 %v1491, %v350
        %v1510 = vadd.f32 %v1494, %v351
        %v1511 = vadd.f32 %v1496, %v352
        %v1512 = vadd.f32 %v1499, %v353
        %v1513 = vadd.f32 %v1501, %v354
        %v1514 = vadd.f32 %v1504, %v355
        %v1515 = vadd.f32 %v1506, %v356
        %1516 = vst.msk [vmem:[%s345] sm:$0xff] %vm359, %v1508
        %1517 = vst.msk [vmem:[%s345 + $0x8] sm:$0xff] %vm359, %v1509
        %1518 = vst.msk [vmem:[%s345 + $0x10] sm:$0xff] %vm359, %v1510
        %1519 = vst.msk [vmem:[%s345 + $0x18] sm:$0xff] %vm359, %v1511
        %1520 = vst.msk [vmem:[%s345 + $0x20] sm:$0xff] %vm359, %v1512
        %1521 = vst.msk [vmem:[%s345 + $0x28] sm:$0xff] %vm359, %v1513
        %1522 = vst.msk [vmem:[%s345 + $0x30] sm:$0xff] %vm359, %v1514
        %1523 = vst.msk [vmem:[%s345 + $0x38] sm:$0xff] %vm359, %v1515
        %v1524 = vmul.f32 %v1267, 0.5
        %v1525 = vmul.f32 %v1268, 0.5
        %v1526 = vmul.f32 %v1269, 0.5
        %v1527 = vmul.f32 %v1270, 0.5
        %v1532 = vrot.slane %v1525, 7
        %vm1533 = vcmask 1041409
        %v1534 = vsel %vm1533, %v1532, %v1524
        %v1535 = vrot.slane %v1526, 6
        %vm1536 = vcmask 1042434
        %v1537 = vsel %vm1536, %v1535, %v1534
        %v1538 = vrot.slane %v1527, 5
        %vm1539 = vcmask 1043459
        %v1540 = vsel %vm1539, %v1538, %v1537
        %v1542 = vsel %vm359, %v1540, 0.0
        %v1544 = vrot.slane %v1542, 1
        %v1545 = vrot.slane %v1542, 2
        %v1546 = vrot.slane %v1542, 3
        %1550 = vst [vmem:[%s334] sm:$0x1] %v1542
        %1551 = vst [vmem:[%s334 + $0x1] sm:$0x1] %v1544
        %1552 = vst [vmem:[%s334 + $0x2] sm:$0x1] %v1545
        %1553 = vst [vmem:[%s334 + $0x3] sm:$0x1] %v1546
        %s1554 = smul.u32 8, %s24
        %p1555 = scmp.lt.s32.totalorder %s1554, 15
        %s1556 = scalar_select %p1555, %s1554, 15
        %s1557 = smul.addr %s1556, 8
        %s1558 = scalar_lea.vmem %s8, %s1557
        %s1559 = sand.u32 %s231, 1
        %s1560 = scalar_lea.sflag [#allocation3], %s1559
        %s1561 = sand.u32 %s231, 1
        %s1562 = smul.addr %s1561, 4
        %s1563 = scalar_lea.vmem [#allocation2], %s1562
        // Predicated region
        $region53: #{swin_forward.13} parent=51 // pred_check
          %p1564 = pneg %p215
        $region54: #{swin_forward.13} parent=51 // pred_check_branch
          %1566 = sbr.rel (%p1564) target = $region56
        $region55: #{swin_forward.13} parent=51 // pred_region
          %s1567 = smul.u32 8, %s24
        $region56: #{swin_forward.13} parent=51 // pred_fallthru
          _
        // Predicated region
        $region57: #{swin_forward.13} parent=51 // pred_check
          %p1568 = pneg %p241
        $region58: #{swin_forward.13} parent=51 // pred_check_branch
          %1570 = sbr.rel (%p1568) target = $region60
        $region59: #{swin_forward.13} parent=51 // pred_region
          %s1571 = smul.u32 4, %s24
          %1573 = vsyncadd %s1560, 0
          %s1574 = scalar_lea.hbm %s9, %s1571
          %s1575 = sshll.u32 %s1563, 4
          %s1576 = int_to_ptr.vmem [resolvable:$true] %s1575
          %s1577 = sshll.u32 %s1574, 4
          %s1578 = int_to_ptr.hbm [resolvable:$true] %s1577
          %1583 = dma.vmem_to_hbm [thread:$0]  %s1576, 64, %s1578, %s1560, 16, 16, 1
        $region60: #{swin_forward.13} parent=51 // pred_fallthru
          _
      $region52: #{swin_forward.13} parent=5 // pred_fallthru
        _
      %p1584 = scmp.le.s32.totalorder 2, %s19
      // Predicated region
      $region61: #{swin_forward.13} parent=5 // pred_check
        %p1585 = pneg %p1584
      $region62: #{swin_forward.13} parent=5 // pred_check_branch
        %1587 = sbr.rel (%p1585) target = $region64
      $region63: #{swin_forward.13} parent=5 // pred_region
        %s1588 = ssub.s32 %s19, 2
        // Predicated region
        $region65: #{swin_forward.13} parent=63 // pred_check
          %p1589 = pneg %p221
        $region66: #{swin_forward.13} parent=63 // pred_check_branch
          %1591 = sbr.rel (%p1589) target = $region68
        $region67: #{swin_forward.13} parent=63 // pred_region
          %s1592 = smul.u32 8, %s25
          %p1593 = scmp.lt.s32.totalorder %s1592, 15
          %s1594 = scalar_select %p1593, %s1592, 15
          %s1595 = smul.addr %s1594, 8
          %s1596 = scalar_lea.vmem %s8, %s1595
        $region68: #{swin_forward.13} parent=63 // pred_fallthru
          _
        // Predicated region
        $region69: #{swin_forward.13} parent=63 // pred_check
          %p1597 = pneg %p247
        $region70: #{swin_forward.13} parent=63 // pred_check_branch
          %1599 = sbr.rel (%p1597) target = $region72
        $region71: #{swin_forward.13} parent=63 // pred_region
          %s1600 = sand.u32 %s232, 1
          %s1601 = scalar_lea.sflag [#allocation3], %s1600
          %s1602 = sand.u32 %s232, 1
          %s1603 = smul.addr %s1602, 4
          %s1604 = scalar_lea.vmem [#allocation2], %s1603
          %1606 = dma.done %s1601, 64
        $region72: #{swin_forward.13} parent=63 // pred_fallthru
          _
      $region64: #{swin_forward.13} parent=5 // pred_fallthru
        _
    $region6: #{swin_forward.13} parent=1 // loop_footer
      %s23 = sadd.s32 1, %s19
    $region7: #{swin_forward.13} parent=1 // loop_footer_branch
      %18 = sbr.rel target = $region3
    $region8: #{swin_forward.13} parent=1 // loop_exit
      _
    %1607 = vsyncpa [#allocation3], 1
    %s1608 = scalar_lea.sflag [#allocation3], 1
    %1609 = vsyncpa %s1608, 1

// kernel: swin_forward.14
$region0: #{swin_forward.14}
  #allocation0 [shape = 'u32[]', space=smem, size = 0x4, offset = 0x4, fixed_abs, tag = 'smem constant byte address 0x4 - core index']
  #allocation1 [shape = 'u32[72,128]{1,0:T(1,128)}', space=vmem, size = 0x9000, scoped, tag = 'internal scratch']
  %s0 = inlined_call_operand.vmem [shape: f32[128,16], index: 0, kind: input, shape index: {}]
  %s1 = inlined_call_operand.vmem [shape: f32[1,16], index: 1, kind: input, shape index: {}]
  %s2 = inlined_call_operand.vmem [shape: f32[1,16], index: 2, kind: input, shape index: {}]
  %s3 = inlined_call_operand.vmem [shape: bf16[16,64], index: 3, kind: input, shape index: {}]
  %s4 = inlined_call_operand.vmem [shape: f32[1,64], index: 4, kind: input, shape index: {}]
  %s5 = inlined_call_operand.vmem [shape: bf16[64,16], index: 5, kind: input, shape index: {}]
  %s6 = inlined_call_operand.vmem [shape: f32[1,16], index: 6, kind: input, shape index: {}]
  %s7 = inlined_call_operand.vmem [shape: f32[128,16], index: 7, kind: output, shape index: {}]
  %s8 = sld [smem:[#allocation0]]
  $region61: #{swin_forward.14} parent=0
    _
  %s10 = ssub.s32 1, %s8
  %s11 = scalar_select 0, %s10, %s8
  loop: start=0, step=1, limit=4
  $region2: #{swin_forward.14} parent=0 // loop_pre_header
    _
  $region3: #{swin_forward.14} parent=0 // loop_header
    %s13 = sphi 0, %s17
    %p14 = scmp.ge.s32.totalorder %s13, 4
    %s23 = sphi 0, %s25
    %s26 = sphi 0, %s23
    %s27 = sphi 0, %s26
    %s43 = sphi 0, %s27
    %s47 = sphi 0, %s47
    %s49 = sphi 0, %s47
    %s50 = sphi 0, %s49
    %s64 = sphi 0, %s50
    %s68 = sphi 0, %s68
    %s70 = sphi 0, %s68
    %s71 = sphi 0, %s70
    %s85 = sphi 0, %s71
    %s89 = sphi 0, %s89
    %s91 = sphi 0, %s89
    %s92 = sphi 0, %s91
    %s106 = sphi 0, %s92
    %s110 = sphi 0, %s110
    %s112 = sphi 0, %s110
    %s113 = sphi 0, %s112
    %s127 = sphi 0, %s113
    %s131 = sphi 0, %s131
    %s133 = sphi 0, %s131
    %s134 = sphi 0, %s133
    %s148 = sphi 0, %s134
    %s152 = sphi 0, %s152
    %s154 = sphi 0, %s152
    %s155 = sphi 0, %s154
    %s169 = sphi 0, %s155
    %s175 = sphi 0, %s177
    %s178 = sphi 0, %s175
    %s179 = sphi 0, %s178
    %s195 = sphi 0, %s179
  $region4: #{swin_forward.14} parent=0 // loop_header_branch
    %16 = sbr.rel (%p14) target = $region8
  $region5: #{swin_forward.14} parent=0 // loop_body
    %s18 = ssub.s32 %s13, 1
    %s19 = ssub.s32 %s13, 2
    %s20 = sadd.s32 %s13, 1
    %s21 = ssub.s32 %s13, %s20
    %p22 = scmp.eq.s32.totalorder %s21, 0
    %s24 = sadd.s32 %s23, 1
    %s25 = scalar_select %p22, %s23, %s24
    %p28 = pneg %p22
    %p29 = scmp.eq.s32.totalorder %s13, 1
    %p30 = por %p28, %p29
    %p31 = scmp.ne.s32.totalorder %s23, %s26
    %p32 = scmp.eq.s32.totalorder %s13, 0
    %p33 = por %p31, %p32
    %p34 = scmp.ne.s32.totalorder %s23, %s26
    %p35 = scmp.eq.s32.totalorder %s18, 1
    %p36 = por %p34, %p35
    %p37 = scmp.ne.s32.totalorder %s26, %s27
    %p38 = scmp.eq.s32.totalorder %s18, 0
    %p39 = por %p37, %p38
    %p40 = scmp.ne.s32.totalorder %s26, %s27
    %p41 = scmp.eq.s32.totalorder %s19, 1
    %p42 = por %p40, %p41
    %p44 = scmp.ne.s32.totalorder %s27, %s43
    %p45 = scmp.eq.s32.totalorder %s19, 0
    %p46 = por %p44, %p45
    %s48 = sadd.s32 %s47, 1
    %p51 = scmp.eq.s32.totalorder %s13, 1
    %p52 = scmp.ne.s32.totalorder %s47, %s49
    %p53 = scmp.eq.s32.totalorder %s13, 0
    %p54 = por %p52, %p53
    %p55 = scmp.ne.s32.totalorder %s47, %s49
    %p56 = scmp.eq.s32.totalorder %s18, 1
    %p57 = por %p55, %p56
    %p58 = scmp.ne.s32.totalorder %s49, %s50
    %p59 = scmp.eq.s32.totalorder %s18, 0
    %p60 = por %p58, %p59
    %p61 = scmp.ne.s32.totalorder %s49, %s50
    %p62 = scmp.eq.s32.totalorder %s19, 1
    %p63 = por %p61, %p62
    %p65 = scmp.ne.s32.totalorder %s50, %s64
    %p66 = scmp.eq.s32.totalorder %s19, 0
    %p67 = por %p65, %p66
    %s69 = sadd.s32 %s68, 1
    %p72 = scmp.eq.s32.totalorder %s13, 1
    %p73 = scmp.ne.s32.totalorder %s68, %s70
    %p74 = scmp.eq.s32.totalorder %s13, 0
    %p75 = por %p73, %p74
    %p76 = scmp.ne.s32.totalorder %s68, %s70
    %p77 = scmp.eq.s32.totalorder %s18, 1
    %p78 = por %p76, %p77
    %p79 = scmp.ne.s32.totalorder %s70, %s71
    %p80 = scmp.eq.s32.totalorder %s18, 0
    %p81 = por %p79, %p80
    %p82 = scmp.ne.s32.totalorder %s70, %s71
    %p83 = scmp.eq.s32.totalorder %s19, 1
    %p84 = por %p82, %p83
    %p86 = scmp.ne.s32.totalorder %s71, %s85
    %p87 = scmp.eq.s32.totalorder %s19, 0
    %p88 = por %p86, %p87
    %s90 = sadd.s32 %s89, 1
    %p93 = scmp.eq.s32.totalorder %s13, 1
    %p94 = scmp.ne.s32.totalorder %s89, %s91
    %p95 = scmp.eq.s32.totalorder %s13, 0
    %p96 = por %p94, %p95
    %p97 = scmp.ne.s32.totalorder %s89, %s91
    %p98 = scmp.eq.s32.totalorder %s18, 1
    %p99 = por %p97, %p98
    %p100 = scmp.ne.s32.totalorder %s91, %s92
    %p101 = scmp.eq.s32.totalorder %s18, 0
    %p102 = por %p100, %p101
    %p103 = scmp.ne.s32.totalorder %s91, %s92
    %p104 = scmp.eq.s32.totalorder %s19, 1
    %p105 = por %p103, %p104
    %p107 = scmp.ne.s32.totalorder %s92, %s106
    %p108 = scmp.eq.s32.totalorder %s19, 0
    %p109 = por %p107, %p108
    %s111 = sadd.s32 %s110, 1
    %p114 = scmp.eq.s32.totalorder %s13, 1
    %p115 = scmp.ne.s32.totalorder %s110, %s112
    %p116 = scmp.eq.s32.totalorder %s13, 0
    %p117 = por %p115, %p116
    %p118 = scmp.ne.s32.totalorder %s110, %s112
    %p119 = scmp.eq.s32.totalorder %s18, 1
    %p120 = por %p118, %p119
    %p121 = scmp.ne.s32.totalorder %s112, %s113
    %p122 = scmp.eq.s32.totalorder %s18, 0
    %p123 = por %p121, %p122
    %p124 = scmp.ne.s32.totalorder %s112, %s113
    %p125 = scmp.eq.s32.totalorder %s19, 1
    %p126 = por %p124, %p125
    %p128 = scmp.ne.s32.totalorder %s113, %s127
    %p129 = scmp.eq.s32.totalorder %s19, 0
    %p130 = por %p128, %p129
    %s132 = sadd.s32 %s131, 1
    %p135 = scmp.eq.s32.totalorder %s13, 1
    %p136 = scmp.ne.s32.totalorder %s131, %s133
    %p137 = scmp.eq.s32.totalorder %s13, 0
    %p138 = por %p136, %p137
    %p139 = scmp.ne.s32.totalorder %s131, %s133
    %p140 = scmp.eq.s32.totalorder %s18, 1
    %p141 = por %p139, %p140
    %p142 = scmp.ne.s32.totalorder %s133, %s134
    %p143 = scmp.eq.s32.totalorder %s18, 0
    %p144 = por %p142, %p143
    %p145 = scmp.ne.s32.totalorder %s133, %s134
    %p146 = scmp.eq.s32.totalorder %s19, 1
    %p147 = por %p145, %p146
    %p149 = scmp.ne.s32.totalorder %s134, %s148
    %p150 = scmp.eq.s32.totalorder %s19, 0
    %p151 = por %p149, %p150
    %s153 = sadd.s32 %s152, 1
    %p156 = scmp.eq.s32.totalorder %s13, 1
    %p157 = scmp.ne.s32.totalorder %s152, %s154
    %p158 = scmp.eq.s32.totalorder %s13, 0
    %p159 = por %p157, %p158
    %p160 = scmp.ne.s32.totalorder %s152, %s154
    %p161 = scmp.eq.s32.totalorder %s18, 1
    %p162 = por %p160, %p161
    %p163 = scmp.ne.s32.totalorder %s154, %s155
    %p164 = scmp.eq.s32.totalorder %s18, 0
    %p165 = por %p163, %p164
    %p166 = scmp.ne.s32.totalorder %s154, %s155
    %p167 = scmp.eq.s32.totalorder %s19, 1
    %p168 = por %p166, %p167
    %p170 = scmp.ne.s32.totalorder %s155, %s169
    %p171 = scmp.eq.s32.totalorder %s19, 0
    %p172 = por %p170, %p171
    %s173 = ssub.s32 %s13, %s20
    %p174 = scmp.eq.s32.totalorder %s173, 0
    %s176 = sadd.s32 %s175, 1
    %s177 = scalar_select %p174, %s175, %s176
    %p180 = pneg %p174
    %p181 = scmp.eq.s32.totalorder %s13, 1
    %p182 = por %p180, %p181
    %p183 = scmp.ne.s32.totalorder %s175, %s178
    %p184 = scmp.eq.s32.totalorder %s13, 0
    %p185 = por %p183, %p184
    %p186 = scmp.ne.s32.totalorder %s175, %s178
    %p187 = scmp.eq.s32.totalorder %s18, 1
    %p188 = por %p186, %p187
    %p189 = scmp.ne.s32.totalorder %s178, %s179
    %p190 = scmp.eq.s32.totalorder %s18, 0
    %p191 = por %p189, %p190
    %p192 = scmp.ne.s32.totalorder %s178, %s179
    %p193 = scmp.eq.s32.totalorder %s19, 1
    %p194 = por %p192, %p193
    %p196 = scmp.ne.s32.totalorder %s179, %s195
    %p197 = scmp.eq.s32.totalorder %s19, 0
    %p198 = por %p196, %p197
    %p199 = scmp.le.s32.totalorder 1, %s13
    %p200 = scmp.lt.s32.totalorder %s13, 3
    %p201 = pnand %p199, %p200
    %p202 = pneg %p201
    // Predicated region
    $region9: #{swin_forward.14} parent=5 // pred_check
      _
    $region10: #{swin_forward.14} parent=5 // pred_check_branch
      %204 = sbr.rel (%p201) target = $region12
    $region11: #{swin_forward.14} parent=5 // pred_region
      %s205 = ssub.s32 %s13, 1
      // Predicated region
      $region13: #{swin_forward.14} parent=11 // pred_check
        %p206 = pneg %p60
      $region14: #{swin_forward.14} parent=11 // pred_check_branch
        %208 = sbr.rel (%p206) target = $region16
      $region15: #{swin_forward.14} parent=11 // pred_region
        _
      $region16: #{swin_forward.14} parent=11 // pred_fallthru
        _
      // Predicated region
      $region17: #{swin_forward.14} parent=11 // pred_check
        %p209 = pneg %p81
      $region18: #{swin_forward.14} parent=11 // pred_check_branch
        %211 = sbr.rel (%p209) target = $region20
      $region19: #{swin_forward.14} parent=11 // pred_region
        _
      $region20: #{swin_forward.14} parent=11 // pred_fallthru
        _
      // Predicated region
      $region21: #{swin_forward.14} parent=11 // pred_check
        %p212 = pneg %p102
      $region22: #{swin_forward.14} parent=11 // pred_check_branch
        %214 = sbr.rel (%p212) target = $region24
      $region23: #{swin_forward.14} parent=11 // pred_region
        _
      $region24: #{swin_forward.14} parent=11 // pred_fallthru
        _
      // Predicated region
      $region25: #{swin_forward.14} parent=11 // pred_check
        %p215 = pneg %p123
      $region26: #{swin_forward.14} parent=11 // pred_check_branch
        %217 = sbr.rel (%p215) target = $region28
      $region27: #{swin_forward.14} parent=11 // pred_region
        _
      $region28: #{swin_forward.14} parent=11 // pred_fallthru
        _
      // Predicated region
      $region29: #{swin_forward.14} parent=11 // pred_check
        %p218 = pneg %p144
      $region30: #{swin_forward.14} parent=11 // pred_check_branch
        %220 = sbr.rel (%p218) target = $region32
      $region31: #{swin_forward.14} parent=11 // pred_region
        _
      $region32: #{swin_forward.14} parent=11 // pred_fallthru
        _
      // Predicated region
      $region33: #{swin_forward.14} parent=11 // pred_check
        %p221 = pneg %p165
      $region34: #{swin_forward.14} parent=11 // pred_check_branch
        %223 = sbr.rel (%p221) target = $region36
      $region35: #{swin_forward.14} parent=11 // pred_region
        _
      $region36: #{swin_forward.14} parent=11 // pred_fallthru
        _
    $region12: #{swin_forward.14} parent=5 // pred_fallthru
      _
    %p224 = scmp.lt.s32.totalorder %s13, 2
    // Predicated region
    $region37: #{swin_forward.14} parent=5 // pred_check
      %p225 = pneg %p224
    $region38: #{swin_forward.14} parent=5 // pred_check_branch
      %227 = sbr.rel (%p225) target = $region40
    $region39: #{swin_forward.14} parent=5 // pred_region
      // Predicated region
      $region41: #{swin_forward.14} parent=39 // pred_check
        %p228 = pneg %p33
      $region42: #{swin_forward.14} parent=39 // pred_check_branch
        %230 = sbr.rel (%p228) target = $region44
      $region43: #{swin_forward.14} parent=39 // pred_region
        %s231 = smul.u32 8, %s13
        %p232 = scmp.lt.s32.totalorder %s231, 15
        %s233 = scalar_select %p232, %s231, 15
        %s234 = smul.addr %s233, 8
        %s235 = scalar_lea.vmem %s0, %s234
        %s236 = smul.u32 8, %s13
      $region44: #{swin_forward.14} parent=39 // pred_fallthru
        _
    $region40: #{swin_forward.14} parent=5 // pred_fallthru
      _
    %p237 = scmp.le.s32.totalorder 1, %s13
    %p238 = scmp.lt.s32.totalorder %s13, 3
    %p239 = pnand %p237, %p238
    %p240 = pneg %p239
    // Predicated region
    $region45: #{swin_forward.14} parent=5 // pred_check
      _
    $region46: #{swin_forward.14} parent=5 // pred_check_branch
      %242 = sbr.rel (%p239) target = $region48
    $region47: #{swin_forward.14} parent=5 // pred_region
      %s243 = ssub.s32 %s13, 1
      %s244 = smul.u32 8, %s18
      %p245 = scmp.lt.s32.totalorder %s244, 15
      %s246 = scalar_select %p245, %s244, 15
      %s247 = smul.addr %s246, 8
      %s248 = scalar_lea.vmem %s0, %s247
      %p249 = pneg %p39
      %p250 = pneg %p36
      %p251 = pneg %p60
      %p252 = pneg %p57
      %p253 = pneg %p81
      %p254 = pneg %p78
      %p255 = pneg %p102
      %p256 = pneg %p99
      %p257 = pneg %p123
      %p258 = pneg %p120
      %p259 = pneg %p144
      %p260 = pneg %p141
      %p261 = pneg %p165
      %p262 = pneg %p162
      %p263 = pneg %p191
      %p264 = pneg %p188
      %s265 = smul.u32 8, %s18
      %p266 = scmp.lt.s32.totalorder %s265, 15
      %s267 = scalar_select %p266, %s265, 15
      %s268 = smul.addr %s267, 8
      %s269 = scalar_lea.vmem %s7, %s268
      %s270 = smul.u32 8, %s18
      %p271 = scmp.lt.s32.totalorder %s270, 15
      %s272 = scalar_select %p271, %s270, 15
      %s273 = smul.addr %s272, 8
      %s274 = scalar_lea.vmem %s0, %s273
      %s275 = smul.u32 8, %s18
      %s276 = smul.u32 8, %s18
      %p277 = scmp.lt.s32.totalorder %s276, 15
      %s278 = scalar_select %p277, %s276, 15
      %s279 = smul.addr %s278, 8
      %s280 = scalar_lea.vmem %s7, %s279
      %s281 = smul.u32 8, %s18
      %v283 = vld [vmem:[%s274] sm:$0xff]
      %v284 = vld [vmem:[%s274 + $0x8] sm:$0xff]
      %v285 = vld [vmem:[%s274 + $0x10] sm:$0xff]
      %v286 = vld [vmem:[%s274 + $0x18] sm:$0xff]
      %v287 = vld [vmem:[%s274 + $0x20] sm:$0xff]
      %v288 = vld [vmem:[%s274 + $0x28] sm:$0xff]
      %v289 = vld [vmem:[%s274 + $0x30] sm:$0xff]
      %v290 = vld [vmem:[%s274 + $0x38] sm:$0xff]
      %v291 = vld [vmem:[%s1] sm:$0x1]
      %v292 = vld [vmem:[%s2] sm:$0x1]
      %vm293 = vcmask 130048
      %v294 = vsel %vm293, %v283, 0.0
      %295 = vadd.xlane.f32.xlu0 %v294
      %v296 = vpop.xlane.xlu0 %295
      %v297 = vsel %vm293, %v284, 0.0
      %298 = vadd.xlane.f32.xlu0 %v297
      %v299 = vpop.xlane.xlu0 %298
      %v300 = vsel %vm293, %v285, 0.0
      %301 = vadd.xlane.f32.xlu0 %v300
      %v302 = vpop.xlane.xlu0 %301
      %v303 = vsel %vm293, %v286, 0.0
      %304 = vadd.xlane.f32.xlu0 %v303
      %v305 = vpop.xlane.xlu0 %304
      %v306 = vsel %vm293, %v287, 0.0
      %307 = vadd.xlane.f32.xlu0 %v306
      %v308 = vpop.xlane.xlu0 %307
      %v309 = vsel %vm293, %v288, 0.0
      %310 = vadd.xlane.f32.xlu0 %v309
      %v311 = vpop.xlane.xlu0 %310
      %v312 = vsel %vm293, %v289, 0.0
      %313 = vadd.xlane.f32.xlu0 %v312
      %v314 = vpop.xlane.xlu0 %313
      %v315 = vsel %vm293, %v290, 0.0
      %316 = vadd.xlane.f32.xlu0 %v315
      %v317 = vpop.xlane.xlu0 %316
      %v318 = vrcp.pop 16.0
      %v319 = vmul.f32 16.0, %v318
      %v320 = vsub.f32 1.0, %v319
      %v321 = vmul.f32 %v318, %v320
      %v322 = vadd.f32 %v318, %v321
      %vm323 = vweird.f32 %v318
      %v324 = vsel %vm323, %v318, %v322
      %v325 = vmul.f32 %v296, %v324
      %v326 = vmul.f32 %v299, %v324
      %v327 = vmul.f32 %v302, %v324
      %v328 = vmul.f32 %v305, %v324
      %v329 = vmul.f32 %v308, %v324
      %v330 = vmul.f32 %v311, %v324
      %v331 = vmul.f32 %v314, %v324
      %v332 = vmul.f32 %v317, %v324
      %v333 = vsub.f32 %v283, %v325
      %v334 = vsub.f32 %v284, %v326
      %v335 = vsub.f32 %v285, %v327
      %v336 = vsub.f32 %v286, %v328
      %v337 = vsub.f32 %v287, %v329
      %v338 = vsub.f32 %v288, %v330
      %v339 = vsub.f32 %v289, %v331
      %v340 = vsub.f32 %v290, %v332
      %v341 = vmul.f32 %v333, %v333
      %v342 = vmul.f32 %v334, %v334
      %v343 = vmul.f32 %v335, %v335
      %v344 = vmul.f32 %v336, %v336
      %v345 = vmul.f32 %v337, %v337
      %v346 = vmul.f32 %v338, %v338
      %v347 = vmul.f32 %v339, %v339
      %v348 = vmul.f32 %v340, %v340
      %v349 = vsel %vm293, %v341, 0.0
      %350 = vadd.xlane.f32.xlu0 %v349
      %v351 = vpop.xlane.xlu0 %350
      %v352 = vsel %vm293, %v342, 0.0
      %353 = vadd.xlane.f32.xlu0 %v352
      %v354 = vpop.xlane.xlu0 %353
      %v355 = vsel %vm293, %v343, 0.0
      %356 = vadd.xlane.f32.xlu0 %v355
      %v357 = vpop.xlane.xlu0 %356
      %v358 = vsel %vm293, %v344, 0.0
      %359 = vadd.xlane.f32.xlu0 %v358
      %v360 = vpop.xlane.xlu0 %359
      %v361 = vsel %vm293, %v345, 0.0
      %362 = vadd.xlane.f32.xlu0 %v361
      %v363 = vpop.xlane.xlu0 %362
      %v364 = vsel %vm293, %v346, 0.0
      %365 = vadd.xlane.f32.xlu0 %v364
      %v366 = vpop.xlane.xlu0 %365
      %v367 = vsel %vm293, %v347, 0.0
      %368 = vadd.xlane.f32.xlu0 %v367
      %v369 = vpop.xlane.xlu0 %368
      %v370 = vsel %vm293, %v348, 0.0
      %371 = vadd.xlane.f32.xlu0 %v370
      %v372 = vpop.xlane.xlu0 %371
      %v373 = vmul.f32 %v351, %v324
      %v374 = vmul.f32 %v354, %v324
      %v375 = vmul.f32 %v357, %v324
      %v376 = vmul.f32 %v360, %v324
      %v377 = vmul.f32 %v363, %v324
      %v378 = vmul.f32 %v366, %v324
      %v379 = vmul.f32 %v369, %v324
      %v380 = vmul.f32 %v372, %v324
      %v381 = vadd.f32 %v373, 1e-05
      %v382 = vadd.f32 %v374, 1e-05
      %v383 = vadd.f32 %v375, 1e-05
      %v384 = vadd.f32 %v376, 1e-05
      %v385 = vadd.f32 %v377, 1e-05
      %v386 = vadd.f32 %v378, 1e-05
      %v387 = vadd.f32 %v379, 1e-05
      %v388 = vadd.f32 %v380, 1e-05
      %v389 = vrsqrt.pop %v381
      %v390 = vmul.f32 %v389, %v381
      %v391 = vmul.f32 %v390, %v389
      %v392 = vmul.f32 0.5, %v391
      %v393 = vsub.f32 1.5, %v392
      %v394 = vmul.f32 %v389, %v393
      %vm395 = vweird.f32 %v381
      %vm396 = vweird.f32 %v389
      %vm397 = vmor %vm395, %vm396
      %v398 = vsel %vm397, %v389, %v394
      %v399 = vrsqrt.pop %v382
      %v400 = vmul.f32 %v399, %v382
      %v401 = vmul.f32 %v400, %v399
      %v402 = vmul.f32 0.5, %v401
      %v403 = vsub.f32 1.5, %v402
      %v404 = vmul.f32 %v399, %v403
      %vm405 = vweird.f32 %v382
      %vm406 = vweird.f32 %v399
      %vm407 = vmor %vm405, %vm406
      %v408 = vsel %vm407, %v399, %v404
      %v409 = vrsqrt.pop %v383
      %v410 = vmul.f32 %v409, %v383
      %v411 = vmul.f32 %v410, %v409
      %v412 = vmul.f32 0.5, %v411
      %v413 = vsub.f32 1.5, %v412
      %v414 = vmul.f32 %v409, %v413
      %vm415 = vweird.f32 %v383
      %vm416 = vweird.f32 %v409
      %vm417 = vmor %vm415, %vm416
      %v418 = vsel %vm417, %v409, %v414
      %v419 = vrsqrt.pop %v384
      %v420 = vmul.f32 %v419, %v384
      %v421 = vmul.f32 %v420, %v419
      %v422 = vmul.f32 0.5, %v421
      %v423 = vsub.f32 1.5, %v422
      %v424 = vmul.f32 %v419, %v423
      %vm425 = vweird.f32 %v384
      %vm426 = vweird.f32 %v419
      %vm427 = vmor %vm425, %vm426
      %v428 = vsel %vm427, %v419, %v424
      %v429 = vrsqrt.pop %v385
      %v430 = vmul.f32 %v429, %v385
      %v431 = vmul.f32 %v430, %v429
      %v432 = vmul.f32 0.5, %v431
      %v433 = vsub.f32 1.5, %v432
      %v434 = vmul.f32 %v429, %v433
      %vm435 = vweird.f32 %v385
      %vm436 = vweird.f32 %v429
      %vm437 = vmor %vm435, %vm436
      %v438 = vsel %vm437, %v429, %v434
      %v439 = vrsqrt.pop %v386
      %v440 = vmul.f32 %v439, %v386
      %v441 = vmul.f32 %v440, %v439
      %v442 = vmul.f32 0.5, %v441
      %v443 = vsub.f32 1.5, %v442
      %v444 = vmul.f32 %v439, %v443
      %vm445 = vweird.f32 %v386
      %vm446 = vweird.f32 %v439
      %vm447 = vmor %vm445, %vm446
      %v448 = vsel %vm447, %v439, %v444
      %v449 = vrsqrt.pop %v387
      %v450 = vmul.f32 %v449, %v387
      %v451 = vmul.f32 %v450, %v449
      %v452 = vmul.f32 0.5, %v451
      %v453 = vsub.f32 1.5, %v452
      %v454 = vmul.f32 %v449, %v453
      %vm455 = vweird.f32 %v387
      %vm456 = vweird.f32 %v449
      %vm457 = vmor %vm455, %vm456
      %v458 = vsel %vm457, %v449, %v454
      %v459 = vrsqrt.pop %v388
      %v460 = vmul.f32 %v459, %v388
      %v461 = vmul.f32 %v460, %v459
      %v462 = vmul.f32 0.5, %v461
      %v463 = vsub.f32 1.5, %v462
      %v464 = vmul.f32 %v459, %v463
      %vm465 = vweird.f32 %v388
      %vm466 = vweird.f32 %v459
      %vm467 = vmor %vm465, %vm466
      %v468 = vsel %vm467, %v459, %v464
      %v469 = vmul.f32 %v333, %v398
      %v470 = vmul.f32 %v334, %v408
      %v471 = vmul.f32 %v335, %v418
      %v472 = vmul.f32 %v336, %v428
      %v473 = vmul.f32 %v337, %v438
      %v474 = vmul.f32 %v338, %v448
      %v475 = vmul.f32 %v339, %v458
      %v476 = vmul.f32 %v340, %v468
      %v478 = vperm.slane %v291, 0
      %v480 = vmul.f32 %v469, %v478
      %v481 = vmul.f32 %v470, %v478
      %v482 = vmul.f32 %v471, %v478
      %v483 = vmul.f32 %v472, %v478
      %v484 = vmul.f32 %v473, %v478
      %v485 = vmul.f32 %v474, %v478
      %v486 = vmul.f32 %v475, %v478
      %v487 = vmul.f32 %v476, %v478
      %v489 = vperm.slane %v292, 0
      %v491 = vadd.f32 %v480, %v489
      %v492 = vadd.f32 %v481, %v489
      %v493 = vadd.f32 %v482, %v489
      %v494 = vadd.f32 %v483, %v489
      %v495 = vadd.f32 %v484, %v489
      %v496 = vadd.f32 %v485, %v489
      %v497 = vadd.f32 %v486, %v489
      %v498 = vadd.f32 %v487, %v489
      %v499 = vpack.c.bf16 %v492, %v491
      %v500 = vpack.c.bf16 %v494, %v493
      %v501 = vpack.c.bf16 %v496, %v495
      %v502 = vpack.c.bf16 %v498, %v497
      %v503 = vld [vmem:[%s3] sm:$0xf]
      %v504 = vld [vmem:[%s3 + $0x4] sm:$0xf]
      %v505 = vld [vmem:[%s4] sm:$0x1]
      %v507 = vperm.slane %v505, 0
      %v511 = vunpack.c.l.b16 %v503
      %v512 = vunpack.c.l.b16 %v504
      %v513 = vpack.c.b16 %v512, %v511
      %v516 = vsel %vm293, %v499, 0
      %v519 = vsel %vm293, %v500, 0
      %v522 = vsel %vm293, %v501, 0
      %v525 = vsel %vm293, %v502, 0
      %527 = vmatpush.bf16.msra.mxu0 0
      %528 = vmatpush.bf16.msra.mxu0 0
      %529 = vmatpush.bf16.msra.mxu0 0
      %530 = vmatpush.bf16.msra.mxu0 0
      %531 = vmatpush.bf16.msra.mxu0 0
      %532 = vmatpush.bf16.msra.mxu0 0
      %533 = vmatpush.bf16.msra.mxu0 0
      %534 = vmatpush.bf16.msra.mxu0 %v513
      %535 = vmatmul.bf16.gmra.mxu0 %v516
      %v536 = vpop.f32.mrf.mxu0
      %v537 = vadd.f32 %v507, %v536
      %v538 = vpop.f32.mrf.mxu0
      %v539 = vadd.f32 %v507, %v538
      %540 = vmatmul.bf16.gmra.mxu0 %v519
      %v541 = vpop.f32.mrf.mxu0
      %v542 = vadd.f32 %v507, %v541
      %v543 = vpop.f32.mrf.mxu0
      %v544 = vadd.f32 %v507, %v543
      %545 = vmatmul.bf16.gmra.mxu0 %v522
      %v546 = vpop.f32.mrf.mxu0
      %v547 = vadd.f32 %v507, %v546
      %v548 = vpop.f32.mrf.mxu0
      %v549 = vadd.f32 %v507, %v548
      %550 = vmatmul.bf16.gmra.mxu0 %v525
      %v551 = vpop.f32.mrf.mxu0
      %v552 = vadd.f32 %v507, %v551
      %v553 = vpop.f32.mrf.mxu0
      %v554 = vadd.f32 %v507, %v553
      %555 = vdwg.mxu0
      %v556 = vmul.f32 %v537, 0.5
      %v557 = vmul.f32 %v539, 0.5
      %v558 = vmul.f32 %v542, 0.5
      %v559 = vmul.f32 %v544, 0.5
      %v560 = vmul.f32 %v547, 0.5
      %v561 = vmul.f32 %v549, 0.5
      %v562 = vmul.f32 %v552, 0.5
      %v563 = vmul.f32 %v554, 0.5
      %v564 = vmul.f32 %v537, 0.70710677
      %v565 = vmul.f32 %v539, 0.70710677
      %v566 = vmul.f32 %v542, 0.70710677
      %v567 = vmul.f32 %v544, 0.70710677
      %v568 = vmul.f32 %v547, 0.70710677
      %v569 = vmul.f32 %v549, 0.70710677
      %v570 = vmul.f32 %v552, 0.70710677
      %v571 = vmul.f32 %v554, 0.70710677
      %v572 = vand.u32 2147483647, %v564
      %v573 = vand.u32 2147483647, %v565
      %v574 = vand.u32 2147483647, %v566
      %v575 = vand.u32 2147483647, %v567
      %v576 = vand.u32 2147483647, %v568
      %v577 = vand.u32 2147483647, %v569
      %v578 = vand.u32 2147483647, %v570
      %v579 = vand.u32 2147483647, %v571
      %v580 = vmul.f32 %v572, 0.3275911
      %v581 = vmul.f32 %v573, 0.3275911
      %v582 = vmul.f32 %v574, 0.3275911
      %v583 = vmul.f32 %v575, 0.3275911
      %v584 = vmul.f32 %v576, 0.3275911
      %v585 = vmul.f32 %v577, 0.3275911
      %v586 = vmul.f32 %v578, 0.3275911
      %v587 = vmul.f32 %v579, 0.3275911
      %v588 = vadd.f32 %v580, 1.0
      %v589 = vadd.f32 %v581, 1.0
      %v590 = vadd.f32 %v582, 1.0
      %v591 = vadd.f32 %v583, 1.0
      %v592 = vadd.f32 %v584, 1.0
      %v593 = vadd.f32 %v585, 1.0
      %v594 = vadd.f32 %v586, 1.0
      %v595 = vadd.f32 %v587, 1.0
      %v596 = vrcp.pop %v588
      %v597 = vmul.f32 %v588, %v596
      %v598 = vsub.f32 1.0, %v597
      %v599 = vmul.f32 %v596, %v598
      %v600 = vadd.f32 %v596, %v599
      %vm601 = vweird.f32 %v588
      %vm602 = vweird.f32 %v596
      %vm603 = vmor %vm601, %vm602
      %v604 = vsel %vm603, %v596, %v600
      %v605 = vand.u32 2147483647, %v588
      %vm606 = vcmp.eq.f32.partialorder %v605, 8.507059e+37
      %v607 = vand.u32 %v588, 2147483648
      %v608 = vor.u32 1.1754944e-38, %v607
      %v609 = vsel %vm606, %v608, %v604
      %v610 = vmul.f32 1.0, %v609
      %v611 = vrcp.pop %v589
      %v612 = vmul.f32 %v589, %v611
      %v613 = vsub.f32 1.0, %v612
      %v614 = vmul.f32 %v611, %v613
      %v615 = vadd.f32 %v611, %v614
      %vm616 = vweird.f32 %v589
      %vm617 = vweird.f32 %v611
      %vm618 = vmor %vm616, %vm617
      %v619 = vsel %vm618, %v611, %v615
      %v620 = vand.u32 2147483647, %v589
      %vm621 = vcmp.eq.f32.partialorder %v620, 8.507059e+37
      %v622 = vand.u32 %v589, 2147483648
      %v623 = vor.u32 1.1754944e-38, %v622
      %v624 = vsel %vm621, %v623, %v619
      %v625 = vmul.f32 1.0, %v624
      %v626 = vrcp.pop %v590
      %v627 = vmul.f32 %v590, %v626
      %v628 = vsub.f32 1.0, %v627
      %v629 = vmul.f32 %v626, %v628
      %v630 = vadd.f32 %v626, %v629
      %vm631 = vweird.f32 %v590
      %vm632 = vweird.f32 %v626
      %vm633 = vmor %vm631, %vm632
      %v634 = vsel %vm633, %v626, %v630
      %v635 = vand.u32 2147483647, %v590
      %vm636 = vcmp.eq.f32.partialorder %v635, 8.507059e+37
      %v637 = vand.u32 %v590, 2147483648
      %v638 = vor.u32 1.1754944e-38, %v637
      %v639 = vsel %vm636, %v638, %v634
      %v640 = vmul.f32 1.0, %v639
      %v641 = vrcp.pop %v591
      %v642 = vmul.f32 %v591, %v641
      %v643 = vsub.f32 1.0, %v642
      %v644 = vmul.f32 %v641, %v643
      %v645 = vadd.f32 %v641, %v644
      %vm646 = vweird.f32 %v591
      %vm647 = vweird.f32 %v641
      %vm648 = vmor %vm646, %vm647
      %v649 = vsel %vm648, %v641, %v645
      %v650 = vand.u32 2147483647, %v591
      %vm651 = vcmp.eq.f32.partialorder %v650, 8.507059e+37
      %v652 = vand.u32 %v591, 2147483648
      %v653 = vor.u32 1.1754944e-38, %v652
      %v654 = vsel %vm651, %v653, %v649
      %v655 = vmul.f32 1.0, %v654
      %v656 = vrcp.pop %v592
      %v657 = vmul.f32 %v592, %v656
      %v658 = vsub.f32 1.0, %v657
      %v659 = vmul.f32 %v656, %v658
      %v660 = vadd.f32 %v656, %v659
      %vm661 = vweird.f32 %v592
      %vm662 = vweird.f32 %v656
      %vm663 = vmor %vm661, %vm662
      %v664 = vsel %vm663, %v656, %v660
      %v665 = vand.u32 2147483647, %v592
      %vm666 = vcmp.eq.f32.partialorder %v665, 8.507059e+37
      %v667 = vand.u32 %v592, 2147483648
      %v668 = vor.u32 1.1754944e-38, %v667
      %v669 = vsel %vm666, %v668, %v664
      %v670 = vmul.f32 1.0, %v669
      %v671 = vrcp.pop %v593
      %v672 = vmul.f32 %v593, %v671
      %v673 = vsub.f32 1.0, %v672
      %v674 = vmul.f32 %v671, %v673
      %v675 = vadd.f32 %v671, %v674
      %vm676 = vweird.f32 %v593
      %vm677 = vweird.f32 %v671
      %vm678 = vmor %vm676, %vm677
      %v679 = vsel %vm678, %v671, %v675
      %v680 = vand.u32 2147483647, %v593
      %vm681 = vcmp.eq.f32.partialorder %v680, 8.507059e+37
      %v682 = vand.u32 %v593, 2147483648
      %v683 = vor.u32 1.1754944e-38, %v682
      %v684 = vsel %vm681, %v683, %v679
      %v685 = vmul.f32 1.0, %v684
      %v686 = vrcp.pop %v594
      %v687 = vmul.f32 %v594, %v686
      %v688 = vsub.f32 1.0, %v687
      %v689 = vmul.f32 %v686, %v688
      %v690 = vadd.f32 %v686, %v689
      %vm691 = vweird.f32 %v594
      %vm692 = vweird.f32 %v686
      %vm693 = vmor %vm691, %vm692
      %v694 = vsel %vm693, %v686, %v690
      %v695 = vand.u32 2147483647, %v594
      %vm696 = vcmp.eq.f32.partialorder %v695, 8.507059e+37
      %v697 = vand.u32 %v594, 2147483648
      %v698 = vor.u32 1.1754944e-38, %v697
      %v699 = vsel %vm696, %v698, %v694
      %v700 = vmul.f32 1.0, %v699
      %v701 = vrcp.pop %v595
      %v702 = vmul.f32 %v595, %v701
      %v703 = vsub.f32 1.0, %v702
      %v704 = vmul.f32 %v701, %v703
      %v705 = vadd.f32 %v701, %v704
      %vm706 = vweird.f32 %v595
      %vm707 = vweird.f32 %v701
      %vm708 = vmor %vm706, %vm707
      %v709 = vsel %vm708, %v701, %v705
      %v710 = vand.u32 2147483647, %v595
      %vm711 = vcmp.eq.f32.partialorder %v710, 8.507059e+37
      %v712 = vand.u32 %v595, 2147483648
      %v713 = vor.u32 1.1754944e-38, %v712
      %v714 = vsel %vm711, %v713, %v709
      %v715 = vmul.f32 1.0, %v714
      %v716 = vmul.f32 %v610, 1.0614054
      %v717 = vmul.f32 %v625, 1.0614054
      %v718 = vmul.f32 %v640, 1.0614054
      %v719 = vmul.f32 %v655, 1.0614054
      %v720 = vmul.f32 %v670, 1.0614054
      %v721 = vmul.f32 %v685, 1.0614054
      %v722 = vmul.f32 %v700, 1.0614054
      %v723 = vmul.f32 %v715, 1.0614054
      %v724 = vadd.f32 %v716, -1.4531521
      %v725 = vadd.f32 %v717, -1.4531521
      %v726 = vadd.f32 %v718, -1.4531521
      %v727 = vadd.f32 %v719, -1.4531521
      %v728 = vadd.f32 %v720, -1.4531521
      %v729 = vadd.f32 %v721, -1.4531521
      %v730 = vadd.f32 %v722, -1.4531521
      %v731 = vadd.f32 %v723, -1.4531521
      %v732 = vmul.f32 %v724, %v610
      %v733 = vmul.f32 %v725, %v625
      %v734 = vmul.f32 %v726, %v640
      %v735 = vmul.f32 %v727, %v655
      %v736 = vmul.f32 %v728, %v670
      %v737 = vmul.f32 %v729, %v685
      %v738 = vmul.f32 %v730, %v700
      %v739 = vmul.f32 %v731, %v715
      %v740 = vadd.f32 %v732, 1.4214138
      %v741 = vadd.f32 %v733, 1.4214138
      %v742 = vadd.f32 %v734, 1.4214138
      %v743 = vadd.f32 %v735, 1.4214138
      %v744 = vadd.f32 %v736, 1.4214138
      %v745 = vadd.f32 %v737, 1.4214138
      %v746 = vadd.f32 %v738, 1.4214138
      %v747 = vadd.f32 %v739, 1.4214138
      %v748 = vmul.f32 %v740, %v610
      %v749 = vmul.f32 %v741, %v625
      %v750 = vmul.f32 %v742, %v640
      %v751 = vmul.f32 %v743, %v655
      %v752 = vmul.f32 %v744, %v670
      %v753 = vmul.f32 %v745, %v685
      %v754 = vmul.f32 %v746, %v700
      %v755 = vmul.f32 %v747, %v715
      %v756 = vadd.f32 %v748, -0.28449672
      %v757 = vadd.f32 %v749, -0.28449672
      %v758 = vadd.f32 %v750, -0.28449672
      %v759 = vadd.f32 %v751, -0.28449672
      %v760 = vadd.f32 %v752, -0.28449672
      %v761 = vadd.f32 %v753, -0.28449672
      %v762 = vadd.f32 %v754, -0.28449672
      %v763 = vadd.f32 %v755, -0.28449672
      %v764 = vmul.f32 %v756, %v610
      %v765 = vmul.f32 %v757, %v625
      %v766 = vmul.f32 %v758, %v640
      %v767 = vmul.f32 %v759, %v655
      %v768 = vmul.f32 %v760, %v670
      %v769 = vmul.f32 %v761, %v685
      %v770 = vmul.f32 %v762, %v700
      %v771 = vmul.f32 %v763, %v715
      %v772 = vadd.f32 %v764, 0.2548296
      %v773 = vadd.f32 %v765, 0.2548296
      %v774 = vadd.f32 %v766, 0.2548296
      %v775 = vadd.f32 %v767, 0.2548296
      %v776 = vadd.f32 %v768, 0.2548296
      %v777 = vadd.f32 %v769, 0.2548296
      %v778 = vadd.f32 %v770, 0.2548296
      %v779 = vadd.f32 %v771, 0.2548296
      %v780 = vmul.f32 %v772, %v610
      %v781 = vmul.f32 %v773, %v625
      %v782 = vmul.f32 %v774, %v640
      %v783 = vmul.f32 %v775, %v655
      %v784 = vmul.f32 %v776, %v670
      %v785 = vmul.f32 %v777, %v685
      %v786 = vmul.f32 %v778, %v700
      %v787 = vmul.f32 %v779, %v715
      %v788 = vsub.f32 0.0, %v572
      %v789 = vsub.f32 0.0, %v573
      %v790 = vsub.f32 0.0, %v574
      %v791 = vsub.f32 0.0, %v575
      %v792 = vsub.f32 0.0, %v576
      %v793 = vsub.f32 0.0, %v577
      %v794 = vsub.f32 0.0, %v578
      %v795 = vsub.f32 0.0, %v579
      %v796 = vmul.f32 %v788, %v572
      %v797 = vmul.f32 %v789, %v573
      %v798 = vmul.f32 %v790, %v574
      %v799 = vmul.f32 %v791, %v575
      %v800 = vmul.f32 %v792, %v576
      %v801 = vmul.f32 %v793, %v577
      %v802 = vmul.f32 %v794, %v578
      %v803 = vmul.f32 %v795, %v579
      %v804 = vmul.f32 %v796, 1.442695
      %v805 = vpow.pop %v804
      %v806 = vmul.f32 %v797, 1.442695
      %v807 = vpow.pop %v806
      %v808 = vmul.f32 %v798, 1.442695
      %v809 = vpow.pop %v808
      %v810 = vmul.f32 %v799, 1.442695
      %v811 = vpow.pop %v810
      %v812 = vmul.f32 %v800, 1.442695
      %v813 = vpow.pop %v812
      %v814 = vmul.f32 %v801, 1.442695
      %v815 = vpow.pop %v814
      %v816 = vmul.f32 %v802, 1.442695
      %v817 = vpow.pop %v816
      %v818 = vmul.f32 %v803, 1.442695
      %v819 = vpow.pop %v818
      %v820 = vmul.f32 %v780, %v805
      %v821 = vmul.f32 %v781, %v807
      %v822 = vmul.f32 %v782, %v809
      %v823 = vmul.f32 %v783, %v811
      %v824 = vmul.f32 %v784, %v813
      %v825 = vmul.f32 %v785, %v815
      %v826 = vmul.f32 %v786, %v817
      %v827 = vmul.f32 %v787, %v819
      %v828 = vsub.f32 1.0, %v820
      %v829 = vsub.f32 1.0, %v821
      %v830 = vsub.f32 1.0, %v822
      %v831 = vsub.f32 1.0, %v823
      %v832 = vsub.f32 1.0, %v824
      %v833 = vsub.f32 1.0, %v825
      %v834 = vsub.f32 1.0, %v826
      %v835 = vsub.f32 1.0, %v827
      %vm836 = vcmp.ge.f32.partialorder %v564, 0.0
      %vm837 = vcmp.ge.f32.partialorder %v565, 0.0
      %vm838 = vcmp.ge.f32.partialorder %v566, 0.0
      %vm839 = vcmp.ge.f32.partialorder %v567, 0.0
      %vm840 = vcmp.ge.f32.partialorder %v568, 0.0
      %vm841 = vcmp.ge.f32.partialorder %v569, 0.0
      %vm842 = vcmp.ge.f32.partialorder %v570, 0.0
      %vm843 = vcmp.ge.f32.partialorder %v571, 0.0
      %v844 = vsub.f32 0.0, %v828
      %v845 = vsub.f32 0.0, %v829
      %v846 = vsub.f32 0.0, %v830
      %v847 = vsub.f32 0.0, %v831
      %v848 = vsub.f32 0.0, %v832
      %v849 = vsub.f32 0.0, %v833
      %v850 = vsub.f32 0.0, %v834
      %v851 = vsub.f32 0.0, %v835
      %v852 = vsel %vm836, %v828, %v844
      %v853 = vsel %vm837, %v829, %v845
      %v854 = vsel %vm838, %v830, %v846
      %v855 = vsel %vm839, %v831, %v847
      %v856 = vsel %vm840, %v832, %v848
      %v857 = vsel %vm841, %v833, %v849
      %v858 = vsel %vm842, %v834, %v850
      %v859 = vsel %vm843, %v835, %v851
      %v860 = vadd.f32 %v852, 1.0
      %v861 = vadd.f32 %v853, 1.0
      %v862 = vadd.f32 %v854, 1.0
      %v863 = vadd.f32 %v855, 1.0
      %v864 = vadd.f32 %v856, 1.0
      %v865 = vadd.f32 %v857, 1.0
      %v866 = vadd.f32 %v858, 1.0
      %v867 = vadd.f32 %v859, 1.0
      %v868 = vmul.f32 %v556, %v860
      %v869 = vmul.f32 %v557, %v861
      %v870 = vmul.f32 %v558, %v862
      %v871 = vmul.f32 %v559, %v863
      %v872 = vmul.f32 %v560, %v864
      %v873 = vmul.f32 %v561, %v865
      %v874 = vmul.f32 %v562, %v866
      %v875 = vmul.f32 %v563, %v867
      %v876 = vpack.c.bf16 %v869, %v868
      %v877 = vpack.c.bf16 %v871, %v870
      %v878 = vpack.c.bf16 %v873, %v872
      %v879 = vpack.c.bf16 %v875, %v874
      %v880 = vld [vmem:[%s5] sm:$0xf]
      %v881 = vld [vmem:[%s5 + $0x4] sm:$0xf]
      %v882 = vld [vmem:[%s5 + $0x8] sm:$0xf]
      %v883 = vld [vmem:[%s5 + $0xc] sm:$0xf]
      %v884 = vld [vmem:[%s5 + $0x10] sm:$0xf]
      %v885 = vld [vmem:[%s5 + $0x14] sm:$0xf]
      %v886 = vld [vmem:[%s5 + $0x18] sm:$0xf]
      %v887 = vld [vmem:[%s5 + $0x1c] sm:$0xf]
      %v888 = vld [vmem:[%s6] sm:$0x1]
      %v890 = vperm.slane %v888, 0
      %v900 = vunpack.c.l.b16 %v880
      %v901 = vunpack.c.l.b16 %v881
      %v902 = vunpack.c.l.b16 %v882
      %v903 = vunpack.c.l.b16 %v883
      %v904 = vunpack.c.l.b16 %v884
      %v905 = vunpack.c.l.b16 %v885
      %v906 = vunpack.c.l.b16 %v886
      %v907 = vunpack.c.l.b16 %v887
      %v908 = vpack.c.b16 %v901, %v900
      %v909 = vpack.c.b16 %v903, %v902
      %v910 = vpack.c.b16 %v905, %v904
      %v911 = vpack.c.b16 %v907, %v906
      %vm916 = vcmask 523264
      %v918 = vsel %vm916, %v876, 0
      %v921 = vsel %vm916, %v877, 0
      %v924 = vsel %vm916, %v878, 0
      %v927 = vsel %vm916, %v879, 0
      %929 = vmatpush.bf16.msra.mxu0 0
      %930 = vmatpush.bf16.msra.mxu0 0
      %931 = vmatpush.bf16.msra.mxu0 0
      %932 = vmatpush.bf16.msra.mxu0 0
      %933 = vmatpush.bf16.msra.mxu0 %v911
      %934 = vmatpush.bf16.msra.mxu0 %v910
      %935 = vmatpush.bf16.msra.mxu0 %v909
      %936 = vmatpush.bf16.msra.mxu0 %v908
      %937 = vmatmul.bf16.gmra.mxu0 %v918
      %v938 = vpop.f32.mrf.mxu0
      %v939 = vadd.f32 %v890, %v938
      %v940 = vpop.f32.mrf.mxu0
      %v941 = vadd.f32 %v890, %v940
      %942 = vmatmul.bf16.gmra.mxu0 %v921
      %v943 = vpop.f32.mrf.mxu0
      %v944 = vadd.f32 %v890, %v943
      %v945 = vpop.f32.mrf.mxu0
      %v946 = vadd.f32 %v890, %v945
      %947 = vmatmul.bf16.gmra.mxu0 %v924
      %v948 = vpop.f32.mrf.mxu0
      %v949 = vadd.f32 %v890, %v948
      %v950 = vpop.f32.mrf.mxu0
      %v951 = vadd.f32 %v890, %v950
      %952 = vmatmul.bf16.gmra.mxu0 %v927
      %v953 = vpop.f32.mrf.mxu0
      %v954 = vadd.f32 %v890, %v953
      %v955 = vpop.f32.mrf.mxu0
      %v956 = vadd.f32 %v890, %v955
      %957 = vdwg.mxu0
      %v958 = vadd.f32 %v283, %v939
      %v959 = vadd.f32 %v284, %v941
      %v960 = vadd.f32 %v285, %v944
      %v961 = vadd.f32 %v286, %v946
      %v962 = vadd.f32 %v287, %v949
      %v963 = vadd.f32 %v288, %v951
      %v964 = vadd.f32 %v289, %v954
      %v965 = vadd.f32 %v290, %v956
      %966 = vst.msk [vmem:[%s280] sm:$0xff] %vm293, %v958
      %967 = vst.msk [vmem:[%s280 + $0x8] sm:$0xff] %vm293, %v959
      %968 = vst.msk [vmem:[%s280 + $0x10] sm:$0xff] %vm293, %v960
      %969 = vst.msk [vmem:[%s280 + $0x18] sm:$0xff] %vm293, %v961
      %970 = vst.msk [vmem:[%s280 + $0x20] sm:$0xff] %vm293, %v962
      %971 = vst.msk [vmem:[%s280 + $0x28] sm:$0xff] %vm293, %v963
      %972 = vst.msk [vmem:[%s280 + $0x30] sm:$0xff] %vm293, %v964
      %973 = vst.msk [vmem:[%s280 + $0x38] sm:$0xff] %vm293, %v965
      %s974 = smul.u32 8, %s18
      %p975 = scmp.lt.s32.totalorder %s974, 15
      %s976 = scalar_select %p975, %s974, 15
      %s977 = smul.addr %s976, 8
      %s978 = scalar_lea.vmem %s7, %s977
      // Predicated region
      $region49: #{swin_forward.14} parent=47 // pred_check
        %p979 = pneg %p188
      $region50: #{swin_forward.14} parent=47 // pred_check_branch
        %981 = sbr.rel (%p979) target = $region52
      $region51: #{swin_forward.14} parent=47 // pred_region
        %s982 = smul.u32 8, %s18
      $region52: #{swin_forward.14} parent=47 // pred_fallthru
        _
    $region48: #{swin_forward.14} parent=5 // pred_fallthru
      _
    %p983 = scmp.le.s32.totalorder 2, %s13
    // Predicated region
    $region53: #{swin_forward.14} parent=5 // pred_check
      %p984 = pneg %p983
    $region54: #{swin_forward.14} parent=5 // pred_check_branch
      %986 = sbr.rel (%p984) target = $region56
    $region55: #{swin_forward.14} parent=5 // pred_region
      %s987 = ssub.s32 %s13, 2
      // Predicated region
      $region57: #{swin_forward.14} parent=55 // pred_check
        %p988 = pneg %p194
      $region58: #{swin_forward.14} parent=55 // pred_check_branch
        %990 = sbr.rel (%p988) target = $region60
      $region59: #{swin_forward.14} parent=55 // pred_region
        %s991 = smul.u32 8, %s19
        %p992 = scmp.lt.s32.totalorder %s991, 15
        %s993 = scalar_select %p992, %s991, 15
        %s994 = smul.addr %s993, 8
        %s995 = scalar_lea.vmem %s7, %s994
      $region60: #{swin_forward.14} parent=55 // pred_fallthru
        _
    $region56: #{swin_forward.14} parent=5 // pred_fallthru
      _
  $region6: #{swin_forward.14} parent=0 // loop_footer
    %s17 = sadd.s32 1, %s13
  $region7: #{swin_forward.14} parent=0 // loop_footer_branch
    %12 = sbr.rel target = $region3
  $region8: #{swin_forward.14} parent=0 // loop_exit
    _

// kernel: swin_forward.15
$region0: #{swin_forward.15}
  #allocation0 [shape = 'u32[]', space=smem, size = 0x4, offset = 0x4, fixed_abs, tag = 'smem constant byte address 0x4 - core index']
  #allocation1 [shape = 'u32[72,128]{1,0:T(1,128)}', space=vmem, size = 0x9000, scoped, tag = 'internal scratch']
  %s0 = inlined_call_operand.vmem [shape: f32[128,16], index: 0, kind: input, shape index: {}]
  %s1 = inlined_call_operand.vmem [shape: f32[1,16], index: 1, kind: input, shape index: {}]
  %s2 = inlined_call_operand.vmem [shape: f32[1,16], index: 2, kind: input, shape index: {}]
  %s3 = inlined_call_operand.vmem [shape: bf16[16,48], index: 3, kind: input, shape index: {}]
  %s4 = inlined_call_operand.vmem [shape: f32[1,48], index: 4, kind: input, shape index: {}]
  %s5 = inlined_call_operand.vmem [shape: bf16[16,16], index: 5, kind: input, shape index: {}]
  %s6 = inlined_call_operand.vmem [shape: f32[1,16], index: 6, kind: input, shape index: {}]
  %s7 = inlined_call_operand.vmem [shape: f32[4,2,16,16], index: 7, kind: input, shape index: {}]
  %s8 = inlined_call_operand.vmem [shape: f32[128,16], index: 8, kind: output, shape index: {0}]
  %s9 = inlined_call_operand.hbm [shape: f32[8,1,128], index: 9, kind: output, shape index: {1}]
  %10 = xla_tuple %s8, %s9
  %s11 = sld [smem:[#allocation0]]
  $region73: #{swin_forward.15} parent=0
    _
  %s13 = ssub.s32 1, %s11
  %s14 = scalar_select 0, %s13, %s11
  $region1: #{swin_forward.15} parent=0
    #allocation2 [shape = 'u8[4096]{0}', space=vmem, size = 0x1000, scoped, tag = 'output window, operand 1']
    #allocation3 [shape = 's32[2]{0}', space=sflag, size = 0x8, scoped, tag = 'scoped memory for swin_forward.15']
    %15 = vsyncpa [#allocation3], 0
    %s16 = scalar_lea.sflag [#allocation3], 1
    %17 = vsyncpa %s16, 0
    loop: start=0, step=1, limit=4
    $region2: #{swin_forward.15} parent=1 // loop_pre_header
      _
    $region3: #{swin_forward.15} parent=1 // loop_header
      %s19 = sphi 0, %s23
      %p20 = scmp.ge.s32.totalorder %s19, 4
      %s29 = sphi 0, %s31
      %s32 = sphi 0, %s29
      %s33 = sphi 0, %s32
      %s49 = sphi 0, %s33
      %s53 = sphi 0, %s53
      %s55 = sphi 0, %s53
      %s56 = sphi 0, %s55
      %s70 = sphi 0, %s56
      %s74 = sphi 0, %s74
      %s76 = sphi 0, %s74
      %s77 = sphi 0, %s76
      %s91 = sphi 0, %s77
      %s95 = sphi 0, %s95
      %s97 = sphi 0, %s95
      %s98 = sphi 0, %s97
      %s112 = sphi 0, %s98
      %s116 = sphi 0, %s116
      %s118 = sphi 0, %s116
      %s119 = sphi 0, %s118
      %s133 = sphi 0, %s119
      %s137 = sphi 0, %s137
      %s139 = sphi 0, %s137
      %s140 = sphi 0, %s139
      %s154 = sphi 0, %s140
      %s158 = sphi 0, %s158
      %s160 = sphi 0, %s158
      %s161 = sphi 0, %s160
      %s175 = sphi 0, %s161
      %s179 = sphi 0, %s179
      %s181 = sphi 0, %s179
      %s182 = sphi 0, %s181
      %s196 = sphi 0, %s182
      %s202 = sphi 0, %s204
      %s205 = sphi 0, %s202
      %s206 = sphi 0, %s205
      %s222 = sphi 0, %s206
      %s228 = sphi 0, %s230
      %s231 = sphi 0, %s228
      %s232 = sphi 0, %s231
      %s248 = sphi 0, %s232
    $region4: #{swin_forward.15} parent=1 // loop_header_branch
      %22 = sbr.rel (%p20) target = $region8
    $region5: #{swin_forward.15} parent=1 // loop_body
      %s24 = ssub.s32 %s19, 1
      %s25 = ssub.s32 %s19, 2
      %s26 = sadd.s32 %s19, 1
      %s27 = ssub.s32 %s19, %s26
      %p28 = scmp.eq.s32.totalorder %s27, 0
      %s30 = sadd.s32 %s29, 1
      %s31 = scalar_select %p28, %s29, %s30
      %p34 = pneg %p28
      %p35 = scmp.eq.s32.totalorder %s19, 1
      %p36 = por %p34, %p35
      %p37 = scmp.ne.s32.totalorder %s29, %s32
      %p38 = scmp.eq.s32.totalorder %s19, 0
      %p39 = por %p37, %p38
      %p40 = scmp.ne.s32.totalorder %s29, %s32
      %p41 = scmp.eq.s32.totalorder %s24, 1
      %p42 = por %p40, %p41
      %p43 = scmp.ne.s32.totalorder %s32, %s33
      %p44 = scmp.eq.s32.totalorder %s24, 0
      %p45 = por %p43, %p44
      %p46 = scmp.ne.s32.totalorder %s32, %s33
      %p47 = scmp.eq.s32.totalorder %s25, 1
      %p48 = por %p46, %p47
      %p50 = scmp.ne.s32.totalorder %s33, %s49
      %p51 = scmp.eq.s32.totalorder %s25, 0
      %p52 = por %p50, %p51
      %s54 = sadd.s32 %s53, 1
      %p57 = scmp.eq.s32.totalorder %s19, 1
      %p58 = scmp.ne.s32.totalorder %s53, %s55
      %p59 = scmp.eq.s32.totalorder %s19, 0
      %p60 = por %p58, %p59
      %p61 = scmp.ne.s32.totalorder %s53, %s55
      %p62 = scmp.eq.s32.totalorder %s24, 1
      %p63 = por %p61, %p62
      %p64 = scmp.ne.s32.totalorder %s55, %s56
      %p65 = scmp.eq.s32.totalorder %s24, 0
      %p66 = por %p64, %p65
      %p67 = scmp.ne.s32.totalorder %s55, %s56
      %p68 = scmp.eq.s32.totalorder %s25, 1
      %p69 = por %p67, %p68
      %p71 = scmp.ne.s32.totalorder %s56, %s70
      %p72 = scmp.eq.s32.totalorder %s25, 0
      %p73 = por %p71, %p72
      %s75 = sadd.s32 %s74, 1
      %p78 = scmp.eq.s32.totalorder %s19, 1
      %p79 = scmp.ne.s32.totalorder %s74, %s76
      %p80 = scmp.eq.s32.totalorder %s19, 0
      %p81 = por %p79, %p80
      %p82 = scmp.ne.s32.totalorder %s74, %s76
      %p83 = scmp.eq.s32.totalorder %s24, 1
      %p84 = por %p82, %p83
      %p85 = scmp.ne.s32.totalorder %s76, %s77
      %p86 = scmp.eq.s32.totalorder %s24, 0
      %p87 = por %p85, %p86
      %p88 = scmp.ne.s32.totalorder %s76, %s77
      %p89 = scmp.eq.s32.totalorder %s25, 1
      %p90 = por %p88, %p89
      %p92 = scmp.ne.s32.totalorder %s77, %s91
      %p93 = scmp.eq.s32.totalorder %s25, 0
      %p94 = por %p92, %p93
      %s96 = sadd.s32 %s95, 1
      %p99 = scmp.eq.s32.totalorder %s19, 1
      %p100 = scmp.ne.s32.totalorder %s95, %s97
      %p101 = scmp.eq.s32.totalorder %s19, 0
      %p102 = por %p100, %p101
      %p103 = scmp.ne.s32.totalorder %s95, %s97
      %p104 = scmp.eq.s32.totalorder %s24, 1
      %p105 = por %p103, %p104
      %p106 = scmp.ne.s32.totalorder %s97, %s98
      %p107 = scmp.eq.s32.totalorder %s24, 0
      %p108 = por %p106, %p107
      %p109 = scmp.ne.s32.totalorder %s97, %s98
      %p110 = scmp.eq.s32.totalorder %s25, 1
      %p111 = por %p109, %p110
      %p113 = scmp.ne.s32.totalorder %s98, %s112
      %p114 = scmp.eq.s32.totalorder %s25, 0
      %p115 = por %p113, %p114
      %s117 = sadd.s32 %s116, 1
      %p120 = scmp.eq.s32.totalorder %s19, 1
      %p121 = scmp.ne.s32.totalorder %s116, %s118
      %p122 = scmp.eq.s32.totalorder %s19, 0
      %p123 = por %p121, %p122
      %p124 = scmp.ne.s32.totalorder %s116, %s118
      %p125 = scmp.eq.s32.totalorder %s24, 1
      %p126 = por %p124, %p125
      %p127 = scmp.ne.s32.totalorder %s118, %s119
      %p128 = scmp.eq.s32.totalorder %s24, 0
      %p129 = por %p127, %p128
      %p130 = scmp.ne.s32.totalorder %s118, %s119
      %p131 = scmp.eq.s32.totalorder %s25, 1
      %p132 = por %p130, %p131
      %p134 = scmp.ne.s32.totalorder %s119, %s133
      %p135 = scmp.eq.s32.totalorder %s25, 0
      %p136 = por %p134, %p135
      %s138 = sadd.s32 %s137, 1
      %p141 = scmp.eq.s32.totalorder %s19, 1
      %p142 = scmp.ne.s32.totalorder %s137, %s139
      %p143 = scmp.eq.s32.totalorder %s19, 0
      %p144 = por %p142, %p143
      %p145 = scmp.ne.s32.totalorder %s137, %s139
      %p146 = scmp.eq.s32.totalorder %s24, 1
      %p147 = por %p145, %p146
      %p148 = scmp.ne.s32.totalorder %s139, %s140
      %p149 = scmp.eq.s32.totalorder %s24, 0
      %p150 = por %p148, %p149
      %p151 = scmp.ne.s32.totalorder %s139, %s140
      %p152 = scmp.eq.s32.totalorder %s25, 1
      %p153 = por %p151, %p152
      %p155 = scmp.ne.s32.totalorder %s140, %s154
      %p156 = scmp.eq.s32.totalorder %s25, 0
      %p157 = por %p155, %p156
      %s159 = sadd.s32 %s158, 1
      %p162 = scmp.eq.s32.totalorder %s19, 1
      %p163 = scmp.ne.s32.totalorder %s158, %s160
      %p164 = scmp.eq.s32.totalorder %s19, 0
      %p165 = por %p163, %p164
      %p166 = scmp.ne.s32.totalorder %s158, %s160
      %p167 = scmp.eq.s32.totalorder %s24, 1
      %p168 = por %p166, %p167
      %p169 = scmp.ne.s32.totalorder %s160, %s161
      %p170 = scmp.eq.s32.totalorder %s24, 0
      %p171 = por %p169, %p170
      %p172 = scmp.ne.s32.totalorder %s160, %s161
      %p173 = scmp.eq.s32.totalorder %s25, 1
      %p174 = por %p172, %p173
      %p176 = scmp.ne.s32.totalorder %s161, %s175
      %p177 = scmp.eq.s32.totalorder %s25, 0
      %p178 = por %p176, %p177
      %s180 = sadd.s32 %s179, 1
      %p183 = scmp.eq.s32.totalorder %s19, 1
      %p184 = scmp.ne.s32.totalorder %s179, %s181
      %p185 = scmp.eq.s32.totalorder %s19, 0
      %p186 = por %p184, %p185
      %p187 = scmp.ne.s32.totalorder %s179, %s181
      %p188 = scmp.eq.s32.totalorder %s24, 1
      %p189 = por %p187, %p188
      %p190 = scmp.ne.s32.totalorder %s181, %s182
      %p191 = scmp.eq.s32.totalorder %s24, 0
      %p192 = por %p190, %p191
      %p193 = scmp.ne.s32.totalorder %s181, %s182
      %p194 = scmp.eq.s32.totalorder %s25, 1
      %p195 = por %p193, %p194
      %p197 = scmp.ne.s32.totalorder %s182, %s196
      %p198 = scmp.eq.s32.totalorder %s25, 0
      %p199 = por %p197, %p198
      %s200 = ssub.s32 %s19, %s26
      %p201 = scmp.eq.s32.totalorder %s200, 0
      %s203 = sadd.s32 %s202, 1
      %s204 = scalar_select %p201, %s202, %s203
      %p207 = pneg %p201
      %p208 = scmp.eq.s32.totalorder %s19, 1
      %p209 = por %p207, %p208
      %p210 = scmp.ne.s32.totalorder %s202, %s205
      %p211 = scmp.eq.s32.totalorder %s19, 0
      %p212 = por %p210, %p211
      %p213 = scmp.ne.s32.totalorder %s202, %s205
      %p214 = scmp.eq.s32.totalorder %s24, 1
      %p215 = por %p213, %p214
      %p216 = scmp.ne.s32.totalorder %s205, %s206
      %p217 = scmp.eq.s32.totalorder %s24, 0
      %p218 = por %p216, %p217
      %p219 = scmp.ne.s32.totalorder %s205, %s206
      %p220 = scmp.eq.s32.totalorder %s25, 1
      %p221 = por %p219, %p220
      %p223 = scmp.ne.s32.totalorder %s206, %s222
      %p224 = scmp.eq.s32.totalorder %s25, 0
      %p225 = por %p223, %p224
      %s226 = ssub.s32 %s19, %s26
      %p227 = scmp.eq.s32.totalorder %s226, 0
      %s229 = sadd.s32 %s228, 1
      %s230 = scalar_select %p227, %s228, %s229
      %p233 = pneg %p227
      %p234 = scmp.eq.s32.totalorder %s19, 1
      %p235 = por %p233, %p234
      %p236 = scmp.ne.s32.totalorder %s228, %s231
      %p237 = scmp.eq.s32.totalorder %s19, 0
      %p238 = por %p236, %p237
      %p239 = scmp.ne.s32.totalorder %s228, %s231
      %p240 = scmp.eq.s32.totalorder %s24, 1
      %p241 = por %p239, %p240
      %p242 = scmp.ne.s32.totalorder %s231, %s232
      %p243 = scmp.eq.s32.totalorder %s24, 0
      %p244 = por %p242, %p243
      %p245 = scmp.ne.s32.totalorder %s231, %s232
      %p246 = scmp.eq.s32.totalorder %s25, 1
      %p247 = por %p245, %p246
      %p249 = scmp.ne.s32.totalorder %s232, %s248
      %p250 = scmp.eq.s32.totalorder %s25, 0
      %p251 = por %p249, %p250
      %p252 = scmp.le.s32.totalorder 1, %s19
      %p253 = scmp.lt.s32.totalorder %s19, 3
      %p254 = pnand %p252, %p253
      %p255 = pneg %p254
      // Predicated region
      $region9: #{swin_forward.15} parent=5 // pred_check
        _
      $region10: #{swin_forward.15} parent=5 // pred_check_branch
        %257 = sbr.rel (%p254) target = $region12
      $region11: #{swin_forward.15} parent=5 // pred_region
        %s258 = ssub.s32 %s19, 1
        // Predicated region
        $region13: #{swin_forward.15} parent=11 // pred_check
          %p259 = pneg %p66
        $region14: #{swin_forward.15} parent=11 // pred_check_branch
          %261 = sbr.rel (%p259) target = $region16
        $region15: #{swin_forward.15} parent=11 // pred_region
          _
        $region16: #{swin_forward.15} parent=11 // pred_fallthru
          _
        // Predicated region
        $region17: #{swin_forward.15} parent=11 // pred_check
          %p262 = pneg %p87
        $region18: #{swin_forward.15} parent=11 // pred_check_branch
          %264 = sbr.rel (%p262) target = $region20
        $region19: #{swin_forward.15} parent=11 // pred_region
          _
        $region20: #{swin_forward.15} parent=11 // pred_fallthru
          _
        // Predicated region
        $region21: #{swin_forward.15} parent=11 // pred_check
          %p265 = pneg %p108
        $region22: #{swin_forward.15} parent=11 // pred_check_branch
          %267 = sbr.rel (%p265) target = $region24
        $region23: #{swin_forward.15} parent=11 // pred_region
          _
        $region24: #{swin_forward.15} parent=11 // pred_fallthru
          _
        // Predicated region
        $region25: #{swin_forward.15} parent=11 // pred_check
          %p268 = pneg %p129
        $region26: #{swin_forward.15} parent=11 // pred_check_branch
          %270 = sbr.rel (%p268) target = $region28
        $region27: #{swin_forward.15} parent=11 // pred_region
          _
        $region28: #{swin_forward.15} parent=11 // pred_fallthru
          _
        // Predicated region
        $region29: #{swin_forward.15} parent=11 // pred_check
          %p271 = pneg %p150
        $region30: #{swin_forward.15} parent=11 // pred_check_branch
          %273 = sbr.rel (%p271) target = $region32
        $region31: #{swin_forward.15} parent=11 // pred_region
          _
        $region32: #{swin_forward.15} parent=11 // pred_fallthru
          _
        // Predicated region
        $region33: #{swin_forward.15} parent=11 // pred_check
          %p274 = pneg %p171
        $region34: #{swin_forward.15} parent=11 // pred_check_branch
          %276 = sbr.rel (%p274) target = $region36
        $region35: #{swin_forward.15} parent=11 // pred_region
          _
        $region36: #{swin_forward.15} parent=11 // pred_fallthru
          _
        // Predicated region
        $region37: #{swin_forward.15} parent=11 // pred_check
          %p277 = pneg %p192
        $region38: #{swin_forward.15} parent=11 // pred_check_branch
          %279 = sbr.rel (%p277) target = $region40
        $region39: #{swin_forward.15} parent=11 // pred_region
          _
        $region40: #{swin_forward.15} parent=11 // pred_fallthru
          _
      $region12: #{swin_forward.15} parent=5 // pred_fallthru
        _
      %p280 = scmp.lt.s32.totalorder %s19, 2
      // Predicated region
      $region41: #{swin_forward.15} parent=5 // pred_check
        %p281 = pneg %p280
      $region42: #{swin_forward.15} parent=5 // pred_check_branch
        %283 = sbr.rel (%p281) target = $region44
      $region43: #{swin_forward.15} parent=5 // pred_region
        // Predicated region
        $region45: #{swin_forward.15} parent=43 // pred_check
          %p284 = pneg %p39
        $region46: #{swin_forward.15} parent=43 // pred_check_branch
          %286 = sbr.rel (%p284) target = $region48
        $region47: #{swin_forward.15} parent=43 // pred_region
          %s287 = smul.u32 8, %s19
          %p288 = scmp.lt.s32.totalorder %s287, 15
          %s289 = scalar_select %p288, %s287, 15
          %s290 = smul.addr %s289, 8
          %s291 = scalar_lea.vmem %s0, %s290
          %s292 = smul.u32 8, %s19
        $region48: #{swin_forward.15} parent=43 // pred_fallthru
          _
      $region44: #{swin_forward.15} parent=5 // pred_fallthru
        _
      %p293 = scmp.le.s32.totalorder 1, %s19
      %p294 = scmp.lt.s32.totalorder %s19, 3
      %p295 = pnand %p293, %p294
      %p296 = pneg %p295
      // Predicated region
      $region49: #{swin_forward.15} parent=5 // pred_check
        _
      $region50: #{swin_forward.15} parent=5 // pred_check_branch
        %298 = sbr.rel (%p295) target = $region52
      $region51: #{swin_forward.15} parent=5 // pred_region
        %s299 = ssub.s32 %s19, 1
        %s300 = smul.u32 8, %s24
        %p301 = scmp.lt.s32.totalorder %s300, 15
        %s302 = scalar_select %p301, %s300, 15
        %s303 = smul.addr %s302, 8
        %s304 = scalar_lea.vmem %s0, %s303
        %p305 = pneg %p45
        %p306 = pneg %p42
        %p307 = pneg %p66
        %p308 = pneg %p63
        %p309 = pneg %p87
        %p310 = pneg %p84
        %p311 = pneg %p108
        %p312 = pneg %p105
        %p313 = pneg %p129
        %p314 = pneg %p126
        %p315 = pneg %p150
        %p316 = pneg %p147
        %p317 = pneg %p171
        %p318 = pneg %p168
        %p319 = pneg %p192
        %p320 = pneg %p189
        %p321 = pneg %p218
        %p322 = pneg %p215
        %s323 = smul.u32 8, %s24
        %p324 = scmp.lt.s32.totalorder %s323, 15
        %s325 = scalar_select %p324, %s323, 15
        %s326 = smul.addr %s325, 8
        %s327 = scalar_lea.vmem %s8, %s326
        %p328 = pneg %p244
        %p329 = pneg %p241
        %s330 = sand.u32 %s231, 1
        %s331 = scalar_lea.sflag [#allocation3], %s330
        %s332 = sand.u32 %s231, 1
        %s333 = smul.addr %s332, 4
        %s334 = scalar_lea.vmem [#allocation2], %s333
        %s335 = smul.u32 8, %s24
        %p336 = scmp.lt.s32.totalorder %s335, 15
        %s337 = scalar_select %p336, %s335, 15
        %s338 = smul.addr %s337, 8
        %s339 = scalar_lea.vmem %s0, %s338
        %s340 = smul.u32 8, %s24
        %s341 = smul.u32 8, %s24
        %p342 = scmp.lt.s32.totalorder %s341, 15
        %s343 = scalar_select %p342, %s341, 15
        %s344 = smul.addr %s343, 8
        %s345 = scalar_lea.vmem %s8, %s344
        %s346 = smul.u32 8, %s24
        %s347 = smul.u32 4, %s24
        %v349 = vld [vmem:[%s339] sm:$0xff]
        %v350 = vld [vmem:[%s339 + $0x8] sm:$0xff]
        %v351 = vld [vmem:[%s339 + $0x10] sm:$0xff]
        %v352 = vld [vmem:[%s339 + $0x18] sm:$0xff]
        %v353 = vld [vmem:[%s339 + $0x20] sm:$0xff]
        %v354 = vld [vmem:[%s339 + $0x28] sm:$0xff]
        %v355 = vld [vmem:[%s339 + $0x30] sm:$0xff]
        %v356 = vld [vmem:[%s339 + $0x38] sm:$0xff]
        %v357 = vld [vmem:[%s1] sm:$0x1]
        %v358 = vld [vmem:[%s2] sm:$0x1]
        %vm359 = vcmask 130048
        %v360 = vsel %vm359, %v349, 0.0
        %361 = vadd.xlane.f32.xlu0 %v360
        %v362 = vpop.xlane.xlu0 %361
        %v363 = vsel %vm359, %v350, 0.0
        %364 = vadd.xlane.f32.xlu0 %v363
        %v365 = vpop.xlane.xlu0 %364
        %v366 = vsel %vm359, %v351, 0.0
        %367 = vadd.xlane.f32.xlu0 %v366
        %v368 = vpop.xlane.xlu0 %367
        %v369 = vsel %vm359, %v352, 0.0
        %370 = vadd.xlane.f32.xlu0 %v369
        %v371 = vpop.xlane.xlu0 %370
        %v372 = vsel %vm359, %v353, 0.0
        %373 = vadd.xlane.f32.xlu0 %v372
        %v374 = vpop.xlane.xlu0 %373
        %v375 = vsel %vm359, %v354, 0.0
        %376 = vadd.xlane.f32.xlu0 %v375
        %v377 = vpop.xlane.xlu0 %376
        %v378 = vsel %vm359, %v355, 0.0
        %379 = vadd.xlane.f32.xlu0 %v378
        %v380 = vpop.xlane.xlu0 %379
        %v381 = vsel %vm359, %v356, 0.0
        %382 = vadd.xlane.f32.xlu0 %v381
        %v383 = vpop.xlane.xlu0 %382
        %v384 = vrcp.pop 16.0
        %v385 = vmul.f32 16.0, %v384
        %v386 = vsub.f32 1.0, %v385
        %v387 = vmul.f32 %v384, %v386
        %v388 = vadd.f32 %v384, %v387
        %vm389 = vweird.f32 %v384
        %v390 = vsel %vm389, %v384, %v388
        %v391 = vmul.f32 %v362, %v390
        %v392 = vmul.f32 %v365, %v390
        %v393 = vmul.f32 %v368, %v390
        %v394 = vmul.f32 %v371, %v390
        %v395 = vmul.f32 %v374, %v390
        %v396 = vmul.f32 %v377, %v390
        %v397 = vmul.f32 %v380, %v390
        %v398 = vmul.f32 %v383, %v390
        %v399 = vsub.f32 %v349, %v391
        %v400 = vsub.f32 %v350, %v392
        %v401 = vsub.f32 %v351, %v393
        %v402 = vsub.f32 %v352, %v394
        %v403 = vsub.f32 %v353, %v395
        %v404 = vsub.f32 %v354, %v396
        %v405 = vsub.f32 %v355, %v397
        %v406 = vsub.f32 %v356, %v398
        %v407 = vmul.f32 %v399, %v399
        %v408 = vmul.f32 %v400, %v400
        %v409 = vmul.f32 %v401, %v401
        %v410 = vmul.f32 %v402, %v402
        %v411 = vmul.f32 %v403, %v403
        %v412 = vmul.f32 %v404, %v404
        %v413 = vmul.f32 %v405, %v405
        %v414 = vmul.f32 %v406, %v406
        %v415 = vsel %vm359, %v407, 0.0
        %416 = vadd.xlane.f32.xlu0 %v415
        %v417 = vpop.xlane.xlu0 %416
        %v418 = vsel %vm359, %v408, 0.0
        %419 = vadd.xlane.f32.xlu0 %v418
        %v420 = vpop.xlane.xlu0 %419
        %v421 = vsel %vm359, %v409, 0.0
        %422 = vadd.xlane.f32.xlu0 %v421
        %v423 = vpop.xlane.xlu0 %422
        %v424 = vsel %vm359, %v410, 0.0
        %425 = vadd.xlane.f32.xlu0 %v424
        %v426 = vpop.xlane.xlu0 %425
        %v427 = vsel %vm359, %v411, 0.0
        %428 = vadd.xlane.f32.xlu0 %v427
        %v429 = vpop.xlane.xlu0 %428
        %v430 = vsel %vm359, %v412, 0.0
        %431 = vadd.xlane.f32.xlu0 %v430
        %v432 = vpop.xlane.xlu0 %431
        %v433 = vsel %vm359, %v413, 0.0
        %434 = vadd.xlane.f32.xlu0 %v433
        %v435 = vpop.xlane.xlu0 %434
        %v436 = vsel %vm359, %v414, 0.0
        %437 = vadd.xlane.f32.xlu0 %v436
        %v438 = vpop.xlane.xlu0 %437
        %v439 = vmul.f32 %v417, %v390
        %v440 = vmul.f32 %v420, %v390
        %v441 = vmul.f32 %v423, %v390
        %v442 = vmul.f32 %v426, %v390
        %v443 = vmul.f32 %v429, %v390
        %v444 = vmul.f32 %v432, %v390
        %v445 = vmul.f32 %v435, %v390
        %v446 = vmul.f32 %v438, %v390
        %v447 = vadd.f32 %v439, 1e-05
        %v448 = vadd.f32 %v440, 1e-05
        %v449 = vadd.f32 %v441, 1e-05
        %v450 = vadd.f32 %v442, 1e-05
        %v451 = vadd.f32 %v443, 1e-05
        %v452 = vadd.f32 %v444, 1e-05
        %v453 = vadd.f32 %v445, 1e-05
        %v454 = vadd.f32 %v446, 1e-05
        %v455 = vrsqrt.pop %v447
        %v456 = vmul.f32 %v455, %v447
        %v457 = vmul.f32 %v456, %v455
        %v458 = vmul.f32 0.5, %v457
        %v459 = vsub.f32 1.5, %v458
        %v460 = vmul.f32 %v455, %v459
        %vm461 = vweird.f32 %v447
        %vm462 = vweird.f32 %v455
        %vm463 = vmor %vm461, %vm462
        %v464 = vsel %vm463, %v455, %v460
        %v465 = vrsqrt.pop %v448
        %v466 = vmul.f32 %v465, %v448
        %v467 = vmul.f32 %v466, %v465
        %v468 = vmul.f32 0.5, %v467
        %v469 = vsub.f32 1.5, %v468
        %v470 = vmul.f32 %v465, %v469
        %vm471 = vweird.f32 %v448
        %vm472 = vweird.f32 %v465
        %vm473 = vmor %vm471, %vm472
        %v474 = vsel %vm473, %v465, %v470
        %v475 = vrsqrt.pop %v449
        %v476 = vmul.f32 %v475, %v449
        %v477 = vmul.f32 %v476, %v475
        %v478 = vmul.f32 0.5, %v477
        %v479 = vsub.f32 1.5, %v478
        %v480 = vmul.f32 %v475, %v479
        %vm481 = vweird.f32 %v449
        %vm482 = vweird.f32 %v475
        %vm483 = vmor %vm481, %vm482
        %v484 = vsel %vm483, %v475, %v480
        %v485 = vrsqrt.pop %v450
        %v486 = vmul.f32 %v485, %v450
        %v487 = vmul.f32 %v486, %v485
        %v488 = vmul.f32 0.5, %v487
        %v489 = vsub.f32 1.5, %v488
        %v490 = vmul.f32 %v485, %v489
        %vm491 = vweird.f32 %v450
        %vm492 = vweird.f32 %v485
        %vm493 = vmor %vm491, %vm492
        %v494 = vsel %vm493, %v485, %v490
        %v495 = vrsqrt.pop %v451
        %v496 = vmul.f32 %v495, %v451
        %v497 = vmul.f32 %v496, %v495
        %v498 = vmul.f32 0.5, %v497
        %v499 = vsub.f32 1.5, %v498
        %v500 = vmul.f32 %v495, %v499
        %vm501 = vweird.f32 %v451
        %vm502 = vweird.f32 %v495
        %vm503 = vmor %vm501, %vm502
        %v504 = vsel %vm503, %v495, %v500
        %v505 = vrsqrt.pop %v452
        %v506 = vmul.f32 %v505, %v452
        %v507 = vmul.f32 %v506, %v505
        %v508 = vmul.f32 0.5, %v507
        %v509 = vsub.f32 1.5, %v508
        %v510 = vmul.f32 %v505, %v509
        %vm511 = vweird.f32 %v452
        %vm512 = vweird.f32 %v505
        %vm513 = vmor %vm511, %vm512
        %v514 = vsel %vm513, %v505, %v510
        %v515 = vrsqrt.pop %v453
        %v516 = vmul.f32 %v515, %v453
        %v517 = vmul.f32 %v516, %v515
        %v518 = vmul.f32 0.5, %v517
        %v519 = vsub.f32 1.5, %v518
        %v520 = vmul.f32 %v515, %v519
        %vm521 = vweird.f32 %v453
        %vm522 = vweird.f32 %v515
        %vm523 = vmor %vm521, %vm522
        %v524 = vsel %vm523, %v515, %v520
        %v525 = vrsqrt.pop %v454
        %v526 = vmul.f32 %v525, %v454
        %v527 = vmul.f32 %v526, %v525
        %v528 = vmul.f32 0.5, %v527
        %v529 = vsub.f32 1.5, %v528
        %v530 = vmul.f32 %v525, %v529
        %vm531 = vweird.f32 %v454
        %vm532 = vweird.f32 %v525
        %vm533 = vmor %vm531, %vm532
        %v534 = vsel %vm533, %v525, %v530
        %v535 = vmul.f32 %v399, %v464
        %v536 = vmul.f32 %v400, %v474
        %v537 = vmul.f32 %v401, %v484
        %v538 = vmul.f32 %v402, %v494
        %v539 = vmul.f32 %v403, %v504
        %v540 = vmul.f32 %v404, %v514
        %v541 = vmul.f32 %v405, %v524
        %v542 = vmul.f32 %v406, %v534
        %v544 = vperm.slane %v357, 0
        %v546 = vmul.f32 %v535, %v544
        %v547 = vmul.f32 %v536, %v544
        %v548 = vmul.f32 %v537, %v544
        %v549 = vmul.f32 %v538, %v544
        %v550 = vmul.f32 %v539, %v544
        %v551 = vmul.f32 %v540, %v544
        %v552 = vmul.f32 %v541, %v544
        %v553 = vmul.f32 %v542, %v544
        %v555 = vperm.slane %v358, 0
        %v557 = vadd.f32 %v546, %v555
        %v558 = vadd.f32 %v547, %v555
        %v559 = vadd.f32 %v548, %v555
        %v560 = vadd.f32 %v549, %v555
        %v561 = vadd.f32 %v550, %v555
        %v562 = vadd.f32 %v551, %v555
        %v563 = vadd.f32 %v552, %v555
        %v564 = vadd.f32 %v553, %v555
        %v565 = vpack.c.bf16 %v558, %v557
        %v566 = vpack.c.bf16 %v560, %v559
        %v567 = vpack.c.bf16 %v562, %v561
        %v568 = vpack.c.bf16 %v564, %v563
        %v569 = vld [vmem:[%s3] sm:$0xf]
        %v570 = vld [vmem:[%s3 + $0x4] sm:$0xf]
        %v571 = vld [vmem:[%s4] sm:$0x1]
        %v573 = vperm.slane %v571, 0
        %v577 = vunpack.c.l.b16 %v569
        %v578 = vunpack.c.l.b16 %v570
        %v579 = vpack.c.b16 %v578, %v577
        %v582 = vsel %vm359, %v565, 0
        %v585 = vsel %vm359, %v566, 0
        %v588 = vsel %vm359, %v567, 0
        %v591 = vsel %vm359, %v568, 0
        %593 = vmatpush.bf16.msra.mxu0 0
        %594 = vmatpush.bf16.msra.mxu0 0
        %595 = vmatpush.bf16.msra.mxu0 0
        %596 = vmatpush.bf16.msra.mxu0 0
        %597 = vmatpush.bf16.msra.mxu0 0
        %598 = vmatpush.bf16.msra.mxu0 0
        %599 = vmatpush.bf16.msra.mxu0 0
        %600 = vmatpush.bf16.msra.mxu0 %v579
        %601 = vmatmul.bf16.gmra.mxu0 %v582
        %v602 = vpop.f32.mrf.mxu0
        %v603 = vadd.f32 %v573, %v602
        %v604 = vpop.f32.mrf.mxu0
        %v605 = vadd.f32 %v573, %v604
        %606 = vmatmul.bf16.gmra.mxu0 %v585
        %v607 = vpop.f32.mrf.mxu0
        %v608 = vadd.f32 %v573, %v607
        %v609 = vpop.f32.mrf.mxu0
        %v610 = vadd.f32 %v573, %v609
        %611 = vmatmul.bf16.gmra.mxu0 %v588
        %v612 = vpop.f32.mrf.mxu0
        %v613 = vadd.f32 %v573, %v612
        %v614 = vpop.f32.mrf.mxu0
        %v615 = vadd.f32 %v573, %v614
        %616 = vmatmul.bf16.gmra.mxu0 %v591
        %v617 = vpop.f32.mrf.mxu0
        %v618 = vadd.f32 %v573, %v617
        %v619 = vpop.f32.mrf.mxu0
        %v620 = vadd.f32 %v573, %v619
        %621 = vdwg.mxu0
        %v622 = vld [vmem:[%s7] sm:$0xff]
        %v623 = vld [vmem:[%s7 + $0x8] sm:$0xff]
        %v624 = vld [vmem:[%s7 + $0x10] sm:$0xff]
        %v625 = vld [vmem:[%s7 + $0x18] sm:$0xff]
        %v626 = vld [vmem:[%s7 + $0x20] sm:$0xff]
        %v627 = vld [vmem:[%s7 + $0x28] sm:$0xff]
        %v628 = vld [vmem:[%s7 + $0x30] sm:$0xff]
        %v629 = vld [vmem:[%s7 + $0x38] sm:$0xff]
        %v630 = vld [vmem:[%s7 + $0x40] sm:$0xff]
        %v631 = vld [vmem:[%s7 + $0x48] sm:$0xff]
        %v632 = vld [vmem:[%s7 + $0x50] sm:$0xff]
        %v633 = vld [vmem:[%s7 + $0x58] sm:$0xff]
        %v634 = vld [vmem:[%s7 + $0x60] sm:$0xff]
        %v635 = vld [vmem:[%s7 + $0x68] sm:$0xff]
        %v636 = vld [vmem:[%s7 + $0x70] sm:$0xff]
        %v637 = vld [vmem:[%s7 + $0x78] sm:$0xff]
        %v638 = vmul.f32 %v603, 0.35355338
        %v639 = vmul.f32 %v605, 0.35355338
        %v640 = vmul.f32 %v608, 0.35355338
        %v641 = vmul.f32 %v610, 0.35355338
        %v642 = vmul.f32 %v613, 0.35355338
        %v643 = vmul.f32 %v615, 0.35355338
        %v644 = vmul.f32 %v618, 0.35355338
        %v645 = vmul.f32 %v620, 0.35355338
        %648 = vrot.lane.b32.xlu0 %v603, 112
        %v649 = vpop.permute.xlu0 %648
        %650 = vrot.lane.b32.xlu0 %v605, 112
        %v651 = vpop.permute.xlu0 %650
        %vm652 = vcmask 64512
        %v654 = vsel %vm652, %v638, 0
        %v657 = vsel %vm652, %v639, 0
        %v659 = vsel %vm652, %v649, 0
        %v661 = vsel %vm652, %v651, 0
        %663 = vmatpush.xpose.msra.mxu0 0.0
        %664 = vmatpush.xpose.msra.mxu0 0.0
        %665 = vmatpush.xpose.msra.mxu0 0.0
        %666 = vmatpush.xpose.msra.mxu0 0.0
        %667 = vmatpush.xpose.msra.mxu0 0.0
        %668 = vmatpush.xpose.msra.mxu0 0.0
        %669 = vmatpush.xpose.msra.mxu0 0.0
        %670 = vmatpush.xpose.msra.mxu0 0.0
        %671 = vmatpush.xpose.msra.mxu0 0.0
        %672 = vmatpush.xpose.msra.mxu0 0.0
        %673 = vmatpush.xpose.msra.mxu0 0.0
        %674 = vmatpush.xpose.msra.mxu0 0.0
        %675 = vmatpush.xpose.msra.mxu0 0.0
        %676 = vmatpush.xpose.msra.mxu0 0.0
        %677 = vmatpush.xpose.msra.mxu0 %v661
        %678 = vmatpush.xpose.msra.mxu0 %v659
        %679 = vmatmul.f32.gmra.mxu0 %v654
        %v680 = vpop.f32.mrf.mxu0
        %v681 = vadd.f32 0.0, %v680
        %682 = vmatmul.f32.gmra.mxu0 %v657
        %v683 = vpop.f32.mrf.mxu0
        %v684 = vadd.f32 0.0, %v683
        %685 = vdwg.mxu0
        %688 = vrot.lane.b32.xlu0 %v608, 112
        %v689 = vpop.permute.xlu0 %688
        %690 = vrot.lane.b32.xlu0 %v610, 112
        %v691 = vpop.permute.xlu0 %690
        %v693 = vsel %vm652, %v640, 0
        %v696 = vsel %vm652, %v641, 0
        %v698 = vsel %vm652, %v689, 0
        %v700 = vsel %vm652, %v691, 0
        %702 = vmatpush.xpose.msra.mxu0 0.0
        %703 = vmatpush.xpose.msra.mxu0 0.0
        %704 = vmatpush.xpose.msra.mxu0 0.0
        %705 = vmatpush.xpose.msra.mxu0 0.0
        %706 = vmatpush.xpose.msra.mxu0 0.0
        %707 = vmatpush.xpose.msra.mxu0 0.0
        %708 = vmatpush.xpose.msra.mxu0 0.0
        %709 = vmatpush.xpose.msra.mxu0 0.0
        %710 = vmatpush.xpose.msra.mxu0 0.0
        %711 = vmatpush.xpose.msra.mxu0 0.0
        %712 = vmatpush.xpose.msra.mxu0 0.0
        %713 = vmatpush.xpose.msra.mxu0 0.0
        %714 = vmatpush.xpose.msra.mxu0 0.0
        %715 = vmatpush.xpose.msra.mxu0 0.0
        %716 = vmatpush.xpose.msra.mxu0 %v700
        %717 = vmatpush.xpose.msra.mxu0 %v698
        %718 = vmatmul.f32.gmra.mxu0 %v693
        %v719 = vpop.f32.mrf.mxu0
        %v720 = vadd.f32 0.0, %v719
        %721 = vmatmul.f32.gmra.mxu0 %v696
        %v722 = vpop.f32.mrf.mxu0
        %v723 = vadd.f32 0.0, %v722
        %724 = vdwg.mxu0
        %727 = vrot.lane.b32.xlu0 %v613, 112
        %v728 = vpop.permute.xlu0 %727
        %729 = vrot.lane.b32.xlu0 %v615, 112
        %v730 = vpop.permute.xlu0 %729
        %v732 = vsel %vm652, %v642, 0
        %v735 = vsel %vm652, %v643, 0
        %v737 = vsel %vm652, %v728, 0
        %v739 = vsel %vm652, %v730, 0
        %741 = vmatpush.xpose.msra.mxu0 0.0
        %742 = vmatpush.xpose.msra.mxu0 0.0
        %743 = vmatpush.xpose.msra.mxu0 0.0
        %744 = vmatpush.xpose.msra.mxu0 0.0
        %745 = vmatpush.xpose.msra.mxu0 0.0
        %746 = vmatpush.xpose.msra.mxu0 0.0
        %747 = vmatpush.xpose.msra.mxu0 0.0
        %748 = vmatpush.xpose.msra.mxu0 0.0
        %749 = vmatpush.xpose.msra.mxu0 0.0
        %750 = vmatpush.xpose.msra.mxu0 0.0
        %751 = vmatpush.xpose.msra.mxu0 0.0
        %752 = vmatpush.xpose.msra.mxu0 0.0
        %753 = vmatpush.xpose.msra.mxu0 0.0
        %754 = vmatpush.xpose.msra.mxu0 0.0
        %755 = vmatpush.xpose.msra.mxu0 %v739
        %756 = vmatpush.xpose.msra.mxu0 %v737
        %757 = vmatmul.f32.gmra.mxu0 %v732
        %v758 = vpop.f32.mrf.mxu0
        %v759 = vadd.f32 0.0, %v758
        %760 = vmatmul.f32.gmra.mxu0 %v735
        %v761 = vpop.f32.mrf.mxu0
        %v762 = vadd.f32 0.0, %v761
        %763 = vdwg.mxu0
        %766 = vrot.lane.b32.xlu0 %v618, 112
        %v767 = vpop.permute.xlu0 %766
        %768 = vrot.lane.b32.xlu0 %v620, 112
        %v769 = vpop.permute.xlu0 %768
        %v771 = vsel %vm652, %v644, 0
        %v774 = vsel %vm652, %v645, 0
        %v776 = vsel %vm652, %v767, 0
        %v778 = vsel %vm652, %v769, 0
        %780 = vmatpush.xpose.msra.mxu0 0.0
        %781 = vmatpush.xpose.msra.mxu0 0.0
        %782 = vmatpush.xpose.msra.mxu0 0.0
        %783 = vmatpush.xpose.msra.mxu0 0.0
        %784 = vmatpush.xpose.msra.mxu0 0.0
        %785 = vmatpush.xpose.msra.mxu0 0.0
        %786 = vmatpush.xpose.msra.mxu0 0.0
        %787 = vmatpush.xpose.msra.mxu0 0.0
        %788 = vmatpush.xpose.msra.mxu0 0.0
        %789 = vmatpush.xpose.msra.mxu0 0.0
        %790 = vmatpush.xpose.msra.mxu0 0.0
        %791 = vmatpush.xpose.msra.mxu0 0.0
        %792 = vmatpush.xpose.msra.mxu0 0.0
        %793 = vmatpush.xpose.msra.mxu0 0.0
        %794 = vmatpush.xpose.msra.mxu0 %v778
        %795 = vmatpush.xpose.msra.mxu0 %v776
        %796 = vmatmul.f32.gmra.mxu0 %v771
        %v797 = vpop.f32.mrf.mxu0
        %v798 = vadd.f32 0.0, %v797
        %799 = vmatmul.f32.gmra.mxu0 %v774
        %v800 = vpop.f32.mrf.mxu0
        %v801 = vadd.f32 0.0, %v800
        %802 = vdwg.mxu0
        %v803 = vadd.f32 %v681, %v622
        %v804 = vadd.f32 %v684, %v623
        %v805 = vadd.f32 %v720, %v626
        %v806 = vadd.f32 %v723, %v627
        %v807 = vadd.f32 %v759, %v630
        %v808 = vadd.f32 %v762, %v631
        %v809 = vadd.f32 %v798, %v634
        %v810 = vadd.f32 %v801, %v635
        %v811 = vsel %vm359, %v803, -inf
        %812 = vmax.xlane.f32.xlu0 %v811
        %v813 = vpop.xlane.xlu0 %812
        %v814 = vsel %vm359, %v804, -inf
        %815 = vmax.xlane.f32.xlu0 %v814
        %v816 = vpop.xlane.xlu0 %815
        %v817 = vsel %vm359, %v805, -inf
        %818 = vmax.xlane.f32.xlu0 %v817
        %v819 = vpop.xlane.xlu0 %818
        %v820 = vsel %vm359, %v806, -inf
        %821 = vmax.xlane.f32.xlu0 %v820
        %v822 = vpop.xlane.xlu0 %821
        %v823 = vsel %vm359, %v807, -inf
        %824 = vmax.xlane.f32.xlu0 %v823
        %v825 = vpop.xlane.xlu0 %824
        %v826 = vsel %vm359, %v808, -inf
        %827 = vmax.xlane.f32.xlu0 %v826
        %v828 = vpop.xlane.xlu0 %827
        %v829 = vsel %vm359, %v809, -inf
        %830 = vmax.xlane.f32.xlu0 %v829
        %v831 = vpop.xlane.xlu0 %830
        %v832 = vsel %vm359, %v810, -inf
        %833 = vmax.xlane.f32.xlu0 %v832
        %v834 = vpop.xlane.xlu0 %833
        %v835 = vsub.f32 %v803, %v813
        %v836 = vsub.f32 %v804, %v816
        %v837 = vsub.f32 %v805, %v819
        %v838 = vsub.f32 %v806, %v822
        %v839 = vsub.f32 %v807, %v825
        %v840 = vsub.f32 %v808, %v828
        %v841 = vsub.f32 %v809, %v831
        %v842 = vsub.f32 %v810, %v834
        %v843 = vmul.f32 %v835, 1.442695
        %v844 = vpow.pop %v843
        %v845 = vmul.f32 %v836, 1.442695
        %v846 = vpow.pop %v845
        %v847 = vmul.f32 %v837, 1.442695
        %v848 = vpow.pop %v847
        %v849 = vmul.f32 %v838, 1.442695
        %v850 = vpow.pop %v849
        %v851 = vmul.f32 %v839, 1.442695
        %v852 = vpow.pop %v851
        %v853 = vmul.f32 %v840, 1.442695
        %v854 = vpow.pop %v853
        %v855 = vmul.f32 %v841, 1.442695
        %v856 = vpow.pop %v855
        %v857 = vmul.f32 %v842, 1.442695
        %v858 = vpow.pop %v857
        %v859 = vsel %vm359, %v844, 0.0
        %860 = vadd.xlane.f32.xlu0 %v859
        %v861 = vpop.xlane.xlu0 %860
        %v862 = vsel %vm359, %v846, 0.0
        %863 = vadd.xlane.f32.xlu0 %v862
        %v864 = vpop.xlane.xlu0 %863
        %v865 = vsel %vm359, %v848, 0.0
        %866 = vadd.xlane.f32.xlu0 %v865
        %v867 = vpop.xlane.xlu0 %866
        %v868 = vsel %vm359, %v850, 0.0
        %869 = vadd.xlane.f32.xlu0 %v868
        %v870 = vpop.xlane.xlu0 %869
        %v871 = vsel %vm359, %v852, 0.0
        %872 = vadd.xlane.f32.xlu0 %v871
        %v873 = vpop.xlane.xlu0 %872
        %v874 = vsel %vm359, %v854, 0.0
        %875 = vadd.xlane.f32.xlu0 %v874
        %v876 = vpop.xlane.xlu0 %875
        %v877 = vsel %vm359, %v856, 0.0
        %878 = vadd.xlane.f32.xlu0 %v877
        %v879 = vpop.xlane.xlu0 %878
        %v880 = vsel %vm359, %v858, 0.0
        %881 = vadd.xlane.f32.xlu0 %v880
        %v882 = vpop.xlane.xlu0 %881
        %v883 = vrcp.pop %v861
        %v884 = vrcp.pop %v864
        %v885 = vrcp.pop %v867
        %v886 = vrcp.pop %v870
        %v887 = vrcp.pop %v873
        %v888 = vrcp.pop %v876
        %v889 = vrcp.pop %v879
        %v890 = vrcp.pop %v882
        %v891 = vmul.f32 %v844, %v883
        %v892 = vmul.f32 %v846, %v884
        %v893 = vmul.f32 %v848, %v885
        %v894 = vmul.f32 %v850, %v886
        %v895 = vmul.f32 %v852, %v887
        %v896 = vmul.f32 %v854, %v888
        %v897 = vmul.f32 %v856, %v889
        %v898 = vmul.f32 %v858, %v890
        %v899 = vadd.f32 %v891, 0.0
        %v900 = vadd.f32 %v893, 0.0
        %v901 = vadd.f32 %v895, 0.0
        %v902 = vadd.f32 %v897, 0.0
        %903 = vrot.lane.b32.xlu0 %v603, 96
        %v904 = vpop.permute.xlu0 %903
        %905 = vrot.lane.b32.xlu0 %v605, 96
        %v906 = vpop.permute.xlu0 %905
        %v910 = vsel %vm359, %v891, 0
        %v913 = vsel %vm359, %v892, 0
        %915 = vmatpush.msra.mxu0 0.0
        %916 = vmatpush.msra.mxu0 0.0
        %917 = vmatpush.msra.mxu0 0.0
        %918 = vmatpush.msra.mxu0 0.0
        %919 = vmatpush.msra.mxu0 0.0
        %920 = vmatpush.msra.mxu0 0.0
        %921 = vmatpush.msra.mxu0 0.0
        %922 = vmatpush.msra.mxu0 0.0
        %923 = vmatpush.msra.mxu0 0.0
        %924 = vmatpush.msra.mxu0 0.0
        %925 = vmatpush.msra.mxu0 0.0
        %926 = vmatpush.msra.mxu0 0.0
        %927 = vmatpush.msra.mxu0 0.0
        %928 = vmatpush.msra.mxu0 0.0
        %929 = vmatpush.msra.mxu0 %v906
        %930 = vmatpush.msra.mxu0 %v904
        %931 = vmatmul.f32.gmra.mxu0 %v910
        %v932 = vpop.f32.mrf.mxu0
        %v933 = vadd.f32 0.0, %v932
        %934 = vmatmul.f32.gmra.mxu0 %v913
        %v935 = vpop.f32.mrf.mxu0
        %v936 = vadd.f32 0.0, %v935
        %937 = vdwg.mxu0
        %938 = vrot.lane.b32.xlu0 %v608, 96
        %v939 = vpop.permute.xlu0 %938
        %940 = vrot.lane.b32.xlu0 %v610, 96
        %v941 = vpop.permute.xlu0 %940
        %v945 = vsel %vm359, %v893, 0
        %v948 = vsel %vm359, %v894, 0
        %950 = vmatpush.msra.mxu0 0.0
        %951 = vmatpush.msra.mxu0 0.0
        %952 = vmatpush.msra.mxu0 0.0
        %953 = vmatpush.msra.mxu0 0.0
        %954 = vmatpush.msra.mxu0 0.0
        %955 = vmatpush.msra.mxu0 0.0
        %956 = vmatpush.msra.mxu0 0.0
        %957 = vmatpush.msra.mxu0 0.0
        %958 = vmatpush.msra.mxu0 0.0
        %959 = vmatpush.msra.mxu0 0.0
        %960 = vmatpush.msra.mxu0 0.0
        %961 = vmatpush.msra.mxu0 0.0
        %962 = vmatpush.msra.mxu0 0.0
        %963 = vmatpush.msra.mxu0 0.0
        %964 = vmatpush.msra.mxu0 %v941
        %965 = vmatpush.msra.mxu0 %v939
        %966 = vmatmul.f32.gmra.mxu0 %v945
        %v967 = vpop.f32.mrf.mxu0
        %v968 = vadd.f32 0.0, %v967
        %969 = vmatmul.f32.gmra.mxu0 %v948
        %v970 = vpop.f32.mrf.mxu0
        %v971 = vadd.f32 0.0, %v970
        %972 = vdwg.mxu0
        %973 = vrot.lane.b32.xlu0 %v613, 96
        %v974 = vpop.permute.xlu0 %973
        %975 = vrot.lane.b32.xlu0 %v615, 96
        %v976 = vpop.permute.xlu0 %975
        %v980 = vsel %vm359, %v895, 0
        %v983 = vsel %vm359, %v896, 0
        %985 = vmatpush.msra.mxu0 0.0
        %986 = vmatpush.msra.mxu0 0.0
        %987 = vmatpush.msra.mxu0 0.0
        %988 = vmatpush.msra.mxu0 0.0
        %989 = vmatpush.msra.mxu0 0.0
        %990 = vmatpush.msra.mxu0 0.0
        %991 = vmatpush.msra.mxu0 0.0
        %992 = vmatpush.msra.mxu0 0.0
        %993 = vmatpush.msra.mxu0 0.0
        %994 = vmatpush.msra.mxu0 0.0
        %995 = vmatpush.msra.mxu0 0.0
        %996 = vmatpush.msra.mxu0 0.0
        %997 = vmatpush.msra.mxu0 0.0
        %998 = vmatpush.msra.mxu0 0.0
        %999 = vmatpush.msra.mxu0 %v976
        %1000 = vmatpush.msra.mxu0 %v974
        %1001 = vmatmul.f32.gmra.mxu0 %v980
        %v1002 = vpop.f32.mrf.mxu0
        %v1003 = vadd.f32 0.0, %v1002
        %1004 = vmatmul.f32.gmra.mxu0 %v983
        %v1005 = vpop.f32.mrf.mxu0
        %v1006 = vadd.f32 0.0, %v1005
        %1007 = vdwg.mxu0
        %1008 = vrot.lane.b32.xlu0 %v618, 96
        %v1009 = vpop.permute.xlu0 %1008
        %1010 = vrot.lane.b32.xlu0 %v620, 96
        %v1011 = vpop.permute.xlu0 %1010
        %v1015 = vsel %vm359, %v897, 0
        %v1018 = vsel %vm359, %v898, 0
        %1020 = vmatpush.msra.mxu0 0.0
        %1021 = vmatpush.msra.mxu0 0.0
        %1022 = vmatpush.msra.mxu0 0.0
        %1023 = vmatpush.msra.mxu0 0.0
        %1024 = vmatpush.msra.mxu0 0.0
        %1025 = vmatpush.msra.mxu0 0.0
        %1026 = vmatpush.msra.mxu0 0.0
        %1027 = vmatpush.msra.mxu0 0.0
        %1028 = vmatpush.msra.mxu0 0.0
        %1029 = vmatpush.msra.mxu0 0.0
        %1030 = vmatpush.msra.mxu0 0.0
        %1031 = vmatpush.msra.mxu0 0.0
        %1032 = vmatpush.msra.mxu0 0.0
        %1033 = vmatpush.msra.mxu0 0.0
        %1034 = vmatpush.msra.mxu0 %v1011
        %1035 = vmatpush.msra.mxu0 %v1009
        %1036 = vmatmul.f32.gmra.mxu0 %v1015
        %v1037 = vpop.f32.mrf.mxu0
        %v1038 = vadd.f32 0.0, %v1037
        %1039 = vmatmul.f32.gmra.mxu0 %v1018
        %v1040 = vpop.f32.mrf.mxu0
        %v1041 = vadd.f32 0.0, %v1040
        %1042 = vdwg.mxu0
        %1043 = vrot.lane.b32.xlu0 %v638, 120
        %v1044 = vpop.permute.xlu0 %1043
        %1045 = vrot.lane.b32.xlu0 %v639, 120
        %v1046 = vpop.permute.xlu0 %1045
        %1047 = vrot.lane.b32.xlu0 %v603, 104
        %v1048 = vpop.permute.xlu0 %1047
        %1049 = vrot.lane.b32.xlu0 %v605, 104
        %v1050 = vpop.permute.xlu0 %1049
        %v1051 = vsel %vm652, %v1044, 0
        %v1053 = vsel %vm652, %v1046, 0
        %v1055 = vsel %vm652, %v1048, 0
        %v1057 = vsel %vm652, %v1050, 0
        %1059 = vmatpush.xpose.msra.mxu0 0.0
        %1060 = vmatpush.xpose.msra.mxu0 0.0
        %1061 = vmatpush.xpose.msra.mxu0 0.0
        %1062 = vmatpush.xpose.msra.mxu0 0.0
        %1063 = vmatpush.xpose.msra.mxu0 0.0
        %1064 = vmatpush.xpose.msra.mxu0 0.0
        %1065 = vmatpush.xpose.msra.mxu0 0.0
        %1066 = vmatpush.xpose.msra.mxu0 0.0
        %1067 = vmatpush.xpose.msra.mxu0 0.0
        %1068 = vmatpush.xpose.msra.mxu0 0.0
        %1069 = vmatpush.xpose.msra.mxu0 0.0
        %1070 = vmatpush.xpose.msra.mxu0 0.0
        %1071 = vmatpush.xpose.msra.mxu0 0.0
        %1072 = vmatpush.xpose.msra.mxu0 0.0
        %1073 = vmatpush.xpose.msra.mxu0 %v1057
        %1074 = vmatpush.xpose.msra.mxu0 %v1055
        %1075 = vmatmul.f32.gmra.mxu0 %v1051
        %v1076 = vpop.f32.mrf.mxu0
        %v1077 = vadd.f32 0.0, %v1076
        %1078 = vmatmul.f32.gmra.mxu0 %v1053
        %v1079 = vpop.f32.mrf.mxu0
        %v1080 = vadd.f32 0.0, %v1079
        %1081 = vdwg.mxu0
        %1082 = vrot.lane.b32.xlu0 %v640, 120
        %v1083 = vpop.permute.xlu0 %1082
        %1084 = vrot.lane.b32.xlu0 %v641, 120
        %v1085 = vpop.permute.xlu0 %1084
        %1086 = vrot.lane.b32.xlu0 %v608, 104
        %v1087 = vpop.permute.xlu0 %1086
        %1088 = vrot.lane.b32.xlu0 %v610, 104
        %v1089 = vpop.permute.xlu0 %1088
        %v1090 = vsel %vm652, %v1083, 0
        %v1092 = vsel %vm652, %v1085, 0
        %v1094 = vsel %vm652, %v1087, 0
        %v1096 = vsel %vm652, %v1089, 0
        %1098 = vmatpush.xpose.msra.mxu0 0.0
        %1099 = vmatpush.xpose.msra.mxu0 0.0
        %1100 = vmatpush.xpose.msra.mxu0 0.0
        %1101 = vmatpush.xpose.msra.mxu0 0.0
        %1102 = vmatpush.xpose.msra.mxu0 0.0
        %1103 = vmatpush.xpose.msra.mxu0 0.0
        %1104 = vmatpush.xpose.msra.mxu0 0.0
        %1105 = vmatpush.xpose.msra.mxu0 0.0
        %1106 = vmatpush.xpose.msra.mxu0 0.0
        %1107 = vmatpush.xpose.msra.mxu0 0.0
        %1108 = vmatpush.xpose.msra.mxu0 0.0
        %1109 = vmatpush.xpose.msra.mxu0 0.0
        %1110 = vmatpush.xpose.msra.mxu0 0.0
        %1111 = vmatpush.xpose.msra.mxu0 0.0
        %1112 = vmatpush.xpose.msra.mxu0 %v1096
        %1113 = vmatpush.xpose.msra.mxu0 %v1094
        %1114 = vmatmul.f32.gmra.mxu0 %v1090
        %v1115 = vpop.f32.mrf.mxu0
        %v1116 = vadd.f32 0.0, %v1115
        %1117 = vmatmul.f32.gmra.mxu0 %v1092
        %v1118 = vpop.f32.mrf.mxu0
        %v1119 = vadd.f32 0.0, %v1118
        %1120 = vdwg.mxu0
        %1121 = vrot.lane.b32.xlu0 %v642, 120
        %v1122 = vpop.permute.xlu0 %1121
        %1123 = vrot.lane.b32.xlu0 %v643, 120
        %v1124 = vpop.permute.xlu0 %1123
        %1125 = vrot.lane.b32.xlu0 %v613, 104
        %v1126 = vpop.permute.xlu0 %1125
        %1127 = vrot.lane.b32.xlu0 %v615, 104
        %v1128 = vpop.permute.xlu0 %1127
        %v1129 = vsel %vm652, %v1122, 0
        %v1131 = vsel %vm652, %v1124, 0
        %v1133 = vsel %vm652, %v1126, 0
        %v1135 = vsel %vm652, %v1128, 0
        %1137 = vmatpush.xpose.msra.mxu0 0.0
        %1138 = vmatpush.xpose.msra.mxu0 0.0
        %1139 = vmatpush.xpose.msra.mxu0 0.0
        %1140 = vmatpush.xpose.msra.mxu0 0.0
        %1141 = vmatpush.xpose.msra.mxu0 0.0
        %1142 = vmatpush.xpose.msra.mxu0 0.0
        %1143 = vmatpush.xpose.msra.mxu0 0.0
        %1144 = vmatpush.xpose.msra.mxu0 0.0
        %1145 = vmatpush.xpose.msra.mxu0 0.0
        %1146 = vmatpush.xpose.msra.mxu0 0.0
        %1147 = vmatpush.xpose.msra.mxu0 0.0
        %1148 = vmatpush.xpose.msra.mxu0 0.0
        %1149 = vmatpush.xpose.msra.mxu0 0.0
        %1150 = vmatpush.xpose.msra.mxu0 0.0
        %1151 = vmatpush.xpose.msra.mxu0 %v1135
        %1152 = vmatpush.xpose.msra.mxu0 %v1133
        %1153 = vmatmul.f32.gmra.mxu0 %v1129
        %v1154 = vpop.f32.mrf.mxu0
        %v1155 = vadd.f32 0.0, %v1154
        %1156 = vmatmul.f32.gmra.mxu0 %v1131
        %v1157 = vpop.f32.mrf.mxu0
        %v1158 = vadd.f32 0.0, %v1157
        %1159 = vdwg.mxu0
        %1160 = vrot.lane.b32.xlu0 %v644, 120
        %v1161 = vpop.permute.xlu0 %1160
        %1162 = vrot.lane.b32.xlu0 %v645, 120
        %v1163 = vpop.permute.xlu0 %1162
        %1164 = vrot.lane.b32.xlu0 %v618, 104
        %v1165 = vpop.permute.xlu0 %1164
        %1166 = vrot.lane.b32.xlu0 %v620, 104
        %v1167 = vpop.permute.xlu0 %1166
        %v1168 = vsel %vm652, %v1161, 0
        %v1170 = vsel %vm652, %v1163, 0
        %v1172 = vsel %vm652, %v1165, 0
        %v1174 = vsel %vm652, %v1167, 0
        %1176 = vmatpush.xpose.msra.mxu0 0.0
        %1177 = vmatpush.xpose.msra.mxu0 0.0
        %1178 = vmatpush.xpose.msra.mxu0 0.0
        %1179 = vmatpush.xpose.msra.mxu0 0.0
        %1180 = vmatpush.xpose.msra.mxu0 0.0
        %1181 = vmatpush.xpose.msra.mxu0 0.0
        %1182 = vmatpush.xpose.msra.mxu0 0.0
        %1183 = vmatpush.xpose.msra.mxu0 0.0
        %1184 = vmatpush.xpose.msra.mxu0 0.0
        %1185 = vmatpush.xpose.msra.mxu0 0.0
        %1186 = vmatpush.xpose.msra.mxu0 0.0
        %1187 = vmatpush.xpose.msra.mxu0 0.0
        %1188 = vmatpush.xpose.msra.mxu0 0.0
        %1189 = vmatpush.xpose.msra.mxu0 0.0
        %1190 = vmatpush.xpose.msra.mxu0 %v1174
        %1191 = vmatpush.xpose.msra.mxu0 %v1172
        %1192 = vmatmul.f32.gmra.mxu0 %v1168
        %v1193 = vpop.f32.mrf.mxu0
        %v1194 = vadd.f32 0.0, %v1193
        %1195 = vmatmul.f32.gmra.mxu0 %v1170
        %v1196 = vpop.f32.mrf.mxu0
        %v1197 = vadd.f32 0.0, %v1196
        %1198 = vdwg.mxu0
        %v1199 = vadd.f32 %v1077, %v624
        %v1200 = vadd.f32 %v1080, %v625
        %v1201 = vadd.f32 %v1116, %v628
        %v1202 = vadd.f32 %v1119, %v629
        %v1203 = vadd.f32 %v1155, %v632
        %v1204 = vadd.f32 %v1158, %v633
        %v1205 = vadd.f32 %v1194, %v636
        %v1206 = vadd.f32 %v1197, %v637
        %v1207 = vsel %vm359, %v1199, -inf
        %1208 = vmax.xlane.f32.xlu0 %v1207
        %v1209 = vpop.xlane.xlu0 %1208
        %v1210 = vsel %vm359, %v1200, -inf
        %1211 = vmax.xlane.f32.xlu0 %v1210
        %v1212 = vpop.xlane.xlu0 %1211
        %v1213 = vsel %vm359, %v1201, -inf
        %1214 = vmax.xlane.f32.xlu0 %v1213
        %v1215 = vpop.xlane.xlu0 %1214
        %v1216 = vsel %vm359, %v1202, -inf
        %1217 = vmax.xlane.f32.xlu0 %v1216
        %v1218 = vpop.xlane.xlu0 %1217
        %v1219 = vsel %vm359, %v1203, -inf
        %1220 = vmax.xlane.f32.xlu0 %v1219
        %v1221 = vpop.xlane.xlu0 %1220
        %v1222 = vsel %vm359, %v1204, -inf
        %1223 = vmax.xlane.f32.xlu0 %v1222
        %v1224 = vpop.xlane.xlu0 %1223
        %v1225 = vsel %vm359, %v1205, -inf
        %1226 = vmax.xlane.f32.xlu0 %v1225
        %v1227 = vpop.xlane.xlu0 %1226
        %v1228 = vsel %vm359, %v1206, -inf
        %1229 = vmax.xlane.f32.xlu0 %v1228
        %v1230 = vpop.xlane.xlu0 %1229
        %v1231 = vsub.f32 %v1199, %v1209
        %v1232 = vsub.f32 %v1200, %v1212
        %v1233 = vsub.f32 %v1201, %v1215
        %v1234 = vsub.f32 %v1202, %v1218
        %v1235 = vsub.f32 %v1203, %v1221
        %v1236 = vsub.f32 %v1204, %v1224
        %v1237 = vsub.f32 %v1205, %v1227
        %v1238 = vsub.f32 %v1206, %v1230
        %v1239 = vmul.f32 %v1231, 1.442695
        %v1240 = vpow.pop %v1239
        %v1241 = vmul.f32 %v1232, 1.442695
        %v1242 = vpow.pop %v1241
        %v1243 = vmul.f32 %v1233, 1.442695
        %v1244 = vpow.pop %v1243
        %v1245 = vmul.f32 %v1234, 1.442695
        %v1246 = vpow.pop %v1245
        %v1247 = vmul.f32 %v1235, 1.442695
        %v1248 = vpow.pop %v1247
        %v1249 = vmul.f32 %v1236, 1.442695
        %v1250 = vpow.pop %v1249
        %v1251 = vmul.f32 %v1237, 1.442695
        %v1252 = vpow.pop %v1251
        %v1253 = vmul.f32 %v1238, 1.442695
        %v1254 = vpow.pop %v1253
        %v1255 = vsel %vm359, %v1240, 0.0
        %1256 = vadd.xlane.f32.xlu0 %v1255
        %v1257 = vpop.xlane.xlu0 %1256
        %v1258 = vsel %vm359, %v1242, 0.0
        %1259 = vadd.xlane.f32.xlu0 %v1258
        %v1260 = vpop.xlane.xlu0 %1259
        %v1261 = vsel %vm359, %v1244, 0.0
        %1262 = vadd.xlane.f32.xlu0 %v1261
        %v1263 = vpop.xlane.xlu0 %1262
        %v1264 = vsel %vm359, %v1246, 0.0
        %1265 = vadd.xlane.f32.xlu0 %v1264
        %v1266 = vpop.xlane.xlu0 %1265
        %v1267 = vsel %vm359, %v1248, 0.0
        %1268 = vadd.xlane.f32.xlu0 %v1267
        %v1269 = vpop.xlane.xlu0 %1268
        %v1270 = vsel %vm359, %v1250, 0.0
        %1271 = vadd.xlane.f32.xlu0 %v1270
        %v1272 = vpop.xlane.xlu0 %1271
        %v1273 = vsel %vm359, %v1252, 0.0
        %1274 = vadd.xlane.f32.xlu0 %v1273
        %v1275 = vpop.xlane.xlu0 %1274
        %v1276 = vsel %vm359, %v1254, 0.0
        %1277 = vadd.xlane.f32.xlu0 %v1276
        %v1278 = vpop.xlane.xlu0 %1277
        %v1279 = vrcp.pop %v1257
        %v1280 = vrcp.pop %v1260
        %v1281 = vrcp.pop %v1263
        %v1282 = vrcp.pop %v1266
        %v1283 = vrcp.pop %v1269
        %v1284 = vrcp.pop %v1272
        %v1285 = vrcp.pop %v1275
        %v1286 = vrcp.pop %v1278
        %v1287 = vmul.f32 %v1240, %v1279
        %v1288 = vmul.f32 %v1242, %v1280
        %v1289 = vmul.f32 %v1244, %v1281
        %v1290 = vmul.f32 %v1246, %v1282
        %v1291 = vmul.f32 %v1248, %v1283
        %v1292 = vmul.f32 %v1250, %v1284
        %v1293 = vmul.f32 %v1252, %v1285
        %v1294 = vmul.f32 %v1254, %v1286
        %v1295 = vadd.f32 %v899, %v1287
        %v1296 = vadd.f32 %v900, %v1289
        %v1297 = vadd.f32 %v901, %v1291
        %v1298 = vadd.f32 %v902, %v1293
        %1299 = vrot.lane.b32.xlu0 %v603, 88
        %v1300 = vpop.permute.xlu0 %1299
        %1301 = vrot.lane.b32.xlu0 %v605, 88
        %v1302 = vpop.permute.xlu0 %1301
        %v1306 = vsel %vm359, %v1287, 0
        %v1309 = vsel %vm359, %v1288, 0
        %1311 = vmatpush.msra.mxu0 0.0
        %1312 = vmatpush.msra.mxu0 0.0
        %1313 = vmatpush.msra.mxu0 0.0
        %1314 = vmatpush.msra.mxu0 0.0
        %1315 = vmatpush.msra.mxu0 0.0
        %1316 = vmatpush.msra.mxu0 0.0
        %1317 = vmatpush.msra.mxu0 0.0
        %1318 = vmatpush.msra.mxu0 0.0
        %1319 = vmatpush.msra.mxu0 0.0
        %1320 = vmatpush.msra.mxu0 0.0
        %1321 = vmatpush.msra.mxu0 0.0
        %1322 = vmatpush.msra.mxu0 0.0
        %1323 = vmatpush.msra.mxu0 0.0
        %1324 = vmatpush.msra.mxu0 0.0
        %1325 = vmatpush.msra.mxu0 %v1302
        %1326 = vmatpush.msra.mxu0 %v1300
        %1327 = vmatmul.f32.gmra.mxu0 %v1306
        %v1328 = vpop.f32.mrf.mxu0
        %v1329 = vadd.f32 0.0, %v1328
        %1330 = vmatmul.f32.gmra.mxu0 %v1309
        %v1331 = vpop.f32.mrf.mxu0
        %v1332 = vadd.f32 0.0, %v1331
        %1333 = vdwg.mxu0
        %1334 = vrot.lane.b32.xlu0 %v608, 88
        %v1335 = vpop.permute.xlu0 %1334
        %1336 = vrot.lane.b32.xlu0 %v610, 88
        %v1337 = vpop.permute.xlu0 %1336
        %v1341 = vsel %vm359, %v1289, 0
        %v1344 = vsel %vm359, %v1290, 0
        %1346 = vmatpush.msra.mxu0 0.0
        %1347 = vmatpush.msra.mxu0 0.0
        %1348 = vmatpush.msra.mxu0 0.0
        %1349 = vmatpush.msra.mxu0 0.0
        %1350 = vmatpush.msra.mxu0 0.0
        %1351 = vmatpush.msra.mxu0 0.0
        %1352 = vmatpush.msra.mxu0 0.0
        %1353 = vmatpush.msra.mxu0 0.0
        %1354 = vmatpush.msra.mxu0 0.0
        %1355 = vmatpush.msra.mxu0 0.0
        %1356 = vmatpush.msra.mxu0 0.0
        %1357 = vmatpush.msra.mxu0 0.0
        %1358 = vmatpush.msra.mxu0 0.0
        %1359 = vmatpush.msra.mxu0 0.0
        %1360 = vmatpush.msra.mxu0 %v1337
        %1361 = vmatpush.msra.mxu0 %v1335
        %1362 = vmatmul.f32.gmra.mxu0 %v1341
        %v1363 = vpop.f32.mrf.mxu0
        %v1364 = vadd.f32 0.0, %v1363
        %1365 = vmatmul.f32.gmra.mxu0 %v1344
        %v1366 = vpop.f32.mrf.mxu0
        %v1367 = vadd.f32 0.0, %v1366
        %1368 = vdwg.mxu0
        %1369 = vrot.lane.b32.xlu0 %v613, 88
        %v1370 = vpop.permute.xlu0 %1369
        %1371 = vrot.lane.b32.xlu0 %v615, 88
        %v1372 = vpop.permute.xlu0 %1371
        %v1376 = vsel %vm359, %v1291, 0
        %v1379 = vsel %vm359, %v1292, 0
        %1381 = vmatpush.msra.mxu0 0.0
        %1382 = vmatpush.msra.mxu0 0.0
        %1383 = vmatpush.msra.mxu0 0.0
        %1384 = vmatpush.msra.mxu0 0.0
        %1385 = vmatpush.msra.mxu0 0.0
        %1386 = vmatpush.msra.mxu0 0.0
        %1387 = vmatpush.msra.mxu0 0.0
        %1388 = vmatpush.msra.mxu0 0.0
        %1389 = vmatpush.msra.mxu0 0.0
        %1390 = vmatpush.msra.mxu0 0.0
        %1391 = vmatpush.msra.mxu0 0.0
        %1392 = vmatpush.msra.mxu0 0.0
        %1393 = vmatpush.msra.mxu0 0.0
        %1394 = vmatpush.msra.mxu0 0.0
        %1395 = vmatpush.msra.mxu0 %v1372
        %1396 = vmatpush.msra.mxu0 %v1370
        %1397 = vmatmul.f32.gmra.mxu0 %v1376
        %v1398 = vpop.f32.mrf.mxu0
        %v1399 = vadd.f32 0.0, %v1398
        %1400 = vmatmul.f32.gmra.mxu0 %v1379
        %v1401 = vpop.f32.mrf.mxu0
        %v1402 = vadd.f32 0.0, %v1401
        %1403 = vdwg.mxu0
        %1404 = vrot.lane.b32.xlu0 %v618, 88
        %v1405 = vpop.permute.xlu0 %1404
        %1406 = vrot.lane.b32.xlu0 %v620, 88
        %v1407 = vpop.permute.xlu0 %1406
        %v1411 = vsel %vm359, %v1293, 0
        %v1414 = vsel %vm359, %v1294, 0
        %1416 = vmatpush.msra.mxu0 0.0
        %1417 = vmatpush.msra.mxu0 0.0
        %1418 = vmatpush.msra.mxu0 0.0
        %1419 = vmatpush.msra.mxu0 0.0
        %1420 = vmatpush.msra.mxu0 0.0
        %1421 = vmatpush.msra.mxu0 0.0
        %1422 = vmatpush.msra.mxu0 0.0
        %1423 = vmatpush.msra.mxu0 0.0
        %1424 = vmatpush.msra.mxu0 0.0
        %1425 = vmatpush.msra.mxu0 0.0
        %1426 = vmatpush.msra.mxu0 0.0
        %1427 = vmatpush.msra.mxu0 0.0
        %1428 = vmatpush.msra.mxu0 0.0
        %1429 = vmatpush.msra.mxu0 0.0
        %1430 = vmatpush.msra.mxu0 %v1407
        %1431 = vmatpush.msra.mxu0 %v1405
        %1432 = vmatmul.f32.gmra.mxu0 %v1411
        %v1433 = vpop.f32.mrf.mxu0
        %v1434 = vadd.f32 0.0, %v1433
        %1435 = vmatmul.f32.gmra.mxu0 %v1414
        %v1436 = vpop.f32.mrf.mxu0
        %v1437 = vadd.f32 0.0, %v1436
        %1438 = vdwg.mxu0
        %1447 = vrot.lane.b32.xlu0 %v1329, 8
        %v1448 = vpop.permute.xlu0 %1447
        %1449 = vrot.lane.b32.xlu0 %v1332, 8
        %v1450 = vpop.permute.xlu0 %1449
        %1451 = vrot.lane.b32.xlu0 %v1364, 8
        %v1452 = vpop.permute.xlu0 %1451
        %1453 = vrot.lane.b32.xlu0 %v1367, 8
        %v1454 = vpop.permute.xlu0 %1453
        %1455 = vrot.lane.b32.xlu0 %v1399, 8
        %v1456 = vpop.permute.xlu0 %1455
        %1457 = vrot.lane.b32.xlu0 %v1402, 8
        %v1458 = vpop.permute.xlu0 %1457
        %1459 = vrot.lane.b32.xlu0 %v1434, 8
        %v1460 = vpop.permute.xlu0 %1459
        %1461 = vrot.lane.b32.xlu0 %v1437, 8
        %v1462 = vpop.permute.xlu0 %1461
        %v1471 = vsel %vm652, %v933, %v1448
        %v1472 = vsel %vm652, %v936, %v1450
        %v1473 = vsel %vm652, %v968, %v1452
        %v1474 = vsel %vm652, %v971, %v1454
        %v1475 = vsel %vm652, %v1003, %v1456
        %v1476 = vsel %vm652, %v1006, %v1458
        %v1477 = vsel %vm652, %v1038, %v1460
        %v1478 = vsel %vm652, %v1041, %v1462
        %v1479 = vpack.c.bf16 %v1472, %v1471
        %v1480 = vpack.c.bf16 %v1474, %v1473
        %v1481 = vpack.c.bf16 %v1476, %v1475
        %v1482 = vpack.c.bf16 %v1478, %v1477
        %v1483 = vld [vmem:[%s5] sm:$0xf]
        %v1484 = vld [vmem:[%s5 + $0x4] sm:$0xf]
        %v1485 = vld [vmem:[%s6] sm:$0x1]
        %v1487 = vperm.slane %v1485, 0
        %v1491 = vunpack.c.l.b16 %v1483
        %v1492 = vunpack.c.l.b16 %v1484
        %v1493 = vpack.c.b16 %v1492, %v1491
        %v1496 = vsel %vm359, %v1479, 0
        %v1499 = vsel %vm359, %v1480, 0
        %v1502 = vsel %vm359, %v1481, 0
        %v1505 = vsel %vm359, %v1482, 0
        %1507 = vmatpush.bf16.msra.mxu0 0
        %1508 = vmatpush.bf16.msra.mxu0 0
        %1509 = vmatpush.bf16.msra.mxu0 0
        %1510 = vmatpush.bf16.msra.mxu0 0
        %1511 = vmatpush.bf16.msra.mxu0 0
        %1512 = vmatpush.bf16.msra.mxu0 0
        %1513 = vmatpush.bf16.msra.mxu0 0
        %1514 = vmatpush.bf16.msra.mxu0 %v1493
        %1515 = vmatmul.bf16.gmra.mxu0 %v1496
        %v1516 = vpop.f32.mrf.mxu0
        %v1517 = vadd.f32 %v1487, %v1516
        %v1518 = vpop.f32.mrf.mxu0
        %v1519 = vadd.f32 %v1487, %v1518
        %1520 = vmatmul.bf16.gmra.mxu0 %v1499
        %v1521 = vpop.f32.mrf.mxu0
        %v1522 = vadd.f32 %v1487, %v1521
        %v1523 = vpop.f32.mrf.mxu0
        %v1524 = vadd.f32 %v1487, %v1523
        %1525 = vmatmul.bf16.gmra.mxu0 %v1502
        %v1526 = vpop.f32.mrf.mxu0
        %v1527 = vadd.f32 %v1487, %v1526
        %v1528 = vpop.f32.mrf.mxu0
        %v1529 = vadd.f32 %v1487, %v1528
        %1530 = vmatmul.bf16.gmra.mxu0 %v1505
        %v1531 = vpop.f32.mrf.mxu0
        %v1532 = vadd.f32 %v1487, %v1531
        %v1533 = vpop.f32.mrf.mxu0
        %v1534 = vadd.f32 %v1487, %v1533
        %1535 = vdwg.mxu0
        %v1536 = vadd.f32 %v1517, %v349
        %v1537 = vadd.f32 %v1519, %v350
        %v1538 = vadd.f32 %v1522, %v351
        %v1539 = vadd.f32 %v1524, %v352
        %v1540 = vadd.f32 %v1527, %v353
        %v1541 = vadd.f32 %v1529, %v354
        %v1542 = vadd.f32 %v1532, %v355
        %v1543 = vadd.f32 %v1534, %v356
        %1544 = vst.msk [vmem:[%s345] sm:$0xff] %vm359, %v1536
        %1545 = vst.msk [vmem:[%s345 + $0x8] sm:$0xff] %vm359, %v1537
        %1546 = vst.msk [vmem:[%s345 + $0x10] sm:$0xff] %vm359, %v1538
        %1547 = vst.msk [vmem:[%s345 + $0x18] sm:$0xff] %vm359, %v1539
        %1548 = vst.msk [vmem:[%s345 + $0x20] sm:$0xff] %vm359, %v1540
        %1549 = vst.msk [vmem:[%s345 + $0x28] sm:$0xff] %vm359, %v1541
        %1550 = vst.msk [vmem:[%s345 + $0x30] sm:$0xff] %vm359, %v1542
        %1551 = vst.msk [vmem:[%s345 + $0x38] sm:$0xff] %vm359, %v1543
        %v1552 = vmul.f32 %v1295, 0.5
        %v1553 = vmul.f32 %v1296, 0.5
        %v1554 = vmul.f32 %v1297, 0.5
        %v1555 = vmul.f32 %v1298, 0.5
        %v1560 = vrot.slane %v1553, 7
        %vm1561 = vcmask 1041409
        %v1562 = vsel %vm1561, %v1560, %v1552
        %v1563 = vrot.slane %v1554, 6
        %vm1564 = vcmask 1042434
        %v1565 = vsel %vm1564, %v1563, %v1562
        %v1566 = vrot.slane %v1555, 5
        %vm1567 = vcmask 1043459
        %v1568 = vsel %vm1567, %v1566, %v1565
        %v1570 = vsel %vm359, %v1568, 0.0
        %v1572 = vrot.slane %v1570, 1
        %v1573 = vrot.slane %v1570, 2
        %v1574 = vrot.slane %v1570, 3
        %1578 = vst [vmem:[%s334] sm:$0x1] %v1570
        %1579 = vst [vmem:[%s334 + $0x1] sm:$0x1] %v1572
        %1580 = vst [vmem:[%s334 + $0x2] sm:$0x1] %v1573
        %1581 = vst [vmem:[%s334 + $0x3] sm:$0x1] %v1574
        %s1582 = smul.u32 8, %s24
        %p1583 = scmp.lt.s32.totalorder %s1582, 15
        %s1584 = scalar_select %p1583, %s1582, 15
        %s1585 = smul.addr %s1584, 8
        %s1586 = scalar_lea.vmem %s8, %s1585
        %s1587 = sand.u32 %s231, 1
        %s1588 = scalar_lea.sflag [#allocation3], %s1587
        %s1589 = sand.u32 %s231, 1
        %s1590 = smul.addr %s1589, 4
        %s1591 = scalar_lea.vmem [#allocation2], %s1590
        // Predicated region
        $region53: #{swin_forward.15} parent=51 // pred_check
          %p1592 = pneg %p215
        $region54: #{swin_forward.15} parent=51 // pred_check_branch
          %1594 = sbr.rel (%p1592) target = $region56
        $region55: #{swin_forward.15} parent=51 // pred_region
          %s1595 = smul.u32 8, %s24
        $region56: #{swin_forward.15} parent=51 // pred_fallthru
          _
        // Predicated region
        $region57: #{swin_forward.15} parent=51 // pred_check
          %p1596 = pneg %p241
        $region58: #{swin_forward.15} parent=51 // pred_check_branch
          %1598 = sbr.rel (%p1596) target = $region60
        $region59: #{swin_forward.15} parent=51 // pred_region
          %s1599 = smul.u32 4, %s24
          %1601 = vsyncadd %s1588, 0
          %s1602 = scalar_lea.hbm %s9, %s1599
          %s1603 = sshll.u32 %s1591, 4
          %s1604 = int_to_ptr.vmem [resolvable:$true] %s1603
          %s1605 = sshll.u32 %s1602, 4
          %s1606 = int_to_ptr.hbm [resolvable:$true] %s1605
          %1611 = dma.vmem_to_hbm [thread:$0]  %s1604, 64, %s1606, %s1588, 16, 16, 1
        $region60: #{swin_forward.15} parent=51 // pred_fallthru
          _
      $region52: #{swin_forward.15} parent=5 // pred_fallthru
        _
      %p1612 = scmp.le.s32.totalorder 2, %s19
      // Predicated region
      $region61: #{swin_forward.15} parent=5 // pred_check
        %p1613 = pneg %p1612
      $region62: #{swin_forward.15} parent=5 // pred_check_branch
        %1615 = sbr.rel (%p1613) target = $region64
      $region63: #{swin_forward.15} parent=5 // pred_region
        %s1616 = ssub.s32 %s19, 2
        // Predicated region
        $region65: #{swin_forward.15} parent=63 // pred_check
          %p1617 = pneg %p221
        $region66: #{swin_forward.15} parent=63 // pred_check_branch
          %1619 = sbr.rel (%p1617) target = $region68
        $region67: #{swin_forward.15} parent=63 // pred_region
          %s1620 = smul.u32 8, %s25
          %p1621 = scmp.lt.s32.totalorder %s1620, 15
          %s1622 = scalar_select %p1621, %s1620, 15
          %s1623 = smul.addr %s1622, 8
          %s1624 = scalar_lea.vmem %s8, %s1623
        $region68: #{swin_forward.15} parent=63 // pred_fallthru
          _
        // Predicated region
        $region69: #{swin_forward.15} parent=63 // pred_check
          %p1625 = pneg %p247
        $region70: #{swin_forward.15} parent=63 // pred_check_branch
          %1627 = sbr.rel (%p1625) target = $region72
        $region71: #{swin_forward.15} parent=63 // pred_region
          %s1628 = sand.u32 %s232, 1
          %s1629 = scalar_lea.sflag [#allocation3], %s1628
          %s1630 = sand.u32 %s232, 1
          %s1631 = smul.addr %s1630, 4
          %s1632 = scalar_lea.vmem [#allocation2], %s1631
          %1634 = dma.done %s1629, 64
        $region72: #{swin_forward.15} parent=63 // pred_fallthru
          _
      $region64: #{swin_forward.15} parent=5 // pred_fallthru
        _
    $region6: #{swin_forward.15} parent=1 // loop_footer
      %s23 = sadd.s32 1, %s19
    $region7: #{swin_forward.15} parent=1 // loop_footer_branch
      %18 = sbr.rel target = $region3
    $region8: #{swin_forward.15} parent=1 // loop_exit
      _
    %1635 = vsyncpa [#allocation3], 1
    %s1636 = scalar_lea.sflag [#allocation3], 1
    %1637 = vsyncpa %s1636, 1

// kernel: swin_forward.17
$region0: #{swin_forward.17}
  #allocation0 [shape = 'u32[]', space=smem, size = 0x4, offset = 0x4, fixed_abs, tag = 'smem constant byte address 0x4 - core index']
  #allocation1 [shape = 'u32[72,128]{1,0:T(1,128)}', space=vmem, size = 0x9000, scoped, tag = 'internal scratch']
  %s0 = inlined_call_operand.vmem [shape: f32[32,64], index: 0, kind: input, shape index: {}]
  %s1 = inlined_call_operand.vmem [shape: f32[1,64], index: 1, kind: input, shape index: {}]
  %s2 = inlined_call_operand.vmem [shape: f32[1,64], index: 2, kind: input, shape index: {}]
  %s3 = inlined_call_operand.vmem [shape: bf16[64,32], index: 3, kind: input, shape index: {}]
  %s4 = inlined_call_operand.vmem [shape: f32[1,32], index: 4, kind: input, shape index: {}]
  %s5 = inlined_call_operand.vmem [shape: f32[32,32], index: 5, kind: output, shape index: {}]
  %s6 = sld [smem:[#allocation0]]
  $region53: #{swin_forward.17} parent=0
    _
  %s8 = ssub.s32 1, %s6
  %s9 = scalar_select 0, %s8, %s6
  loop: start=0, step=1, limit=4
  $region2: #{swin_forward.17} parent=0 // loop_pre_header
    _
  $region3: #{swin_forward.17} parent=0 // loop_header
    %s11 = sphi 0, %s15
    %p12 = scmp.ge.s32.totalorder %s11, 4
    %s21 = sphi 0, %s23
    %s24 = sphi 0, %s21
    %s25 = sphi 0, %s24
    %s41 = sphi 0, %s25
    %s45 = sphi 0, %s45
    %s47 = sphi 0, %s45
    %s48 = sphi 0, %s47
    %s62 = sphi 0, %s48
    %s66 = sphi 0, %s66
    %s68 = sphi 0, %s66
    %s69 = sphi 0, %s68
    %s83 = sphi 0, %s69
    %s87 = sphi 0, %s87
    %s89 = sphi 0, %s87
    %s90 = sphi 0, %s89
    %s104 = sphi 0, %s90
    %s108 = sphi 0, %s108
    %s110 = sphi 0, %s108
    %s111 = sphi 0, %s110
    %s125 = sphi 0, %s111
    %s131 = sphi 0, %s133
    %s134 = sphi 0, %s131
    %s135 = sphi 0, %s134
    %s151 = sphi 0, %s135
  $region4: #{swin_forward.17} parent=0 // loop_header_branch
    %14 = sbr.rel (%p12) target = $region8
  $region5: #{swin_forward.17} parent=0 // loop_body
    %s16 = ssub.s32 %s11, 1
    %s17 = ssub.s32 %s11, 2
    %s18 = sadd.s32 %s11, 1
    %s19 = ssub.s32 %s11, %s18
    %p20 = scmp.eq.s32.totalorder %s19, 0
    %s22 = sadd.s32 %s21, 1
    %s23 = scalar_select %p20, %s21, %s22
    %p26 = pneg %p20
    %p27 = scmp.eq.s32.totalorder %s11, 1
    %p28 = por %p26, %p27
    %p29 = scmp.ne.s32.totalorder %s21, %s24
    %p30 = scmp.eq.s32.totalorder %s11, 0
    %p31 = por %p29, %p30
    %p32 = scmp.ne.s32.totalorder %s21, %s24
    %p33 = scmp.eq.s32.totalorder %s16, 1
    %p34 = por %p32, %p33
    %p35 = scmp.ne.s32.totalorder %s24, %s25
    %p36 = scmp.eq.s32.totalorder %s16, 0
    %p37 = por %p35, %p36
    %p38 = scmp.ne.s32.totalorder %s24, %s25
    %p39 = scmp.eq.s32.totalorder %s17, 1
    %p40 = por %p38, %p39
    %p42 = scmp.ne.s32.totalorder %s25, %s41
    %p43 = scmp.eq.s32.totalorder %s17, 0
    %p44 = por %p42, %p43
    %s46 = sadd.s32 %s45, 1
    %p49 = scmp.eq.s32.totalorder %s11, 1
    %p50 = scmp.ne.s32.totalorder %s45, %s47
    %p51 = scmp.eq.s32.totalorder %s11, 0
    %p52 = por %p50, %p51
    %p53 = scmp.ne.s32.totalorder %s45, %s47
    %p54 = scmp.eq.s32.totalorder %s16, 1
    %p55 = por %p53, %p54
    %p56 = scmp.ne.s32.totalorder %s47, %s48
    %p57 = scmp.eq.s32.totalorder %s16, 0
    %p58 = por %p56, %p57
    %p59 = scmp.ne.s32.totalorder %s47, %s48
    %p60 = scmp.eq.s32.totalorder %s17, 1
    %p61 = por %p59, %p60
    %p63 = scmp.ne.s32.totalorder %s48, %s62
    %p64 = scmp.eq.s32.totalorder %s17, 0
    %p65 = por %p63, %p64
    %s67 = sadd.s32 %s66, 1
    %p70 = scmp.eq.s32.totalorder %s11, 1
    %p71 = scmp.ne.s32.totalorder %s66, %s68
    %p72 = scmp.eq.s32.totalorder %s11, 0
    %p73 = por %p71, %p72
    %p74 = scmp.ne.s32.totalorder %s66, %s68
    %p75 = scmp.eq.s32.totalorder %s16, 1
    %p76 = por %p74, %p75
    %p77 = scmp.ne.s32.totalorder %s68, %s69
    %p78 = scmp.eq.s32.totalorder %s16, 0
    %p79 = por %p77, %p78
    %p80 = scmp.ne.s32.totalorder %s68, %s69
    %p81 = scmp.eq.s32.totalorder %s17, 1
    %p82 = por %p80, %p81
    %p84 = scmp.ne.s32.totalorder %s69, %s83
    %p85 = scmp.eq.s32.totalorder %s17, 0
    %p86 = por %p84, %p85
    %s88 = sadd.s32 %s87, 1
    %p91 = scmp.eq.s32.totalorder %s11, 1
    %p92 = scmp.ne.s32.totalorder %s87, %s89
    %p93 = scmp.eq.s32.totalorder %s11, 0
    %p94 = por %p92, %p93
    %p95 = scmp.ne.s32.totalorder %s87, %s89
    %p96 = scmp.eq.s32.totalorder %s16, 1
    %p97 = por %p95, %p96
    %p98 = scmp.ne.s32.totalorder %s89, %s90
    %p99 = scmp.eq.s32.totalorder %s16, 0
    %p100 = por %p98, %p99
    %p101 = scmp.ne.s32.totalorder %s89, %s90
    %p102 = scmp.eq.s32.totalorder %s17, 1
    %p103 = por %p101, %p102
    %p105 = scmp.ne.s32.totalorder %s90, %s104
    %p106 = scmp.eq.s32.totalorder %s17, 0
    %p107 = por %p105, %p106
    %s109 = sadd.s32 %s108, 1
    %p112 = scmp.eq.s32.totalorder %s11, 1
    %p113 = scmp.ne.s32.totalorder %s108, %s110
    %p114 = scmp.eq.s32.totalorder %s11, 0
    %p115 = por %p113, %p114
    %p116 = scmp.ne.s32.totalorder %s108, %s110
    %p117 = scmp.eq.s32.totalorder %s16, 1
    %p118 = por %p116, %p117
    %p119 = scmp.ne.s32.totalorder %s110, %s111
    %p120 = scmp.eq.s32.totalorder %s16, 0
    %p121 = por %p119, %p120
    %p122 = scmp.ne.s32.totalorder %s110, %s111
    %p123 = scmp.eq.s32.totalorder %s17, 1
    %p124 = por %p122, %p123
    %p126 = scmp.ne.s32.totalorder %s111, %s125
    %p127 = scmp.eq.s32.totalorder %s17, 0
    %p128 = por %p126, %p127
    %s129 = ssub.s32 %s11, %s18
    %p130 = scmp.eq.s32.totalorder %s129, 0
    %s132 = sadd.s32 %s131, 1
    %s133 = scalar_select %p130, %s131, %s132
    %p136 = pneg %p130
    %p137 = scmp.eq.s32.totalorder %s11, 1
    %p138 = por %p136, %p137
    %p139 = scmp.ne.s32.totalorder %s131, %s134
    %p140 = scmp.eq.s32.totalorder %s11, 0
    %p141 = por %p139, %p140
    %p142 = scmp.ne.s32.totalorder %s131, %s134
    %p143 = scmp.eq.s32.totalorder %s16, 1
    %p144 = por %p142, %p143
    %p145 = scmp.ne.s32.totalorder %s134, %s135
    %p146 = scmp.eq.s32.totalorder %s16, 0
    %p147 = por %p145, %p146
    %p148 = scmp.ne.s32.totalorder %s134, %s135
    %p149 = scmp.eq.s32.totalorder %s17, 1
    %p150 = por %p148, %p149
    %p152 = scmp.ne.s32.totalorder %s135, %s151
    %p153 = scmp.eq.s32.totalorder %s17, 0
    %p154 = por %p152, %p153
    %p155 = scmp.le.s32.totalorder 1, %s11
    %p156 = scmp.lt.s32.totalorder %s11, 3
    %p157 = pnand %p155, %p156
    %p158 = pneg %p157
    // Predicated region
    $region9: #{swin_forward.17} parent=5 // pred_check
      _
    $region10: #{swin_forward.17} parent=5 // pred_check_branch
      %160 = sbr.rel (%p157) target = $region12
    $region11: #{swin_forward.17} parent=5 // pred_region
      %s161 = ssub.s32 %s11, 1
      // Predicated region
      $region13: #{swin_forward.17} parent=11 // pred_check
        %p162 = pneg %p58
      $region14: #{swin_forward.17} parent=11 // pred_check_branch
        %164 = sbr.rel (%p162) target = $region16
      $region15: #{swin_forward.17} parent=11 // pred_region
        _
      $region16: #{swin_forward.17} parent=11 // pred_fallthru
        _
      // Predicated region
      $region17: #{swin_forward.17} parent=11 // pred_check
        %p165 = pneg %p79
      $region18: #{swin_forward.17} parent=11 // pred_check_branch
        %167 = sbr.rel (%p165) target = $region20
      $region19: #{swin_forward.17} parent=11 // pred_region
        _
      $region20: #{swin_forward.17} parent=11 // pred_fallthru
        _
      // Predicated region
      $region21: #{swin_forward.17} parent=11 // pred_check
        %p168 = pneg %p100
      $region22: #{swin_forward.17} parent=11 // pred_check_branch
        %170 = sbr.rel (%p168) target = $region24
      $region23: #{swin_forward.17} parent=11 // pred_region
        _
      $region24: #{swin_forward.17} parent=11 // pred_fallthru
        _
      // Predicated region
      $region25: #{swin_forward.17} parent=11 // pred_check
        %p171 = pneg %p121
      $region26: #{swin_forward.17} parent=11 // pred_check_branch
        %173 = sbr.rel (%p171) target = $region28
      $region27: #{swin_forward.17} parent=11 // pred_region
        _
      $region28: #{swin_forward.17} parent=11 // pred_fallthru
        _
    $region12: #{swin_forward.17} parent=5 // pred_fallthru
      _
    %p174 = scmp.lt.s32.totalorder %s11, 2
    // Predicated region
    $region29: #{swin_forward.17} parent=5 // pred_check
      %p175 = pneg %p174
    $region30: #{swin_forward.17} parent=5 // pred_check_branch
      %177 = sbr.rel (%p175) target = $region32
    $region31: #{swin_forward.17} parent=5 // pred_region
      // Predicated region
      $region33: #{swin_forward.17} parent=31 // pred_check
        %p178 = pneg %p31
      $region34: #{swin_forward.17} parent=31 // pred_check_branch
        %180 = sbr.rel (%p178) target = $region36
      $region35: #{swin_forward.17} parent=31 // pred_region
        %s181 = smul.u32 2, %s11
        %p182 = scmp.lt.s32.totalorder %s181, 3
        %s183 = scalar_select %p182, %s181, 3
        %s184 = smul.addr %s183, 8
        %s185 = scalar_lea.vmem %s0, %s184
        %s186 = smul.u32 2, %s11
      $region36: #{swin_forward.17} parent=31 // pred_fallthru
        _
    $region32: #{swin_forward.17} parent=5 // pred_fallthru
      _
    %p187 = scmp.le.s32.totalorder 1, %s11
    %p188 = scmp.lt.s32.totalorder %s11, 3
    %p189 = pnand %p187, %p188
    %p190 = pneg %p189
    // Predicated region
    $region37: #{swin_forward.17} parent=5 // pred_check
      _
    $region38: #{swin_forward.17} parent=5 // pred_check_branch
      %192 = sbr.rel (%p189) target = $region40
    $region39: #{swin_forward.17} parent=5 // pred_region
      %s193 = ssub.s32 %s11, 1
      %s194 = smul.u32 2, %s16
      %p195 = scmp.lt.s32.totalorder %s194, 3
      %s196 = scalar_select %p195, %s194, 3
      %s197 = smul.addr %s196, 8
      %s198 = scalar_lea.vmem %s0, %s197
      %p199 = pneg %p37
      %p200 = pneg %p34
      %p201 = pneg %p58
      %p202 = pneg %p55
      %p203 = pneg %p79
      %p204 = pneg %p76
      %p205 = pneg %p100
      %p206 = pneg %p97
      %p207 = pneg %p121
      %p208 = pneg %p118
      %p209 = pneg %p147
      %p210 = pneg %p144
      %s211 = smul.u32 2, %s16
      %p212 = scmp.lt.s32.totalorder %s211, 3
      %s213 = scalar_select %p212, %s211, 3
      %s214 = smul.addr %s213, 8
      %s215 = scalar_lea.vmem %s5, %s214
      %s216 = smul.u32 2, %s16
      %p217 = scmp.lt.s32.totalorder %s216, 3
      %s218 = scalar_select %p217, %s216, 3
      %s219 = smul.addr %s218, 8
      %s220 = scalar_lea.vmem %s0, %s219
      %s221 = smul.u32 2, %s16
      %s222 = smul.u32 2, %s16
      %p223 = scmp.lt.s32.totalorder %s222, 3
      %s224 = scalar_select %p223, %s222, 3
      %s225 = smul.addr %s224, 8
      %s226 = scalar_lea.vmem %s5, %s225
      %s227 = smul.u32 2, %s16
      %v229 = vld [vmem:[%s220] sm:$0xff]
      %v230 = vld [vmem:[%s220 + $0x8] sm:$0xff]
      %v231 = vld [vmem:[%s1] sm:$0x1]
      %v232 = vld [vmem:[%s2] sm:$0x1]
      %vm233 = vcmask 523264
      %v234 = vsel %vm233, %v229, 0.0
      %235 = vadd.xlane.f32.xlu0 %v234
      %v236 = vpop.xlane.xlu0 %235
      %v237 = vsel %vm233, %v230, 0.0
      %238 = vadd.xlane.f32.xlu0 %v237
      %v239 = vpop.xlane.xlu0 %238
      %v240 = vrcp.pop 64.0
      %v241 = vmul.f32 64.0, %v240
      %v242 = vsub.f32 1.0, %v241
      %v243 = vmul.f32 %v240, %v242
      %v244 = vadd.f32 %v240, %v243
      %vm245 = vweird.f32 %v240
      %v246 = vsel %vm245, %v240, %v244
      %v247 = vmul.f32 %v236, %v246
      %v248 = vmul.f32 %v239, %v246
      %v249 = vsub.f32 %v229, %v247
      %v250 = vsub.f32 %v230, %v248
      %v251 = vmul.f32 %v249, %v249
      %v252 = vmul.f32 %v250, %v250
      %v253 = vsel %vm233, %v251, 0.0
      %254 = vadd.xlane.f32.xlu0 %v253
      %v255 = vpop.xlane.xlu0 %254
      %v256 = vsel %vm233, %v252, 0.0
      %257 = vadd.xlane.f32.xlu0 %v256
      %v258 = vpop.xlane.xlu0 %257
      %v259 = vmul.f32 %v255, %v246
      %v260 = vmul.f32 %v258, %v246
      %v261 = vadd.f32 %v259, 1e-05
      %v262 = vadd.f32 %v260, 1e-05
      %v263 = vrsqrt.pop %v261
      %v264 = vmul.f32 %v263, %v261
      %v265 = vmul.f32 %v264, %v263
      %v266 = vmul.f32 0.5, %v265
      %v267 = vsub.f32 1.5, %v266
      %v268 = vmul.f32 %v263, %v267
      %vm269 = vweird.f32 %v261
      %vm270 = vweird.f32 %v263
      %vm271 = vmor %vm269, %vm270
      %v272 = vsel %vm271, %v263, %v268
      %v273 = vrsqrt.pop %v262
      %v274 = vmul.f32 %v273, %v262
      %v275 = vmul.f32 %v274, %v273
      %v276 = vmul.f32 0.5, %v275
      %v277 = vsub.f32 1.5, %v276
      %v278 = vmul.f32 %v273, %v277
      %vm279 = vweird.f32 %v262
      %vm280 = vweird.f32 %v273
      %vm281 = vmor %vm279, %vm280
      %v282 = vsel %vm281, %v273, %v278
      %v283 = vmul.f32 %v249, %v272
      %v284 = vmul.f32 %v250, %v282
      %v286 = vperm.slane %v231, 0
      %v288 = vmul.f32 %v283, %v286
      %v289 = vmul.f32 %v284, %v286
      %v291 = vperm.slane %v232, 0
      %v293 = vadd.f32 %v288, %v291
      %v294 = vadd.f32 %v289, %v291
      %v295 = vpack.c.bf16 %v294, %v293
      %v296 = vld [vmem:[%s3] sm:$0xf]
      %v297 = vld [vmem:[%s3 + $0x4] sm:$0xf]
      %v298 = vld [vmem:[%s3 + $0x8] sm:$0xf]
      %v299 = vld [vmem:[%s3 + $0xc] sm:$0xf]
      %v300 = vld [vmem:[%s3 + $0x10] sm:$0xf]
      %v301 = vld [vmem:[%s3 + $0x14] sm:$0xf]
      %v302 = vld [vmem:[%s3 + $0x18] sm:$0xf]
      %v303 = vld [vmem:[%s3 + $0x1c] sm:$0xf]
      %v304 = vld [vmem:[%s4] sm:$0x1]
      %v306 = vperm.slane %v304, 0
      %v316 = vunpack.c.l.b16 %v296
      %v317 = vunpack.c.l.b16 %v297
      %v318 = vunpack.c.l.b16 %v298
      %v319 = vunpack.c.l.b16 %v299
      %v320 = vunpack.c.l.b16 %v300
      %v321 = vunpack.c.l.b16 %v301
      %v322 = vunpack.c.l.b16 %v302
      %v323 = vunpack.c.l.b16 %v303
      %v324 = vpack.c.b16 %v317, %v316
      %v325 = vpack.c.b16 %v319, %v318
      %v326 = vpack.c.b16 %v321, %v320
      %v327 = vpack.c.b16 %v323, %v322
      %v333 = vsel %vm233, %v295, 0
      %335 = vmatpush.bf16.msra.mxu0 0
      %336 = vmatpush.bf16.msra.mxu0 0
      %337 = vmatpush.bf16.msra.mxu0 0
      %338 = vmatpush.bf16.msra.mxu0 0
      %339 = vmatpush.bf16.msra.mxu0 %v327
      %340 = vmatpush.bf16.msra.mxu0 %v326
      %341 = vmatpush.bf16.msra.mxu0 %v325
      %342 = vmatpush.bf16.msra.mxu0 %v324
      %343 = vmatmul.bf16.gmra.mxu0 %v333
      %v344 = vpop.f32.mrf.mxu0
      %v345 = vadd.f32 %v306, %v344
      %v346 = vpop.f32.mrf.mxu0
      %v347 = vadd.f32 %v306, %v346
      %348 = vdwg.mxu0
      %vm349 = vcmask 261120
      %350 = vst.msk [vmem:[%s226] sm:$0xff] %vm349, %v345
      %351 = vst.msk [vmem:[%s226 + $0x8] sm:$0xff] %vm349, %v347
      %s352 = smul.u32 2, %s16
      %p353 = scmp.lt.s32.totalorder %s352, 3
      %s354 = scalar_select %p353, %s352, 3
      %s355 = smul.addr %s354, 8
      %s356 = scalar_lea.vmem %s5, %s355
      // Predicated region
      $region41: #{swin_forward.17} parent=39 // pred_check
        %p357 = pneg %p144
      $region42: #{swin_forward.17} parent=39 // pred_check_branch
        %359 = sbr.rel (%p357) target = $region44
      $region43: #{swin_forward.17} parent=39 // pred_region
        %s360 = smul.u32 2, %s16
      $region44: #{swin_forward.17} parent=39 // pred_fallthru
        _
    $region40: #{swin_forward.17} parent=5 // pred_fallthru
      _
    %p361 = scmp.le.s32.totalorder 2, %s11
    // Predicated region
    $region45: #{swin_forward.17} parent=5 // pred_check
      %p362 = pneg %p361
    $region46: #{swin_forward.17} parent=5 // pred_check_branch
      %364 = sbr.rel (%p362) target = $region48
    $region47: #{swin_forward.17} parent=5 // pred_region
      %s365 = ssub.s32 %s11, 2
      // Predicated region
      $region49: #{swin_forward.17} parent=47 // pred_check
        %p366 = pneg %p150
      $region50: #{swin_forward.17} parent=47 // pred_check_branch
        %368 = sbr.rel (%p366) target = $region52
      $region51: #{swin_forward.17} parent=47 // pred_region
        %s369 = smul.u32 2, %s17
        %p370 = scmp.lt.s32.totalorder %s369, 3
        %s371 = scalar_select %p370, %s369, 3
        %s372 = smul.addr %s371, 8
        %s373 = scalar_lea.vmem %s5, %s372
      $region52: #{swin_forward.17} parent=47 // pred_fallthru
        _
    $region48: #{swin_forward.17} parent=5 // pred_fallthru
      _
  $region6: #{swin_forward.17} parent=0 // loop_footer
    %s15 = sadd.s32 1, %s11
  $region7: #{swin_forward.17} parent=0 // loop_footer_branch
    %10 = sbr.rel target = $region3
  $region8: #{swin_forward.17} parent=0 // loop_exit
    _

// kernel: swin_forward.19
$region0: #{swin_forward.19}
  #allocation0 [shape = 'u32[]', space=smem, size = 0x4, offset = 0x4, fixed_abs, tag = 'smem constant byte address 0x4 - core index']
  #allocation1 [shape = 'u32[72,128]{1,0:T(1,128)}', space=vmem, size = 0x9000, scoped, tag = 'internal scratch']
  %s0 = inlined_call_operand.vmem [shape: f32[32,32], index: 0, kind: input, shape index: {}]
  %s1 = inlined_call_operand.vmem [shape: f32[1,32], index: 1, kind: input, shape index: {}]
  %s2 = inlined_call_operand.vmem [shape: f32[1,32], index: 2, kind: input, shape index: {}]
  %s3 = inlined_call_operand.vmem [shape: bf16[32,128], index: 3, kind: input, shape index: {}]
  %s4 = inlined_call_operand.vmem [shape: f32[1,128], index: 4, kind: input, shape index: {}]
  %s5 = inlined_call_operand.vmem [shape: bf16[128,32], index: 5, kind: input, shape index: {}]
  %s6 = inlined_call_operand.vmem [shape: f32[1,32], index: 6, kind: input, shape index: {}]
  %s7 = inlined_call_operand.vmem [shape: f32[32,32], index: 7, kind: output, shape index: {}]
  %s8 = sld [smem:[#allocation0]]
  $region61: #{swin_forward.19} parent=0
    _
  %s10 = ssub.s32 1, %s8
  %s11 = scalar_select 0, %s10, %s8
  loop: start=0, step=1, limit=4
  $region2: #{swin_forward.19} parent=0 // loop_pre_header
    _
  $region3: #{swin_forward.19} parent=0 // loop_header
    %s13 = sphi 0, %s17
    %p14 = scmp.ge.s32.totalorder %s13, 4
    %s23 = sphi 0, %s25
    %s26 = sphi 0, %s23
    %s27 = sphi 0, %s26
    %s43 = sphi 0, %s27
    %s47 = sphi 0, %s47
    %s49 = sphi 0, %s47
    %s50 = sphi 0, %s49
    %s64 = sphi 0, %s50
    %s68 = sphi 0, %s68
    %s70 = sphi 0, %s68
    %s71 = sphi 0, %s70
    %s85 = sphi 0, %s71
    %s89 = sphi 0, %s89
    %s91 = sphi 0, %s89
    %s92 = sphi 0, %s91
    %s106 = sphi 0, %s92
    %s110 = sphi 0, %s110
    %s112 = sphi 0, %s110
    %s113 = sphi 0, %s112
    %s127 = sphi 0, %s113
    %s131 = sphi 0, %s131
    %s133 = sphi 0, %s131
    %s134 = sphi 0, %s133
    %s148 = sphi 0, %s134
    %s152 = sphi 0, %s152
    %s154 = sphi 0, %s152
    %s155 = sphi 0, %s154
    %s169 = sphi 0, %s155
    %s175 = sphi 0, %s177
    %s178 = sphi 0, %s175
    %s179 = sphi 0, %s178
    %s195 = sphi 0, %s179
  $region4: #{swin_forward.19} parent=0 // loop_header_branch
    %16 = sbr.rel (%p14) target = $region8
  $region5: #{swin_forward.19} parent=0 // loop_body
    %s18 = ssub.s32 %s13, 1
    %s19 = ssub.s32 %s13, 2
    %s20 = sadd.s32 %s13, 1
    %s21 = ssub.s32 %s13, %s20
    %p22 = scmp.eq.s32.totalorder %s21, 0
    %s24 = sadd.s32 %s23, 1
    %s25 = scalar_select %p22, %s23, %s24
    %p28 = pneg %p22
    %p29 = scmp.eq.s32.totalorder %s13, 1
    %p30 = por %p28, %p29
    %p31 = scmp.ne.s32.totalorder %s23, %s26
    %p32 = scmp.eq.s32.totalorder %s13, 0
    %p33 = por %p31, %p32
    %p34 = scmp.ne.s32.totalorder %s23, %s26
    %p35 = scmp.eq.s32.totalorder %s18, 1
    %p36 = por %p34, %p35
    %p37 = scmp.ne.s32.totalorder %s26, %s27
    %p38 = scmp.eq.s32.totalorder %s18, 0
    %p39 = por %p37, %p38
    %p40 = scmp.ne.s32.totalorder %s26, %s27
    %p41 = scmp.eq.s32.totalorder %s19, 1
    %p42 = por %p40, %p41
    %p44 = scmp.ne.s32.totalorder %s27, %s43
    %p45 = scmp.eq.s32.totalorder %s19, 0
    %p46 = por %p44, %p45
    %s48 = sadd.s32 %s47, 1
    %p51 = scmp.eq.s32.totalorder %s13, 1
    %p52 = scmp.ne.s32.totalorder %s47, %s49
    %p53 = scmp.eq.s32.totalorder %s13, 0
    %p54 = por %p52, %p53
    %p55 = scmp.ne.s32.totalorder %s47, %s49
    %p56 = scmp.eq.s32.totalorder %s18, 1
    %p57 = por %p55, %p56
    %p58 = scmp.ne.s32.totalorder %s49, %s50
    %p59 = scmp.eq.s32.totalorder %s18, 0
    %p60 = por %p58, %p59
    %p61 = scmp.ne.s32.totalorder %s49, %s50
    %p62 = scmp.eq.s32.totalorder %s19, 1
    %p63 = por %p61, %p62
    %p65 = scmp.ne.s32.totalorder %s50, %s64
    %p66 = scmp.eq.s32.totalorder %s19, 0
    %p67 = por %p65, %p66
    %s69 = sadd.s32 %s68, 1
    %p72 = scmp.eq.s32.totalorder %s13, 1
    %p73 = scmp.ne.s32.totalorder %s68, %s70
    %p74 = scmp.eq.s32.totalorder %s13, 0
    %p75 = por %p73, %p74
    %p76 = scmp.ne.s32.totalorder %s68, %s70
    %p77 = scmp.eq.s32.totalorder %s18, 1
    %p78 = por %p76, %p77
    %p79 = scmp.ne.s32.totalorder %s70, %s71
    %p80 = scmp.eq.s32.totalorder %s18, 0
    %p81 = por %p79, %p80
    %p82 = scmp.ne.s32.totalorder %s70, %s71
    %p83 = scmp.eq.s32.totalorder %s19, 1
    %p84 = por %p82, %p83
    %p86 = scmp.ne.s32.totalorder %s71, %s85
    %p87 = scmp.eq.s32.totalorder %s19, 0
    %p88 = por %p86, %p87
    %s90 = sadd.s32 %s89, 1
    %p93 = scmp.eq.s32.totalorder %s13, 1
    %p94 = scmp.ne.s32.totalorder %s89, %s91
    %p95 = scmp.eq.s32.totalorder %s13, 0
    %p96 = por %p94, %p95
    %p97 = scmp.ne.s32.totalorder %s89, %s91
    %p98 = scmp.eq.s32.totalorder %s18, 1
    %p99 = por %p97, %p98
    %p100 = scmp.ne.s32.totalorder %s91, %s92
    %p101 = scmp.eq.s32.totalorder %s18, 0
    %p102 = por %p100, %p101
    %p103 = scmp.ne.s32.totalorder %s91, %s92
    %p104 = scmp.eq.s32.totalorder %s19, 1
    %p105 = por %p103, %p104
    %p107 = scmp.ne.s32.totalorder %s92, %s106
    %p108 = scmp.eq.s32.totalorder %s19, 0
    %p109 = por %p107, %p108
    %s111 = sadd.s32 %s110, 1
    %p114 = scmp.eq.s32.totalorder %s13, 1
    %p115 = scmp.ne.s32.totalorder %s110, %s112
    %p116 = scmp.eq.s32.totalorder %s13, 0
    %p117 = por %p115, %p116
    %p118 = scmp.ne.s32.totalorder %s110, %s112
    %p119 = scmp.eq.s32.totalorder %s18, 1
    %p120 = por %p118, %p119
    %p121 = scmp.ne.s32.totalorder %s112, %s113
    %p122 = scmp.eq.s32.totalorder %s18, 0
    %p123 = por %p121, %p122
    %p124 = scmp.ne.s32.totalorder %s112, %s113
    %p125 = scmp.eq.s32.totalorder %s19, 1
    %p126 = por %p124, %p125
    %p128 = scmp.ne.s32.totalorder %s113, %s127
    %p129 = scmp.eq.s32.totalorder %s19, 0
    %p130 = por %p128, %p129
    %s132 = sadd.s32 %s131, 1
    %p135 = scmp.eq.s32.totalorder %s13, 1
    %p136 = scmp.ne.s32.totalorder %s131, %s133
    %p137 = scmp.eq.s32.totalorder %s13, 0
    %p138 = por %p136, %p137
    %p139 = scmp.ne.s32.totalorder %s131, %s133
    %p140 = scmp.eq.s32.totalorder %s18, 1
    %p141 = por %p139, %p140
    %p142 = scmp.ne.s32.totalorder %s133, %s134
    %p143 = scmp.eq.s32.totalorder %s18, 0
    %p144 = por %p142, %p143
    %p145 = scmp.ne.s32.totalorder %s133, %s134
    %p146 = scmp.eq.s32.totalorder %s19, 1
    %p147 = por %p145, %p146
    %p149 = scmp.ne.s32.totalorder %s134, %s148
    %p150 = scmp.eq.s32.totalorder %s19, 0
    %p151 = por %p149, %p150
    %s153 = sadd.s32 %s152, 1
    %p156 = scmp.eq.s32.totalorder %s13, 1
    %p157 = scmp.ne.s32.totalorder %s152, %s154
    %p158 = scmp.eq.s32.totalorder %s13, 0
    %p159 = por %p157, %p158
    %p160 = scmp.ne.s32.totalorder %s152, %s154
    %p161 = scmp.eq.s32.totalorder %s18, 1
    %p162 = por %p160, %p161
    %p163 = scmp.ne.s32.totalorder %s154, %s155
    %p164 = scmp.eq.s32.totalorder %s18, 0
    %p165 = por %p163, %p164
    %p166 = scmp.ne.s32.totalorder %s154, %s155
    %p167 = scmp.eq.s32.totalorder %s19, 1
    %p168 = por %p166, %p167
    %p170 = scmp.ne.s32.totalorder %s155, %s169
    %p171 = scmp.eq.s32.totalorder %s19, 0
    %p172 = por %p170, %p171
    %s173 = ssub.s32 %s13, %s20
    %p174 = scmp.eq.s32.totalorder %s173, 0
    %s176 = sadd.s32 %s175, 1
    %s177 = scalar_select %p174, %s175, %s176
    %p180 = pneg %p174
    %p181 = scmp.eq.s32.totalorder %s13, 1
    %p182 = por %p180, %p181
    %p183 = scmp.ne.s32.totalorder %s175, %s178
    %p184 = scmp.eq.s32.totalorder %s13, 0
    %p185 = por %p183, %p184
    %p186 = scmp.ne.s32.totalorder %s175, %s178
    %p187 = scmp.eq.s32.totalorder %s18, 1
    %p188 = por %p186, %p187
    %p189 = scmp.ne.s32.totalorder %s178, %s179
    %p190 = scmp.eq.s32.totalorder %s18, 0
    %p191 = por %p189, %p190
    %p192 = scmp.ne.s32.totalorder %s178, %s179
    %p193 = scmp.eq.s32.totalorder %s19, 1
    %p194 = por %p192, %p193
    %p196 = scmp.ne.s32.totalorder %s179, %s195
    %p197 = scmp.eq.s32.totalorder %s19, 0
    %p198 = por %p196, %p197
    %p199 = scmp.le.s32.totalorder 1, %s13
    %p200 = scmp.lt.s32.totalorder %s13, 3
    %p201 = pnand %p199, %p200
    %p202 = pneg %p201
    // Predicated region
    $region9: #{swin_forward.19} parent=5 // pred_check
      _
    $region10: #{swin_forward.19} parent=5 // pred_check_branch
      %204 = sbr.rel (%p201) target = $region12
    $region11: #{swin_forward.19} parent=5 // pred_region
      %s205 = ssub.s32 %s13, 1
      // Predicated region
      $region13: #{swin_forward.19} parent=11 // pred_check
        %p206 = pneg %p60
      $region14: #{swin_forward.19} parent=11 // pred_check_branch
        %208 = sbr.rel (%p206) target = $region16
      $region15: #{swin_forward.19} parent=11 // pred_region
        _
      $region16: #{swin_forward.19} parent=11 // pred_fallthru
        _
      // Predicated region
      $region17: #{swin_forward.19} parent=11 // pred_check
        %p209 = pneg %p81
      $region18: #{swin_forward.19} parent=11 // pred_check_branch
        %211 = sbr.rel (%p209) target = $region20
      $region19: #{swin_forward.19} parent=11 // pred_region
        _
      $region20: #{swin_forward.19} parent=11 // pred_fallthru
        _
      // Predicated region
      $region21: #{swin_forward.19} parent=11 // pred_check
        %p212 = pneg %p102
      $region22: #{swin_forward.19} parent=11 // pred_check_branch
        %214 = sbr.rel (%p212) target = $region24
      $region23: #{swin_forward.19} parent=11 // pred_region
        _
      $region24: #{swin_forward.19} parent=11 // pred_fallthru
        _
      // Predicated region
      $region25: #{swin_forward.19} parent=11 // pred_check
        %p215 = pneg %p123
      $region26: #{swin_forward.19} parent=11 // pred_check_branch
        %217 = sbr.rel (%p215) target = $region28
      $region27: #{swin_forward.19} parent=11 // pred_region
        _
      $region28: #{swin_forward.19} parent=11 // pred_fallthru
        _
      // Predicated region
      $region29: #{swin_forward.19} parent=11 // pred_check
        %p218 = pneg %p144
      $region30: #{swin_forward.19} parent=11 // pred_check_branch
        %220 = sbr.rel (%p218) target = $region32
      $region31: #{swin_forward.19} parent=11 // pred_region
        _
      $region32: #{swin_forward.19} parent=11 // pred_fallthru
        _
      // Predicated region
      $region33: #{swin_forward.19} parent=11 // pred_check
        %p221 = pneg %p165
      $region34: #{swin_forward.19} parent=11 // pred_check_branch
        %223 = sbr.rel (%p221) target = $region36
      $region35: #{swin_forward.19} parent=11 // pred_region
        _
      $region36: #{swin_forward.19} parent=11 // pred_fallthru
        _
    $region12: #{swin_forward.19} parent=5 // pred_fallthru
      _
    %p224 = scmp.lt.s32.totalorder %s13, 2
    // Predicated region
    $region37: #{swin_forward.19} parent=5 // pred_check
      %p225 = pneg %p224
    $region38: #{swin_forward.19} parent=5 // pred_check_branch
      %227 = sbr.rel (%p225) target = $region40
    $region39: #{swin_forward.19} parent=5 // pred_region
      // Predicated region
      $region41: #{swin_forward.19} parent=39 // pred_check
        %p228 = pneg %p33
      $region42: #{swin_forward.19} parent=39 // pred_check_branch
        %230 = sbr.rel (%p228) target = $region44
      $region43: #{swin_forward.19} parent=39 // pred_region
        %s231 = smul.u32 2, %s13
        %p232 = scmp.lt.s32.totalorder %s231, 3
        %s233 = scalar_select %p232, %s231, 3
        %s234 = smul.addr %s233, 8
        %s235 = scalar_lea.vmem %s0, %s234
        %s236 = smul.u32 2, %s13
      $region44: #{swin_forward.19} parent=39 // pred_fallthru
        _
    $region40: #{swin_forward.19} parent=5 // pred_fallthru
      _
    %p237 = scmp.le.s32.totalorder 1, %s13
    %p238 = scmp.lt.s32.totalorder %s13, 3
    %p239 = pnand %p237, %p238
    %p240 = pneg %p239
    // Predicated region
    $region45: #{swin_forward.19} parent=5 // pred_check
      _
    $region46: #{swin_forward.19} parent=5 // pred_check_branch
      %242 = sbr.rel (%p239) target = $region48
    $region47: #{swin_forward.19} parent=5 // pred_region
      %s243 = ssub.s32 %s13, 1
      %s244 = smul.u32 2, %s18
      %p245 = scmp.lt.s32.totalorder %s244, 3
      %s246 = scalar_select %p245, %s244, 3
      %s247 = smul.addr %s246, 8
      %s248 = scalar_lea.vmem %s0, %s247
      %p249 = pneg %p39
      %p250 = pneg %p36
      %p251 = pneg %p60
      %p252 = pneg %p57
      %p253 = pneg %p81
      %p254 = pneg %p78
      %p255 = pneg %p102
      %p256 = pneg %p99
      %p257 = pneg %p123
      %p258 = pneg %p120
      %p259 = pneg %p144
      %p260 = pneg %p141
      %p261 = pneg %p165
      %p262 = pneg %p162
      %p263 = pneg %p191
      %p264 = pneg %p188
      %s265 = smul.u32 2, %s18
      %p266 = scmp.lt.s32.totalorder %s265, 3
      %s267 = scalar_select %p266, %s265, 3
      %s268 = smul.addr %s267, 8
      %s269 = scalar_lea.vmem %s7, %s268
      %s270 = smul.u32 2, %s18
      %p271 = scmp.lt.s32.totalorder %s270, 3
      %s272 = scalar_select %p271, %s270, 3
      %s273 = smul.addr %s272, 8
      %s274 = scalar_lea.vmem %s0, %s273
      %s275 = smul.u32 2, %s18
      %s276 = smul.u32 2, %s18
      %p277 = scmp.lt.s32.totalorder %s276, 3
      %s278 = scalar_select %p277, %s276, 3
      %s279 = smul.addr %s278, 8
      %s280 = scalar_lea.vmem %s7, %s279
      %s281 = smul.u32 2, %s18
      %v283 = vld [vmem:[%s274] sm:$0xff]
      %v284 = vld [vmem:[%s274 + $0x8] sm:$0xff]
      %v285 = vld [vmem:[%s1] sm:$0x1]
      %v286 = vld [vmem:[%s2] sm:$0x1]
      %vm287 = vcmask 261120
      %v288 = vsel %vm287, %v283, 0.0
      %289 = vadd.xlane.f32.xlu0 %v288
      %v290 = vpop.xlane.xlu0 %289
      %v291 = vsel %vm287, %v284, 0.0
      %292 = vadd.xlane.f32.xlu0 %v291
      %v293 = vpop.xlane.xlu0 %292
      %v294 = vrcp.pop 32.0
      %v295 = vmul.f32 32.0, %v294
      %v296 = vsub.f32 1.0, %v295
      %v297 = vmul.f32 %v294, %v296
      %v298 = vadd.f32 %v294, %v297
      %vm299 = vweird.f32 %v294
      %v300 = vsel %vm299, %v294, %v298
      %v301 = vmul.f32 %v290, %v300
      %v302 = vmul.f32 %v293, %v300
      %v303 = vsub.f32 %v283, %v301
      %v304 = vsub.f32 %v284, %v302
      %v305 = vmul.f32 %v303, %v303
      %v306 = vmul.f32 %v304, %v304
      %v307 = vsel %vm287, %v305, 0.0
      %308 = vadd.xlane.f32.xlu0 %v307
      %v309 = vpop.xlane.xlu0 %308
      %v310 = vsel %vm287, %v306, 0.0
      %311 = vadd.xlane.f32.xlu0 %v310
      %v312 = vpop.xlane.xlu0 %311
      %v313 = vmul.f32 %v309, %v300
      %v314 = vmul.f32 %v312, %v300
      %v315 = vadd.f32 %v313, 1e-05
      %v316 = vadd.f32 %v314, 1e-05
      %v317 = vrsqrt.pop %v315
      %v318 = vmul.f32 %v317, %v315
      %v319 = vmul.f32 %v318, %v317
      %v320 = vmul.f32 0.5, %v319
      %v321 = vsub.f32 1.5, %v320
      %v322 = vmul.f32 %v317, %v321
      %vm323 = vweird.f32 %v315
      %vm324 = vweird.f32 %v317
      %vm325 = vmor %vm323, %vm324
      %v326 = vsel %vm325, %v317, %v322
      %v327 = vrsqrt.pop %v316
      %v328 = vmul.f32 %v327, %v316
      %v329 = vmul.f32 %v328, %v327
      %v330 = vmul.f32 0.5, %v329
      %v331 = vsub.f32 1.5, %v330
      %v332 = vmul.f32 %v327, %v331
      %vm333 = vweird.f32 %v316
      %vm334 = vweird.f32 %v327
      %vm335 = vmor %vm333, %vm334
      %v336 = vsel %vm335, %v327, %v332
      %v337 = vmul.f32 %v303, %v326
      %v338 = vmul.f32 %v304, %v336
      %v340 = vperm.slane %v285, 0
      %v342 = vmul.f32 %v337, %v340
      %v343 = vmul.f32 %v338, %v340
      %v345 = vperm.slane %v286, 0
      %v347 = vadd.f32 %v342, %v345
      %v348 = vadd.f32 %v343, %v345
      %v349 = vpack.c.bf16 %v348, %v347
      %v350 = vld [vmem:[%s3] sm:$0xf]
      %v351 = vld [vmem:[%s3 + $0x4] sm:$0xf]
      %v352 = vld [vmem:[%s3 + $0x8] sm:$0xf]
      %v353 = vld [vmem:[%s3 + $0xc] sm:$0xf]
      %v354 = vld [vmem:[%s4] sm:$0x1]
      %v356 = vperm.slane %v354, 0
      %v362 = vunpack.c.l.b16 %v350
      %v363 = vunpack.c.l.b16 %v351
      %v364 = vunpack.c.l.b16 %v352
      %v365 = vunpack.c.l.b16 %v353
      %v366 = vpack.c.b16 %v363, %v362
      %v367 = vpack.c.b16 %v365, %v364
      %v371 = vsel %vm287, %v349, 0
      %373 = vmatpush.bf16.msra.mxu0 0
      %374 = vmatpush.bf16.msra.mxu0 0
      %375 = vmatpush.bf16.msra.mxu0 0
      %376 = vmatpush.bf16.msra.mxu0 0
      %377 = vmatpush.bf16.msra.mxu0 0
      %378 = vmatpush.bf16.msra.mxu0 0
      %379 = vmatpush.bf16.msra.mxu0 %v367
      %380 = vmatpush.bf16.msra.mxu0 %v366
      %381 = vmatmul.bf16.gmra.mxu0 %v371
      %v382 = vpop.f32.mrf.mxu0
      %v383 = vadd.f32 %v356, %v382
      %v384 = vpop.f32.mrf.mxu0
      %v385 = vadd.f32 %v356, %v384
      %386 = vdwg.mxu0
      %v387 = vmul.f32 %v383, 0.5
      %v388 = vmul.f32 %v385, 0.5
      %v389 = vmul.f32 %v383, 0.70710677
      %v390 = vmul.f32 %v385, 0.70710677
      %v391 = vand.u32 2147483647, %v389
      %v392 = vand.u32 2147483647, %v390
      %v393 = vmul.f32 %v391, 0.3275911
      %v394 = vmul.f32 %v392, 0.3275911
      %v395 = vadd.f32 %v393, 1.0
      %v396 = vadd.f32 %v394, 1.0
      %v397 = vrcp.pop %v395
      %v398 = vmul.f32 %v395, %v397
      %v399 = vsub.f32 1.0, %v398
      %v400 = vmul.f32 %v397, %v399
      %v401 = vadd.f32 %v397, %v400
      %vm402 = vweird.f32 %v395
      %vm403 = vweird.f32 %v397
      %vm404 = vmor %vm402, %vm403
      %v405 = vsel %vm404, %v397, %v401
      %v406 = vand.u32 2147483647, %v395
      %vm407 = vcmp.eq.f32.partialorder %v406, 8.507059e+37
      %v408 = vand.u32 %v395, 2147483648
      %v409 = vor.u32 1.1754944e-38, %v408
      %v410 = vsel %vm407, %v409, %v405
      %v411 = vmul.f32 1.0, %v410
      %v412 = vrcp.pop %v396
      %v413 = vmul.f32 %v396, %v412
      %v414 = vsub.f32 1.0, %v413
      %v415 = vmul.f32 %v412, %v414
      %v416 = vadd.f32 %v412, %v415
      %vm417 = vweird.f32 %v396
      %vm418 = vweird.f32 %v412
      %vm419 = vmor %vm417, %vm418
      %v420 = vsel %vm419, %v412, %v416
      %v421 = vand.u32 2147483647, %v396
      %vm422 = vcmp.eq.f32.partialorder %v421, 8.507059e+37
      %v423 = vand.u32 %v396, 2147483648
      %v424 = vor.u32 1.1754944e-38, %v423
      %v425 = vsel %vm422, %v424, %v420
      %v426 = vmul.f32 1.0, %v425
      %v427 = vmul.f32 %v411, 1.0614054
      %v428 = vmul.f32 %v426, 1.0614054
      %v429 = vadd.f32 %v427, -1.4531521
      %v430 = vadd.f32 %v428, -1.4531521
      %v431 = vmul.f32 %v429, %v411
      %v432 = vmul.f32 %v430, %v426
      %v433 = vadd.f32 %v431, 1.4214138
      %v434 = vadd.f32 %v432, 1.4214138
      %v435 = vmul.f32 %v433, %v411
      %v436 = vmul.f32 %v434, %v426
      %v437 = vadd.f32 %v435, -0.28449672
      %v438 = vadd.f32 %v436, -0.28449672
      %v439 = vmul.f32 %v437, %v411
      %v440 = vmul.f32 %v438, %v426
      %v441 = vadd.f32 %v439, 0.2548296
      %v442 = vadd.f32 %v440, 0.2548296
      %v443 = vmul.f32 %v441, %v411
      %v444 = vmul.f32 %v442, %v426
      %v445 = vsub.f32 0.0, %v391
      %v446 = vsub.f32 0.0, %v392
      %v447 = vmul.f32 %v445, %v391
      %v448 = vmul.f32 %v446, %v392
      %v449 = vmul.f32 %v447, 1.442695
      %v450 = vpow.pop %v449
      %v451 = vmul.f32 %v448, 1.442695
      %v452 = vpow.pop %v451
      %v453 = vmul.f32 %v443, %v450
      %v454 = vmul.f32 %v444, %v452
      %v455 = vsub.f32 1.0, %v453
      %v456 = vsub.f32 1.0, %v454
      %vm457 = vcmp.ge.f32.partialorder %v389, 0.0
      %vm458 = vcmp.ge.f32.partialorder %v390, 0.0
      %v459 = vsub.f32 0.0, %v455
      %v460 = vsub.f32 0.0, %v456
      %v461 = vsel %vm457, %v455, %v459
      %v462 = vsel %vm458, %v456, %v460
      %v463 = vadd.f32 %v461, 1.0
      %v464 = vadd.f32 %v462, 1.0
      %v465 = vmul.f32 %v387, %v463
      %v466 = vmul.f32 %v388, %v464
      %v467 = vpack.c.bf16 %v466, %v465
      %v468 = vld [vmem:[%s5] sm:$0xf]
      %v469 = vld [vmem:[%s5 + $0x4] sm:$0xf]
      %v470 = vld [vmem:[%s5 + $0x8] sm:$0xf]
      %v471 = vld [vmem:[%s5 + $0xc] sm:$0xf]
      %v472 = vld [vmem:[%s5 + $0x10] sm:$0xf]
      %v473 = vld [vmem:[%s5 + $0x14] sm:$0xf]
      %v474 = vld [vmem:[%s5 + $0x18] sm:$0xf]
      %v475 = vld [vmem:[%s5 + $0x1c] sm:$0xf]
      %v476 = vld [vmem:[%s5 + $0x20] sm:$0xf]
      %v477 = vld [vmem:[%s5 + $0x24] sm:$0xf]
      %v478 = vld [vmem:[%s5 + $0x28] sm:$0xf]
      %v479 = vld [vmem:[%s5 + $0x2c] sm:$0xf]
      %v480 = vld [vmem:[%s5 + $0x30] sm:$0xf]
      %v481 = vld [vmem:[%s5 + $0x34] sm:$0xf]
      %v482 = vld [vmem:[%s5 + $0x38] sm:$0xf]
      %v483 = vld [vmem:[%s5 + $0x3c] sm:$0xf]
      %v484 = vld [vmem:[%s6] sm:$0x1]
      %v486 = vperm.slane %v484, 0
      %v504 = vunpack.c.l.b16 %v468
      %v505 = vunpack.c.l.b16 %v469
      %v506 = vunpack.c.l.b16 %v470
      %v507 = vunpack.c.l.b16 %v471
      %v508 = vunpack.c.l.b16 %v472
      %v509 = vunpack.c.l.b16 %v473
      %v510 = vunpack.c.l.b16 %v474
      %v511 = vunpack.c.l.b16 %v475
      %v512 = vunpack.c.l.b16 %v476
      %v513 = vunpack.c.l.b16 %v477
      %v514 = vunpack.c.l.b16 %v478
      %v515 = vunpack.c.l.b16 %v479
      %v516 = vunpack.c.l.b16 %v480
      %v517 = vunpack.c.l.b16 %v481
      %v518 = vunpack.c.l.b16 %v482
      %v519 = vunpack.c.l.b16 %v483
      %v520 = vpack.c.b16 %v505, %v504
      %v521 = vpack.c.b16 %v507, %v506
      %v522 = vpack.c.b16 %v509, %v508
      %v523 = vpack.c.b16 %v511, %v510
      %v524 = vpack.c.b16 %v513, %v512
      %v525 = vpack.c.b16 %v515, %v514
      %v526 = vpack.c.b16 %v517, %v516
      %v527 = vpack.c.b16 %v519, %v518
      %536 = vmatpush.bf16.msra.mxu0 %v527
      %537 = vmatpush.bf16.msra.mxu0 %v526
      %538 = vmatpush.bf16.msra.mxu0 %v525
      %539 = vmatpush.bf16.msra.mxu0 %v524
      %540 = vmatpush.bf16.msra.mxu0 %v523
      %541 = vmatpush.bf16.msra.mxu0 %v522
      %542 = vmatpush.bf16.msra.mxu0 %v521
      %543 = vmatpush.bf16.msra.mxu0 %v520
      %544 = vmatmul.bf16.gmra.mxu0 %v467
      %v545 = vpop.f32.mrf.mxu0
      %v546 = vadd.f32 %v486, %v545
      %v547 = vpop.f32.mrf.mxu0
      %v548 = vadd.f32 %v486, %v547
      %549 = vdwg.mxu0
      %v550 = vadd.f32 %v283, %v546
      %v551 = vadd.f32 %v284, %v548
      %552 = vst.msk [vmem:[%s280] sm:$0xff] %vm287, %v550
      %553 = vst.msk [vmem:[%s280 + $0x8] sm:$0xff] %vm287, %v551
      %s554 = smul.u32 2, %s18
      %p555 = scmp.lt.s32.totalorder %s554, 3
      %s556 = scalar_select %p555, %s554, 3
      %s557 = smul.addr %s556, 8
      %s558 = scalar_lea.vmem %s7, %s557
      // Predicated region
      $region49: #{swin_forward.19} parent=47 // pred_check
        %p559 = pneg %p188
      $region50: #{swin_forward.19} parent=47 // pred_check_branch
        %561 = sbr.rel (%p559) target = $region52
      $region51: #{swin_forward.19} parent=47 // pred_region
        %s562 = smul.u32 2, %s18
      $region52: #{swin_forward.19} parent=47 // pred_fallthru
        _
    $region48: #{swin_forward.19} parent=5 // pred_fallthru
      _
    %p563 = scmp.le.s32.totalorder 2, %s13
    // Predicated region
    $region53: #{swin_forward.19} parent=5 // pred_check
      %p564 = pneg %p563
    $region54: #{swin_forward.19} parent=5 // pred_check_branch
      %566 = sbr.rel (%p564) target = $region56
    $region55: #{swin_forward.19} parent=5 // pred_region
      %s567 = ssub.s32 %s13, 2
      // Predicated region
      $region57: #{swin_forward.19} parent=55 // pred_check
        %p568 = pneg %p194
      $region58: #{swin_forward.19} parent=55 // pred_check_branch
        %570 = sbr.rel (%p568) target = $region60
      $region59: #{swin_forward.19} parent=55 // pred_region
        %s571 = smul.u32 2, %s19
        %p572 = scmp.lt.s32.totalorder %s571, 3
        %s573 = scalar_select %p572, %s571, 3
        %s574 = smul.addr %s573, 8
        %s575 = scalar_lea.vmem %s7, %s574
      $region60: #{swin_forward.19} parent=55 // pred_fallthru
        _
    $region56: #{swin_forward.19} parent=5 // pred_fallthru
      _
  $region6: #{swin_forward.19} parent=0 // loop_footer
    %s17 = sadd.s32 1, %s13
  $region7: #{swin_forward.19} parent=0 // loop_footer_branch
    %12 = sbr.rel target = $region3
  $region8: #{swin_forward.19} parent=0 // loop_exit
    _

// kernel: swin_forward.18
$region0: #{swin_forward.18}
  #allocation0 [shape = 'u32[]', space=smem, size = 0x4, offset = 0x4, fixed_abs, tag = 'smem constant byte address 0x4 - core index']
  #allocation1 [shape = 'u32[72,128]{1,0:T(1,128)}', space=vmem, size = 0x9000, scoped, tag = 'internal scratch']
  %s0 = inlined_call_operand.vmem [shape: f32[32,32], index: 0, kind: input, shape index: {}]
  %s1 = inlined_call_operand.vmem [shape: f32[1,32], index: 1, kind: input, shape index: {}]
  %s2 = inlined_call_operand.vmem [shape: f32[1,32], index: 2, kind: input, shape index: {}]
  %s3 = inlined_call_operand.vmem [shape: bf16[32,96], index: 3, kind: input, shape index: {}]
  %s4 = inlined_call_operand.vmem [shape: f32[1,96], index: 4, kind: input, shape index: {}]
  %s5 = inlined_call_operand.vmem [shape: bf16[32,32], index: 5, kind: input, shape index: {}]
  %s6 = inlined_call_operand.vmem [shape: f32[1,32], index: 6, kind: input, shape index: {}]
  %s7 = inlined_call_operand.vmem [shape: f32[1,4,16,16], index: 7, kind: input, shape index: {}]
  %s8 = inlined_call_operand.vmem [shape: f32[32,32], index: 8, kind: output, shape index: {0}]
  %s9 = inlined_call_operand.hbm [shape: f32[2,1,128], index: 9, kind: output, shape index: {1}]
  %10 = xla_tuple %s8, %s9
  %s11 = sld [smem:[#allocation0]]
  $region73: #{swin_forward.18} parent=0
    _
  %s13 = ssub.s32 1, %s11
  %s14 = scalar_select 0, %s13, %s11
  $region1: #{swin_forward.18} parent=0
    #allocation2 [shape = 'u8[1024]{0}', space=vmem, size = 0x400, scoped, tag = 'output window, operand 1']
    #allocation3 [shape = 's32[2]{0}', space=sflag, size = 0x8, scoped, tag = 'scoped memory for swin_forward.18']
    %15 = vsyncpa [#allocation3], 0
    %s16 = scalar_lea.sflag [#allocation3], 1
    %17 = vsyncpa %s16, 0
    loop: start=0, step=1, limit=4
    $region2: #{swin_forward.18} parent=1 // loop_pre_header
      _
    $region3: #{swin_forward.18} parent=1 // loop_header
      %s19 = sphi 0, %s23
      %p20 = scmp.ge.s32.totalorder %s19, 4
      %s29 = sphi 0, %s31
      %s32 = sphi 0, %s29
      %s33 = sphi 0, %s32
      %s49 = sphi 0, %s33
      %s53 = sphi 0, %s53
      %s55 = sphi 0, %s53
      %s56 = sphi 0, %s55
      %s70 = sphi 0, %s56
      %s74 = sphi 0, %s74
      %s76 = sphi 0, %s74
      %s77 = sphi 0, %s76
      %s91 = sphi 0, %s77
      %s95 = sphi 0, %s95
      %s97 = sphi 0, %s95
      %s98 = sphi 0, %s97
      %s112 = sphi 0, %s98
      %s116 = sphi 0, %s116
      %s118 = sphi 0, %s116
      %s119 = sphi 0, %s118
      %s133 = sphi 0, %s119
      %s137 = sphi 0, %s137
      %s139 = sphi 0, %s137
      %s140 = sphi 0, %s139
      %s154 = sphi 0, %s140
      %s158 = sphi 0, %s158
      %s160 = sphi 0, %s158
      %s161 = sphi 0, %s160
      %s175 = sphi 0, %s161
      %s179 = sphi 0, %s179
      %s181 = sphi 0, %s179
      %s182 = sphi 0, %s181
      %s196 = sphi 0, %s182
      %s202 = sphi 0, %s204
      %s205 = sphi 0, %s202
      %s206 = sphi 0, %s205
      %s222 = sphi 0, %s206
      %s228 = sphi 0, %s230
      %s231 = sphi 0, %s228
      %s232 = sphi 0, %s231
      %s248 = sphi 0, %s232
    $region4: #{swin_forward.18} parent=1 // loop_header_branch
      %22 = sbr.rel (%p20) target = $region8
    $region5: #{swin_forward.18} parent=1 // loop_body
      %s24 = ssub.s32 %s19, 1
      %s25 = ssub.s32 %s19, 2
      %s26 = sadd.s32 %s19, 1
      %s27 = ssub.s32 %s19, %s26
      %p28 = scmp.eq.s32.totalorder %s27, 0
      %s30 = sadd.s32 %s29, 1
      %s31 = scalar_select %p28, %s29, %s30
      %p34 = pneg %p28
      %p35 = scmp.eq.s32.totalorder %s19, 1
      %p36 = por %p34, %p35
      %p37 = scmp.ne.s32.totalorder %s29, %s32
      %p38 = scmp.eq.s32.totalorder %s19, 0
      %p39 = por %p37, %p38
      %p40 = scmp.ne.s32.totalorder %s29, %s32
      %p41 = scmp.eq.s32.totalorder %s24, 1
      %p42 = por %p40, %p41
      %p43 = scmp.ne.s32.totalorder %s32, %s33
      %p44 = scmp.eq.s32.totalorder %s24, 0
      %p45 = por %p43, %p44
      %p46 = scmp.ne.s32.totalorder %s32, %s33
      %p47 = scmp.eq.s32.totalorder %s25, 1
      %p48 = por %p46, %p47
      %p50 = scmp.ne.s32.totalorder %s33, %s49
      %p51 = scmp.eq.s32.totalorder %s25, 0
      %p52 = por %p50, %p51
      %s54 = sadd.s32 %s53, 1
      %p57 = scmp.eq.s32.totalorder %s19, 1
      %p58 = scmp.ne.s32.totalorder %s53, %s55
      %p59 = scmp.eq.s32.totalorder %s19, 0
      %p60 = por %p58, %p59
      %p61 = scmp.ne.s32.totalorder %s53, %s55
      %p62 = scmp.eq.s32.totalorder %s24, 1
      %p63 = por %p61, %p62
      %p64 = scmp.ne.s32.totalorder %s55, %s56
      %p65 = scmp.eq.s32.totalorder %s24, 0
      %p66 = por %p64, %p65
      %p67 = scmp.ne.s32.totalorder %s55, %s56
      %p68 = scmp.eq.s32.totalorder %s25, 1
      %p69 = por %p67, %p68
      %p71 = scmp.ne.s32.totalorder %s56, %s70
      %p72 = scmp.eq.s32.totalorder %s25, 0
      %p73 = por %p71, %p72
      %s75 = sadd.s32 %s74, 1
      %p78 = scmp.eq.s32.totalorder %s19, 1
      %p79 = scmp.ne.s32.totalorder %s74, %s76
      %p80 = scmp.eq.s32.totalorder %s19, 0
      %p81 = por %p79, %p80
      %p82 = scmp.ne.s32.totalorder %s74, %s76
      %p83 = scmp.eq.s32.totalorder %s24, 1
      %p84 = por %p82, %p83
      %p85 = scmp.ne.s32.totalorder %s76, %s77
      %p86 = scmp.eq.s32.totalorder %s24, 0
      %p87 = por %p85, %p86
      %p88 = scmp.ne.s32.totalorder %s76, %s77
      %p89 = scmp.eq.s32.totalorder %s25, 1
      %p90 = por %p88, %p89
      %p92 = scmp.ne.s32.totalorder %s77, %s91
      %p93 = scmp.eq.s32.totalorder %s25, 0
      %p94 = por %p92, %p93
      %s96 = sadd.s32 %s95, 1
      %p99 = scmp.eq.s32.totalorder %s19, 1
      %p100 = scmp.ne.s32.totalorder %s95, %s97
      %p101 = scmp.eq.s32.totalorder %s19, 0
      %p102 = por %p100, %p101
      %p103 = scmp.ne.s32.totalorder %s95, %s97
      %p104 = scmp.eq.s32.totalorder %s24, 1
      %p105 = por %p103, %p104
      %p106 = scmp.ne.s32.totalorder %s97, %s98
      %p107 = scmp.eq.s32.totalorder %s24, 0
      %p108 = por %p106, %p107
      %p109 = scmp.ne.s32.totalorder %s97, %s98
      %p110 = scmp.eq.s32.totalorder %s25, 1
      %p111 = por %p109, %p110
      %p113 = scmp.ne.s32.totalorder %s98, %s112
      %p114 = scmp.eq.s32.totalorder %s25, 0
      %p115 = por %p113, %p114
      %s117 = sadd.s32 %s116, 1
      %p120 = scmp.eq.s32.totalorder %s19, 1
      %p121 = scmp.ne.s32.totalorder %s116, %s118
      %p122 = scmp.eq.s32.totalorder %s19, 0
      %p123 = por %p121, %p122
      %p124 = scmp.ne.s32.totalorder %s116, %s118
      %p125 = scmp.eq.s32.totalorder %s24, 1
      %p126 = por %p124, %p125
      %p127 = scmp.ne.s32.totalorder %s118, %s119
      %p128 = scmp.eq.s32.totalorder %s24, 0
      %p129 = por %p127, %p128
      %p130 = scmp.ne.s32.totalorder %s118, %s119
      %p131 = scmp.eq.s32.totalorder %s25, 1
      %p132 = por %p130, %p131
      %p134 = scmp.ne.s32.totalorder %s119, %s133
      %p135 = scmp.eq.s32.totalorder %s25, 0
      %p136 = por %p134, %p135
      %s138 = sadd.s32 %s137, 1
      %p141 = scmp.eq.s32.totalorder %s19, 1
      %p142 = scmp.ne.s32.totalorder %s137, %s139
      %p143 = scmp.eq.s32.totalorder %s19, 0
      %p144 = por %p142, %p143
      %p145 = scmp.ne.s32.totalorder %s137, %s139
      %p146 = scmp.eq.s32.totalorder %s24, 1
      %p147 = por %p145, %p146
      %p148 = scmp.ne.s32.totalorder %s139, %s140
      %p149 = scmp.eq.s32.totalorder %s24, 0
      %p150 = por %p148, %p149
      %p151 = scmp.ne.s32.totalorder %s139, %s140
      %p152 = scmp.eq.s32.totalorder %s25, 1
      %p153 = por %p151, %p152
      %p155 = scmp.ne.s32.totalorder %s140, %s154
      %p156 = scmp.eq.s32.totalorder %s25, 0
      %p157 = por %p155, %p156
      %s159 = sadd.s32 %s158, 1
      %p162 = scmp.eq.s32.totalorder %s19, 1
      %p163 = scmp.ne.s32.totalorder %s158, %s160
      %p164 = scmp.eq.s32.totalorder %s19, 0
      %p165 = por %p163, %p164
      %p166 = scmp.ne.s32.totalorder %s158, %s160
      %p167 = scmp.eq.s32.totalorder %s24, 1
      %p168 = por %p166, %p167
      %p169 = scmp.ne.s32.totalorder %s160, %s161
      %p170 = scmp.eq.s32.totalorder %s24, 0
      %p171 = por %p169, %p170
      %p172 = scmp.ne.s32.totalorder %s160, %s161
      %p173 = scmp.eq.s32.totalorder %s25, 1
      %p174 = por %p172, %p173
      %p176 = scmp.ne.s32.totalorder %s161, %s175
      %p177 = scmp.eq.s32.totalorder %s25, 0
      %p178 = por %p176, %p177
      %s180 = sadd.s32 %s179, 1
      %p183 = scmp.eq.s32.totalorder %s19, 1
      %p184 = scmp.ne.s32.totalorder %s179, %s181
      %p185 = scmp.eq.s32.totalorder %s19, 0
      %p186 = por %p184, %p185
      %p187 = scmp.ne.s32.totalorder %s179, %s181
      %p188 = scmp.eq.s32.totalorder %s24, 1
      %p189 = por %p187, %p188
      %p190 = scmp.ne.s32.totalorder %s181, %s182
      %p191 = scmp.eq.s32.totalorder %s24, 0
      %p192 = por %p190, %p191
      %p193 = scmp.ne.s32.totalorder %s181, %s182
      %p194 = scmp.eq.s32.totalorder %s25, 1
      %p195 = por %p193, %p194
      %p197 = scmp.ne.s32.totalorder %s182, %s196
      %p198 = scmp.eq.s32.totalorder %s25, 0
      %p199 = por %p197, %p198
      %s200 = ssub.s32 %s19, %s26
      %p201 = scmp.eq.s32.totalorder %s200, 0
      %s203 = sadd.s32 %s202, 1
      %s204 = scalar_select %p201, %s202, %s203
      %p207 = pneg %p201
      %p208 = scmp.eq.s32.totalorder %s19, 1
      %p209 = por %p207, %p208
      %p210 = scmp.ne.s32.totalorder %s202, %s205
      %p211 = scmp.eq.s32.totalorder %s19, 0
      %p212 = por %p210, %p211
      %p213 = scmp.ne.s32.totalorder %s202, %s205
      %p214 = scmp.eq.s32.totalorder %s24, 1
      %p215 = por %p213, %p214
      %p216 = scmp.ne.s32.totalorder %s205, %s206
      %p217 = scmp.eq.s32.totalorder %s24, 0
      %p218 = por %p216, %p217
      %p219 = scmp.ne.s32.totalorder %s205, %s206
      %p220 = scmp.eq.s32.totalorder %s25, 1
      %p221 = por %p219, %p220
      %p223 = scmp.ne.s32.totalorder %s206, %s222
      %p224 = scmp.eq.s32.totalorder %s25, 0
      %p225 = por %p223, %p224
      %s226 = ssub.s32 %s19, %s26
      %p227 = scmp.eq.s32.totalorder %s226, 0
      %s229 = sadd.s32 %s228, 1
      %s230 = scalar_select %p227, %s228, %s229
      %p233 = pneg %p227
      %p234 = scmp.eq.s32.totalorder %s19, 1
      %p235 = por %p233, %p234
      %p236 = scmp.ne.s32.totalorder %s228, %s231
      %p237 = scmp.eq.s32.totalorder %s19, 0
      %p238 = por %p236, %p237
      %p239 = scmp.ne.s32.totalorder %s228, %s231
      %p240 = scmp.eq.s32.totalorder %s24, 1
      %p241 = por %p239, %p240
      %p242 = scmp.ne.s32.totalorder %s231, %s232
      %p243 = scmp.eq.s32.totalorder %s24, 0
      %p244 = por %p242, %p243
      %p245 = scmp.ne.s32.totalorder %s231, %s232
      %p246 = scmp.eq.s32.totalorder %s25, 1
      %p247 = por %p245, %p246
      %p249 = scmp.ne.s32.totalorder %s232, %s248
      %p250 = scmp.eq.s32.totalorder %s25, 0
      %p251 = por %p249, %p250
      %p252 = scmp.le.s32.totalorder 1, %s19
      %p253 = scmp.lt.s32.totalorder %s19, 3
      %p254 = pnand %p252, %p253
      %p255 = pneg %p254
      // Predicated region
      $region9: #{swin_forward.18} parent=5 // pred_check
        _
      $region10: #{swin_forward.18} parent=5 // pred_check_branch
        %257 = sbr.rel (%p254) target = $region12
      $region11: #{swin_forward.18} parent=5 // pred_region
        %s258 = ssub.s32 %s19, 1
        // Predicated region
        $region13: #{swin_forward.18} parent=11 // pred_check
          %p259 = pneg %p66
        $region14: #{swin_forward.18} parent=11 // pred_check_branch
          %261 = sbr.rel (%p259) target = $region16
        $region15: #{swin_forward.18} parent=11 // pred_region
          _
        $region16: #{swin_forward.18} parent=11 // pred_fallthru
          _
        // Predicated region
        $region17: #{swin_forward.18} parent=11 // pred_check
          %p262 = pneg %p87
        $region18: #{swin_forward.18} parent=11 // pred_check_branch
          %264 = sbr.rel (%p262) target = $region20
        $region19: #{swin_forward.18} parent=11 // pred_region
          _
        $region20: #{swin_forward.18} parent=11 // pred_fallthru
          _
        // Predicated region
        $region21: #{swin_forward.18} parent=11 // pred_check
          %p265 = pneg %p108
        $region22: #{swin_forward.18} parent=11 // pred_check_branch
          %267 = sbr.rel (%p265) target = $region24
        $region23: #{swin_forward.18} parent=11 // pred_region
          _
        $region24: #{swin_forward.18} parent=11 // pred_fallthru
          _
        // Predicated region
        $region25: #{swin_forward.18} parent=11 // pred_check
          %p268 = pneg %p129
        $region26: #{swin_forward.18} parent=11 // pred_check_branch
          %270 = sbr.rel (%p268) target = $region28
        $region27: #{swin_forward.18} parent=11 // pred_region
          _
        $region28: #{swin_forward.18} parent=11 // pred_fallthru
          _
        // Predicated region
        $region29: #{swin_forward.18} parent=11 // pred_check
          %p271 = pneg %p150
        $region30: #{swin_forward.18} parent=11 // pred_check_branch
          %273 = sbr.rel (%p271) target = $region32
        $region31: #{swin_forward.18} parent=11 // pred_region
          _
        $region32: #{swin_forward.18} parent=11 // pred_fallthru
          _
        // Predicated region
        $region33: #{swin_forward.18} parent=11 // pred_check
          %p274 = pneg %p171
        $region34: #{swin_forward.18} parent=11 // pred_check_branch
          %276 = sbr.rel (%p274) target = $region36
        $region35: #{swin_forward.18} parent=11 // pred_region
          _
        $region36: #{swin_forward.18} parent=11 // pred_fallthru
          _
        // Predicated region
        $region37: #{swin_forward.18} parent=11 // pred_check
          %p277 = pneg %p192
        $region38: #{swin_forward.18} parent=11 // pred_check_branch
          %279 = sbr.rel (%p277) target = $region40
        $region39: #{swin_forward.18} parent=11 // pred_region
          _
        $region40: #{swin_forward.18} parent=11 // pred_fallthru
          _
      $region12: #{swin_forward.18} parent=5 // pred_fallthru
        _
      %p280 = scmp.lt.s32.totalorder %s19, 2
      // Predicated region
      $region41: #{swin_forward.18} parent=5 // pred_check
        %p281 = pneg %p280
      $region42: #{swin_forward.18} parent=5 // pred_check_branch
        %283 = sbr.rel (%p281) target = $region44
      $region43: #{swin_forward.18} parent=5 // pred_region
        // Predicated region
        $region45: #{swin_forward.18} parent=43 // pred_check
          %p284 = pneg %p39
        $region46: #{swin_forward.18} parent=43 // pred_check_branch
          %286 = sbr.rel (%p284) target = $region48
        $region47: #{swin_forward.18} parent=43 // pred_region
          %s287 = smul.u32 2, %s19
          %p288 = scmp.lt.s32.totalorder %s287, 3
          %s289 = scalar_select %p288, %s287, 3
          %s290 = smul.addr %s289, 8
          %s291 = scalar_lea.vmem %s0, %s290
          %s292 = smul.u32 2, %s19
        $region48: #{swin_forward.18} parent=43 // pred_fallthru
          _
      $region44: #{swin_forward.18} parent=5 // pred_fallthru
        _
      %p293 = scmp.le.s32.totalorder 1, %s19
      %p294 = scmp.lt.s32.totalorder %s19, 3
      %p295 = pnand %p293, %p294
      %p296 = pneg %p295
      // Predicated region
      $region49: #{swin_forward.18} parent=5 // pred_check
        _
      $region50: #{swin_forward.18} parent=5 // pred_check_branch
        %298 = sbr.rel (%p295) target = $region52
      $region51: #{swin_forward.18} parent=5 // pred_region
        %s299 = ssub.s32 %s19, 1
        %s300 = smul.u32 2, %s24
        %p301 = scmp.lt.s32.totalorder %s300, 3
        %s302 = scalar_select %p301, %s300, 3
        %s303 = smul.addr %s302, 8
        %s304 = scalar_lea.vmem %s0, %s303
        %p305 = pneg %p45
        %p306 = pneg %p42
        %p307 = pneg %p66
        %p308 = pneg %p63
        %p309 = pneg %p87
        %p310 = pneg %p84
        %p311 = pneg %p108
        %p312 = pneg %p105
        %p313 = pneg %p129
        %p314 = pneg %p126
        %p315 = pneg %p150
        %p316 = pneg %p147
        %p317 = pneg %p171
        %p318 = pneg %p168
        %p319 = pneg %p192
        %p320 = pneg %p189
        %p321 = pneg %p218
        %p322 = pneg %p215
        %s323 = smul.u32 2, %s24
        %p324 = scmp.lt.s32.totalorder %s323, 3
        %s325 = scalar_select %p324, %s323, 3
        %s326 = smul.addr %s325, 8
        %s327 = scalar_lea.vmem %s8, %s326
        %p328 = pneg %p244
        %p329 = pneg %p241
        %s330 = sand.u32 %s231, 1
        %s331 = scalar_lea.sflag [#allocation3], %s330
        %s332 = sand.u32 %s231, 1
        %s333 = scalar_lea.vmem [#allocation2], %s332
        %s334 = smul.u32 2, %s24
        %p335 = scmp.lt.s32.totalorder %s334, 3
        %s336 = scalar_select %p335, %s334, 3
        %s337 = smul.addr %s336, 8
        %s338 = scalar_lea.vmem %s0, %s337
        %s339 = smul.u32 2, %s24
        %s340 = smul.u32 2, %s24
        %p341 = scmp.lt.s32.totalorder %s340, 3
        %s342 = scalar_select %p341, %s340, 3
        %s343 = smul.addr %s342, 8
        %s344 = scalar_lea.vmem %s8, %s343
        %s345 = smul.u32 2, %s24
        %v347 = vld [vmem:[%s338] sm:$0xff]
        %v348 = vld [vmem:[%s338 + $0x8] sm:$0xff]
        %v349 = vld [vmem:[%s1] sm:$0x1]
        %v350 = vld [vmem:[%s2] sm:$0x1]
        %vm351 = vcmask 261120
        %v352 = vsel %vm351, %v347, 0.0
        %353 = vadd.xlane.f32.xlu0 %v352
        %v354 = vpop.xlane.xlu0 %353
        %v355 = vsel %vm351, %v348, 0.0
        %356 = vadd.xlane.f32.xlu0 %v355
        %v357 = vpop.xlane.xlu0 %356
        %v358 = vrcp.pop 32.0
        %v359 = vmul.f32 32.0, %v358
        %v360 = vsub.f32 1.0, %v359
        %v361 = vmul.f32 %v358, %v360
        %v362 = vadd.f32 %v358, %v361
        %vm363 = vweird.f32 %v358
        %v364 = vsel %vm363, %v358, %v362
        %v365 = vmul.f32 %v354, %v364
        %v366 = vmul.f32 %v357, %v364
        %v367 = vsub.f32 %v347, %v365
        %v368 = vsub.f32 %v348, %v366
        %v369 = vmul.f32 %v367, %v367
        %v370 = vmul.f32 %v368, %v368
        %v371 = vsel %vm351, %v369, 0.0
        %372 = vadd.xlane.f32.xlu0 %v371
        %v373 = vpop.xlane.xlu0 %372
        %v374 = vsel %vm351, %v370, 0.0
        %375 = vadd.xlane.f32.xlu0 %v374
        %v376 = vpop.xlane.xlu0 %375
        %v377 = vmul.f32 %v373, %v364
        %v378 = vmul.f32 %v376, %v364
        %v379 = vadd.f32 %v377, 1e-05
        %v380 = vadd.f32 %v378, 1e-05
        %v381 = vrsqrt.pop %v379
        %v382 = vmul.f32 %v381, %v379
        %v383 = vmul.f32 %v382, %v381
        %v384 = vmul.f32 0.5, %v383
        %v385 = vsub.f32 1.5, %v384
        %v386 = vmul.f32 %v381, %v385
        %vm387 = vweird.f32 %v379
        %vm388 = vweird.f32 %v381
        %vm389 = vmor %vm387, %vm388
        %v390 = vsel %vm389, %v381, %v386
        %v391 = vrsqrt.pop %v380
        %v392 = vmul.f32 %v391, %v380
        %v393 = vmul.f32 %v392, %v391
        %v394 = vmul.f32 0.5, %v393
        %v395 = vsub.f32 1.5, %v394
        %v396 = vmul.f32 %v391, %v395
        %vm397 = vweird.f32 %v380
        %vm398 = vweird.f32 %v391
        %vm399 = vmor %vm397, %vm398
        %v400 = vsel %vm399, %v391, %v396
        %v401 = vmul.f32 %v367, %v390
        %v402 = vmul.f32 %v368, %v400
        %v404 = vperm.slane %v349, 0
        %v406 = vmul.f32 %v401, %v404
        %v407 = vmul.f32 %v402, %v404
        %v409 = vperm.slane %v350, 0
        %v411 = vadd.f32 %v406, %v409
        %v412 = vadd.f32 %v407, %v409
        %v413 = vpack.c.bf16 %v412, %v411
        %v414 = vld [vmem:[%s3] sm:$0xf]
        %v415 = vld [vmem:[%s3 + $0x4] sm:$0xf]
        %v416 = vld [vmem:[%s3 + $0x8] sm:$0xf]
        %v417 = vld [vmem:[%s3 + $0xc] sm:$0xf]
        %v418 = vld [vmem:[%s4] sm:$0x1]
        %v420 = vperm.slane %v418, 0
        %v426 = vunpack.c.l.b16 %v414
        %v427 = vunpack.c.l.b16 %v415
        %v428 = vunpack.c.l.b16 %v416
        %v429 = vunpack.c.l.b16 %v417
        %v430 = vpack.c.b16 %v427, %v426
        %v431 = vpack.c.b16 %v429, %v428
        %v435 = vsel %vm351, %v413, 0
        %437 = vmatpush.bf16.msra.mxu0 0
        %438 = vmatpush.bf16.msra.mxu0 0
        %439 = vmatpush.bf16.msra.mxu0 0
        %440 = vmatpush.bf16.msra.mxu0 0
        %441 = vmatpush.bf16.msra.mxu0 0
        %442 = vmatpush.bf16.msra.mxu0 0
        %443 = vmatpush.bf16.msra.mxu0 %v431
        %444 = vmatpush.bf16.msra.mxu0 %v430
        %445 = vmatmul.bf16.gmra.mxu0 %v435
        %v446 = vpop.f32.mrf.mxu0
        %v447 = vadd.f32 %v420, %v446
        %v448 = vpop.f32.mrf.mxu0
        %v449 = vadd.f32 %v420, %v448
        %450 = vdwg.mxu0
        %v451 = vld [vmem:[%s7] sm:$0xff]
        %v452 = vld [vmem:[%s7 + $0x8] sm:$0xff]
        %v453 = vld [vmem:[%s7 + $0x10] sm:$0xff]
        %v454 = vld [vmem:[%s7 + $0x18] sm:$0xff]
        %v455 = vld [vmem:[%s7 + $0x20] sm:$0xff]
        %v456 = vld [vmem:[%s7 + $0x28] sm:$0xff]
        %v457 = vld [vmem:[%s7 + $0x30] sm:$0xff]
        %v458 = vld [vmem:[%s7 + $0x38] sm:$0xff]
        %v459 = vmul.f32 %v447, 0.35355338
        %v460 = vmul.f32 %v449, 0.35355338
        %463 = vrot.lane.b32.xlu0 %v447, 96
        %v464 = vpop.permute.xlu0 %463
        %465 = vrot.lane.b32.xlu0 %v449, 96
        %v466 = vpop.permute.xlu0 %465
        %vm467 = vcmask 64512
        %v469 = vsel %vm467, %v459, 0
        %v472 = vsel %vm467, %v460, 0
        %v474 = vsel %vm467, %v464, 0
        %v476 = vsel %vm467, %v466, 0
        %478 = vmatpush.xpose.msra.mxu0 0.0
        %479 = vmatpush.xpose.msra.mxu0 0.0
        %480 = vmatpush.xpose.msra.mxu0 0.0
        %481 = vmatpush.xpose.msra.mxu0 0.0
        %482 = vmatpush.xpose.msra.mxu0 0.0
        %483 = vmatpush.xpose.msra.mxu0 0.0
        %484 = vmatpush.xpose.msra.mxu0 0.0
        %485 = vmatpush.xpose.msra.mxu0 0.0
        %486 = vmatpush.xpose.msra.mxu0 0.0
        %487 = vmatpush.xpose.msra.mxu0 0.0
        %488 = vmatpush.xpose.msra.mxu0 0.0
        %489 = vmatpush.xpose.msra.mxu0 0.0
        %490 = vmatpush.xpose.msra.mxu0 0.0
        %491 = vmatpush.xpose.msra.mxu0 0.0
        %492 = vmatpush.xpose.msra.mxu0 %v476
        %493 = vmatpush.xpose.msra.mxu0 %v474
        %494 = vmatmul.f32.gmra.mxu0 %v469
        %v495 = vpop.f32.mrf.mxu0
        %v496 = vadd.f32 %v451, %v495
        %497 = vmatmul.f32.gmra.mxu0 %v472
        %v498 = vpop.f32.mrf.mxu0
        %v499 = vadd.f32 %v452, %v498
        %500 = vdwg.mxu0
        %vm501 = vcmask 130048
        %v502 = vsel %vm501, %v496, -inf
        %503 = vmax.xlane.f32.xlu0 %v502
        %v504 = vpop.xlane.xlu0 %503
        %v505 = vsel %vm501, %v499, -inf
        %506 = vmax.xlane.f32.xlu0 %v505
        %v507 = vpop.xlane.xlu0 %506
        %v508 = vsub.f32 %v496, %v504
        %v509 = vsub.f32 %v499, %v507
        %v510 = vmul.f32 %v508, 1.442695
        %v511 = vpow.pop %v510
        %v512 = vmul.f32 %v509, 1.442695
        %v513 = vpow.pop %v512
        %v514 = vsel %vm501, %v511, 0.0
        %515 = vadd.xlane.f32.xlu0 %v514
        %v516 = vpop.xlane.xlu0 %515
        %v517 = vsel %vm501, %v513, 0.0
        %518 = vadd.xlane.f32.xlu0 %v517
        %v519 = vpop.xlane.xlu0 %518
        %v520 = vrcp.pop %v516
        %v521 = vrcp.pop %v519
        %v522 = vmul.f32 %v511, %v520
        %v523 = vmul.f32 %v513, %v521
        %v524 = vadd.f32 %v522, 0.0
        %525 = vrot.lane.b32.xlu0 %v447, 64
        %v526 = vpop.permute.xlu0 %525
        %527 = vrot.lane.b32.xlu0 %v449, 64
        %v528 = vpop.permute.xlu0 %527
        %v532 = vsel %vm501, %v522, 0
        %v535 = vsel %vm501, %v523, 0
        %537 = vmatpush.msra.mxu0 0.0
        %538 = vmatpush.msra.mxu0 0.0
        %539 = vmatpush.msra.mxu0 0.0
        %540 = vmatpush.msra.mxu0 0.0
        %541 = vmatpush.msra.mxu0 0.0
        %542 = vmatpush.msra.mxu0 0.0
        %543 = vmatpush.msra.mxu0 0.0
        %544 = vmatpush.msra.mxu0 0.0
        %545 = vmatpush.msra.mxu0 0.0
        %546 = vmatpush.msra.mxu0 0.0
        %547 = vmatpush.msra.mxu0 0.0
        %548 = vmatpush.msra.mxu0 0.0
        %549 = vmatpush.msra.mxu0 0.0
        %550 = vmatpush.msra.mxu0 0.0
        %551 = vmatpush.msra.mxu0 %v528
        %552 = vmatpush.msra.mxu0 %v526
        %553 = vmatmul.f32.gmra.mxu0 %v532
        %v554 = vpop.f32.mrf.mxu0
        %v555 = vadd.f32 0.0, %v554
        %556 = vmatmul.f32.gmra.mxu0 %v535
        %v557 = vpop.f32.mrf.mxu0
        %v558 = vadd.f32 0.0, %v557
        %559 = vdwg.mxu0
        %560 = vrot.lane.b32.xlu0 %v459, 120
        %v561 = vpop.permute.xlu0 %560
        %562 = vrot.lane.b32.xlu0 %v460, 120
        %v563 = vpop.permute.xlu0 %562
        %564 = vrot.lane.b32.xlu0 %v447, 88
        %v565 = vpop.permute.xlu0 %564
        %566 = vrot.lane.b32.xlu0 %v449, 88
        %v567 = vpop.permute.xlu0 %566
        %v568 = vsel %vm467, %v561, 0
        %v570 = vsel %vm467, %v563, 0
        %v572 = vsel %vm467, %v565, 0
        %v574 = vsel %vm467, %v567, 0
        %576 = vmatpush.xpose.msra.mxu0 0.0
        %577 = vmatpush.xpose.msra.mxu0 0.0
        %578 = vmatpush.xpose.msra.mxu0 0.0
        %579 = vmatpush.xpose.msra.mxu0 0.0
        %580 = vmatpush.xpose.msra.mxu0 0.0
        %581 = vmatpush.xpose.msra.mxu0 0.0
        %582 = vmatpush.xpose.msra.mxu0 0.0
        %583 = vmatpush.xpose.msra.mxu0 0.0
        %584 = vmatpush.xpose.msra.mxu0 0.0
        %585 = vmatpush.xpose.msra.mxu0 0.0
        %586 = vmatpush.xpose.msra.mxu0 0.0
        %587 = vmatpush.xpose.msra.mxu0 0.0
        %588 = vmatpush.xpose.msra.mxu0 0.0
        %589 = vmatpush.xpose.msra.mxu0 0.0
        %590 = vmatpush.xpose.msra.mxu0 %v574
        %591 = vmatpush.xpose.msra.mxu0 %v572
        %592 = vmatmul.f32.gmra.mxu0 %v568
        %v593 = vpop.f32.mrf.mxu0
        %v594 = vadd.f32 %v453, %v593
        %595 = vmatmul.f32.gmra.mxu0 %v570
        %v596 = vpop.f32.mrf.mxu0
        %v597 = vadd.f32 %v454, %v596
        %598 = vdwg.mxu0
        %v599 = vsel %vm501, %v594, -inf
        %600 = vmax.xlane.f32.xlu0 %v599
        %v601 = vpop.xlane.xlu0 %600
        %v602 = vsel %vm501, %v597, -inf
        %603 = vmax.xlane.f32.xlu0 %v602
        %v604 = vpop.xlane.xlu0 %603
        %v605 = vsub.f32 %v594, %v601
        %v606 = vsub.f32 %v597, %v604
        %v607 = vmul.f32 %v605, 1.442695
        %v608 = vpow.pop %v607
        %v609 = vmul.f32 %v606, 1.442695
        %v610 = vpow.pop %v609
        %v611 = vsel %vm501, %v608, 0.0
        %612 = vadd.xlane.f32.xlu0 %v611
        %v613 = vpop.xlane.xlu0 %612
        %v614 = vsel %vm501, %v610, 0.0
        %615 = vadd.xlane.f32.xlu0 %v614
        %v616 = vpop.xlane.xlu0 %615
        %v617 = vrcp.pop %v613
        %v618 = vrcp.pop %v616
        %v619 = vmul.f32 %v608, %v617
        %v620 = vmul.f32 %v610, %v618
        %v621 = vadd.f32 %v524, %v619
        %622 = vrot.lane.b32.xlu0 %v447, 56
        %v623 = vpop.permute.xlu0 %622
        %624 = vrot.lane.b32.xlu0 %v449, 56
        %v625 = vpop.permute.xlu0 %624
        %v629 = vsel %vm501, %v619, 0
        %v632 = vsel %vm501, %v620, 0
        %634 = vmatpush.msra.mxu0 0.0
        %635 = vmatpush.msra.mxu0 0.0
        %636 = vmatpush.msra.mxu0 0.0
        %637 = vmatpush.msra.mxu0 0.0
        %638 = vmatpush.msra.mxu0 0.0
        %639 = vmatpush.msra.mxu0 0.0
        %640 = vmatpush.msra.mxu0 0.0
        %641 = vmatpush.msra.mxu0 0.0
        %642 = vmatpush.msra.mxu0 0.0
        %643 = vmatpush.msra.mxu0 0.0
        %644 = vmatpush.msra.mxu0 0.0
        %645 = vmatpush.msra.mxu0 0.0
        %646 = vmatpush.msra.mxu0 0.0
        %647 = vmatpush.msra.mxu0 0.0
        %648 = vmatpush.msra.mxu0 %v625
        %649 = vmatpush.msra.mxu0 %v623
        %650 = vmatmul.f32.gmra.mxu0 %v629
        %v651 = vpop.f32.mrf.mxu0
        %v652 = vadd.f32 0.0, %v651
        %653 = vmatmul.f32.gmra.mxu0 %v632
        %v654 = vpop.f32.mrf.mxu0
        %v655 = vadd.f32 0.0, %v654
        %656 = vdwg.mxu0
        %657 = vrot.lane.b32.xlu0 %v459, 112
        %v658 = vpop.permute.xlu0 %657
        %659 = vrot.lane.b32.xlu0 %v460, 112
        %v660 = vpop.permute.xlu0 %659
        %661 = vrot.lane.b32.xlu0 %v447, 80
        %v662 = vpop.permute.xlu0 %661
        %663 = vrot.lane.b32.xlu0 %v449, 80
        %v664 = vpop.permute.xlu0 %663
        %v665 = vsel %vm467, %v658, 0
        %v667 = vsel %vm467, %v660, 0
        %v669 = vsel %vm467, %v662, 0
        %v671 = vsel %vm467, %v664, 0
        %673 = vmatpush.xpose.msra.mxu0 0.0
        %674 = vmatpush.xpose.msra.mxu0 0.0
        %675 = vmatpush.xpose.msra.mxu0 0.0
        %676 = vmatpush.xpose.msra.mxu0 0.0
        %677 = vmatpush.xpose.msra.mxu0 0.0
        %678 = vmatpush.xpose.msra.mxu0 0.0
        %679 = vmatpush.xpose.msra.mxu0 0.0
        %680 = vmatpush.xpose.msra.mxu0 0.0
        %681 = vmatpush.xpose.msra.mxu0 0.0
        %682 = vmatpush.xpose.msra.mxu0 0.0
        %683 = vmatpush.xpose.msra.mxu0 0.0
        %684 = vmatpush.xpose.msra.mxu0 0.0
        %685 = vmatpush.xpose.msra.mxu0 0.0
        %686 = vmatpush.xpose.msra.mxu0 0.0
        %687 = vmatpush.xpose.msra.mxu0 %v671
        %688 = vmatpush.xpose.msra.mxu0 %v669
        %689 = vmatmul.f32.gmra.mxu0 %v665
        %v690 = vpop.f32.mrf.mxu0
        %v691 = vadd.f32 %v455, %v690
        %692 = vmatmul.f32.gmra.mxu0 %v667
        %v693 = vpop.f32.mrf.mxu0
        %v694 = vadd.f32 %v456, %v693
        %695 = vdwg.mxu0
        %v696 = vsel %vm501, %v691, -inf
        %697 = vmax.xlane.f32.xlu0 %v696
        %v698 = vpop.xlane.xlu0 %697
        %v699 = vsel %vm501, %v694, -inf
        %700 = vmax.xlane.f32.xlu0 %v699
        %v701 = vpop.xlane.xlu0 %700
        %v702 = vsub.f32 %v691, %v698
        %v703 = vsub.f32 %v694, %v701
        %v704 = vmul.f32 %v702, 1.442695
        %v705 = vpow.pop %v704
        %v706 = vmul.f32 %v703, 1.442695
        %v707 = vpow.pop %v706
        %v708 = vsel %vm501, %v705, 0.0
        %709 = vadd.xlane.f32.xlu0 %v708
        %v710 = vpop.xlane.xlu0 %709
        %v711 = vsel %vm501, %v707, 0.0
        %712 = vadd.xlane.f32.xlu0 %v711
        %v713 = vpop.xlane.xlu0 %712
        %v714 = vrcp.pop %v710
        %v715 = vrcp.pop %v713
        %v716 = vmul.f32 %v705, %v714
        %v717 = vmul.f32 %v707, %v715
        %v718 = vadd.f32 %v621, %v716
        %719 = vrot.lane.b32.xlu0 %v447, 48
        %v720 = vpop.permute.xlu0 %719
        %721 = vrot.lane.b32.xlu0 %v449, 48
        %v722 = vpop.permute.xlu0 %721
        %v726 = vsel %vm501, %v716, 0
        %v729 = vsel %vm501, %v717, 0
        %731 = vmatpush.msra.mxu0 0.0
        %732 = vmatpush.msra.mxu0 0.0
        %733 = vmatpush.msra.mxu0 0.0
        %734 = vmatpush.msra.mxu0 0.0
        %735 = vmatpush.msra.mxu0 0.0
        %736 = vmatpush.msra.mxu0 0.0
        %737 = vmatpush.msra.mxu0 0.0
        %738 = vmatpush.msra.mxu0 0.0
        %739 = vmatpush.msra.mxu0 0.0
        %740 = vmatpush.msra.mxu0 0.0
        %741 = vmatpush.msra.mxu0 0.0
        %742 = vmatpush.msra.mxu0 0.0
        %743 = vmatpush.msra.mxu0 0.0
        %744 = vmatpush.msra.mxu0 0.0
        %745 = vmatpush.msra.mxu0 %v722
        %746 = vmatpush.msra.mxu0 %v720
        %747 = vmatmul.f32.gmra.mxu0 %v726
        %v748 = vpop.f32.mrf.mxu0
        %v749 = vadd.f32 0.0, %v748
        %750 = vmatmul.f32.gmra.mxu0 %v729
        %v751 = vpop.f32.mrf.mxu0
        %v752 = vadd.f32 0.0, %v751
        %753 = vdwg.mxu0
        %754 = vrot.lane.b32.xlu0 %v459, 104
        %v755 = vpop.permute.xlu0 %754
        %756 = vrot.lane.b32.xlu0 %v460, 104
        %v757 = vpop.permute.xlu0 %756
        %758 = vrot.lane.b32.xlu0 %v447, 72
        %v759 = vpop.permute.xlu0 %758
        %760 = vrot.lane.b32.xlu0 %v449, 72
        %v761 = vpop.permute.xlu0 %760
        %v762 = vsel %vm467, %v755, 0
        %v764 = vsel %vm467, %v757, 0
        %v766 = vsel %vm467, %v759, 0
        %v768 = vsel %vm467, %v761, 0
        %770 = vmatpush.xpose.msra.mxu0 0.0
        %771 = vmatpush.xpose.msra.mxu0 0.0
        %772 = vmatpush.xpose.msra.mxu0 0.0
        %773 = vmatpush.xpose.msra.mxu0 0.0
        %774 = vmatpush.xpose.msra.mxu0 0.0
        %775 = vmatpush.xpose.msra.mxu0 0.0
        %776 = vmatpush.xpose.msra.mxu0 0.0
        %777 = vmatpush.xpose.msra.mxu0 0.0
        %778 = vmatpush.xpose.msra.mxu0 0.0
        %779 = vmatpush.xpose.msra.mxu0 0.0
        %780 = vmatpush.xpose.msra.mxu0 0.0
        %781 = vmatpush.xpose.msra.mxu0 0.0
        %782 = vmatpush.xpose.msra.mxu0 0.0
        %783 = vmatpush.xpose.msra.mxu0 0.0
        %784 = vmatpush.xpose.msra.mxu0 %v768
        %785 = vmatpush.xpose.msra.mxu0 %v766
        %786 = vmatmul.f32.gmra.mxu0 %v762
        %v787 = vpop.f32.mrf.mxu0
        %v788 = vadd.f32 %v457, %v787
        %789 = vmatmul.f32.gmra.mxu0 %v764
        %v790 = vpop.f32.mrf.mxu0
        %v791 = vadd.f32 %v458, %v790
        %792 = vdwg.mxu0
        %v793 = vsel %vm501, %v788, -inf
        %794 = vmax.xlane.f32.xlu0 %v793
        %v795 = vpop.xlane.xlu0 %794
        %v796 = vsel %vm501, %v791, -inf
        %797 = vmax.xlane.f32.xlu0 %v796
        %v798 = vpop.xlane.xlu0 %797
        %v799 = vsub.f32 %v788, %v795
        %v800 = vsub.f32 %v791, %v798
        %v801 = vmul.f32 %v799, 1.442695
        %v802 = vpow.pop %v801
        %v803 = vmul.f32 %v800, 1.442695
        %v804 = vpow.pop %v803
        %v805 = vsel %vm501, %v802, 0.0
        %806 = vadd.xlane.f32.xlu0 %v805
        %v807 = vpop.xlane.xlu0 %806
        %v808 = vsel %vm501, %v804, 0.0
        %809 = vadd.xlane.f32.xlu0 %v808
        %v810 = vpop.xlane.xlu0 %809
        %v811 = vrcp.pop %v807
        %v812 = vrcp.pop %v810
        %v813 = vmul.f32 %v802, %v811
        %v814 = vmul.f32 %v804, %v812
        %v815 = vadd.f32 %v718, %v813
        %816 = vrot.lane.b32.xlu0 %v447, 40
        %v817 = vpop.permute.xlu0 %816
        %818 = vrot.lane.b32.xlu0 %v449, 40
        %v819 = vpop.permute.xlu0 %818
        %v823 = vsel %vm501, %v813, 0
        %v826 = vsel %vm501, %v814, 0
        %828 = vmatpush.msra.mxu0 0.0
        %829 = vmatpush.msra.mxu0 0.0
        %830 = vmatpush.msra.mxu0 0.0
        %831 = vmatpush.msra.mxu0 0.0
        %832 = vmatpush.msra.mxu0 0.0
        %833 = vmatpush.msra.mxu0 0.0
        %834 = vmatpush.msra.mxu0 0.0
        %835 = vmatpush.msra.mxu0 0.0
        %836 = vmatpush.msra.mxu0 0.0
        %837 = vmatpush.msra.mxu0 0.0
        %838 = vmatpush.msra.mxu0 0.0
        %839 = vmatpush.msra.mxu0 0.0
        %840 = vmatpush.msra.mxu0 0.0
        %841 = vmatpush.msra.mxu0 0.0
        %842 = vmatpush.msra.mxu0 %v819
        %843 = vmatpush.msra.mxu0 %v817
        %844 = vmatmul.f32.gmra.mxu0 %v823
        %v845 = vpop.f32.mrf.mxu0
        %v846 = vadd.f32 0.0, %v845
        %847 = vmatmul.f32.gmra.mxu0 %v826
        %v848 = vpop.f32.mrf.mxu0
        %v849 = vadd.f32 0.0, %v848
        %850 = vdwg.mxu0
        %853 = vrot.lane.b32.xlu0 %v652, 8
        %v854 = vpop.permute.xlu0 %853
        %855 = vrot.lane.b32.xlu0 %v655, 8
        %v856 = vpop.permute.xlu0 %855
        %861 = vrot.lane.b32.xlu0 %v749, 16
        %v862 = vpop.permute.xlu0 %861
        %863 = vrot.lane.b32.xlu0 %v752, 16
        %v864 = vpop.permute.xlu0 %863
        %869 = vrot.lane.b32.xlu0 %v846, 24
        %v870 = vpop.permute.xlu0 %869
        %871 = vrot.lane.b32.xlu0 %v849, 24
        %v872 = vpop.permute.xlu0 %871
        %v875 = vsel %vm467, %v555, %v854
        %v876 = vsel %vm467, %v558, %v856
        %v877 = vsel %vm501, %v875, %v862
        %v878 = vsel %vm501, %v876, %v864
        %vm879 = vcmask 195584
        %v880 = vsel %vm879, %v877, %v870
        %v881 = vsel %vm879, %v878, %v872
        %v882 = vpack.c.bf16 %v881, %v880
        %v883 = vld [vmem:[%s5] sm:$0xf]
        %v884 = vld [vmem:[%s5 + $0x4] sm:$0xf]
        %v885 = vld [vmem:[%s5 + $0x8] sm:$0xf]
        %v886 = vld [vmem:[%s5 + $0xc] sm:$0xf]
        %v887 = vld [vmem:[%s6] sm:$0x1]
        %v889 = vperm.slane %v887, 0
        %v895 = vunpack.c.l.b16 %v883
        %v896 = vunpack.c.l.b16 %v884
        %v897 = vunpack.c.l.b16 %v885
        %v898 = vunpack.c.l.b16 %v886
        %v899 = vpack.c.b16 %v896, %v895
        %v900 = vpack.c.b16 %v898, %v897
        %v904 = vsel %vm351, %v882, 0
        %906 = vmatpush.bf16.msra.mxu0 0
        %907 = vmatpush.bf16.msra.mxu0 0
        %908 = vmatpush.bf16.msra.mxu0 0
        %909 = vmatpush.bf16.msra.mxu0 0
        %910 = vmatpush.bf16.msra.mxu0 0
        %911 = vmatpush.bf16.msra.mxu0 0
        %912 = vmatpush.bf16.msra.mxu0 %v900
        %913 = vmatpush.bf16.msra.mxu0 %v899
        %914 = vmatmul.bf16.gmra.mxu0 %v904
        %v915 = vpop.f32.mrf.mxu0
        %v916 = vadd.f32 %v889, %v915
        %v917 = vpop.f32.mrf.mxu0
        %v918 = vadd.f32 %v889, %v917
        %919 = vdwg.mxu0
        %v920 = vadd.f32 %v916, %v347
        %v921 = vadd.f32 %v918, %v348
        %922 = vst.msk [vmem:[%s344] sm:$0xff] %vm351, %v920
        %923 = vst.msk [vmem:[%s344 + $0x8] sm:$0xff] %vm351, %v921
        %v924 = vmul.f32 %v815, 0.25
        %v925 = vsel %vm501, %v924, 0.0
        %926 = vst [vmem:[%s333] sm:$0x1] %v925
        %s927 = smul.u32 2, %s24
        %p928 = scmp.lt.s32.totalorder %s927, 3
        %s929 = scalar_select %p928, %s927, 3
        %s930 = smul.addr %s929, 8
        %s931 = scalar_lea.vmem %s8, %s930
        %s932 = sand.u32 %s231, 1
        %s933 = scalar_lea.sflag [#allocation3], %s932
        %s934 = sand.u32 %s231, 1
        %s935 = scalar_lea.vmem [#allocation2], %s934
        // Predicated region
        $region53: #{swin_forward.18} parent=51 // pred_check
          %p936 = pneg %p215
        $region54: #{swin_forward.18} parent=51 // pred_check_branch
          %938 = sbr.rel (%p936) target = $region56
        $region55: #{swin_forward.18} parent=51 // pred_region
          %s939 = smul.u32 2, %s24
        $region56: #{swin_forward.18} parent=51 // pred_fallthru
          _
        // Predicated region
        $region57: #{swin_forward.18} parent=51 // pred_check
          %p940 = pneg %p241
        $region58: #{swin_forward.18} parent=51 // pred_check_branch
          %942 = sbr.rel (%p940) target = $region60
        $region59: #{swin_forward.18} parent=51 // pred_region
          %944 = vsyncadd %s933, 0
          %s945 = scalar_lea.hbm %s9, %s24
          %s947 = sshll.u32 %s935, 4
          %s948 = int_to_ptr.vmem [resolvable:$true] %s947
          %s949 = sshll.u32 %s945, 4
          %s950 = int_to_ptr.hbm [resolvable:$true] %s949
          %952 = dma.vmem_to_hbm [thread:$0]  %s948, 16, %s950, %s933
        $region60: #{swin_forward.18} parent=51 // pred_fallthru
          _
      $region52: #{swin_forward.18} parent=5 // pred_fallthru
        _
      %p953 = scmp.le.s32.totalorder 2, %s19
      // Predicated region
      $region61: #{swin_forward.18} parent=5 // pred_check
        %p954 = pneg %p953
      $region62: #{swin_forward.18} parent=5 // pred_check_branch
        %956 = sbr.rel (%p954) target = $region64
      $region63: #{swin_forward.18} parent=5 // pred_region
        %s957 = ssub.s32 %s19, 2
        // Predicated region
        $region65: #{swin_forward.18} parent=63 // pred_check
          %p958 = pneg %p221
        $region66: #{swin_forward.18} parent=63 // pred_check_branch
          %960 = sbr.rel (%p958) target = $region68
        $region67: #{swin_forward.18} parent=63 // pred_region
          %s961 = smul.u32 2, %s25
          %p962 = scmp.lt.s32.totalorder %s961, 3
          %s963 = scalar_select %p962, %s961, 3
          %s964 = smul.addr %s963, 8
          %s965 = scalar_lea.vmem %s8, %s964
        $region68: #{swin_forward.18} parent=63 // pred_fallthru
          _
        // Predicated region
        $region69: #{swin_forward.18} parent=63 // pred_check
          %p966 = pneg %p247
        $region70: #{swin_forward.18} parent=63 // pred_check_branch
          %968 = sbr.rel (%p966) target = $region72
        $region71: #{swin_forward.18} parent=63 // pred_region
          %s969 = sand.u32 %s232, 1
          %s970 = scalar_lea.sflag [#allocation3], %s969
          %s971 = sand.u32 %s232, 1
          %s972 = scalar_lea.vmem [#allocation2], %s971
          %974 = dma.done %s970, 16
        $region72: #{swin_forward.18} parent=63 // pred_fallthru
          _
      $region64: #{swin_forward.18} parent=5 // pred_fallthru
        _
    $region6: #{swin_forward.18} parent=1 // loop_footer
      %s23 = sadd.s32 1, %s19
    $region7: #{swin_forward.18} parent=1 // loop_footer_branch
      %18 = sbr.rel target = $region3
    $region8: #{swin_forward.18} parent=1 // loop_exit
      _
    %975 = vsyncpa [#allocation3], 1
    %s976 = scalar_lea.sflag [#allocation3], 1
    %977 = vsyncpa %s976, 1

// kernel: swin_forward.22
$region0: #{swin_forward.22}
  #allocation0 [shape = 'u32[]', space=smem, size = 0x4, offset = 0x4, fixed_abs, tag = 'smem constant byte address 0x4 - core index']
  #allocation1 [shape = 'u32[72,128]{1,0:T(1,128)}', space=vmem, size = 0x9000, scoped, tag = 'internal scratch']
  %s0 = inlined_call_operand.vmem [shape: f32[32,32], index: 0, kind: input, shape index: {}]
  %s1 = inlined_call_operand.vmem [shape: f32[1,32], index: 1, kind: input, shape index: {}]
  %s2 = inlined_call_operand.vmem [shape: f32[1,32], index: 2, kind: input, shape index: {}]
  %s3 = inlined_call_operand.vmem [shape: f32[32,32], index: 3, kind: output, shape index: {}]
  %s4 = sld [smem:[#allocation0]]
  $region45: #{swin_forward.22} parent=0
    _
  %s6 = ssub.s32 1, %s4
  %s7 = scalar_select 0, %s6, %s4
  loop: start=0, step=1, limit=4
  $region2: #{swin_forward.22} parent=0 // loop_pre_header
    _
  $region3: #{swin_forward.22} parent=0 // loop_header
    %s9 = sphi 0, %s13
    %p10 = scmp.ge.s32.totalorder %s9, 4
    %s19 = sphi 0, %s21
    %s22 = sphi 0, %s19
    %s23 = sphi 0, %s22
    %s39 = sphi 0, %s23
    %s43 = sphi 0, %s43
    %s45 = sphi 0, %s43
    %s46 = sphi 0, %s45
    %s60 = sphi 0, %s46
    %s64 = sphi 0, %s64
    %s66 = sphi 0, %s64
    %s67 = sphi 0, %s66
    %s81 = sphi 0, %s67
    %s87 = sphi 0, %s89
    %s90 = sphi 0, %s87
    %s91 = sphi 0, %s90
    %s107 = sphi 0, %s91
  $region4: #{swin_forward.22} parent=0 // loop_header_branch
    %12 = sbr.rel (%p10) target = $region8
  $region5: #{swin_forward.22} parent=0 // loop_body
    %s14 = ssub.s32 %s9, 1
    %s15 = ssub.s32 %s9, 2
    %s16 = sadd.s32 %s9, 1
    %s17 = ssub.s32 %s9, %s16
    %p18 = scmp.eq.s32.totalorder %s17, 0
    %s20 = sadd.s32 %s19, 1
    %s21 = scalar_select %p18, %s19, %s20
    %p24 = pneg %p18
    %p25 = scmp.eq.s32.totalorder %s9, 1
    %p26 = por %p24, %p25
    %p27 = scmp.ne.s32.totalorder %s19, %s22
    %p28 = scmp.eq.s32.totalorder %s9, 0
    %p29 = por %p27, %p28
    %p30 = scmp.ne.s32.totalorder %s19, %s22
    %p31 = scmp.eq.s32.totalorder %s14, 1
    %p32 = por %p30, %p31
    %p33 = scmp.ne.s32.totalorder %s22, %s23
    %p34 = scmp.eq.s32.totalorder %s14, 0
    %p35 = por %p33, %p34
    %p36 = scmp.ne.s32.totalorder %s22, %s23
    %p37 = scmp.eq.s32.totalorder %s15, 1
    %p38 = por %p36, %p37
    %p40 = scmp.ne.s32.totalorder %s23, %s39
    %p41 = scmp.eq.s32.totalorder %s15, 0
    %p42 = por %p40, %p41
    %s44 = sadd.s32 %s43, 1
    %p47 = scmp.eq.s32.totalorder %s9, 1
    %p48 = scmp.ne.s32.totalorder %s43, %s45
    %p49 = scmp.eq.s32.totalorder %s9, 0
    %p50 = por %p48, %p49
    %p51 = scmp.ne.s32.totalorder %s43, %s45
    %p52 = scmp.eq.s32.totalorder %s14, 1
    %p53 = por %p51, %p52
    %p54 = scmp.ne.s32.totalorder %s45, %s46
    %p55 = scmp.eq.s32.totalorder %s14, 0
    %p56 = por %p54, %p55
    %p57 = scmp.ne.s32.totalorder %s45, %s46
    %p58 = scmp.eq.s32.totalorder %s15, 1
    %p59 = por %p57, %p58
    %p61 = scmp.ne.s32.totalorder %s46, %s60
    %p62 = scmp.eq.s32.totalorder %s15, 0
    %p63 = por %p61, %p62
    %s65 = sadd.s32 %s64, 1
    %p68 = scmp.eq.s32.totalorder %s9, 1
    %p69 = scmp.ne.s32.totalorder %s64, %s66
    %p70 = scmp.eq.s32.totalorder %s9, 0
    %p71 = por %p69, %p70
    %p72 = scmp.ne.s32.totalorder %s64, %s66
    %p73 = scmp.eq.s32.totalorder %s14, 1
    %p74 = por %p72, %p73
    %p75 = scmp.ne.s32.totalorder %s66, %s67
    %p76 = scmp.eq.s32.totalorder %s14, 0
    %p77 = por %p75, %p76
    %p78 = scmp.ne.s32.totalorder %s66, %s67
    %p79 = scmp.eq.s32.totalorder %s15, 1
    %p80 = por %p78, %p79
    %p82 = scmp.ne.s32.totalorder %s67, %s81
    %p83 = scmp.eq.s32.totalorder %s15, 0
    %p84 = por %p82, %p83
    %s85 = ssub.s32 %s9, %s16
    %p86 = scmp.eq.s32.totalorder %s85, 0
    %s88 = sadd.s32 %s87, 1
    %s89 = scalar_select %p86, %s87, %s88
    %p92 = pneg %p86
    %p93 = scmp.eq.s32.totalorder %s9, 1
    %p94 = por %p92, %p93
    %p95 = scmp.ne.s32.totalorder %s87, %s90
    %p96 = scmp.eq.s32.totalorder %s9, 0
    %p97 = por %p95, %p96
    %p98 = scmp.ne.s32.totalorder %s87, %s90
    %p99 = scmp.eq.s32.totalorder %s14, 1
    %p100 = por %p98, %p99
    %p101 = scmp.ne.s32.totalorder %s90, %s91
    %p102 = scmp.eq.s32.totalorder %s14, 0
    %p103 = por %p101, %p102
    %p104 = scmp.ne.s32.totalorder %s90, %s91
    %p105 = scmp.eq.s32.totalorder %s15, 1
    %p106 = por %p104, %p105
    %p108 = scmp.ne.s32.totalorder %s91, %s107
    %p109 = scmp.eq.s32.totalorder %s15, 0
    %p110 = por %p108, %p109
    %p111 = scmp.le.s32.totalorder 1, %s9
    %p112 = scmp.lt.s32.totalorder %s9, 3
    %p113 = pnand %p111, %p112
    %p114 = pneg %p113
    // Predicated region
    $region9: #{swin_forward.22} parent=5 // pred_check
      _
    $region10: #{swin_forward.22} parent=5 // pred_check_branch
      %116 = sbr.rel (%p113) target = $region12
    $region11: #{swin_forward.22} parent=5 // pred_region
      %s117 = ssub.s32 %s9, 1
      // Predicated region
      $region13: #{swin_forward.22} parent=11 // pred_check
        %p118 = pneg %p56
      $region14: #{swin_forward.22} parent=11 // pred_check_branch
        %120 = sbr.rel (%p118) target = $region16
      $region15: #{swin_forward.22} parent=11 // pred_region
        _
      $region16: #{swin_forward.22} parent=11 // pred_fallthru
        _
      // Predicated region
      $region17: #{swin_forward.22} parent=11 // pred_check
        %p121 = pneg %p77
      $region18: #{swin_forward.22} parent=11 // pred_check_branch
        %123 = sbr.rel (%p121) target = $region20
      $region19: #{swin_forward.22} parent=11 // pred_region
        _
      $region20: #{swin_forward.22} parent=11 // pred_fallthru
        _
    $region12: #{swin_forward.22} parent=5 // pred_fallthru
      _
    %p124 = scmp.lt.s32.totalorder %s9, 2
    // Predicated region
    $region21: #{swin_forward.22} parent=5 // pred_check
      %p125 = pneg %p124
    $region22: #{swin_forward.22} parent=5 // pred_check_branch
      %127 = sbr.rel (%p125) target = $region24
    $region23: #{swin_forward.22} parent=5 // pred_region
      // Predicated region
      $region25: #{swin_forward.22} parent=23 // pred_check
        %p128 = pneg %p29
      $region26: #{swin_forward.22} parent=23 // pred_check_branch
        %130 = sbr.rel (%p128) target = $region28
      $region27: #{swin_forward.22} parent=23 // pred_region
        %s131 = smul.u32 2, %s9
        %p132 = scmp.lt.s32.totalorder %s131, 3
        %s133 = scalar_select %p132, %s131, 3
        %s134 = smul.addr %s133, 8
        %s135 = scalar_lea.vmem %s0, %s134
        %s136 = smul.u32 2, %s9
      $region28: #{swin_forward.22} parent=23 // pred_fallthru
        _
    $region24: #{swin_forward.22} parent=5 // pred_fallthru
      _
    %p137 = scmp.le.s32.totalorder 1, %s9
    %p138 = scmp.lt.s32.totalorder %s9, 3
    %p139 = pnand %p137, %p138
    %p140 = pneg %p139
    // Predicated region
    $region29: #{swin_forward.22} parent=5 // pred_check
      _
    $region30: #{swin_forward.22} parent=5 // pred_check_branch
      %142 = sbr.rel (%p139) target = $region32
    $region31: #{swin_forward.22} parent=5 // pred_region
      %s143 = ssub.s32 %s9, 1
      %s144 = smul.u32 2, %s14
      %p145 = scmp.lt.s32.totalorder %s144, 3
      %s146 = scalar_select %p145, %s144, 3
      %s147 = smul.addr %s146, 8
      %s148 = scalar_lea.vmem %s0, %s147
      %p149 = pneg %p35
      %p150 = pneg %p32
      %p151 = pneg %p56
      %p152 = pneg %p53
      %p153 = pneg %p77
      %p154 = pneg %p74
      %p155 = pneg %p103
      %p156 = pneg %p100
      %s157 = smul.u32 2, %s14
      %p158 = scmp.lt.s32.totalorder %s157, 3
      %s159 = scalar_select %p158, %s157, 3
      %s160 = smul.addr %s159, 8
      %s161 = scalar_lea.vmem %s3, %s160
      %s162 = smul.u32 2, %s14
      %p163 = scmp.lt.s32.totalorder %s162, 3
      %s164 = scalar_select %p163, %s162, 3
      %s165 = smul.addr %s164, 8
      %s166 = scalar_lea.vmem %s0, %s165
      %s167 = smul.u32 2, %s14
      %s168 = smul.u32 2, %s14
      %p169 = scmp.lt.s32.totalorder %s168, 3
      %s170 = scalar_select %p169, %s168, 3
      %s171 = smul.addr %s170, 8
      %s172 = scalar_lea.vmem %s3, %s171
      %s173 = smul.u32 2, %s14
      %v174 = vld [vmem:[%s166] sm:$0xff]
      %v175 = vld [vmem:[%s166 + $0x8] sm:$0xff]
      %v176 = vld [vmem:[%s1] sm:$0x1]
      %v177 = vld [vmem:[%s2] sm:$0x1]
      %vm178 = vcmask 261120
      %v179 = vsel %vm178, %v174, 0.0
      %180 = vadd.xlane.f32.xlu0 %v179
      %v181 = vpop.xlane.xlu0 %180
      %v182 = vsel %vm178, %v175, 0.0
      %183 = vadd.xlane.f32.xlu0 %v182
      %v184 = vpop.xlane.xlu0 %183
      %v185 = vrcp.pop 32.0
      %v186 = vmul.f32 32.0, %v185
      %v187 = vsub.f32 1.0, %v186
      %v188 = vmul.f32 %v185, %v187
      %v189 = vadd.f32 %v185, %v188
      %vm190 = vweird.f32 %v185
      %v191 = vsel %vm190, %v185, %v189
      %v192 = vmul.f32 %v181, %v191
      %v193 = vmul.f32 %v184, %v191
      %v194 = vsub.f32 %v174, %v192
      %v195 = vsub.f32 %v175, %v193
      %v196 = vmul.f32 %v194, %v194
      %v197 = vmul.f32 %v195, %v195
      %v198 = vsel %vm178, %v196, 0.0
      %199 = vadd.xlane.f32.xlu0 %v198
      %v200 = vpop.xlane.xlu0 %199
      %v201 = vsel %vm178, %v197, 0.0
      %202 = vadd.xlane.f32.xlu0 %v201
      %v203 = vpop.xlane.xlu0 %202
      %v204 = vmul.f32 %v200, %v191
      %v205 = vmul.f32 %v203, %v191
      %v206 = vadd.f32 %v204, 1e-05
      %v207 = vadd.f32 %v205, 1e-05
      %v208 = vrsqrt.pop %v206
      %v209 = vmul.f32 %v208, %v206
      %v210 = vmul.f32 %v209, %v208
      %v211 = vmul.f32 0.5, %v210
      %v212 = vsub.f32 1.5, %v211
      %v213 = vmul.f32 %v208, %v212
      %vm214 = vweird.f32 %v206
      %vm215 = vweird.f32 %v208
      %vm216 = vmor %vm214, %vm215
      %v217 = vsel %vm216, %v208, %v213
      %v218 = vrsqrt.pop %v207
      %v219 = vmul.f32 %v218, %v207
      %v220 = vmul.f32 %v219, %v218
      %v221 = vmul.f32 0.5, %v220
      %v222 = vsub.f32 1.5, %v221
      %v223 = vmul.f32 %v218, %v222
      %vm224 = vweird.f32 %v207
      %vm225 = vweird.f32 %v218
      %vm226 = vmor %vm224, %vm225
      %v227 = vsel %vm226, %v218, %v223
      %v228 = vmul.f32 %v194, %v217
      %v229 = vmul.f32 %v195, %v227
      %v231 = vperm.slane %v176, 0
      %v233 = vmul.f32 %v228, %v231
      %v234 = vmul.f32 %v229, %v231
      %v236 = vperm.slane %v177, 0
      %v238 = vadd.f32 %v233, %v236
      %v239 = vadd.f32 %v234, %v236
      %240 = vst.msk [vmem:[%s172] sm:$0xff] %vm178, %v238
      %241 = vst.msk [vmem:[%s172 + $0x8] sm:$0xff] %vm178, %v239
      %s242 = smul.u32 2, %s14
      %p243 = scmp.lt.s32.totalorder %s242, 3
      %s244 = scalar_select %p243, %s242, 3
      %s245 = smul.addr %s244, 8
      %s246 = scalar_lea.vmem %s3, %s245
      // Predicated region
      $region33: #{swin_forward.22} parent=31 // pred_check
        %p247 = pneg %p100
      $region34: #{swin_forward.22} parent=31 // pred_check_branch
        %249 = sbr.rel (%p247) target = $region36
      $region35: #{swin_forward.22} parent=31 // pred_region
        %s250 = smul.u32 2, %s14
      $region36: #{swin_forward.22} parent=31 // pred_fallthru
        _
    $region32: #{swin_forward.22} parent=5 // pred_fallthru
      _
    %p251 = scmp.le.s32.totalorder 2, %s9
    // Predicated region
    $region37: #{swin_forward.22} parent=5 // pred_check
      %p252 = pneg %p251
    $region38: #{swin_forward.22} parent=5 // pred_check_branch
      %254 = sbr.rel (%p252) target = $region40
    $region39: #{swin_forward.22} parent=5 // pred_region
      %s255 = ssub.s32 %s9, 2
      // Predicated region
      $region41: #{swin_forward.22} parent=39 // pred_check
        %p256 = pneg %p106
      $region42: #{swin_forward.22} parent=39 // pred_check_branch
        %258 = sbr.rel (%p256) target = $region44
      $region43: #{swin_forward.22} parent=39 // pred_region
        %s259 = smul.u32 2, %s15
        %p260 = scmp.lt.s32.totalorder %s259, 3
        %s261 = scalar_select %p260, %s259, 3
        %s262 = smul.addr %s261, 8
        %s263 = scalar_lea.vmem %s3, %s262
      $region44: #{swin_forward.22} parent=39 // pred_fallthru
        _
    $region40: #{swin_forward.22} parent=5 // pred_fallthru
      _
  $region6: #{swin_forward.22} parent=0 // loop_footer
    %s13 = sadd.s32 1, %s9
  $region7: #{swin_forward.22} parent=0 // loop_footer_branch
    %8 = sbr.rel target = $region3
  $region8: #{swin_forward.22} parent=0 // loop_exit
    _

// kernel: swin_forward.23
$region0: #{swin_forward.23}
  #allocation0 [shape = 'u32[]', space=smem, size = 0x4, offset = 0x4, fixed_abs, tag = 'smem constant byte address 0x4 - core index']
  #allocation1 [shape = 'u32[72,128]{1,0:T(1,128)}', space=vmem, size = 0x9000, scoped, tag = 'internal scratch']
  %s0 = inlined_call_operand.vmem [shape: bf16[2,32], index: 0, kind: input, shape index: {}]
  %s1 = inlined_call_operand.vmem [shape: bf16[32,10], index: 1, kind: input, shape index: {}]
  %s2 = inlined_call_operand.vmem [shape: f32[1,10], index: 2, kind: input, shape index: {}]
  %s3 = inlined_call_operand.hbm [shape: f32[2,10], index: 3, kind: output, shape index: {}]
  %s4 = sld [smem:[#allocation0]]
  $region22: #{swin_forward.23} parent=0
    _
  %s6 = ssub.s32 1, %s4
  %s7 = scalar_select 0, %s6, %s4
  $region1: #{swin_forward.23} parent=0
    #allocation2 [shape = 'u8[1024]{0}', space=vmem, size = 0x400, scoped, tag = 'output window, operand 0, single buffered']
    #allocation3 [shape = 's32[1]{0}', space=sflag, size = 0x4, scoped, tag = 'scoped memory for swin_forward.23']
    %8 = vsyncpa [#allocation3], 0
    // Predicated region
    $region2: #{swin_forward.23} parent=1 // pred_check
      _
    $region3: #{swin_forward.23} parent=1 // pred_check_branch
      %10 = sbr.rel (0) target = $region5
    $region4: #{swin_forward.23} parent=1 // pred_region
      _
    $region5: #{swin_forward.23} parent=1 // pred_fallthru
      _
    // Predicated region
    $region6: #{swin_forward.23} parent=1 // pred_check
      _
    $region7: #{swin_forward.23} parent=1 // pred_check_branch
      %12 = sbr.rel (0) target = $region9
    $region8: #{swin_forward.23} parent=1 // pred_region
      _
    $region9: #{swin_forward.23} parent=1 // pred_fallthru
      _
    // Predicated region
    $region10: #{swin_forward.23} parent=1 // pred_check
      _
    $region11: #{swin_forward.23} parent=1 // pred_check_branch
      %14 = sbr.rel (0) target = $region13
    $region12: #{swin_forward.23} parent=1 // pred_region
      _
    $region13: #{swin_forward.23} parent=1 // pred_fallthru
      _
    %v16 = vld [vmem:[%s0] sm:$0x1]
    %v17 = vld [vmem:[%s1] sm:$0xf]
    %v18 = vld [vmem:[%s1 + $0x4] sm:$0xf]
    %v19 = vld [vmem:[%s1 + $0x8] sm:$0xf]
    %v20 = vld [vmem:[%s1 + $0xc] sm:$0xf]
    %v21 = vld [vmem:[%s2] sm:$0x1]
    %v23 = vperm.slane %v21, 0
    %v29 = vunpack.c.l.b16 %v17
    %v30 = vunpack.c.l.b16 %v18
    %v31 = vunpack.c.l.b16 %v19
    %v32 = vunpack.c.l.b16 %v20
    %v33 = vpack.c.b16 %v30, %v29
    %v34 = vpack.c.b16 %v32, %v31
    %vm37 = vcmask 261120
    %v39 = vsel %vm37, %v16, 0
    %41 = vmatpush.bf16.msra.mxu0 0
    %42 = vmatpush.bf16.msra.mxu0 0
    %43 = vmatpush.bf16.msra.mxu0 0
    %44 = vmatpush.bf16.msra.mxu0 0
    %45 = vmatpush.bf16.msra.mxu0 0
    %46 = vmatpush.bf16.msra.mxu0 0
    %47 = vmatpush.bf16.msra.mxu0 %v34
    %48 = vmatpush.bf16.msra.mxu0 %v33
    %49 = vmatmul.bf16.gmra.mxu0 %v39
    %v50 = vpop.f32.mrf.mxu0
    %v51 = vadd.f32 %v23, %v50
    %v52 = vpop.f32.mrf.mxu0
    %53 = vdwg.mxu0
    %vm54 = vcmask 74752
    %55 = vst.msk [vmem:[#allocation2] sm:$0x3] %vm54, %v51
    // Predicated region
    $region14: #{swin_forward.23} parent=1 // pred_check
      _
    $region15: #{swin_forward.23} parent=1 // pred_check_branch
      %57 = sbr.rel (0) target = $region17
    $region16: #{swin_forward.23} parent=1 // pred_region
      %59 = vsyncadd [#allocation3], 0
      %s61 = sshll.u32 [#allocation2], 4
      %s62 = int_to_ptr.vmem [resolvable:$true] %s61
      %s63 = sshll.u32 %s3, 4
      %s64 = int_to_ptr.hbm [resolvable:$true] %s63
      %66 = dma.vmem_to_hbm [thread:$0]  %s62, 32, %s64, [#allocation3]
    $region17: #{swin_forward.23} parent=1 // pred_fallthru
      _
    // Predicated region
    $region18: #{swin_forward.23} parent=1 // pred_check
      _
    $region19: #{swin_forward.23} parent=1 // pred_check_branch
      %68 = sbr.rel (0) target = $region21
    $region20: #{swin_forward.23} parent=1 // pred_region
      %70 = dma.done [#allocation3], 32
    $region21: #{swin_forward.23} parent=1 // pred_fallthru
      _
    %71 = vsyncpa [#allocation3], 1

</llo_original>
